<compile_context>
chip_gen: v6e
topology: v6e:2x2x1
jax: 0.10.0
libtpu: 0.0.40
codegen_flags: <defaults>
</compile_context>

<pallas_src>
import jax
import jax.numpy as jnp
from jax.experimental import pallas as pl
from jax.experimental.pallas import tpu as pltpu


# ----------------------------------------------------------------------------
# Kernel 1: conv1 + ReLU + pool2  ->  conv2 + ReLU + pool2   (per batch element)
# ----------------------------------------------------------------------------
def conv_block_kernel(x_ref, w1_ref, b1_ref, w2_ref, b2_ref, o_ref,
                      s1_ref, pad_ref, s2_ref):
    # ---- conv1: Cin=1, K=9 -> 9 shifted FMAs on the VPU (MXU not worth it),
    #      50 output channels on the lane axis. ------------------------------
    x = x_ref[0]                                      # (30, 30, 1) padded input
    w1 = w1_ref[...]                                  # (9, 50)
    acc1 = jnp.zeros((28, 28, 50), jnp.float32)
    for kh in range(3):
        for kw in range(3):
            t = kh * 3 + kw
            tap = x[kh:kh + 28, kw:kw + 28, :]        # (28, 28, 1)
            acc1 = acc1 + tap * w1[t:t + 1, :]        # -> (28, 28, 50)
    h1 = jnp.maximum(acc1 + b1_ref[...], 0.0)         # bias + ReLU

    # ---- maxpool 2x2 (layer1): H-pairs via leading-dim split, W-pairs via
    #      stride-2 reads of a VMEM scratch. ---------------------------------
    hh1 = jnp.max(h1.reshape(14, 2, 28, 50), axis=1)  # (14, 28, 50)
    s1_ref[...] = hh1
    p1 = jnp.maximum(s1_ref[:, pl.ds(0, 14, stride=2), :],
                     s1_ref[:, pl.ds(1, 14, stride=2), :])     # (14, 14, 50)

    # ---- conv2: im2col taps built in VMEM from a zero-padded scratch,
    #      9 accumulated bf16 MXU matmuls, f32 accumulation.
    #      The tap W-extent is 16 (multiple of 8) so the 3D->2D reshape is a
    #      layout no-op; the 2 extra W columns are garbage and dropped later.
    pad_ref[...] = jnp.zeros_like(pad_ref)            # (16, 18, 50)
    pad_ref[1:15, 1:15, :] = p1
    acc2 = jnp.zeros((224, 20), jnp.float32)          # 224 = 14 * 16
    for kh in range(3):
        for kw in range(3):
            t = kh * 3 + kw
            tap = pad_ref[kh:kh + 14, kw:kw + 16, :]  # (14, 16, 50)
            tap2d = tap.reshape(224, 50).astype(jnp.bfloat16)
            acc2 = acc2 + jnp.dot(tap2d, w2_ref[t],
                                  preferred_element_type=jnp.float32)
    h2 = jnp.maximum(acc2 + b2_ref[...], 0.0)         # (224, 20)

    # ---- maxpool 2x2 (layer2); pooled column 7 comes from the padding
    #      garbage (w=14,15) and is sliced away. -----------------------------
    hh2 = jnp.max(h2.reshape(7, 2, 16, 20), axis=1)   # (7, 16, 20)
    s2_ref[...] = hh2
    p2 = jnp.maximum(s2_ref[:, pl.ds(0, 8, stride=2), :],
                     s2_ref[:, pl.ds(1, 8, stride=2), :])      # (7, 8, 20)
    o_ref[0] = p2[:, 0:7, :]                          # (7, 7, 20)


def conv_block(xpad, w1, b1, w2, b2):
    N = xpad.shape[0]
    return pl.pallas_call(
        conv_block_kernel,
        out_shape=jax.ShapeDtypeStruct((N, 7, 7, 20), jnp.float32),
        grid=(N,),
        in_specs=[
            pl.BlockSpec((1, 30, 30, 1), lambda n: (n, 0, 0, 0)),
            pl.BlockSpec((9, 50), lambda n: (0, 0)),
            pl.BlockSpec((1, 50), lambda n: (0, 0)),
            pl.BlockSpec((9, 50, 20), lambda n: (0, 0, 0)),
            pl.BlockSpec((1, 20), lambda n: (0, 0)),
        ],
        out_specs=pl.BlockSpec((1, 7, 7, 20), lambda n: (n, 0, 0, 0)),
        scratch_shapes=[
            pltpu.VMEM((14, 28, 50), jnp.float32),    # H-pooled conv1
            pltpu.VMEM((16, 18, 50), jnp.float32),    # zero-padded conv2 input
            pltpu.VMEM((7, 16, 20), jnp.float32),     # H-pooled conv2
        ],
        compiler_params=pltpu.CompilerParams(dimension_semantics=("parallel",)),
    )(xpad, w1, b1, w2, b2)


# ----------------------------------------------------------------------------
# Kernel 2: fc1 (980->250) + ReLU + fc2 (250->121), fully fused.
# ----------------------------------------------------------------------------
def mlp_kernel(x_ref, w3_ref, b3_ref, w4_ref, b4_ref, o_ref):
    h = jnp.dot(x_ref[...].astype(jnp.bfloat16), w3_ref[...],
                preferred_element_type=jnp.float32)
    h = jnp.maximum(h + b3_ref[...], 0.0)
    y = jnp.dot(h.astype(jnp.bfloat16), w4_ref[...],
                preferred_element_type=jnp.float32)
    o_ref[...] = y + b4_ref[...]


def mlp(flat, w3, b3, w4, b4):
    N = flat.shape[0]
    return pl.pallas_call(
        mlp_kernel,
        out_shape=jax.ShapeDtypeStruct((N, 121), jnp.float32),
    )(flat, w3, b3, w4, b4)


# ----------------------------------------------------------------------------
# Parameters (PyTorch layouts) + one-time conversion to kernel layouts.
# ----------------------------------------------------------------------------
def init_params(key):
    ks = jax.random.split(key, 8)

    def uni(k, shape, fan_in):
        bound = 1.0 / jnp.sqrt(jnp.float32(fan_in))
        return jax.random.uniform(k, shape, jnp.float32, -bound, bound)

    return {
        "conv1_w": uni(ks[0], (50, 1, 3, 3), 9),       # Conv2d(1, 50, 3, pad=1)
        "conv1_b": uni(ks[1], (50,), 9),
        "conv2_w": uni(ks[2], (20, 50, 3, 3), 450),    # Conv2d(50, 20, 3, pad=1)
        "conv2_b": uni(ks[3], (20,), 450),
        "fc1_w": uni(ks[4], (250, 980), 980),          # Linear(980, 250)
        "fc1_b": uni(ks[5], (250,), 980),
        "fc2_w": uni(ks[6], (121, 250), 250),          # Linear(250, 121)
        "fc2_b": uni(ks[7], (121,), 250),
    }


def prepare_params(p):
    """One-time layout prep: im2col weight layouts, bf16 MXU weights, and the
    PyTorch CHW-flatten permutation folded into the fc1 weight rows."""
    w1 = jnp.transpose(p["conv1_w"], (2, 3, 1, 0)).reshape(9, 50)
    w2 = jnp.transpose(p["conv2_w"], (2, 3, 1, 0)).reshape(9, 50, 20)
    w3 = (p["fc1_w"].reshape(250, 20, 7, 7)
          .transpose(2, 3, 1, 0).reshape(980, 250))    # rows now in NHWC order
    w4 = p["fc2_w"].T
    return {
        "w1": w1.astype(jnp.float32),
        "b1": p["conv1_b"].reshape(1, 50).astype(jnp.float32),
        "w2": w2.astype(jnp.bfloat16),
        "b2": p["conv2_b"].reshape(1, 20).astype(jnp.float32),
        "w3": w3.astype(jnp.bfloat16),
        "b3": p["fc1_b"].reshape(1, 250).astype(jnp.float32),
        "w4": w4.astype(jnp.bfloat16),
        "b4": p["fc2_b"].reshape(1, 121).astype(jnp.float32),
    }


# ----------------------------------------------------------------------------
# Forward
# ----------------------------------------------------------------------------
@jax.jit
def cnn_forward(kp, x_nchw):
    N = x_nchw.shape[0]
    # NCHW with C=1 -> NHWC is a pure reshape; add the 3x3 conv zero border.
    img = x_nchw.reshape(N, 28, 28, 1)
    xpad = jnp.pad(img, ((0, 0), (1, 1), (1, 1), (0, 0)))          # (N,30,30,1)
    h = conv_block(xpad, kp["w1"], kp["b1"], kp["w2"], kp["b2"])   # (N,7,7,20)
    flat = h.reshape(N, 7 * 7 * 20)   # NHWC flatten; fc1 rows pre-permuted
    return mlp(flat, kp["w3"], kp["b3"], kp["w4"], kp["b4"])       # (N,121)


if __name__ == "__main__":
    key = jax.random.PRNGKey(0)
    pkey, xkey = jax.random.split(key)
    params = prepare_params(init_params(pkey))
    # Spatial size must be 28: the Linear expects 20*7*7 after two /2 pools.
    x = jax.random.normal(xkey, (2, 1, 28, 28), dtype=jnp.float32)
    y = jax.block_until_ready(cnn_forward(params, x))
    assert y.shape == (2, 121) and y.dtype == jnp.float32
    print("KERNEL_OK")
</pallas_src>

<mosaic_0001>
module attributes {stable_mosaic.version = 11 : i64} {
  func.func @mlp_kernel(%arg0: memref<2x980xf32, #tpu.memory_space<vmem>>, %arg1: memref<980x250xbf16, #tpu.memory_space<vmem>>, %arg2: memref<1x250xf32, #tpu.memory_space<vmem>>, %arg3: memref<250x121xbf16, #tpu.memory_space<vmem>>, %arg4: memref<1x121xf32, #tpu.memory_space<vmem>>, %arg5: memref<2x121xf32, #tpu.memory_space<vmem>>) attributes {dimension_semantics = [], scalar_prefetch = 0 : i64, scratch_operands = 0 : i64, tpu.core_type = #tpu.core_type<tc>} {
    %c0 = arith.constant 0 : index
    %c0_0 = arith.constant 0 : index
    %0 = vector.load %arg0[%c0, %c0_0] : memref<2x980xf32, #tpu.memory_space<vmem>>, vector<2x980xf32>
    %1 = arith.truncf %0 : vector<2x980xf32> to vector<2x980xbf16>
    %c0_1 = arith.constant 0 : index
    %c0_2 = arith.constant 0 : index
    %2 = vector.load %arg1[%c0_1, %c0_2] : memref<980x250xbf16, #tpu.memory_space<vmem>>, vector<980x250xbf16>
    %cst = arith.constant dense<0.000000e+00> : vector<2x250xf32>
    %3 = tpu.matmul %1, %2, %cst {dimension_numbers = #tpu.dot_dimension_numbers<[1], [0], [0], [1], [0, 0, 1, 1], [], []>} : vector<2x980xbf16>, vector<980x250xbf16>, vector<2x250xf32> -> vector<2x250xf32>
    %c0_3 = arith.constant 0 : index
    %c0_4 = arith.constant 0 : index
    %4 = vector.load %arg2[%c0_3, %c0_4] : memref<1x250xf32, #tpu.memory_space<vmem>>, vector<1x250xf32>
    %5 = vector.broadcast %4 : vector<1x250xf32> to vector<2x250xf32>
    %6 = arith.addf %3, %5 : vector<2x250xf32>
    %cst_5 = arith.constant 0.000000e+00 : f32
    %7 = vector.broadcast %cst_5 : f32 to vector<2x250xf32>
    %8 = arith.maximumf %6, %7 : vector<2x250xf32>
    %9 = arith.truncf %8 : vector<2x250xf32> to vector<2x250xbf16>
    %c0_6 = arith.constant 0 : index
    %c0_7 = arith.constant 0 : index
    %10 = vector.load %arg3[%c0_6, %c0_7] : memref<250x121xbf16, #tpu.memory_space<vmem>>, vector<250x121xbf16>
    %cst_8 = arith.constant dense<0.000000e+00> : vector<2x121xf32>
    %11 = tpu.matmul %9, %10, %cst_8 {dimension_numbers = #tpu.dot_dimension_numbers<[1], [0], [0], [1], [0, 0, 1, 1], [], []>} : vector<2x250xbf16>, vector<250x121xbf16>, vector<2x121xf32> -> vector<2x121xf32>
    %c0_9 = arith.constant 0 : index
    %c0_10 = arith.constant 0 : index
    %12 = vector.load %arg4[%c0_9, %c0_10] : memref<1x121xf32, #tpu.memory_space<vmem>>, vector<1x121xf32>
    %13 = vector.broadcast %12 : vector<1x121xf32> to vector<2x121xf32>
    %14 = arith.addf %11, %13 : vector<2x121xf32>
    %c0_11 = arith.constant 0 : index
    %c0_12 = arith.constant 0 : index
    %15 = vector.load %arg5[%c0_11, %c0_12] : memref<2x121xf32, #tpu.memory_space<vmem>>, vector<2x121xf32>
    tpu.vector_store %arg5[%c0_11, %c0_12], %14 {strides = array<i32>} : memref<2x121xf32, #tpu.memory_space<vmem>>, vector<2x121xf32>,
    return
  }
}

module attributes {stable_mosaic.version = 11 : i64} {
  func.func @conv_block_kernel(%arg0: i32, %arg1: memref<1x30x30x1xf32, #tpu.memory_space<vmem>>, %arg2: memref<9x50xf32, #tpu.memory_space<vmem>>, %arg3: memref<1x50xf32, #tpu.memory_space<vmem>>, %arg4: memref<9x50x20xbf16, #tpu.memory_space<vmem>>, %arg5: memref<1x20xf32, #tpu.memory_space<vmem>>, %arg6: memref<1x7x7x20xf32, #tpu.memory_space<vmem>>, %arg7: memref<14x28x50xf32, #tpu.memory_space<vmem>>, %arg8: memref<16x18x50xf32, #tpu.memory_space<vmem>>, %arg9: memref<7x16x20xf32, #tpu.memory_space<vmem>>) attributes {dimension_semantics = [#tpu.dimension_semantics<parallel>], iteration_bounds = array<i64: 2>, scalar_prefetch = 0 : i64, scratch_operands = 3 : i64, tpu.core_type = #tpu.core_type<tc>, window_params = [{transform_indices = @transform_0, window_bounds = array<i64: 1, 30, 30, 1>}, {pipeline_mode = #tpu.pipeline_mode<synchronous>, transform_indices = @transform_1, window_bounds = array<i64: 9, 50>}, {pipeline_mode = #tpu.pipeline_mode<synchronous>, transform_indices = @transform_2, window_bounds = array<i64: 1, 50>}, {pipeline_mode = #tpu.pipeline_mode<synchronous>, transform_indices = @transform_3, window_bounds = array<i64: 9, 50, 20>}, {pipeline_mode = #tpu.pipeline_mode<synchronous>, transform_indices = @transform_4, window_bounds = array<i64: 1, 20>}, {transform_indices = @transform_5, window_bounds = array<i64: 1, 7, 7, 20>}]} {
    %c0 = arith.constant 0 : index
    %c0_0 = arith.constant 0 : index
    %c0_1 = arith.constant 0 : index
    %c0_2 = arith.constant 0 : index
    %0 = vector.load %arg1[%c0, %c0_0, %c0_1, %c0_2] : memref<1x30x30x1xf32, #tpu.memory_space<vmem>>, vector<1x30x30x1xf32>
    %1 = vector.shape_cast %0 : vector<1x30x30x1xf32> to vector<30x30x1xf32>
    %c0_3 = arith.constant 0 : index
    %c0_4 = arith.constant 0 : index
    %2 = vector.load %arg2[%c0_3, %c0_4] : memref<9x50xf32, #tpu.memory_space<vmem>>, vector<9x50xf32>
    %cst = arith.constant 0.000000e+00 : f32
    %3 = vector.broadcast %cst : f32 to vector<28x28x50xf32>
    %4 = vector.extract_strided_slice %1 {offsets = [0, 0, 0], sizes = [28, 28, 1], strides = [1, 1, 1]} : vector<30x30x1xf32> to vector<28x28x1xf32>
    %5 = vector.extract_strided_slice %2 {offsets = [0, 0], sizes = [1, 50], strides = [1, 1]} : vector<9x50xf32> to vector<1x50xf32>
    %6 = vector.shape_cast %5 : vector<1x50xf32> to vector<1x1x50xf32>
    %7 = vector.broadcast %4 : vector<28x28x1xf32> to vector<28x28x50xf32>
    %8 = vector.broadcast %6 : vector<1x1x50xf32> to vector<28x28x50xf32>
    %9 = arith.mulf %7, %8 : vector<28x28x50xf32>
    %10 = arith.addf %3, %9 : vector<28x28x50xf32>
    %11 = vector.extract_strided_slice %1 {offsets = [0, 1, 0], sizes = [28, 28, 1], strides = [1, 1, 1]} : vector<30x30x1xf32> to vector<28x28x1xf32>
    %12 = vector.extract_strided_slice %2 {offsets = [1, 0], sizes = [1, 50], strides = [1, 1]} : vector<9x50xf32> to vector<1x50xf32>
    %13 = vector.shape_cast %12 : vector<1x50xf32> to vector<1x1x50xf32>
    %14 = vector.broadcast %11 : vector<28x28x1xf32> to vector<28x28x50xf32>
    %15 = vector.broadcast %13 : vector<1x1x50xf32> to vector<28x28x50xf32>
    %16 = arith.mulf %14, %15 : vector<28x28x50xf32>
    %17 = arith.addf %10, %16 : vector<28x28x50xf32>
    %18 = vector.extract_strided_slice %1 {offsets = [0, 2, 0], sizes = [28, 28, 1], strides = [1, 1, 1]} : vector<30x30x1xf32> to vector<28x28x1xf32>
    %19 = vector.extract_strided_slice %2 {offsets = [2, 0], sizes = [1, 50], strides = [1, 1]} : vector<9x50xf32> to vector<1x50xf32>
    %20 = vector.shape_cast %19 : vector<1x50xf32> to vector<1x1x50xf32>
    %21 = vector.broadcast %18 : vector<28x28x1xf32> to vector<28x28x50xf32>
    %22 = vector.broadcast %20 : vector<1x1x50xf32> to vector<28x28x50xf32>
    %23 = arith.mulf %21, %22 : vector<28x28x50xf32>
    %24 = arith.addf %17, %23 : vector<28x28x50xf32>
    %25 = vector.extract_strided_slice %1 {offsets = [1, 0, 0], sizes = [28, 28, 1], strides = [1, 1, 1]} : vector<30x30x1xf32> to vector<28x28x1xf32>
    %26 = vector.extract_strided_slice %2 {offsets = [3, 0], sizes = [1, 50], strides = [1, 1]} : vector<9x50xf32> to vector<1x50xf32>
    %27 = vector.shape_cast %26 : vector<1x50xf32> to vector<1x1x50xf32>
    %28 = vector.broadcast %25 : vector<28x28x1xf32> to vector<28x28x50xf32>
    %29 = vector.broadcast %27 : vector<1x1x50xf32> to vector<28x28x50xf32>
    %30 = arith.mulf %28, %29 : vector<28x28x50xf32>
    %31 = arith.addf %24, %30 : vector<28x28x50xf32>
    %32 = vector.extract_strided_slice %1 {offsets = [1, 1, 0], sizes = [28, 28, 1], strides = [1, 1, 1]} : vector<30x30x1xf32> to vector<28x28x1xf32>
    %33 = vector.extract_strided_slice %2 {offsets = [4, 0], sizes = [1, 50], strides = [1, 1]} : vector<9x50xf32> to vector<1x50xf32>
    %34 = vector.shape_cast %33 : vector<1x50xf32> to vector<1x1x50xf32>
    %35 = vector.broadcast %32 : vector<28x28x1xf32> to vector<28x28x50xf32>
    %36 = vector.broadcast %34 : vector<1x1x50xf32> to vector<28x28x50xf32>
    %37 = arith.mulf %35, %36 : vector<28x28x50xf32>
    %38 = arith.addf %31, %37 : vector<28x28x50xf32>
    %39 = vector.extract_strided_slice %1 {offsets = [1, 2, 0], sizes = [28, 28, 1], strides = [1, 1, 1]} : vector<30x30x1xf32> to vector<28x28x1xf32>
    %40 = vector.extract_strided_slice %2 {offsets = [5, 0], sizes = [1, 50], strides = [1, 1]} : vector<9x50xf32> to vector<1x50xf32>
    %41 = vector.shape_cast %40 : vector<1x50xf32> to vector<1x1x50xf32>
    %42 = vector.broadcast %39 : vector<28x28x1xf32> to vector<28x28x50xf32>
    %43 = vector.broadcast %41 : vector<1x1x50xf32> to vector<28x28x50xf32>
    %44 = arith.mulf %42, %43 : vector<28x28x50xf32>
    %45 = arith.addf %38, %44 : vector<28x28x50xf32>
    %46 = vector.extract_strided_slice %1 {offsets = [2, 0, 0], sizes = [28, 28, 1], strides = [1, 1, 1]} : vector<30x30x1xf32> to vector<28x28x1xf32>
    %47 = vector.extract_strided_slice %2 {offsets = [6, 0], sizes = [1, 50], strides = [1, 1]} : vector<9x50xf32> to vector<1x50xf32>
    %48 = vector.shape_cast %47 : vector<1x50xf32> to vector<1x1x50xf32>
    %49 = vector.broadcast %46 : vector<28x28x1xf32> to vector<28x28x50xf32>
    %50 = vector.broadcast %48 : vector<1x1x50xf32> to vector<28x28x50xf32>
    %51 = arith.mulf %49, %50 : vector<28x28x50xf32>
    %52 = arith.addf %45, %51 : vector<28x28x50xf32>
    %53 = vector.extract_strided_slice %1 {offsets = [2, 1, 0], sizes = [28, 28, 1], strides = [1, 1, 1]} : vector<30x30x1xf32> to vector<28x28x1xf32>
    %54 = vector.extract_strided_slice %2 {offsets = [7, 0], sizes = [1, 50], strides = [1, 1]} : vector<9x50xf32> to vector<1x50xf32>
    %55 = vector.shape_cast %54 : vector<1x50xf32> to vector<1x1x50xf32>
    %56 = vector.broadcast %53 : vector<28x28x1xf32> to vector<28x28x50xf32>
    %57 = vector.broadcast %55 : vector<1x1x50xf32> to vector<28x28x50xf32>
    %58 = arith.mulf %56, %57 : vector<28x28x50xf32>
    %59 = arith.addf %52, %58 : vector<28x28x50xf32>
    %60 = vector.extract_strided_slice %1 {offsets = [2, 2, 0], sizes = [28, 28, 1], strides = [1, 1, 1]} : vector<30x30x1xf32> to vector<28x28x1xf32>
    %61 = vector.extract_strided_slice %2 {offsets = [8, 0], sizes = [1, 50], strides = [1, 1]} : vector<9x50xf32> to vector<1x50xf32>
    %62 = vector.shape_cast %61 : vector<1x50xf32> to vector<1x1x50xf32>
    %63 = vector.broadcast %60 : vector<28x28x1xf32> to vector<28x28x50xf32>
    %64 = vector.broadcast %62 : vector<1x1x50xf32> to vector<28x28x50xf32>
    %65 = arith.mulf %63, %64 : vector<28x28x50xf32>
    %66 = arith.addf %59, %65 : vector<28x28x50xf32>
    %c0_5 = arith.constant 0 : index
    %c0_6 = arith.constant 0 : index
    %67 = vector.load %arg3[%c0_5, %c0_6] : memref<1x50xf32, #tpu.memory_space<vmem>>, vector<1x50xf32>
    %68 = vector.shape_cast %67 : vector<1x50xf32> to vector<1x1x50xf32>
    %69 = vector.broadcast %68 : vector<1x1x50xf32> to vector<28x28x50xf32>
    %70 = arith.addf %66, %69 : vector<28x28x50xf32>
    %cst_7 = arith.constant 0.000000e+00 : f32
    %71 = vector.broadcast %cst_7 : f32 to vector<28x28x50xf32>
    %72 = arith.maximumf %70, %71 : vector<28x28x50xf32>
    %73 = vector.shape_cast %72 : vector<28x28x50xf32> to vector<14x2x28x50xf32>
    %cst_8 = arith.constant dense<0xFF800000> : vector<14x28x50xf32>
    %74 = vector.multi_reduction <maximumf>, %73, %cst_8 [1] : vector<14x2x28x50xf32> to vector<14x28x50xf32>
    %c0_9 = arith.constant 0 : index
    %c0_10 = arith.constant 0 : index
    %c0_11 = arith.constant 0 : index
    %75 = vector.load %arg7[%c0_9, %c0_10, %c0_11] : memref<14x28x50xf32, #tpu.memory_space<vmem>>, vector<14x28x50xf32>
    tpu.vector_store %arg7[%c0_9, %c0_10, %c0_11], %74 {strides = array<i32>} : memref<14x28x50xf32, #tpu.memory_space<vmem>>, vector<14x28x50xf32>,
    %c0_12 = arith.constant 0 : index
    %c0_13 = arith.constant 0 : index
    %c0_14 = arith.constant 0 : index
    %76 = tpu.strided_load %arg7[%c0_12, %c0_13, %c0_14] {strides = array<i32: 1, 2, 1>} : memref<14x28x50xf32, #tpu.memory_space<vmem>>, vector<14x14x50xf32>
    %c0_15 = arith.constant 0 : index
    %c1 = arith.constant 1 : index
    %c0_16 = arith.constant 0 : index
    %77 = tpu.strided_load %arg7[%c0_15, %c1, %c0_16] {strides = array<i32: 1, 2, 1>} : memref<14x28x50xf32, #tpu.memory_space<vmem>>, vector<14x14x50xf32>
    %78 = arith.maximumf %76, %77 : vector<14x14x50xf32>
    %cst_17 = arith.constant 0.000000e+00 : f32
    %79 = vector.broadcast %cst_17 : f32 to vector<16x18x50xf32>
    %c0_18 = arith.constant 0 : index
    %c0_19 = arith.constant 0 : index
    %c0_20 = arith.constant 0 : index
    %80 = vector.load %arg8[%c0_18, %c0_19, %c0_20] : memref<16x18x50xf32, #tpu.memory_space<vmem>>, vector<16x18x50xf32>
    tpu.vector_store %arg8[%c0_18, %c0_19, %c0_20], %79 {strides = array<i32>} : memref<16x18x50xf32, #tpu.memory_space<vmem>>, vector<16x18x50xf32>,
    %c1_21 = arith.constant 1 : index
    %c1_22 = arith.constant 1 : index
    %c0_23 = arith.constant 0 : index
    %81 = vector.load %arg8[%c1_21, %c1_22, %c0_23] : memref<16x18x50xf32, #tpu.memory_space<vmem>>, vector<14x14x50xf32>
    tpu.vector_store %arg8[%c1_21, %c1_22, %c0_23], %78 {strides = array<i32>} : memref<16x18x50xf32, #tpu.memory_space<vmem>>, vector<14x14x50xf32>,
    %cst_24 = arith.constant 0.000000e+00 : f32
    %82 = vector.broadcast %cst_24 : f32 to vector<224x20xf32>
    %c0_25 = arith.constant 0 : index
    %c0_26 = arith.constant 0 : index
    %c0_27 = arith.constant 0 : index
    %83 = vector.load %arg8[%c0_25, %c0_26, %c0_27] : memref<16x18x50xf32, #tpu.memory_space<vmem>>, vector<14x16x50xf32>
    %84 = vector.shape_cast %83 : vector<14x16x50xf32> to vector<224x50xf32>
    %85 = arith.truncf %84 : vector<224x50xf32> to vector<224x50xbf16>
    %c0_28 = arith.constant 0 : index
    %c0_29 = arith.constant 0 : index
    %c0_30 = arith.constant 0 : index
    %86 = vector.load %arg4[%c0_28, %c0_29, %c0_30] : memref<9x50x20xbf16, #tpu.memory_space<vmem>>, vector<1x50x20xbf16>
    %87 = vector.shape_cast %86 : vector<1x50x20xbf16> to vector<50x20xbf16>
    %cst_31 = arith.constant dense<0.000000e+00> : vector<224x20xf32>
    %88 = tpu.matmul %85, %87, %cst_31 {dimension_numbers = #tpu.dot_dimension_numbers<[1], [0], [0], [1], [0, 0, 1, 1], [], []>} : vector<224x50xbf16>, vector<50x20xbf16>, vector<224x20xf32> -> vector<224x20xf32>
    %89 = arith.addf %82, %88 : vector<224x20xf32>
    %c0_32 = arith.constant 0 : index
    %c1_33 = arith.constant 1 : index
    %c0_34 = arith.constant 0 : index
    %90 = vector.load %arg8[%c0_32, %c1_33, %c0_34] : memref<16x18x50xf32, #tpu.memory_space<vmem>>, vector<14x16x50xf32>
    %91 = vector.shape_cast %90 : vector<14x16x50xf32> to vector<224x50xf32>
    %92 = arith.truncf %91 : vector<224x50xf32> to vector<224x50xbf16>
    %c1_35 = arith.constant 1 : index
    %c0_36 = arith.constant 0 : index
    %c0_37 = arith.constant 0 : index
    %93 = vector.load %arg4[%c1_35, %c0_36, %c0_37] : memref<9x50x20xbf16, #tpu.memory_space<vmem>>, vector<1x50x20xbf16>
    %94 = vector.shape_cast %93 : vector<1x50x20xbf16> to vector<50x20xbf16>
    %cst_38 = arith.constant dense<0.000000e+00> : vector<224x20xf32>
    %95 = tpu.matmul %92, %94, %cst_38 {dimension_numbers = #tpu.dot_dimension_numbers<[1], [0], [0], [1], [0, 0, 1, 1], [], []>} : vector<224x50xbf16>, vector<50x20xbf16>, vector<224x20xf32> -> vector<224x20xf32>
    %96 = arith.addf %89, %95 : vector<224x20xf32>
    %c0_39 = arith.constant 0 : index
    %c2 = arith.constant 2 : index
    %c0_40 = arith.constant 0 : index
    %97 = vector.load %arg8[%c0_39, %c2, %c0_40] : memref<16x18x50xf32, #tpu.memory_space<vmem>>, vector<14x16x50xf32>
    %98 = vector.shape_cast %97 : vector<14x16x50xf32> to vector<224x50xf32>
    %99 = arith.truncf %98 : vector<224x50xf32> to vector<224x50xbf16>
    %c2_41 = arith.constant 2 : index
    %c0_42 = arith.constant 0 : index
    %c0_43 = arith.constant 0 : index
    %100 = vector.load %arg4[%c2_41, %c0_42, %c0_43] : memref<9x50x20xbf16, #tpu.memory_space<vmem>>, vector<1x50x20xbf16>
    %101 = vector.shape_cast %100 : vector<1x50x20xbf16> to vector<50x20xbf16>
    %cst_44 = arith.constant dense<0.000000e+00> : vector<224x20xf32>
    %102 = tpu.matmul %99, %101, %cst_44 {dimension_numbers = #tpu.dot_dimension_numbers<[1], [0], [0], [1], [0, 0, 1, 1], [], []>} : vector<224x50xbf16>, vector<50x20xbf16>, vector<224x20xf32> -> vector<224x20xf32>
    %103 = arith.addf %96, %102 : vector<224x20xf32>
    %c1_45 = arith.constant 1 : index
    %c0_46 = arith.constant 0 : index
    %c0_47 = arith.constant 0 : index
    %104 = vector.load %arg8[%c1_45, %c0_46, %c0_47] : memref<16x18x50xf32, #tpu.memory_space<vmem>>, vector<14x16x50xf32>
    %105 = vector.shape_cast %104 : vector<14x16x50xf32> to vector<224x50xf32>
    %106 = arith.truncf %105 : vector<224x50xf32> to vector<224x50xbf16>
    %c3 = arith.constant 3 : index
    %c0_48 = arith.constant 0 : index
    %c0_49 = arith.constant 0 : index
    %107 = vector.load %arg4[%c3, %c0_48, %c0_49] : memref<9x50x20xbf16, #tpu.memory_space<vmem>>, vector<1x50x20xbf16>
    %108 = vector.shape_cast %107 : vector<1x50x20xbf16> to vector<50x20xbf16>
    %cst_50 = arith.constant dense<0.000000e+00> : vector<224x20xf32>
    %109 = tpu.matmul %106, %108, %cst_50 {dimension_numbers = #tpu.dot_dimension_numbers<[1], [0], [0], [1], [0, 0, 1, 1], [], []>} : vector<224x50xbf16>, vector<50x20xbf16>, vector<224x20xf32> -> vector<224x20xf32>
    %110 = arith.addf %103, %109 : vector<224x20xf32>
    %c1_51 = arith.constant 1 : index
    %c1_52 = arith.constant 1 : index
    %c0_53 = arith.constant 0 : index
    %111 = vector.load %arg8[%c1_51, %c1_52, %c0_53] : memref<16x18x50xf32, #tpu.memory_space<vmem>>, vector<14x16x50xf32>
    %112 = vector.shape_cast %111 : vector<14x16x50xf32> to vector<224x50xf32>
    %113 = arith.truncf %112 : vector<224x50xf32> to vector<224x50xbf16>
    %c4 = arith.constant 4 : index
    %c0_54 = arith.constant 0 : index
    %c0_55 = arith.constant 0 : index
    %114 = vector.load %arg4[%c4, %c0_54, %c0_55] : memref<9x50x20xbf16, #tpu.memory_space<vmem>>, vector<1x50x20xbf16>
    %115 = vector.shape_cast %114 : vector<1x50x20xbf16> to vector<50x20xbf16>
    %cst_56 = arith.constant dense<0.000000e+00> : vector<224x20xf32>
    %116 = tpu.matmul %113, %115, %cst_56 {dimension_numbers = #tpu.dot_dimension_numbers<[1], [0], [0], [1], [0, 0, 1, 1], [], []>} : vector<224x50xbf16>, vector<50x20xbf16>, vector<224x20xf32> -> vector<224x20xf32>
    %117 = arith.addf %110, %116 : vector<224x20xf32>
    %c1_57 = arith.constant 1 : index
    %c2_58 = arith.constant 2 : index
    %c0_59 = arith.constant 0 : index
    %118 = vector.load %arg8[%c1_57, %c2_58, %c0_59] : memref<16x18x50xf32, #tpu.memory_space<vmem>>, vector<14x16x50xf32>
    %119 = vector.shape_cast %118 : vector<14x16x50xf32> to vector<224x50xf32>
    %120 = arith.truncf %119 : vector<224x50xf32> to vector<224x50xbf16>
    %c5 = arith.constant 5 : index
    %c0_60 = arith.constant 0 : index
    %c0_61 = arith.constant 0 : index
    %121 = vector.load %arg4[%c5, %c0_60, %c0_61] : memref<9x50x20xbf16, #tpu.memory_space<vmem>>, vector<1x50x20xbf16>
    %122 = vector.shape_cast %121 : vector<1x50x20xbf16> to vector<50x20xbf16>
    %cst_62 = arith.constant dense<0.000000e+00> : vector<224x20xf32>
    %123 = tpu.matmul %120, %122, %cst_62 {dimension_numbers = #tpu.dot_dimension_numbers<[1], [0], [0], [1], [0, 0, 1, 1], [], []>} : vector<224x50xbf16>, vector<50x20xbf16>, vector<224x20xf32> -> vector<224x20xf32>
    %124 = arith.addf %117, %123 : vector<224x20xf32>
    %c2_63 = arith.constant 2 : index
    %c0_64 = arith.constant 0 : index
    %c0_65 = arith.constant 0 : index
    %125 = vector.load %arg8[%c2_63, %c0_64, %c0_65] : memref<16x18x50xf32, #tpu.memory_space<vmem>>, vector<14x16x50xf32>
    %126 = vector.shape_cast %125 : vector<14x16x50xf32> to vector<224x50xf32>
    %127 = arith.truncf %126 : vector<224x50xf32> to vector<224x50xbf16>
    %c6 = arith.constant 6 : index
    %c0_66 = arith.constant 0 : index
    %c0_67 = arith.constant 0 : index
    %128 = vector.load %arg4[%c6, %c0_66, %c0_67] : memref<9x50x20xbf16, #tpu.memory_space<vmem>>, vector<1x50x20xbf16>
    %129 = vector.shape_cast %128 : vector<1x50x20xbf16> to vector<50x20xbf16>
    %cst_68 = arith.constant dense<0.000000e+00> : vector<224x20xf32>
    %130 = tpu.matmul %127, %129, %cst_68 {dimension_numbers = #tpu.dot_dimension_numbers<[1], [0], [0], [1], [0, 0, 1, 1], [], []>} : vector<224x50xbf16>, vector<50x20xbf16>, vector<224x20xf32> -> vector<224x20xf32>
    %131 = arith.addf %124, %130 : vector<224x20xf32>
    %c2_69 = arith.constant 2 : index
    %c1_70 = arith.constant 1 : index
    %c0_71 = arith.constant 0 : index
    %132 = vector.load %arg8[%c2_69, %c1_70, %c0_71] : memref<16x18x50xf32, #tpu.memory_space<vmem>>, vector<14x16x50xf32>
    %133 = vector.shape_cast %132 : vector<14x16x50xf32> to vector<224x50xf32>
    %134 = arith.truncf %133 : vector<224x50xf32> to vector<224x50xbf16>
    %c7 = arith.constant 7 : index
    %c0_72 = arith.constant 0 : index
    %c0_73 = arith.constant 0 : index
    %135 = vector.load %arg4[%c7, %c0_72, %c0_73] : memref<9x50x20xbf16, #tpu.memory_space<vmem>>, vector<1x50x20xbf16>
    %136 = vector.shape_cast %135 : vector<1x50x20xbf16> to vector<50x20xbf16>
    %cst_74 = arith.constant dense<0.000000e+00> : vector<224x20xf32>
    %137 = tpu.matmul %134, %136, %cst_74 {dimension_numbers = #tpu.dot_dimension_numbers<[1], [0], [0], [1], [0, 0, 1, 1], [], []>} : vector<224x50xbf16>, vector<50x20xbf16>, vector<224x20xf32> -> vector<224x20xf32>
    %138 = arith.addf %131, %137 : vector<224x20xf32>
    %c2_75 = arith.constant 2 : index
    %c2_76 = arith.constant 2 : index
    %c0_77 = arith.constant 0 : index
    %139 = vector.load %arg8[%c2_75, %c2_76, %c0_77] : memref<16x18x50xf32, #tpu.memory_space<vmem>>, vector<14x16x50xf32>
    %140 = vector.shape_cast %139 : vector<14x16x50xf32> to vector<224x50xf32>
    %141 = arith.truncf %140 : vector<224x50xf32> to vector<224x50xbf16>
    %c8 = arith.constant 8 : index
    %c0_78 = arith.constant 0 : index
    %c0_79 = arith.constant 0 : index
    %142 = vector.load %arg4[%c8, %c0_78, %c0_79] : memref<9x50x20xbf16, #tpu.memory_space<vmem>>, vector<1x50x20xbf16>
    %143 = vector.shape_cast %142 : vector<1x50x20xbf16> to vector<50x20xbf16>
    %cst_80 = arith.constant dense<0.000000e+00> : vector<224x20xf32>
    %144 = tpu.matmul %141, %143, %cst_80 {dimension_numbers = #tpu.dot_dimension_numbers<[1], [0], [0], [1], [0, 0, 1, 1], [], []>} : vector<224x50xbf16>, vector<50x20xbf16>, vector<224x20xf32> -> vector<224x20xf32>
    %145 = arith.addf %138, %144 : vector<224x20xf32>
    %c0_81 = arith.constant 0 : index
    %c0_82 = arith.constant 0 : index
    %146 = vector.load %arg5[%c0_81, %c0_82] : memref<1x20xf32, #tpu.memory_space<vmem>>, vector<1x20xf32>
    %147 = vector.broadcast %146 : vector<1x20xf32> to vector<224x20xf32>
    %148 = arith.addf %145, %147 : vector<224x20xf32>
    %cst_83 = arith.constant 0.000000e+00 : f32
    %149 = vector.broadcast %cst_83 : f32 to vector<224x20xf32>
    %150 = arith.maximumf %148, %149 : vector<224x20xf32>
    %151 = vector.shape_cast %150 : vector<224x20xf32> to vector<7x2x16x20xf32>
    %cst_84 = arith.constant dense<0xFF800000> : vector<7x16x20xf32>
    %152 = vector.multi_reduction <maximumf>, %151, %cst_84 [1] : vector<7x2x16x20xf32> to vector<7x16x20xf32>
    %c0_85 = arith.constant 0 : index
    %c0_86 = arith.constant 0 : index
    %c0_87 = arith.constant 0 : index
    %153 = vector.load %arg9[%c0_85, %c0_86, %c0_87] : memref<7x16x20xf32, #tpu.memory_space<vmem>>, vector<7x16x20xf32>
    tpu.vector_store %arg9[%c0_85, %c0_86, %c0_87], %152 {strides = array<i32>} : memref<7x16x20xf32, #tpu.memory_space<vmem>>, vector<7x16x20xf32>,
    %c0_88 = arith.constant 0 : index
    %c0_89 = arith.constant 0 : index
    %c0_90 = arith.constant 0 : index
    %154 = tpu.strided_load %arg9[%c0_88, %c0_89, %c0_90] {strides = array<i32: 1, 2, 1>} : memref<7x16x20xf32, #tpu.memory_space<vmem>>, vector<7x8x20xf32>
    %c0_91 = arith.constant 0 : index
    %c1_92 = arith.constant 1 : index
    %c0_93 = arith.constant 0 : index
    %155 = tpu.strided_load %arg9[%c0_91, %c1_92, %c0_93] {strides = array<i32: 1, 2, 1>} : memref<7x16x20xf32, #tpu.memory_space<vmem>>, vector<7x8x20xf32>
    %156 = arith.maximumf %154, %155 : vector<7x8x20xf32>
    %157 = vector.extract_strided_slice %156 {offsets = [0, 0, 0], sizes = [7, 7, 20], strides = [1, 1, 1]} : vector<7x8x20xf32> to vector<7x7x20xf32>
    %c0_94 = arith.constant 0 : index
    %c0_95 = arith.constant 0 : index
    %c0_96 = arith.constant 0 : index
    %c0_97 = arith.constant 0 : index
    %158 = vector.load %arg6[%c0_94, %c0_95, %c0_96, %c0_97] : memref<1x7x7x20xf32, #tpu.memory_space<vmem>>, vector<1x7x7x20xf32>
    %159 = vector.shape_cast %158 : vector<1x7x7x20xf32> to vector<7x7x20xf32>
    %160 = vector.shape_cast %157 : vector<7x7x20xf32> to vector<1x7x7x20xf32>
    tpu.vector_store %arg6[%c0_94, %c0_95, %c0_96, %c0_97], %160 {strides = array<i32>} : memref<1x7x7x20xf32, #tpu.memory_space<vmem>>, vector<1x7x7x20xf32>,
    return
  }
  func.func @transform_0(%arg0: i32) -> (i32, i32, i32, i32) {
    %c0_i32 = arith.constant 0 : i32
    %c0_i32_0 = arith.constant 0 : i32
    %c0_i32_1 = arith.constant 0 : i32
    %c0_i32_2 = arith.constant 0 : i32
    return %arg0, %c0_i32, %c0_i32_0, %c0_i32_1 : i32, i32, i32, i32
  }
  func.func @transform_1(%arg0: i32) -> (i32, i32) {
    %c0_i32 = arith.constant 0 : i32
    %c0_i32_0 = arith.constant 0 : i32
    %c0_i32_1 = arith.constant 0 : i32
    return %c0_i32, %c0_i32_0 : i32, i32
  }
  func.func @transform_2(%arg0: i32) -> (i32, i32) {
    %c0_i32 = arith.constant 0 : i32
    %c0_i32_0 = arith.constant 0 : i32
    %c0_i32_1 = arith.constant 0 : i32
    return %c0_i32, %c0_i32_0 : i32, i32
  }
  func.func @transform_3(%arg0: i32) -> (i32, i32, i32) {
    %c0_i32 = arith.constant 0 : i32
    %c0_i32_0 = arith.constant 0 : i32
    %c0_i32_1 = arith.constant 0 : i32
    %c0_i32_2 = arith.constant 0 : i32
    return %c0_i32, %c0_i32_0, %c0_i32_1 : i32, i32, i32
  }
  func.func @transform_4(%arg0: i32) -> (i32, i32) {
    %c0_i32 = arith.constant 0 : i32
    %c0_i32_0 = arith.constant 0 : i32
    %c0_i32_1 = arith.constant 0 : i32
    return %c0_i32, %c0_i32_0 : i32, i32
  }
  func.func @transform_5(%arg0: i32) -> (i32, i32, i32, i32) {
    %c0_i32 = arith.constant 0 : i32
    %c0_i32_0 = arith.constant 0 : i32
    %c0_i32_1 = arith.constant 0 : i32
    %c0_i32_2 = arith.constant 0 : i32
    return %arg0, %c0_i32, %c0_i32_0, %c0_i32_1 : i32, i32, i32, i32
  }
}

</mosaic_0001>

<llo_original>
// kernel: cnn_forward.3
$region0: #{cnn_forward.3}
  #allocation0 [shape = 'u32[]', space=smem, size = 0x4, offset = 0x4, fixed_abs, tag = 'smem constant byte address 0x4 - core index']
  #allocation1 [shape = 'u32[144,128]{1,0:T(1,128)}', space=vmem, size = 0x12000, scoped, tag = 'internal scratch']
  %s0 = inlined_call_operand.vmem [shape: f32[2,980], index: 0, kind: input, shape index: {}]
  %s1 = inlined_call_operand.vmem [shape: bf16[980,250], index: 1, kind: input, shape index: {}]
  %s2 = inlined_call_operand.vmem [shape: f32[1,250], index: 2, kind: input, shape index: {}]
  %s3 = inlined_call_operand.vmem [shape: bf16[250,121], index: 3, kind: input, shape index: {}]
  %s4 = inlined_call_operand.vmem [shape: f32[1,121], index: 4, kind: input, shape index: {}]
  %s5 = inlined_call_operand.hbm [shape: f32[2,121], index: 5, kind: output, shape index: {}]
  %s6 = sld [smem:[#allocation0]]
  $region30: #{cnn_forward.3} parent=0
    _
  %s8 = ssub.s32 1, %s6
  %s9 = scalar_select 0, %s8, %s6
  $region1: #{cnn_forward.3} parent=0
    #allocation2 [shape = 'u8[1024]{0}', space=vmem, size = 0x400, scoped, tag = 'output window, operand 0, single buffered']
    #allocation3 [shape = 's32[1]{0}', space=sflag, size = 0x4, scoped, tag = 'scoped memory for cnn_forward.3']
    %10 = vsyncpa [#allocation3], 0
    // Predicated region
    $region2: #{cnn_forward.3} parent=1 // pred_check
      _
    $region3: #{cnn_forward.3} parent=1 // pred_check_branch
      %12 = sbr.rel (0) target = $region5
    $region4: #{cnn_forward.3} parent=1 // pred_region
      _
    $region5: #{cnn_forward.3} parent=1 // pred_fallthru
      _
    // Predicated region
    $region6: #{cnn_forward.3} parent=1 // pred_check
      _
    $region7: #{cnn_forward.3} parent=1 // pred_check_branch
      %14 = sbr.rel (0) target = $region9
    $region8: #{cnn_forward.3} parent=1 // pred_region
      _
    $region9: #{cnn_forward.3} parent=1 // pred_fallthru
      _
    // Predicated region
    $region10: #{cnn_forward.3} parent=1 // pred_check
      _
    $region11: #{cnn_forward.3} parent=1 // pred_check_branch
      %16 = sbr.rel (0) target = $region13
    $region12: #{cnn_forward.3} parent=1 // pred_region
      _
    $region13: #{cnn_forward.3} parent=1 // pred_fallthru
      _
    // Predicated region
    $region14: #{cnn_forward.3} parent=1 // pred_check
      _
    $region15: #{cnn_forward.3} parent=1 // pred_check_branch
      %18 = sbr.rel (0) target = $region17
    $region16: #{cnn_forward.3} parent=1 // pred_region
      _
    $region17: #{cnn_forward.3} parent=1 // pred_fallthru
      _
    // Predicated region
    $region18: #{cnn_forward.3} parent=1 // pred_check
      _
    $region19: #{cnn_forward.3} parent=1 // pred_check_branch
      %20 = sbr.rel (0) target = $region21
    $region20: #{cnn_forward.3} parent=1 // pred_region
      _
    $region21: #{cnn_forward.3} parent=1 // pred_fallthru
      _
    %v22 = vld [vmem:[%s0] sm:$0xff]
    %v23 = vld [vmem:[%s0 + $0x8] sm:$0xff]
    %v26 = vcombine.high %v22, %v22
    %v28 = vunpack.c.l.s4 1983009808
    %v29 = vunpack.c.0.s8 %v28
    %v30 = vlaneseq
    %v31 = vshrl.u32 %v30, 7
    %v32 = vsub.s32 %v29, %v31
    %v33 = vrot.slane %v22, %v32
    %v35 = vunpack.c.l.s4 1983009808
    %v36 = vunpack.c.0.s8 %v35
    %v37 = vlaneseq
    %v38 = vshrl.u32 %v37, 7
    %v39 = vsub.s32 %v36, %v38
    %v40 = vrot.slane %v26, %v39
    %v41 = vcombine.high %v33, %v33
    %v42 = vcombine.high %v40, %v40
    %v43 = vcombine.high %v23, %v23
    %v45 = vunpack.c.l.s4 1983009808
    %v46 = vunpack.c.0.s8 %v45
    %v47 = vlaneseq
    %v48 = vshrl.u32 %v47, 7
    %v49 = vsub.s32 %v46, %v48
    %v50 = vrot.slane %v23, %v49
    %v52 = vunpack.c.l.s4 1983009808
    %v53 = vunpack.c.0.s8 %v52
    %v54 = vlaneseq
    %v55 = vshrl.u32 %v54, 7
    %v56 = vsub.s32 %v53, %v55
    %v57 = vrot.slane %v43, %v56
    %v58 = vcombine.high %v50, %v50
    %v59 = vcombine.high %v57, %v57
    %v68 = vpack.c.bf16 %v33, %v33
    %v69 = vpack.c.bf16 %v41, %v41
    %v70 = vpack.c.bf16 %v40, %v40
    %v71 = vpack.c.bf16 %v42, %v42
    %v72 = vpack.c.bf16 %v50, %v50
    %v73 = vpack.c.bf16 %v58, %v58
    %v74 = vpack.c.bf16 %v57, %v57
    %v75 = vpack.c.bf16 %v59, %v59
    %v76 = vld [vmem:[%s1] sm:$0xff]
    %v77 = vld [vmem:[%s1 + $0x8] sm:$0xff]
    %v78 = vld [vmem:[%s1 + $0x10] sm:$0xff]
    %v79 = vld [vmem:[%s1 + $0x18] sm:$0xff]
    %v80 = vld [vmem:[%s1 + $0x20] sm:$0xff]
    %v81 = vld [vmem:[%s1 + $0x28] sm:$0xff]
    %v82 = vld [vmem:[%s1 + $0x30] sm:$0xff]
    %v83 = vld [vmem:[%s1 + $0x38] sm:$0xff]
    %v84 = vld [vmem:[%s1 + $0x40] sm:$0xff]
    %v85 = vld [vmem:[%s1 + $0x48] sm:$0xff]
    %v86 = vld [vmem:[%s1 + $0x50] sm:$0xff]
    %v87 = vld [vmem:[%s1 + $0x58] sm:$0xff]
    %v88 = vld [vmem:[%s1 + $0x60] sm:$0xff]
    %v89 = vld [vmem:[%s1 + $0x68] sm:$0xff]
    %v90 = vld [vmem:[%s1 + $0x70] sm:$0xff]
    %v91 = vld [vmem:[%s1 + $0x78] sm:$0xff]
    %v92 = vld [vmem:[%s1 + $0x80] sm:$0xff]
    %v93 = vld [vmem:[%s1 + $0x88] sm:$0xff]
    %v94 = vld [vmem:[%s1 + $0x90] sm:$0xff]
    %v95 = vld [vmem:[%s1 + $0x98] sm:$0xff]
    %v96 = vld [vmem:[%s1 + $0xa0] sm:$0xff]
    %v97 = vld [vmem:[%s1 + $0xa8] sm:$0xff]
    %v98 = vld [vmem:[%s1 + $0xb0] sm:$0xff]
    %v99 = vld [vmem:[%s1 + $0xb8] sm:$0xff]
    %v100 = vld [vmem:[%s1 + $0xc0] sm:$0xff]
    %v101 = vld [vmem:[%s1 + $0xc8] sm:$0xff]
    %v102 = vld [vmem:[%s1 + $0xd0] sm:$0xff]
    %v103 = vld [vmem:[%s1 + $0xd8] sm:$0xff]
    %v104 = vld [vmem:[%s1 + $0xe0] sm:$0xff]
    %v105 = vld [vmem:[%s1 + $0xe8] sm:$0xff]
    %v106 = vld [vmem:[%s1 + $0xf0] sm:$0xff]
    %v107 = vld [vmem:[%s1 + $0xf8] sm:$0xff]
    %v108 = vld [vmem:[%s1 + $0x100] sm:$0xff]
    %v109 = vld [vmem:[%s1 + $0x108] sm:$0xff]
    %v110 = vld [vmem:[%s1 + $0x110] sm:$0xff]
    %v111 = vld [vmem:[%s1 + $0x118] sm:$0xff]
    %v112 = vld [vmem:[%s1 + $0x120] sm:$0xff]
    %v113 = vld [vmem:[%s1 + $0x128] sm:$0xff]
    %v114 = vld [vmem:[%s1 + $0x130] sm:$0xff]
    %v115 = vld [vmem:[%s1 + $0x138] sm:$0xff]
    %v116 = vld [vmem:[%s1 + $0x140] sm:$0xff]
    %v117 = vld [vmem:[%s1 + $0x148] sm:$0xff]
    %v118 = vld [vmem:[%s1 + $0x150] sm:$0xff]
    %v119 = vld [vmem:[%s1 + $0x158] sm:$0xff]
    %v120 = vld [vmem:[%s1 + $0x160] sm:$0xff]
    %v121 = vld [vmem:[%s1 + $0x168] sm:$0xff]
    %v122 = vld [vmem:[%s1 + $0x170] sm:$0xff]
    %v123 = vld [vmem:[%s1 + $0x178] sm:$0xff]
    %v124 = vld [vmem:[%s1 + $0x180] sm:$0xff]
    %v125 = vld [vmem:[%s1 + $0x188] sm:$0xff]
    %v126 = vld [vmem:[%s1 + $0x190] sm:$0xff]
    %v127 = vld [vmem:[%s1 + $0x198] sm:$0xff]
    %v128 = vld [vmem:[%s1 + $0x1a0] sm:$0xff]
    %v129 = vld [vmem:[%s1 + $0x1a8] sm:$0xff]
    %v130 = vld [vmem:[%s1 + $0x1b0] sm:$0xff]
    %v131 = vld [vmem:[%s1 + $0x1b8] sm:$0xff]
    %v132 = vld [vmem:[%s1 + $0x1c0] sm:$0xff]
    %v133 = vld [vmem:[%s1 + $0x1c8] sm:$0xff]
    %v134 = vld [vmem:[%s1 + $0x1d0] sm:$0xff]
    %v135 = vld [vmem:[%s1 + $0x1d8] sm:$0xff]
    %v136 = vld [vmem:[%s1 + $0x1e0] sm:$0xff]
    %v137 = vld [vmem:[%s1 + $0x1e8] sm:$0xff]
    %v138 = vld [vmem:[%s1 + $0x1f0] sm:$0xff]
    %v139 = vld [vmem:[%s1 + $0x1f8] sm:$0xff]
    %v140 = vld [vmem:[%s1 + $0x200] sm:$0xff]
    %v141 = vld [vmem:[%s1 + $0x208] sm:$0xff]
    %v142 = vld [vmem:[%s1 + $0x210] sm:$0xff]
    %v143 = vld [vmem:[%s1 + $0x218] sm:$0xff]
    %v144 = vld [vmem:[%s1 + $0x220] sm:$0xff]
    %v145 = vld [vmem:[%s1 + $0x228] sm:$0xff]
    %v146 = vld [vmem:[%s1 + $0x230] sm:$0xff]
    %v147 = vld [vmem:[%s1 + $0x238] sm:$0xff]
    %v148 = vld [vmem:[%s1 + $0x240] sm:$0xff]
    %v149 = vld [vmem:[%s1 + $0x248] sm:$0xff]
    %v150 = vld [vmem:[%s1 + $0x250] sm:$0xff]
    %v151 = vld [vmem:[%s1 + $0x258] sm:$0xff]
    %v152 = vld [vmem:[%s1 + $0x260] sm:$0xff]
    %v153 = vld [vmem:[%s1 + $0x268] sm:$0xff]
    %v154 = vld [vmem:[%s1 + $0x270] sm:$0xff]
    %v155 = vld [vmem:[%s1 + $0x278] sm:$0xff]
    %v156 = vld [vmem:[%s1 + $0x280] sm:$0xff]
    %v157 = vld [vmem:[%s1 + $0x288] sm:$0xff]
    %v158 = vld [vmem:[%s1 + $0x290] sm:$0xff]
    %v159 = vld [vmem:[%s1 + $0x298] sm:$0xff]
    %v160 = vld [vmem:[%s1 + $0x2a0] sm:$0xff]
    %v161 = vld [vmem:[%s1 + $0x2a8] sm:$0xff]
    %v162 = vld [vmem:[%s1 + $0x2b0] sm:$0xff]
    %v163 = vld [vmem:[%s1 + $0x2b8] sm:$0xff]
    %v164 = vld [vmem:[%s1 + $0x2c0] sm:$0xff]
    %v165 = vld [vmem:[%s1 + $0x2c8] sm:$0xff]
    %v166 = vld [vmem:[%s1 + $0x2d0] sm:$0xff]
    %v167 = vld [vmem:[%s1 + $0x2d8] sm:$0xff]
    %v168 = vld [vmem:[%s1 + $0x2e0] sm:$0xff]
    %v169 = vld [vmem:[%s1 + $0x2e8] sm:$0xff]
    %v170 = vld [vmem:[%s1 + $0x2f0] sm:$0xff]
    %v171 = vld [vmem:[%s1 + $0x2f8] sm:$0xff]
    %v172 = vld [vmem:[%s1 + $0x300] sm:$0xff]
    %v173 = vld [vmem:[%s1 + $0x308] sm:$0xff]
    %v174 = vld [vmem:[%s1 + $0x310] sm:$0xff]
    %v175 = vld [vmem:[%s1 + $0x318] sm:$0xff]
    %v176 = vld [vmem:[%s1 + $0x320] sm:$0xff]
    %v177 = vld [vmem:[%s1 + $0x328] sm:$0xff]
    %v178 = vld [vmem:[%s1 + $0x330] sm:$0xff]
    %v179 = vld [vmem:[%s1 + $0x338] sm:$0xff]
    %v180 = vld [vmem:[%s1 + $0x340] sm:$0xff]
    %v181 = vld [vmem:[%s1 + $0x348] sm:$0xff]
    %v182 = vld [vmem:[%s1 + $0x350] sm:$0xff]
    %v183 = vld [vmem:[%s1 + $0x358] sm:$0xff]
    %v184 = vld [vmem:[%s1 + $0x360] sm:$0xff]
    %v185 = vld [vmem:[%s1 + $0x368] sm:$0xff]
    %v186 = vld [vmem:[%s1 + $0x370] sm:$0xff]
    %v187 = vld [vmem:[%s1 + $0x378] sm:$0xff]
    %v188 = vld [vmem:[%s1 + $0x380] sm:$0xff]
    %v189 = vld [vmem:[%s1 + $0x388] sm:$0xff]
    %v190 = vld [vmem:[%s1 + $0x390] sm:$0xff]
    %v191 = vld [vmem:[%s1 + $0x398] sm:$0xff]
    %v192 = vld [vmem:[%s1 + $0x3a0] sm:$0xff]
    %v193 = vld [vmem:[%s1 + $0x3a8] sm:$0xff]
    %v194 = vld [vmem:[%s1 + $0x3b0] sm:$0xff]
    %v195 = vld [vmem:[%s1 + $0x3b8] sm:$0xff]
    %v196 = vld [vmem:[%s1 + $0x3c0] sm:$0xff]
    %v197 = vld [vmem:[%s1 + $0x3c8] sm:$0xff]
    %v198 = vld [vmem:[%s1 + $0x3d0] sm:$0x33]
    %v199 = vld [vmem:[%s2] sm:$0x3]
    %v201 = vlaneseq
    %v202 = vshrl.u32 %v201, 7
    %v203 = vsub.s32 0, %v202
    %v204 = vrot.slane %v199, %v203
    %v205 = vlaneseq
    %v206 = vshrl.u32 %v205, 7
    %v207 = vsub.s32 1, %v206
    %v208 = vrot.slane %v199, %v207
    %v334 = vunpack.c.l.b16 %v76
    %v335 = vunpack.c.h.b16 %v76
    %v336 = vunpack.c.l.b16 %v77
    %v337 = vunpack.c.h.b16 %v77
    %v338 = vunpack.c.l.b16 %v78
    %v339 = vunpack.c.h.b16 %v78
    %v340 = vunpack.c.l.b16 %v79
    %v341 = vunpack.c.h.b16 %v79
    %v342 = vunpack.c.l.b16 %v80
    %v343 = vunpack.c.h.b16 %v80
    %v344 = vunpack.c.l.b16 %v81
    %v345 = vunpack.c.h.b16 %v81
    %v346 = vunpack.c.l.b16 %v82
    %v347 = vunpack.c.h.b16 %v82
    %v348 = vunpack.c.l.b16 %v83
    %v349 = vunpack.c.h.b16 %v83
    %v350 = vunpack.c.l.b16 %v84
    %v351 = vunpack.c.h.b16 %v84
    %v352 = vunpack.c.l.b16 %v85
    %v353 = vunpack.c.h.b16 %v85
    %v354 = vunpack.c.l.b16 %v86
    %v355 = vunpack.c.h.b16 %v86
    %v356 = vunpack.c.l.b16 %v87
    %v357 = vunpack.c.h.b16 %v87
    %v358 = vunpack.c.l.b16 %v88
    %v359 = vunpack.c.h.b16 %v88
    %v360 = vunpack.c.l.b16 %v89
    %v361 = vunpack.c.h.b16 %v89
    %v362 = vunpack.c.l.b16 %v90
    %v363 = vunpack.c.h.b16 %v90
    %v364 = vunpack.c.l.b16 %v91
    %v365 = vunpack.c.h.b16 %v91
    %v366 = vunpack.c.l.b16 %v92
    %v367 = vunpack.c.h.b16 %v92
    %v368 = vunpack.c.l.b16 %v93
    %v369 = vunpack.c.h.b16 %v93
    %v370 = vunpack.c.l.b16 %v94
    %v371 = vunpack.c.h.b16 %v94
    %v372 = vunpack.c.l.b16 %v95
    %v373 = vunpack.c.h.b16 %v95
    %v374 = vunpack.c.l.b16 %v96
    %v375 = vunpack.c.h.b16 %v96
    %v376 = vunpack.c.l.b16 %v97
    %v377 = vunpack.c.h.b16 %v97
    %v378 = vunpack.c.l.b16 %v98
    %v379 = vunpack.c.h.b16 %v98
    %v380 = vunpack.c.l.b16 %v99
    %v381 = vunpack.c.h.b16 %v99
    %v382 = vunpack.c.l.b16 %v100
    %v383 = vunpack.c.h.b16 %v100
    %v384 = vunpack.c.l.b16 %v101
    %v385 = vunpack.c.h.b16 %v101
    %v386 = vunpack.c.l.b16 %v102
    %v387 = vunpack.c.h.b16 %v102
    %v388 = vunpack.c.l.b16 %v103
    %v389 = vunpack.c.h.b16 %v103
    %v390 = vunpack.c.l.b16 %v104
    %v391 = vunpack.c.h.b16 %v104
    %v392 = vunpack.c.l.b16 %v105
    %v393 = vunpack.c.h.b16 %v105
    %v394 = vunpack.c.l.b16 %v106
    %v395 = vunpack.c.h.b16 %v106
    %v396 = vunpack.c.l.b16 %v107
    %v397 = vunpack.c.h.b16 %v107
    %v398 = vunpack.c.l.b16 %v108
    %v399 = vunpack.c.h.b16 %v108
    %v400 = vunpack.c.l.b16 %v109
    %v401 = vunpack.c.h.b16 %v109
    %v402 = vunpack.c.l.b16 %v110
    %v403 = vunpack.c.h.b16 %v110
    %v404 = vunpack.c.l.b16 %v111
    %v405 = vunpack.c.h.b16 %v111
    %v406 = vunpack.c.l.b16 %v112
    %v407 = vunpack.c.h.b16 %v112
    %v408 = vunpack.c.l.b16 %v113
    %v409 = vunpack.c.h.b16 %v113
    %v410 = vunpack.c.l.b16 %v114
    %v411 = vunpack.c.h.b16 %v114
    %v412 = vunpack.c.l.b16 %v115
    %v413 = vunpack.c.h.b16 %v115
    %v414 = vunpack.c.l.b16 %v116
    %v415 = vunpack.c.h.b16 %v116
    %v416 = vunpack.c.l.b16 %v117
    %v417 = vunpack.c.h.b16 %v117
    %v418 = vunpack.c.l.b16 %v118
    %v419 = vunpack.c.h.b16 %v118
    %v420 = vunpack.c.l.b16 %v119
    %v421 = vunpack.c.h.b16 %v119
    %v422 = vunpack.c.l.b16 %v120
    %v423 = vunpack.c.h.b16 %v120
    %v424 = vunpack.c.l.b16 %v121
    %v425 = vunpack.c.h.b16 %v121
    %v426 = vunpack.c.l.b16 %v122
    %v427 = vunpack.c.h.b16 %v122
    %v428 = vunpack.c.l.b16 %v123
    %v429 = vunpack.c.h.b16 %v123
    %v430 = vunpack.c.l.b16 %v124
    %v431 = vunpack.c.h.b16 %v124
    %v432 = vunpack.c.l.b16 %v125
    %v433 = vunpack.c.h.b16 %v125
    %v434 = vunpack.c.l.b16 %v126
    %v435 = vunpack.c.h.b16 %v126
    %v436 = vunpack.c.l.b16 %v127
    %v437 = vunpack.c.h.b16 %v127
    %v438 = vunpack.c.l.b16 %v128
    %v439 = vunpack.c.h.b16 %v128
    %v440 = vunpack.c.l.b16 %v129
    %v441 = vunpack.c.h.b16 %v129
    %v442 = vunpack.c.l.b16 %v130
    %v443 = vunpack.c.h.b16 %v130
    %v444 = vunpack.c.l.b16 %v131
    %v445 = vunpack.c.h.b16 %v131
    %v446 = vunpack.c.l.b16 %v132
    %v447 = vunpack.c.h.b16 %v132
    %v448 = vunpack.c.l.b16 %v133
    %v449 = vunpack.c.h.b16 %v133
    %v450 = vunpack.c.l.b16 %v134
    %v451 = vunpack.c.h.b16 %v134
    %v452 = vunpack.c.l.b16 %v135
    %v453 = vunpack.c.h.b16 %v135
    %v454 = vunpack.c.l.b16 %v136
    %v455 = vunpack.c.h.b16 %v136
    %v456 = vunpack.c.l.b16 %v137
    %v457 = vunpack.c.h.b16 %v137
    %v458 = vunpack.c.l.b16 %v138
    %v459 = vunpack.c.h.b16 %v138
    %v460 = vunpack.c.l.b16 %v139
    %v461 = vunpack.c.h.b16 %v139
    %v462 = vunpack.c.l.b16 %v140
    %v463 = vunpack.c.h.b16 %v140
    %v464 = vunpack.c.l.b16 %v141
    %v465 = vunpack.c.h.b16 %v141
    %v466 = vunpack.c.l.b16 %v142
    %v467 = vunpack.c.h.b16 %v142
    %v468 = vunpack.c.l.b16 %v143
    %v469 = vunpack.c.h.b16 %v143
    %v470 = vunpack.c.l.b16 %v144
    %v471 = vunpack.c.h.b16 %v144
    %v472 = vunpack.c.l.b16 %v145
    %v473 = vunpack.c.h.b16 %v145
    %v474 = vunpack.c.l.b16 %v146
    %v475 = vunpack.c.h.b16 %v146
    %v476 = vunpack.c.l.b16 %v147
    %v477 = vunpack.c.h.b16 %v147
    %v478 = vunpack.c.l.b16 %v148
    %v479 = vunpack.c.h.b16 %v148
    %v480 = vunpack.c.l.b16 %v149
    %v481 = vunpack.c.h.b16 %v149
    %v482 = vunpack.c.l.b16 %v150
    %v483 = vunpack.c.h.b16 %v150
    %v484 = vunpack.c.l.b16 %v151
    %v485 = vunpack.c.h.b16 %v151
    %v486 = vunpack.c.l.b16 %v152
    %v487 = vunpack.c.h.b16 %v152
    %v488 = vunpack.c.l.b16 %v153
    %v489 = vunpack.c.h.b16 %v153
    %v490 = vunpack.c.l.b16 %v154
    %v491 = vunpack.c.h.b16 %v154
    %v492 = vunpack.c.l.b16 %v155
    %v493 = vunpack.c.h.b16 %v155
    %v494 = vunpack.c.l.b16 %v156
    %v495 = vunpack.c.h.b16 %v156
    %v496 = vunpack.c.l.b16 %v157
    %v497 = vunpack.c.h.b16 %v157
    %v498 = vunpack.c.l.b16 %v158
    %v499 = vunpack.c.h.b16 %v158
    %v500 = vunpack.c.l.b16 %v159
    %v501 = vunpack.c.h.b16 %v159
    %v502 = vunpack.c.l.b16 %v160
    %v503 = vunpack.c.h.b16 %v160
    %v504 = vunpack.c.l.b16 %v161
    %v505 = vunpack.c.h.b16 %v161
    %v506 = vunpack.c.l.b16 %v162
    %v507 = vunpack.c.h.b16 %v162
    %v508 = vunpack.c.l.b16 %v163
    %v509 = vunpack.c.h.b16 %v163
    %v510 = vunpack.c.l.b16 %v164
    %v511 = vunpack.c.h.b16 %v164
    %v512 = vunpack.c.l.b16 %v165
    %v513 = vunpack.c.h.b16 %v165
    %v514 = vunpack.c.l.b16 %v166
    %v515 = vunpack.c.h.b16 %v166
    %v516 = vunpack.c.l.b16 %v167
    %v517 = vunpack.c.h.b16 %v167
    %v518 = vunpack.c.l.b16 %v168
    %v519 = vunpack.c.h.b16 %v168
    %v520 = vunpack.c.l.b16 %v169
    %v521 = vunpack.c.h.b16 %v169
    %v522 = vunpack.c.l.b16 %v170
    %v523 = vunpack.c.h.b16 %v170
    %v524 = vunpack.c.l.b16 %v171
    %v525 = vunpack.c.h.b16 %v171
    %v526 = vunpack.c.l.b16 %v172
    %v527 = vunpack.c.h.b16 %v172
    %v528 = vunpack.c.l.b16 %v173
    %v529 = vunpack.c.h.b16 %v173
    %v530 = vunpack.c.l.b16 %v174
    %v531 = vunpack.c.h.b16 %v174
    %v532 = vunpack.c.l.b16 %v175
    %v533 = vunpack.c.h.b16 %v175
    %v534 = vunpack.c.l.b16 %v176
    %v535 = vunpack.c.h.b16 %v176
    %v536 = vunpack.c.l.b16 %v177
    %v537 = vunpack.c.h.b16 %v177
    %v538 = vunpack.c.l.b16 %v178
    %v539 = vunpack.c.h.b16 %v178
    %v540 = vunpack.c.l.b16 %v179
    %v541 = vunpack.c.h.b16 %v179
    %v542 = vunpack.c.l.b16 %v180
    %v543 = vunpack.c.h.b16 %v180
    %v544 = vunpack.c.l.b16 %v181
    %v545 = vunpack.c.h.b16 %v181
    %v546 = vunpack.c.l.b16 %v182
    %v547 = vunpack.c.h.b16 %v182
    %v548 = vunpack.c.l.b16 %v183
    %v549 = vunpack.c.h.b16 %v183
    %v550 = vunpack.c.l.b16 %v184
    %v551 = vunpack.c.h.b16 %v184
    %v552 = vunpack.c.l.b16 %v185
    %v553 = vunpack.c.h.b16 %v185
    %v554 = vunpack.c.l.b16 %v186
    %v555 = vunpack.c.h.b16 %v186
    %v556 = vunpack.c.l.b16 %v187
    %v557 = vunpack.c.h.b16 %v187
    %v558 = vunpack.c.l.b16 %v188
    %v559 = vunpack.c.h.b16 %v188
    %v560 = vunpack.c.l.b16 %v189
    %v561 = vunpack.c.h.b16 %v189
    %v562 = vunpack.c.l.b16 %v190
    %v563 = vunpack.c.h.b16 %v190
    %v564 = vunpack.c.l.b16 %v191
    %v565 = vunpack.c.h.b16 %v191
    %v566 = vunpack.c.l.b16 %v192
    %v567 = vunpack.c.h.b16 %v192
    %v568 = vunpack.c.l.b16 %v193
    %v569 = vunpack.c.h.b16 %v193
    %v570 = vunpack.c.l.b16 %v194
    %v571 = vunpack.c.h.b16 %v194
    %v572 = vunpack.c.l.b16 %v195
    %v573 = vunpack.c.h.b16 %v195
    %v574 = vunpack.c.l.b16 %v196
    %v575 = vunpack.c.h.b16 %v196
    %v576 = vunpack.c.l.b16 %v197
    %v577 = vunpack.c.h.b16 %v197
    %v578 = vunpack.c.l.b16 %v198
    %v579 = vunpack.c.h.b16 %v198
    %v580 = vpack.c.b16 %v336, %v334
    %v581 = vpack.c.b16 %v337, %v335
    %v582 = vpack.c.b16 %v340, %v338
    %v583 = vpack.c.b16 %v341, %v339
    %v584 = vpack.c.b16 %v344, %v342
    %v585 = vpack.c.b16 %v345, %v343
    %v586 = vpack.c.b16 %v348, %v346
    %v587 = vpack.c.b16 %v349, %v347
    %v588 = vpack.c.b16 %v352, %v350
    %v589 = vpack.c.b16 %v353, %v351
    %v590 = vpack.c.b16 %v356, %v354
    %v591 = vpack.c.b16 %v357, %v355
    %v592 = vpack.c.b16 %v360, %v358
    %v593 = vpack.c.b16 %v361, %v359
    %v594 = vpack.c.b16 %v364, %v362
    %v595 = vpack.c.b16 %v365, %v363
    %v596 = vpack.c.b16 %v368, %v366
    %v597 = vpack.c.b16 %v369, %v367
    %v598 = vpack.c.b16 %v372, %v370
    %v599 = vpack.c.b16 %v373, %v371
    %v600 = vpack.c.b16 %v376, %v374
    %v601 = vpack.c.b16 %v377, %v375
    %v602 = vpack.c.b16 %v380, %v378
    %v603 = vpack.c.b16 %v381, %v379
    %v604 = vpack.c.b16 %v384, %v382
    %v605 = vpack.c.b16 %v385, %v383
    %v606 = vpack.c.b16 %v388, %v386
    %v607 = vpack.c.b16 %v389, %v387
    %v608 = vpack.c.b16 %v392, %v390
    %v609 = vpack.c.b16 %v393, %v391
    %v610 = vpack.c.b16 %v396, %v394
    %v611 = vpack.c.b16 %v397, %v395
    %v612 = vpack.c.b16 %v400, %v398
    %v613 = vpack.c.b16 %v401, %v399
    %v614 = vpack.c.b16 %v404, %v402
    %v615 = vpack.c.b16 %v405, %v403
    %v616 = vpack.c.b16 %v408, %v406
    %v617 = vpack.c.b16 %v409, %v407
    %v618 = vpack.c.b16 %v412, %v410
    %v619 = vpack.c.b16 %v413, %v411
    %v620 = vpack.c.b16 %v416, %v414
    %v621 = vpack.c.b16 %v417, %v415
    %v622 = vpack.c.b16 %v420, %v418
    %v623 = vpack.c.b16 %v421, %v419
    %v624 = vpack.c.b16 %v424, %v422
    %v625 = vpack.c.b16 %v425, %v423
    %v626 = vpack.c.b16 %v428, %v426
    %v627 = vpack.c.b16 %v429, %v427
    %v628 = vpack.c.b16 %v432, %v430
    %v629 = vpack.c.b16 %v433, %v431
    %v630 = vpack.c.b16 %v436, %v434
    %v631 = vpack.c.b16 %v437, %v435
    %v632 = vpack.c.b16 %v440, %v438
    %v633 = vpack.c.b16 %v441, %v439
    %v634 = vpack.c.b16 %v444, %v442
    %v635 = vpack.c.b16 %v445, %v443
    %v636 = vpack.c.b16 %v448, %v446
    %v637 = vpack.c.b16 %v449, %v447
    %v638 = vpack.c.b16 %v452, %v450
    %v639 = vpack.c.b16 %v453, %v451
    %v640 = vpack.c.b16 %v456, %v454
    %v641 = vpack.c.b16 %v457, %v455
    %v642 = vpack.c.b16 %v460, %v458
    %v643 = vpack.c.b16 %v461, %v459
    %v644 = vpack.c.b16 %v464, %v462
    %v645 = vpack.c.b16 %v465, %v463
    %v646 = vpack.c.b16 %v468, %v466
    %v647 = vpack.c.b16 %v469, %v467
    %v648 = vpack.c.b16 %v472, %v470
    %v649 = vpack.c.b16 %v473, %v471
    %v650 = vpack.c.b16 %v476, %v474
    %v651 = vpack.c.b16 %v477, %v475
    %v652 = vpack.c.b16 %v480, %v478
    %v653 = vpack.c.b16 %v481, %v479
    %v654 = vpack.c.b16 %v484, %v482
    %v655 = vpack.c.b16 %v485, %v483
    %v656 = vpack.c.b16 %v488, %v486
    %v657 = vpack.c.b16 %v489, %v487
    %v658 = vpack.c.b16 %v492, %v490
    %v659 = vpack.c.b16 %v493, %v491
    %v660 = vpack.c.b16 %v496, %v494
    %v661 = vpack.c.b16 %v497, %v495
    %v662 = vpack.c.b16 %v500, %v498
    %v663 = vpack.c.b16 %v501, %v499
    %v664 = vpack.c.b16 %v504, %v502
    %v665 = vpack.c.b16 %v505, %v503
    %v666 = vpack.c.b16 %v508, %v506
    %v667 = vpack.c.b16 %v509, %v507
    %v668 = vpack.c.b16 %v512, %v510
    %v669 = vpack.c.b16 %v513, %v511
    %v670 = vpack.c.b16 %v516, %v514
    %v671 = vpack.c.b16 %v517, %v515
    %v672 = vpack.c.b16 %v520, %v518
    %v673 = vpack.c.b16 %v521, %v519
    %v674 = vpack.c.b16 %v524, %v522
    %v675 = vpack.c.b16 %v525, %v523
    %v676 = vpack.c.b16 %v528, %v526
    %v677 = vpack.c.b16 %v529, %v527
    %v678 = vpack.c.b16 %v532, %v530
    %v679 = vpack.c.b16 %v533, %v531
    %v680 = vpack.c.b16 %v536, %v534
    %v681 = vpack.c.b16 %v537, %v535
    %v682 = vpack.c.b16 %v540, %v538
    %v683 = vpack.c.b16 %v541, %v539
    %v684 = vpack.c.b16 %v544, %v542
    %v685 = vpack.c.b16 %v545, %v543
    %v686 = vpack.c.b16 %v548, %v546
    %v687 = vpack.c.b16 %v549, %v547
    %v688 = vpack.c.b16 %v552, %v550
    %v689 = vpack.c.b16 %v553, %v551
    %v690 = vpack.c.b16 %v556, %v554
    %v691 = vpack.c.b16 %v557, %v555
    %v692 = vpack.c.b16 %v560, %v558
    %v693 = vpack.c.b16 %v561, %v559
    %v694 = vpack.c.b16 %v564, %v562
    %v695 = vpack.c.b16 %v565, %v563
    %v696 = vpack.c.b16 %v568, %v566
    %v697 = vpack.c.b16 %v569, %v567
    %v698 = vpack.c.b16 %v572, %v570
    %v699 = vpack.c.b16 %v573, %v571
    %v700 = vpack.c.b16 %v576, %v574
    %v701 = vpack.c.b16 %v577, %v575
    %v702 = vpack.c.b16 %v578, %v578
    %v703 = vpack.c.b16 %v579, %v579
    %vm826 = vcmask 687104
    %v828 = vsel %vm826, %v75, 0
    %vm830 = vcmask 1041408
    %v832 = vsel %vm830, %v702, 0
    %v835 = vsel %vm830, %v703, 0
    %837 = vmatprep.subr.bf16.mxu0 %v595
    %838 = vmatpush1.bf16.msra.mxu0 %v594
    %839 = vmatprep.subr.bf16.mxu0 %v593
    %840 = vmatpush1.bf16.msra.mxu0 %v592
    %841 = vmatprep.subr.bf16.mxu0 %v591
    %842 = vmatpush1.bf16.msra.mxu0 %v590
    %843 = vmatprep.subr.bf16.mxu0 %v589
    %844 = vmatpush1.bf16.msra.mxu0 %v588
    %845 = vmatprep.subr.bf16.mxu0 %v587
    %846 = vmatpush1.bf16.msra.mxu0 %v586
    %847 = vmatprep.subr.bf16.mxu0 %v585
    %848 = vmatpush1.bf16.msra.mxu0 %v584
    %849 = vmatprep.subr.bf16.mxu0 %v583
    %850 = vmatpush1.bf16.msra.mxu0 %v582
    %851 = vmatprep.subr.bf16.mxu0 %v581
    %852 = vmatpush1.bf16.msra.mxu0 %v580
    %853 = vmatprep.subr.bf16.mxu0 %v611
    %854 = vmatpush2.bf16.msra.mxu0 %v610
    %855 = vmatprep.subr.bf16.mxu0 %v609
    %856 = vmatpush2.bf16.msra.mxu0 %v608
    %857 = vmatprep.subr.bf16.mxu0 %v607
    %858 = vmatpush2.bf16.msra.mxu0 %v606
    %859 = vmatprep.subr.bf16.mxu0 %v605
    %860 = vmatpush2.bf16.msra.mxu0 %v604
    %861 = vmatprep.subr.bf16.mxu0 %v603
    %862 = vmatpush2.bf16.msra.mxu0 %v602
    %863 = vmatprep.subr.bf16.mxu0 %v601
    %864 = vmatpush2.bf16.msra.mxu0 %v600
    %865 = vmatprep.subr.bf16.mxu0 %v599
    %866 = vmatpush2.bf16.msra.mxu0 %v598
    %867 = vmatprep.subr.bf16.mxu0 %v597
    %868 = vmatpush2.bf16.msra.mxu0 %v596
    %869 = vmatprep.mubr.bf16.mxu0 %v69
    %870 = vmatmul.mubr.bf16.gmra.mxu0 %v68
    %v871 = vpop.f32.mrf.mxu0
    %v872 = vadd.f32 %v204, %v871
    %v873 = vpop.f32.mrf.mxu0
    %v874 = vadd.f32 %v208, %v873
    %v875 = vpop.f32.mrf.mxu0
    %v876 = vpop.f32.mrf.mxu0
    %877 = vdwg.mxu0
    %878 = vmatprep.subr.bf16.mxu0 %v627
    %879 = vmatpush1.bf16.msra.mxu0 %v626
    %880 = vmatprep.subr.bf16.mxu0 %v625
    %881 = vmatpush1.bf16.msra.mxu0 %v624
    %882 = vmatprep.subr.bf16.mxu0 %v623
    %883 = vmatpush1.bf16.msra.mxu0 %v622
    %884 = vmatprep.subr.bf16.mxu0 %v621
    %885 = vmatpush1.bf16.msra.mxu0 %v620
    %886 = vmatprep.subr.bf16.mxu0 %v619
    %887 = vmatpush1.bf16.msra.mxu0 %v618
    %888 = vmatprep.subr.bf16.mxu0 %v617
    %889 = vmatpush1.bf16.msra.mxu0 %v616
    %890 = vmatprep.subr.bf16.mxu0 %v615
    %891 = vmatpush1.bf16.msra.mxu0 %v614
    %892 = vmatprep.subr.bf16.mxu0 %v613
    %893 = vmatpush1.bf16.msra.mxu0 %v612
    %894 = vmatprep.subr.bf16.mxu0 %v643
    %895 = vmatpush2.bf16.msra.mxu0 %v642
    %896 = vmatprep.subr.bf16.mxu0 %v641
    %897 = vmatpush2.bf16.msra.mxu0 %v640
    %898 = vmatprep.subr.bf16.mxu0 %v639
    %899 = vmatpush2.bf16.msra.mxu0 %v638
    %900 = vmatprep.subr.bf16.mxu0 %v637
    %901 = vmatpush2.bf16.msra.mxu0 %v636
    %902 = vmatprep.subr.bf16.mxu0 %v635
    %903 = vmatpush2.bf16.msra.mxu0 %v634
    %904 = vmatprep.subr.bf16.mxu0 %v633
    %905 = vmatpush2.bf16.msra.mxu0 %v632
    %906 = vmatprep.subr.bf16.mxu0 %v631
    %907 = vmatpush2.bf16.msra.mxu0 %v630
    %908 = vmatprep.subr.bf16.mxu0 %v629
    %909 = vmatpush2.bf16.msra.mxu0 %v628
    %910 = vmatprep.mubr.bf16.mxu0 %v71
    %911 = vmatmul.mubr.bf16.gmra.mxu0 %v70
    %v912 = vpop.f32.mrf.mxu0
    %v913 = vadd.f32 %v872, %v912
    %v914 = vpop.f32.mrf.mxu0
    %v915 = vadd.f32 %v874, %v914
    %v916 = vpop.f32.mrf.mxu0
    %v917 = vpop.f32.mrf.mxu0
    %918 = vdwg.mxu0
    %919 = vmatprep.subr.bf16.mxu0 %v659
    %920 = vmatpush1.bf16.msra.mxu0 %v658
    %921 = vmatprep.subr.bf16.mxu0 %v657
    %922 = vmatpush1.bf16.msra.mxu0 %v656
    %923 = vmatprep.subr.bf16.mxu0 %v655
    %924 = vmatpush1.bf16.msra.mxu0 %v654
    %925 = vmatprep.subr.bf16.mxu0 %v653
    %926 = vmatpush1.bf16.msra.mxu0 %v652
    %927 = vmatprep.subr.bf16.mxu0 %v651
    %928 = vmatpush1.bf16.msra.mxu0 %v650
    %929 = vmatprep.subr.bf16.mxu0 %v649
    %930 = vmatpush1.bf16.msra.mxu0 %v648
    %931 = vmatprep.subr.bf16.mxu0 %v647
    %932 = vmatpush1.bf16.msra.mxu0 %v646
    %933 = vmatprep.subr.bf16.mxu0 %v645
    %934 = vmatpush1.bf16.msra.mxu0 %v644
    %935 = vmatprep.subr.bf16.mxu0 %v675
    %936 = vmatpush2.bf16.msra.mxu0 %v674
    %937 = vmatprep.subr.bf16.mxu0 %v673
    %938 = vmatpush2.bf16.msra.mxu0 %v672
    %939 = vmatprep.subr.bf16.mxu0 %v671
    %940 = vmatpush2.bf16.msra.mxu0 %v670
    %941 = vmatprep.subr.bf16.mxu0 %v669
    %942 = vmatpush2.bf16.msra.mxu0 %v668
    %943 = vmatprep.subr.bf16.mxu0 %v667
    %944 = vmatpush2.bf16.msra.mxu0 %v666
    %945 = vmatprep.subr.bf16.mxu0 %v665
    %946 = vmatpush2.bf16.msra.mxu0 %v664
    %947 = vmatprep.subr.bf16.mxu0 %v663
    %948 = vmatpush2.bf16.msra.mxu0 %v662
    %949 = vmatprep.subr.bf16.mxu0 %v661
    %950 = vmatpush2.bf16.msra.mxu0 %v660
    %951 = vmatprep.mubr.bf16.mxu0 %v73
    %952 = vmatmul.mubr.bf16.gmra.mxu0 %v72
    %v953 = vpop.f32.mrf.mxu0
    %v954 = vadd.f32 %v913, %v953
    %v955 = vpop.f32.mrf.mxu0
    %v956 = vadd.f32 %v915, %v955
    %v957 = vpop.f32.mrf.mxu0
    %v958 = vpop.f32.mrf.mxu0
    %959 = vdwg.mxu0
    %960 = vmatprep.subr.bf16.mxu0 %v691
    %961 = vmatpush1.bf16.msra.mxu0 %v690
    %962 = vmatprep.subr.bf16.mxu0 %v689
    %963 = vmatpush1.bf16.msra.mxu0 %v688
    %964 = vmatprep.subr.bf16.mxu0 %v687
    %965 = vmatpush1.bf16.msra.mxu0 %v686
    %966 = vmatprep.subr.bf16.mxu0 %v685
    %967 = vmatpush1.bf16.msra.mxu0 %v684
    %968 = vmatprep.subr.bf16.mxu0 %v683
    %969 = vmatpush1.bf16.msra.mxu0 %v682
    %970 = vmatprep.subr.bf16.mxu0 %v681
    %971 = vmatpush1.bf16.msra.mxu0 %v680
    %972 = vmatprep.subr.bf16.mxu0 %v679
    %973 = vmatpush1.bf16.msra.mxu0 %v678
    %974 = vmatprep.subr.bf16.mxu0 %v677
    %975 = vmatpush1.bf16.msra.mxu0 %v676
    %976 = vmatprep.subr.bf16.mxu0 0
    %977 = vmatpush2.bf16.msra.mxu0 0
    %978 = vmatprep.subr.bf16.mxu0 0
    %979 = vmatpush2.bf16.msra.mxu0 0
    %980 = vmatprep.subr.bf16.mxu0 %v835
    %981 = vmatpush2.bf16.msra.mxu0 %v832
    %982 = vmatprep.subr.bf16.mxu0 %v701
    %983 = vmatpush2.bf16.msra.mxu0 %v700
    %984 = vmatprep.subr.bf16.mxu0 %v699
    %985 = vmatpush2.bf16.msra.mxu0 %v698
    %986 = vmatprep.subr.bf16.mxu0 %v697
    %987 = vmatpush2.bf16.msra.mxu0 %v696
    %988 = vmatprep.subr.bf16.mxu0 %v695
    %989 = vmatpush2.bf16.msra.mxu0 %v694
    %990 = vmatprep.subr.bf16.mxu0 %v693
    %991 = vmatpush2.bf16.msra.mxu0 %v692
    %992 = vmatprep.mubr.bf16.mxu0 %v828
    %993 = vmatmul.mubr.bf16.gmra.mxu0 %v74
    %v994 = vpop.f32.mrf.mxu0
    %v995 = vadd.f32 %v954, %v994
    %v996 = vpop.f32.mrf.mxu0
    %v997 = vadd.f32 %v956, %v996
    %v998 = vpop.f32.mrf.mxu0
    %v999 = vpop.f32.mrf.mxu0
    %1000 = vdwg.mxu0
    %v1001 = vmax.f32 %v995, 0.0
    %v1002 = vmax.f32 %v997, 0.0
    %v1003 = vpack.c.bf16 %v1001, %v1001
    %v1004 = vpack.c.bf16 %v1002, %v1002
    %v1005 = vld [vmem:[%s3] sm:$0xf]
    %v1006 = vld [vmem:[%s3 + $0x4] sm:$0xf]
    %v1007 = vld [vmem:[%s3 + $0x8] sm:$0xf]
    %v1008 = vld [vmem:[%s3 + $0xc] sm:$0xf]
    %v1009 = vld [vmem:[%s3 + $0x10] sm:$0xf]
    %v1010 = vld [vmem:[%s3 + $0x14] sm:$0xf]
    %v1011 = vld [vmem:[%s3 + $0x18] sm:$0xf]
    %v1012 = vld [vmem:[%s3 + $0x1c] sm:$0xf]
    %v1013 = vld [vmem:[%s3 + $0x20] sm:$0xf]
    %v1014 = vld [vmem:[%s3 + $0x24] sm:$0xf]
    %v1015 = vld [vmem:[%s3 + $0x28] sm:$0xf]
    %v1016 = vld [vmem:[%s3 + $0x2c] sm:$0xf]
    %v1017 = vld [vmem:[%s3 + $0x30] sm:$0xf]
    %v1018 = vld [vmem:[%s3 + $0x34] sm:$0xf]
    %v1019 = vld [vmem:[%s3 + $0x38] sm:$0xf]
    %v1020 = vld [vmem:[%s3 + $0x3c] sm:$0xf]
    %v1021 = vld [vmem:[%s3 + $0x40] sm:$0xf]
    %v1022 = vld [vmem:[%s3 + $0x44] sm:$0xf]
    %v1023 = vld [vmem:[%s3 + $0x48] sm:$0xf]
    %v1024 = vld [vmem:[%s3 + $0x4c] sm:$0xf]
    %v1025 = vld [vmem:[%s3 + $0x50] sm:$0xf]
    %v1026 = vld [vmem:[%s3 + $0x54] sm:$0xf]
    %v1027 = vld [vmem:[%s3 + $0x58] sm:$0xf]
    %v1028 = vld [vmem:[%s3 + $0x5c] sm:$0xf]
    %v1029 = vld [vmem:[%s3 + $0x60] sm:$0xf]
    %v1030 = vld [vmem:[%s3 + $0x64] sm:$0xf]
    %v1031 = vld [vmem:[%s3 + $0x68] sm:$0xf]
    %v1032 = vld [vmem:[%s3 + $0x6c] sm:$0xf]
    %v1033 = vld [vmem:[%s3 + $0x70] sm:$0xf]
    %v1034 = vld [vmem:[%s3 + $0x74] sm:$0xf]
    %v1035 = vld [vmem:[%s3 + $0x78] sm:$0xf]
    %v1036 = vld [vmem:[%s3 + $0x7c] sm:$0x1]
    %v1037 = vld [vmem:[%s4] sm:$0x1]
    %v1039 = vlaneseq
    %v1040 = vshrl.u32 %v1039, 7
    %v1041 = vsub.s32 0, %v1040
    %v1042 = vrot.slane %v1037, %v1041
    %v1076 = vunpack.c.l.b16 %v1005
    %v1077 = vunpack.c.l.b16 %v1006
    %v1078 = vunpack.c.l.b16 %v1007
    %v1079 = vunpack.c.l.b16 %v1008
    %v1080 = vunpack.c.l.b16 %v1009
    %v1081 = vunpack.c.l.b16 %v1010
    %v1082 = vunpack.c.l.b16 %v1011
    %v1083 = vunpack.c.l.b16 %v1012
    %v1084 = vunpack.c.l.b16 %v1013
    %v1085 = vunpack.c.l.b16 %v1014
    %v1086 = vunpack.c.l.b16 %v1015
    %v1087 = vunpack.c.l.b16 %v1016
    %v1088 = vunpack.c.l.b16 %v1017
    %v1089 = vunpack.c.l.b16 %v1018
    %v1090 = vunpack.c.l.b16 %v1019
    %v1091 = vunpack.c.l.b16 %v1020
    %v1092 = vunpack.c.l.b16 %v1021
    %v1093 = vunpack.c.l.b16 %v1022
    %v1094 = vunpack.c.l.b16 %v1023
    %v1095 = vunpack.c.l.b16 %v1024
    %v1096 = vunpack.c.l.b16 %v1025
    %v1097 = vunpack.c.l.b16 %v1026
    %v1098 = vunpack.c.l.b16 %v1027
    %v1099 = vunpack.c.l.b16 %v1028
    %v1100 = vunpack.c.l.b16 %v1029
    %v1101 = vunpack.c.l.b16 %v1030
    %v1102 = vunpack.c.l.b16 %v1031
    %v1103 = vunpack.c.l.b16 %v1032
    %v1104 = vunpack.c.l.b16 %v1033
    %v1105 = vunpack.c.l.b16 %v1034
    %v1106 = vunpack.c.l.b16 %v1035
    %v1107 = vunpack.c.l.b16 %v1036
    %v1108 = vpack.c.b16 %v1077, %v1076
    %v1109 = vpack.c.b16 %v1079, %v1078
    %v1110 = vpack.c.b16 %v1081, %v1080
    %v1111 = vpack.c.b16 %v1083, %v1082
    %v1112 = vpack.c.b16 %v1085, %v1084
    %v1113 = vpack.c.b16 %v1087, %v1086
    %v1114 = vpack.c.b16 %v1089, %v1088
    %v1115 = vpack.c.b16 %v1091, %v1090
    %v1116 = vpack.c.b16 %v1093, %v1092
    %v1117 = vpack.c.b16 %v1095, %v1094
    %v1118 = vpack.c.b16 %v1097, %v1096
    %v1119 = vpack.c.b16 %v1099, %v1098
    %v1120 = vpack.c.b16 %v1101, %v1100
    %v1121 = vpack.c.b16 %v1103, %v1102
    %v1122 = vpack.c.b16 %v1105, %v1104
    %v1123 = vpack.c.b16 %v1107, %v1106
    %vm1139 = vcmask 998400
    %v1141 = vsel %vm1139, %v1004, 0
    %vm1143 = vcmask 1044480
    %v1145 = vsel %vm1143, %v1123, 0
    %1147 = vmatprep.subr.bf16.mxu0 0
    %1148 = vmatpush1.bf16.msra.mxu0 %v1115
    %1149 = vmatprep.subr.bf16.mxu0 0
    %1150 = vmatpush1.bf16.msra.mxu0 %v1114
    %1151 = vmatprep.subr.bf16.mxu0 0
    %1152 = vmatpush1.bf16.msra.mxu0 %v1113
    %1153 = vmatprep.subr.bf16.mxu0 0
    %1154 = vmatpush1.bf16.msra.mxu0 %v1112
    %1155 = vmatprep.subr.bf16.mxu0 0
    %1156 = vmatpush1.bf16.msra.mxu0 %v1111
    %1157 = vmatprep.subr.bf16.mxu0 0
    %1158 = vmatpush1.bf16.msra.mxu0 %v1110
    %1159 = vmatprep.subr.bf16.mxu0 0
    %1160 = vmatpush1.bf16.msra.mxu0 %v1109
    %1161 = vmatprep.subr.bf16.mxu0 0
    %1162 = vmatpush1.bf16.msra.mxu0 %v1108
    %1163 = vmatprep.subr.bf16.mxu0 0
    %1164 = vmatpush2.bf16.msra.mxu0 %v1145
    %1165 = vmatprep.subr.bf16.mxu0 0
    %1166 = vmatpush2.bf16.msra.mxu0 %v1122
    %1167 = vmatprep.subr.bf16.mxu0 0
    %1168 = vmatpush2.bf16.msra.mxu0 %v1121
    %1169 = vmatprep.subr.bf16.mxu0 0
    %1170 = vmatpush2.bf16.msra.mxu0 %v1120
    %1171 = vmatprep.subr.bf16.mxu0 0
    %1172 = vmatpush2.bf16.msra.mxu0 %v1119
    %1173 = vmatprep.subr.bf16.mxu0 0
    %1174 = vmatpush2.bf16.msra.mxu0 %v1118
    %1175 = vmatprep.subr.bf16.mxu0 0
    %1176 = vmatpush2.bf16.msra.mxu0 %v1117
    %1177 = vmatprep.subr.bf16.mxu0 0
    %1178 = vmatpush2.bf16.msra.mxu0 %v1116
    %1179 = vmatprep.mubr.bf16.mxu0 %v1141
    %1180 = vmatmul.mubr.bf16.gmra.mxu0 %v1003
    %v1181 = vpop.f32.mrf.mxu0
    %v1182 = vadd.f32 %v1042, %v1181
    %v1183 = vpop.f32.mrf.mxu0
    %v1184 = vpop.f32.mrf.mxu0
    %v1185 = vpop.f32.mrf.mxu0
    %1186 = vdwg.mxu0
    %vm1187 = vcmask 984064
    %1188 = vst.msk [vmem:[#allocation2] sm:$0x3] %vm1187, %v1182
    // Predicated region
    $region22: #{cnn_forward.3} parent=1 // pred_check
      _
    $region23: #{cnn_forward.3} parent=1 // pred_check_branch
      %1190 = sbr.rel (0) target = $region25
    $region24: #{cnn_forward.3} parent=1 // pred_region
      %s1192 = ssub.s32 32, 32
      %1193 = vsyncadd [#allocation3], %s1192
      %s1195 = sshll.u32 [#allocation2], 4
      %s1196 = int_to_ptr.vmem [resolvable:$true] %s1195
      %1198 = dma.vmem_to_hbm [thread:$0]  %s1196, 32, %s5, [#allocation3]
    $region25: #{cnn_forward.3} parent=1 // pred_fallthru
      _
    // Predicated region
    $region26: #{cnn_forward.3} parent=1 // pred_check
      _
    $region27: #{cnn_forward.3} parent=1 // pred_check_branch
      %1200 = sbr.rel (0) target = $region29
    $region28: #{cnn_forward.3} parent=1 // pred_region
      %1201 = dma.done [#allocation3], 32
    $region29: #{cnn_forward.3} parent=1 // pred_fallthru
      _
    %1202 = vsyncpa [#allocation3], 1

// kernel: cnn_forward.2
$region0: #{cnn_forward.2}
  #allocation0 [shape = 'u32[]', space=smem, size = 0x4, offset = 0x4, fixed_abs, tag = 'smem constant byte address 0x4 - core index']
  #allocation1 [shape = 'u32[144,128]{1,0:T(1,128)}', space=vmem, size = 0x12000, scoped, tag = 'internal scratch']
  #allocation2 [shape = 'f32[14,28,50]{2,1,0:T(8,128)}', space=vmem, size = 0x38000, scoped, tag = 'scratch operand']
  #allocation3 [shape = 'f32[16,18,50]{2,1,0:T(8,128)}', space=vmem, size = 0x30000, scoped, tag = 'scratch operand']
  #allocation4 [shape = 'f32[7,16,20]{2,1,0:T(8,128)}', space=vmem, size = 0xe000, scoped, tag = 'scratch operand']
  %s0 = inlined_call_operand.vmem [shape: f32[2,30,30,1], index: 0, kind: input, shape index: {}]
  %s1 = inlined_call_operand.vmem [shape: f32[9,50], index: 1, kind: input, shape index: {}]
  %s2 = inlined_call_operand.vmem [shape: f32[1,50], index: 2, kind: input, shape index: {}]
  %s3 = inlined_call_operand.vmem [shape: bf16[9,50,20], index: 3, kind: input, shape index: {}]
  %s4 = inlined_call_operand.vmem [shape: f32[1,20], index: 4, kind: input, shape index: {}]
  %s5 = inlined_call_operand.vmem [shape: f32[2,7,7,20], index: 5, kind: output, shape index: {}]
  %s6 = sld [smem:[#allocation0]]
  $region53: #{cnn_forward.2} parent=0
    _
  %s8 = ssub.s32 1, %s6
  %s9 = scalar_select 0, %s8, %s6
  loop: start=0, step=1, limit=4
  $region2: #{cnn_forward.2} parent=0 // loop_pre_header
    _
  $region3: #{cnn_forward.2} parent=0 // loop_header
    %s11 = sphi 0, %s15
    %p12 = scmp.ge.s32.totalorder %s11, 4
    %s21 = sphi 0, %s23
    %s24 = sphi 0, %s21
    %s25 = sphi 0, %s24
    %s41 = sphi 0, %s25
    %s45 = sphi 0, %s45
    %s47 = sphi 0, %s45
    %s48 = sphi 0, %s47
    %s62 = sphi 0, %s48
    %s66 = sphi 0, %s66
    %s68 = sphi 0, %s66
    %s69 = sphi 0, %s68
    %s83 = sphi 0, %s69
    %s87 = sphi 0, %s87
    %s89 = sphi 0, %s87
    %s90 = sphi 0, %s89
    %s104 = sphi 0, %s90
    %s108 = sphi 0, %s108
    %s110 = sphi 0, %s108
    %s111 = sphi 0, %s110
    %s125 = sphi 0, %s111
    %s131 = sphi 0, %s133
    %s134 = sphi 0, %s131
    %s135 = sphi 0, %s134
    %s151 = sphi 0, %s135
  $region4: #{cnn_forward.2} parent=0 // loop_header_branch
    %14 = sbr.rel (%p12) target = $region8
  $region5: #{cnn_forward.2} parent=0 // loop_body
    %s16 = ssub.s32 %s11, 1
    %s17 = ssub.s32 %s11, 2
    %s18 = sadd.s32 %s11, 1
    %s19 = ssub.s32 %s11, %s18
    %p20 = scmp.eq.s32.totalorder %s19, 0
    %s22 = sadd.s32 %s21, 1
    %s23 = scalar_select %p20, %s21, %s22
    %p26 = pneg %p20
    %p27 = scmp.eq.s32.totalorder %s11, 1
    %p28 = por %p26, %p27
    %p29 = scmp.ne.s32.totalorder %s21, %s24
    %p30 = scmp.eq.s32.totalorder %s11, 0
    %p31 = por %p29, %p30
    %p32 = scmp.ne.s32.totalorder %s21, %s24
    %p33 = scmp.eq.s32.totalorder %s16, 1
    %p34 = por %p32, %p33
    %p35 = scmp.ne.s32.totalorder %s24, %s25
    %p36 = scmp.eq.s32.totalorder %s16, 0
    %p37 = por %p35, %p36
    %p38 = scmp.ne.s32.totalorder %s24, %s25
    %p39 = scmp.eq.s32.totalorder %s17, 1
    %p40 = por %p38, %p39
    %p42 = scmp.ne.s32.totalorder %s25, %s41
    %p43 = scmp.eq.s32.totalorder %s17, 0
    %p44 = por %p42, %p43
    %s46 = sadd.s32 %s45, 1
    %p49 = scmp.eq.s32.totalorder %s11, 1
    %p50 = scmp.ne.s32.totalorder %s45, %s47
    %p51 = scmp.eq.s32.totalorder %s11, 0
    %p52 = por %p50, %p51
    %p53 = scmp.ne.s32.totalorder %s45, %s47
    %p54 = scmp.eq.s32.totalorder %s16, 1
    %p55 = por %p53, %p54
    %p56 = scmp.ne.s32.totalorder %s47, %s48
    %p57 = scmp.eq.s32.totalorder %s16, 0
    %p58 = por %p56, %p57
    %p59 = scmp.ne.s32.totalorder %s47, %s48
    %p60 = scmp.eq.s32.totalorder %s17, 1
    %p61 = por %p59, %p60
    %p63 = scmp.ne.s32.totalorder %s48, %s62
    %p64 = scmp.eq.s32.totalorder %s17, 0
    %p65 = por %p63, %p64
    %s67 = sadd.s32 %s66, 1
    %p70 = scmp.eq.s32.totalorder %s11, 1
    %p71 = scmp.ne.s32.totalorder %s66, %s68
    %p72 = scmp.eq.s32.totalorder %s11, 0
    %p73 = por %p71, %p72
    %p74 = scmp.ne.s32.totalorder %s66, %s68
    %p75 = scmp.eq.s32.totalorder %s16, 1
    %p76 = por %p74, %p75
    %p77 = scmp.ne.s32.totalorder %s68, %s69
    %p78 = scmp.eq.s32.totalorder %s16, 0
    %p79 = por %p77, %p78
    %p80 = scmp.ne.s32.totalorder %s68, %s69
    %p81 = scmp.eq.s32.totalorder %s17, 1
    %p82 = por %p80, %p81
    %p84 = scmp.ne.s32.totalorder %s69, %s83
    %p85 = scmp.eq.s32.totalorder %s17, 0
    %p86 = por %p84, %p85
    %s88 = sadd.s32 %s87, 1
    %p91 = scmp.eq.s32.totalorder %s11, 1
    %p92 = scmp.ne.s32.totalorder %s87, %s89
    %p93 = scmp.eq.s32.totalorder %s11, 0
    %p94 = por %p92, %p93
    %p95 = scmp.ne.s32.totalorder %s87, %s89
    %p96 = scmp.eq.s32.totalorder %s16, 1
    %p97 = por %p95, %p96
    %p98 = scmp.ne.s32.totalorder %s89, %s90
    %p99 = scmp.eq.s32.totalorder %s16, 0
    %p100 = por %p98, %p99
    %p101 = scmp.ne.s32.totalorder %s89, %s90
    %p102 = scmp.eq.s32.totalorder %s17, 1
    %p103 = por %p101, %p102
    %p105 = scmp.ne.s32.totalorder %s90, %s104
    %p106 = scmp.eq.s32.totalorder %s17, 0
    %p107 = por %p105, %p106
    %s109 = sadd.s32 %s108, 1
    %p112 = scmp.eq.s32.totalorder %s11, 1
    %p113 = scmp.ne.s32.totalorder %s108, %s110
    %p114 = scmp.eq.s32.totalorder %s11, 0
    %p115 = por %p113, %p114
    %p116 = scmp.ne.s32.totalorder %s108, %s110
    %p117 = scmp.eq.s32.totalorder %s16, 1
    %p118 = por %p116, %p117
    %p119 = scmp.ne.s32.totalorder %s110, %s111
    %p120 = scmp.eq.s32.totalorder %s16, 0
    %p121 = por %p119, %p120
    %p122 = scmp.ne.s32.totalorder %s110, %s111
    %p123 = scmp.eq.s32.totalorder %s17, 1
    %p124 = por %p122, %p123
    %p126 = scmp.ne.s32.totalorder %s111, %s125
    %p127 = scmp.eq.s32.totalorder %s17, 0
    %p128 = por %p126, %p127
    %s129 = ssub.s32 %s11, %s18
    %p130 = scmp.eq.s32.totalorder %s129, 0
    %s132 = sadd.s32 %s131, 1
    %s133 = scalar_select %p130, %s131, %s132
    %p136 = pneg %p130
    %p137 = scmp.eq.s32.totalorder %s11, 1
    %p138 = por %p136, %p137
    %p139 = scmp.ne.s32.totalorder %s131, %s134
    %p140 = scmp.eq.s32.totalorder %s11, 0
    %p141 = por %p139, %p140
    %p142 = scmp.ne.s32.totalorder %s131, %s134
    %p143 = scmp.eq.s32.totalorder %s16, 1
    %p144 = por %p142, %p143
    %p145 = scmp.ne.s32.totalorder %s134, %s135
    %p146 = scmp.eq.s32.totalorder %s16, 0
    %p147 = por %p145, %p146
    %p148 = scmp.ne.s32.totalorder %s134, %s135
    %p149 = scmp.eq.s32.totalorder %s17, 1
    %p150 = por %p148, %p149
    %p152 = scmp.ne.s32.totalorder %s135, %s151
    %p153 = scmp.eq.s32.totalorder %s17, 0
    %p154 = por %p152, %p153
    %p155 = scmp.le.s32.totalorder 1, %s11
    %p156 = scmp.lt.s32.totalorder %s11, 3
    %p157 = pnand %p155, %p156
    %p158 = pneg %p157
    // Predicated region
    $region9: #{cnn_forward.2} parent=5 // pred_check
      _
    $region10: #{cnn_forward.2} parent=5 // pred_check_branch
      %160 = sbr.rel (%p157) target = $region12
    $region11: #{cnn_forward.2} parent=5 // pred_region
      %s161 = ssub.s32 %s11, 1
      // Predicated region
      $region13: #{cnn_forward.2} parent=11 // pred_check
        %p162 = pneg %p58
      $region14: #{cnn_forward.2} parent=11 // pred_check_branch
        %164 = sbr.rel (%p162) target = $region16
      $region15: #{cnn_forward.2} parent=11 // pred_region
        _
      $region16: #{cnn_forward.2} parent=11 // pred_fallthru
        _
      // Predicated region
      $region17: #{cnn_forward.2} parent=11 // pred_check
        %p165 = pneg %p79
      $region18: #{cnn_forward.2} parent=11 // pred_check_branch
        %167 = sbr.rel (%p165) target = $region20
      $region19: #{cnn_forward.2} parent=11 // pred_region
        _
      $region20: #{cnn_forward.2} parent=11 // pred_fallthru
        _
      // Predicated region
      $region21: #{cnn_forward.2} parent=11 // pred_check
        %p168 = pneg %p100
      $region22: #{cnn_forward.2} parent=11 // pred_check_branch
        %170 = sbr.rel (%p168) target = $region24
      $region23: #{cnn_forward.2} parent=11 // pred_region
        _
      $region24: #{cnn_forward.2} parent=11 // pred_fallthru
        _
      // Predicated region
      $region25: #{cnn_forward.2} parent=11 // pred_check
        %p171 = pneg %p121
      $region26: #{cnn_forward.2} parent=11 // pred_check_branch
        %173 = sbr.rel (%p171) target = $region28
      $region27: #{cnn_forward.2} parent=11 // pred_region
        _
      $region28: #{cnn_forward.2} parent=11 // pred_fallthru
        _
    $region12: #{cnn_forward.2} parent=5 // pred_fallthru
      _
    %p174 = scmp.lt.s32.totalorder %s11, 2
    // Predicated region
    $region29: #{cnn_forward.2} parent=5 // pred_check
      %p175 = pneg %p174
    $region30: #{cnn_forward.2} parent=5 // pred_check_branch
      %177 = sbr.rel (%p175) target = $region32
    $region31: #{cnn_forward.2} parent=5 // pred_region
      // Predicated region
      $region33: #{cnn_forward.2} parent=31 // pred_check
        %p178 = pneg %p31
      $region34: #{cnn_forward.2} parent=31 // pred_check_branch
        %180 = sbr.rel (%p178) target = $region36
      $region35: #{cnn_forward.2} parent=31 // pred_region
        %p181 = scmp.lt.s32.totalorder %s11, 1
        %s182 = scalar_select %p181, %s11, 1
        %s183 = smul.addr %s182, 120
        %s184 = smul.addr %s183, 8
        %s185 = scalar_lea.vmem %s0, %s184
      $region36: #{cnn_forward.2} parent=31 // pred_fallthru
        _
    $region32: #{cnn_forward.2} parent=5 // pred_fallthru
      _
    %p186 = scmp.le.s32.totalorder 1, %s11
    %p187 = scmp.lt.s32.totalorder %s11, 3
    %p188 = pnand %p186, %p187
    %p189 = pneg %p188
    // Predicated region
    $region37: #{cnn_forward.2} parent=5 // pred_check
      _
    $region38: #{cnn_forward.2} parent=5 // pred_check_branch
      %191 = sbr.rel (%p188) target = $region40
    $region39: #{cnn_forward.2} parent=5 // pred_region
      %s192 = ssub.s32 %s11, 1
      %p193 = scmp.lt.s32.totalorder %s16, 1
      %s194 = scalar_select %p193, %s16, 1
      %s195 = smul.addr %s194, 120
      %s196 = smul.addr %s195, 8
      %s197 = scalar_lea.vmem %s0, %s196
      %p198 = pneg %p37
      %p199 = pneg %p34
      %p200 = pneg %p58
      %p201 = pneg %p55
      %p202 = pneg %p79
      %p203 = pneg %p76
      %p204 = pneg %p100
      %p205 = pneg %p97
      %p206 = pneg %p121
      %p207 = pneg %p118
      %p208 = pneg %p147
      %p209 = pneg %p144
      %p210 = scmp.lt.s32.totalorder %s16, 1
      %s211 = scalar_select %p210, %s16, 1
      %s212 = smul.addr %s211, 7
      %s213 = smul.addr %s212, 8
      %s214 = scalar_lea.vmem %s5, %s213
      %p215 = scmp.lt.s32.totalorder %s16, 1
      %s216 = scalar_select %p215, %s16, 1
      %s217 = smul.addr %s216, 120
      %s218 = smul.addr %s217, 8
      %s219 = scalar_lea.vmem %s0, %s218
      %p220 = scmp.lt.s32.totalorder %s16, 1
      %s221 = scalar_select %p220, %s16, 1
      %s222 = smul.addr %s221, 7
      %s223 = smul.addr %s222, 8
      %s224 = scalar_lea.vmem %s5, %s223
      %v226 = vld [vmem:[%s219] sm:$0xff]
      %v227 = vld [vmem:[%s219 + $0x8] sm:$0xff]
      %v228 = vld [vmem:[%s219 + $0x10] sm:$0xff]
      %v229 = vld [vmem:[%s219 + $0x18] sm:$0x3f]
      %v230 = vld [vmem:[%s219 + $0x20] sm:$0xff]
      %v231 = vld [vmem:[%s219 + $0x28] sm:$0xff]
      %v232 = vld [vmem:[%s219 + $0x30] sm:$0xff]
      %v233 = vld [vmem:[%s219 + $0x38] sm:$0x3f]
      %v234 = vld [vmem:[%s219 + $0x40] sm:$0xff]
      %v235 = vld [vmem:[%s219 + $0x48] sm:$0xff]
      %v236 = vld [vmem:[%s219 + $0x50] sm:$0xff]
      %v237 = vld [vmem:[%s219 + $0x58] sm:$0x3f]
      %v238 = vld [vmem:[%s219 + $0x60] sm:$0xff]
      %v239 = vld [vmem:[%s219 + $0x68] sm:$0xff]
      %v240 = vld [vmem:[%s219 + $0x70] sm:$0xff]
      %v241 = vld [vmem:[%s219 + $0x78] sm:$0x3f]
      %v242 = vld [vmem:[%s219 + $0x80] sm:$0xff]
      %v243 = vld [vmem:[%s219 + $0x88] sm:$0xff]
      %v244 = vld [vmem:[%s219 + $0x90] sm:$0xff]
      %v245 = vld [vmem:[%s219 + $0x98] sm:$0x3f]
      %v246 = vld [vmem:[%s219 + $0xa0] sm:$0xff]
      %v247 = vld [vmem:[%s219 + $0xa8] sm:$0xff]
      %v248 = vld [vmem:[%s219 + $0xb0] sm:$0xff]
      %v249 = vld [vmem:[%s219 + $0xb8] sm:$0x3f]
      %v250 = vld [vmem:[%s219 + $0xc0] sm:$0xff]
      %v251 = vld [vmem:[%s219 + $0xc8] sm:$0xff]
      %v252 = vld [vmem:[%s219 + $0xd0] sm:$0xff]
      %v253 = vld [vmem:[%s219 + $0xd8] sm:$0x3f]
      %v254 = vld [vmem:[%s219 + $0xe0] sm:$0xff]
      %v255 = vld [vmem:[%s219 + $0xe8] sm:$0xff]
      %v256 = vld [vmem:[%s219 + $0xf0] sm:$0xff]
      %v257 = vld [vmem:[%s219 + $0xf8] sm:$0x3f]
      %v258 = vld [vmem:[%s219 + $0x100] sm:$0xff]
      %v259 = vld [vmem:[%s219 + $0x108] sm:$0xff]
      %v260 = vld [vmem:[%s219 + $0x110] sm:$0xff]
      %v261 = vld [vmem:[%s219 + $0x118] sm:$0x3f]
      %v262 = vld [vmem:[%s219 + $0x120] sm:$0xff]
      %v263 = vld [vmem:[%s219 + $0x128] sm:$0xff]
      %v264 = vld [vmem:[%s219 + $0x130] sm:$0xff]
      %v265 = vld [vmem:[%s219 + $0x138] sm:$0x3f]
      %v266 = vld [vmem:[%s219 + $0x140] sm:$0xff]
      %v267 = vld [vmem:[%s219 + $0x148] sm:$0xff]
      %v268 = vld [vmem:[%s219 + $0x150] sm:$0xff]
      %v269 = vld [vmem:[%s219 + $0x158] sm:$0x3f]
      %v270 = vld [vmem:[%s219 + $0x160] sm:$0xff]
      %v271 = vld [vmem:[%s219 + $0x168] sm:$0xff]
      %v272 = vld [vmem:[%s219 + $0x170] sm:$0xff]
      %v273 = vld [vmem:[%s219 + $0x178] sm:$0x3f]
      %v274 = vld [vmem:[%s219 + $0x180] sm:$0xff]
      %v275 = vld [vmem:[%s219 + $0x188] sm:$0xff]
      %v276 = vld [vmem:[%s219 + $0x190] sm:$0xff]
      %v277 = vld [vmem:[%s219 + $0x198] sm:$0x3f]
      %v278 = vld [vmem:[%s219 + $0x1a0] sm:$0xff]
      %v279 = vld [vmem:[%s219 + $0x1a8] sm:$0xff]
      %v280 = vld [vmem:[%s219 + $0x1b0] sm:$0xff]
      %v281 = vld [vmem:[%s219 + $0x1b8] sm:$0x3f]
      %v282 = vld [vmem:[%s219 + $0x1c0] sm:$0xff]
      %v283 = vld [vmem:[%s219 + $0x1c8] sm:$0xff]
      %v284 = vld [vmem:[%s219 + $0x1d0] sm:$0xff]
      %v285 = vld [vmem:[%s219 + $0x1d8] sm:$0x3f]
      %v286 = vld [vmem:[%s219 + $0x1e0] sm:$0xff]
      %v287 = vld [vmem:[%s219 + $0x1e8] sm:$0xff]
      %v288 = vld [vmem:[%s219 + $0x1f0] sm:$0xff]
      %v289 = vld [vmem:[%s219 + $0x1f8] sm:$0x3f]
      %v290 = vld [vmem:[%s219 + $0x200] sm:$0xff]
      %v291 = vld [vmem:[%s219 + $0x208] sm:$0xff]
      %v292 = vld [vmem:[%s219 + $0x210] sm:$0xff]
      %v293 = vld [vmem:[%s219 + $0x218] sm:$0x3f]
      %v294 = vld [vmem:[%s219 + $0x220] sm:$0xff]
      %v295 = vld [vmem:[%s219 + $0x228] sm:$0xff]
      %v296 = vld [vmem:[%s219 + $0x230] sm:$0xff]
      %v297 = vld [vmem:[%s219 + $0x238] sm:$0x3f]
      %v298 = vld [vmem:[%s219 + $0x240] sm:$0xff]
      %v299 = vld [vmem:[%s219 + $0x248] sm:$0xff]
      %v300 = vld [vmem:[%s219 + $0x250] sm:$0xff]
      %v301 = vld [vmem:[%s219 + $0x258] sm:$0x3f]
      %v302 = vld [vmem:[%s219 + $0x260] sm:$0xff]
      %v303 = vld [vmem:[%s219 + $0x268] sm:$0xff]
      %v304 = vld [vmem:[%s219 + $0x270] sm:$0xff]
      %v305 = vld [vmem:[%s219 + $0x278] sm:$0x3f]
      %v306 = vld [vmem:[%s219 + $0x280] sm:$0xff]
      %v307 = vld [vmem:[%s219 + $0x288] sm:$0xff]
      %v308 = vld [vmem:[%s219 + $0x290] sm:$0xff]
      %v309 = vld [vmem:[%s219 + $0x298] sm:$0x3f]
      %v310 = vld [vmem:[%s219 + $0x2a0] sm:$0xff]
      %v311 = vld [vmem:[%s219 + $0x2a8] sm:$0xff]
      %v312 = vld [vmem:[%s219 + $0x2b0] sm:$0xff]
      %v313 = vld [vmem:[%s219 + $0x2b8] sm:$0x3f]
      %v314 = vld [vmem:[%s219 + $0x2c0] sm:$0xff]
      %v315 = vld [vmem:[%s219 + $0x2c8] sm:$0xff]
      %v316 = vld [vmem:[%s219 + $0x2d0] sm:$0xff]
      %v317 = vld [vmem:[%s219 + $0x2d8] sm:$0x3f]
      %v318 = vld [vmem:[%s219 + $0x2e0] sm:$0xff]
      %v319 = vld [vmem:[%s219 + $0x2e8] sm:$0xff]
      %v320 = vld [vmem:[%s219 + $0x2f0] sm:$0xff]
      %v321 = vld [vmem:[%s219 + $0x2f8] sm:$0x3f]
      %v322 = vld [vmem:[%s219 + $0x300] sm:$0xff]
      %v323 = vld [vmem:[%s219 + $0x308] sm:$0xff]
      %v324 = vld [vmem:[%s219 + $0x310] sm:$0xff]
      %v325 = vld [vmem:[%s219 + $0x318] sm:$0x3f]
      %v326 = vld [vmem:[%s219 + $0x320] sm:$0xff]
      %v327 = vld [vmem:[%s219 + $0x328] sm:$0xff]
      %v328 = vld [vmem:[%s219 + $0x330] sm:$0xff]
      %v329 = vld [vmem:[%s219 + $0x338] sm:$0x3f]
      %v330 = vld [vmem:[%s219 + $0x340] sm:$0xff]
      %v331 = vld [vmem:[%s219 + $0x348] sm:$0xff]
      %v332 = vld [vmem:[%s219 + $0x350] sm:$0xff]
      %v333 = vld [vmem:[%s219 + $0x358] sm:$0x3f]
      %v334 = vld [vmem:[%s219 + $0x360] sm:$0xff]
      %v335 = vld [vmem:[%s219 + $0x368] sm:$0xff]
      %v336 = vld [vmem:[%s219 + $0x370] sm:$0xff]
      %v337 = vld [vmem:[%s219 + $0x378] sm:$0x3f]
      %v338 = vld [vmem:[%s219 + $0x380] sm:$0xff]
      %v339 = vld [vmem:[%s219 + $0x388] sm:$0xff]
      %v340 = vld [vmem:[%s219 + $0x390] sm:$0xff]
      %v341 = vld [vmem:[%s219 + $0x398] sm:$0x3f]
      %v342 = vld [vmem:[%s219 + $0x3a0] sm:$0xff]
      %v343 = vld [vmem:[%s219 + $0x3a8] sm:$0xff]
      %v344 = vld [vmem:[%s219 + $0x3b0] sm:$0xff]
      %v345 = vld [vmem:[%s219 + $0x3b8] sm:$0x3f]
      %v346 = vld [vmem:[%s1] sm:$0xff]
      %v347 = vld [vmem:[%s1 + $0x8] sm:$0x1]
      %349 = vset.pattern.permute.xlu0 0
      %350 = vperm.xlu0 %349, %v226
      %v351 = vpop.permute.xlu0 %350
      %354 = vset.pattern.permute.xlu0 0
      %355 = vperm.xlu0 %354, %v227
      %v356 = vpop.permute.xlu0 %355
      %359 = vset.pattern.permute.xlu0 0
      %360 = vperm.xlu0 %359, %v228
      %v361 = vpop.permute.xlu0 %360
      %364 = vset.pattern.permute.xlu0 0
      %365 = vperm.xlu0 %364, %v229
      %v366 = vpop.permute.xlu0 %365
      %369 = vset.pattern.permute.xlu0 0
      %370 = vperm.xlu0 %369, %v230
      %v371 = vpop.permute.xlu0 %370
      %374 = vset.pattern.permute.xlu0 0
      %375 = vperm.xlu0 %374, %v231
      %v376 = vpop.permute.xlu0 %375
      %379 = vset.pattern.permute.xlu0 0
      %380 = vperm.xlu0 %379, %v232
      %v381 = vpop.permute.xlu0 %380
      %384 = vset.pattern.permute.xlu0 0
      %385 = vperm.xlu0 %384, %v233
      %v386 = vpop.permute.xlu0 %385
      %389 = vset.pattern.permute.xlu0 0
      %390 = vperm.xlu0 %389, %v234
      %v391 = vpop.permute.xlu0 %390
      %394 = vset.pattern.permute.xlu0 0
      %395 = vperm.xlu0 %394, %v235
      %v396 = vpop.permute.xlu0 %395
      %399 = vset.pattern.permute.xlu0 0
      %400 = vperm.xlu0 %399, %v236
      %v401 = vpop.permute.xlu0 %400
      %404 = vset.pattern.permute.xlu0 0
      %405 = vperm.xlu0 %404, %v237
      %v406 = vpop.permute.xlu0 %405
      %409 = vset.pattern.permute.xlu0 0
      %410 = vperm.xlu0 %409, %v238
      %v411 = vpop.permute.xlu0 %410
      %414 = vset.pattern.permute.xlu0 0
      %415 = vperm.xlu0 %414, %v239
      %v416 = vpop.permute.xlu0 %415
      %419 = vset.pattern.permute.xlu0 0
      %420 = vperm.xlu0 %419, %v240
      %v421 = vpop.permute.xlu0 %420
      %424 = vset.pattern.permute.xlu0 0
      %425 = vperm.xlu0 %424, %v241
      %v426 = vpop.permute.xlu0 %425
      %429 = vset.pattern.permute.xlu0 0
      %430 = vperm.xlu0 %429, %v242
      %v431 = vpop.permute.xlu0 %430
      %434 = vset.pattern.permute.xlu0 0
      %435 = vperm.xlu0 %434, %v243
      %v436 = vpop.permute.xlu0 %435
      %439 = vset.pattern.permute.xlu0 0
      %440 = vperm.xlu0 %439, %v244
      %v441 = vpop.permute.xlu0 %440
      %444 = vset.pattern.permute.xlu0 0
      %445 = vperm.xlu0 %444, %v245
      %v446 = vpop.permute.xlu0 %445
      %449 = vset.pattern.permute.xlu0 0
      %450 = vperm.xlu0 %449, %v246
      %v451 = vpop.permute.xlu0 %450
      %454 = vset.pattern.permute.xlu0 0
      %455 = vperm.xlu0 %454, %v247
      %v456 = vpop.permute.xlu0 %455
      %459 = vset.pattern.permute.xlu0 0
      %460 = vperm.xlu0 %459, %v248
      %v461 = vpop.permute.xlu0 %460
      %464 = vset.pattern.permute.xlu0 0
      %465 = vperm.xlu0 %464, %v249
      %v466 = vpop.permute.xlu0 %465
      %469 = vset.pattern.permute.xlu0 0
      %470 = vperm.xlu0 %469, %v250
      %v471 = vpop.permute.xlu0 %470
      %474 = vset.pattern.permute.xlu0 0
      %475 = vperm.xlu0 %474, %v251
      %v476 = vpop.permute.xlu0 %475
      %479 = vset.pattern.permute.xlu0 0
      %480 = vperm.xlu0 %479, %v252
      %v481 = vpop.permute.xlu0 %480
      %484 = vset.pattern.permute.xlu0 0
      %485 = vperm.xlu0 %484, %v253
      %v486 = vpop.permute.xlu0 %485
      %489 = vset.pattern.permute.xlu0 0
      %490 = vperm.xlu0 %489, %v254
      %v491 = vpop.permute.xlu0 %490
      %494 = vset.pattern.permute.xlu0 0
      %495 = vperm.xlu0 %494, %v255
      %v496 = vpop.permute.xlu0 %495
      %499 = vset.pattern.permute.xlu0 0
      %500 = vperm.xlu0 %499, %v256
      %v501 = vpop.permute.xlu0 %500
      %504 = vset.pattern.permute.xlu0 0
      %505 = vperm.xlu0 %504, %v257
      %v506 = vpop.permute.xlu0 %505
      %509 = vset.pattern.permute.xlu0 0
      %510 = vperm.xlu0 %509, %v258
      %v511 = vpop.permute.xlu0 %510
      %514 = vset.pattern.permute.xlu0 0
      %515 = vperm.xlu0 %514, %v259
      %v516 = vpop.permute.xlu0 %515
      %519 = vset.pattern.permute.xlu0 0
      %520 = vperm.xlu0 %519, %v260
      %v521 = vpop.permute.xlu0 %520
      %524 = vset.pattern.permute.xlu0 0
      %525 = vperm.xlu0 %524, %v261
      %v526 = vpop.permute.xlu0 %525
      %529 = vset.pattern.permute.xlu0 0
      %530 = vperm.xlu0 %529, %v262
      %v531 = vpop.permute.xlu0 %530
      %534 = vset.pattern.permute.xlu0 0
      %535 = vperm.xlu0 %534, %v263
      %v536 = vpop.permute.xlu0 %535
      %539 = vset.pattern.permute.xlu0 0
      %540 = vperm.xlu0 %539, %v264
      %v541 = vpop.permute.xlu0 %540
      %544 = vset.pattern.permute.xlu0 0
      %545 = vperm.xlu0 %544, %v265
      %v546 = vpop.permute.xlu0 %545
      %549 = vset.pattern.permute.xlu0 0
      %550 = vperm.xlu0 %549, %v266
      %v551 = vpop.permute.xlu0 %550
      %554 = vset.pattern.permute.xlu0 0
      %555 = vperm.xlu0 %554, %v267
      %v556 = vpop.permute.xlu0 %555
      %559 = vset.pattern.permute.xlu0 0
      %560 = vperm.xlu0 %559, %v268
      %v561 = vpop.permute.xlu0 %560
      %564 = vset.pattern.permute.xlu0 0
      %565 = vperm.xlu0 %564, %v269
      %v566 = vpop.permute.xlu0 %565
      %569 = vset.pattern.permute.xlu0 0
      %570 = vperm.xlu0 %569, %v270
      %v571 = vpop.permute.xlu0 %570
      %574 = vset.pattern.permute.xlu0 0
      %575 = vperm.xlu0 %574, %v271
      %v576 = vpop.permute.xlu0 %575
      %579 = vset.pattern.permute.xlu0 0
      %580 = vperm.xlu0 %579, %v272
      %v581 = vpop.permute.xlu0 %580
      %584 = vset.pattern.permute.xlu0 0
      %585 = vperm.xlu0 %584, %v273
      %v586 = vpop.permute.xlu0 %585
      %589 = vset.pattern.permute.xlu0 0
      %590 = vperm.xlu0 %589, %v274
      %v591 = vpop.permute.xlu0 %590
      %594 = vset.pattern.permute.xlu0 0
      %595 = vperm.xlu0 %594, %v275
      %v596 = vpop.permute.xlu0 %595
      %599 = vset.pattern.permute.xlu0 0
      %600 = vperm.xlu0 %599, %v276
      %v601 = vpop.permute.xlu0 %600
      %604 = vset.pattern.permute.xlu0 0
      %605 = vperm.xlu0 %604, %v277
      %v606 = vpop.permute.xlu0 %605
      %609 = vset.pattern.permute.xlu0 0
      %610 = vperm.xlu0 %609, %v278
      %v611 = vpop.permute.xlu0 %610
      %614 = vset.pattern.permute.xlu0 0
      %615 = vperm.xlu0 %614, %v279
      %v616 = vpop.permute.xlu0 %615
      %619 = vset.pattern.permute.xlu0 0
      %620 = vperm.xlu0 %619, %v280
      %v621 = vpop.permute.xlu0 %620
      %624 = vset.pattern.permute.xlu0 0
      %625 = vperm.xlu0 %624, %v281
      %v626 = vpop.permute.xlu0 %625
      %629 = vset.pattern.permute.xlu0 0
      %630 = vperm.xlu0 %629, %v282
      %v631 = vpop.permute.xlu0 %630
      %634 = vset.pattern.permute.xlu0 0
      %635 = vperm.xlu0 %634, %v283
      %v636 = vpop.permute.xlu0 %635
      %639 = vset.pattern.permute.xlu0 0
      %640 = vperm.xlu0 %639, %v284
      %v641 = vpop.permute.xlu0 %640
      %644 = vset.pattern.permute.xlu0 0
      %645 = vperm.xlu0 %644, %v285
      %v646 = vpop.permute.xlu0 %645
      %649 = vset.pattern.permute.xlu0 0
      %650 = vperm.xlu0 %649, %v286
      %v651 = vpop.permute.xlu0 %650
      %654 = vset.pattern.permute.xlu0 0
      %655 = vperm.xlu0 %654, %v287
      %v656 = vpop.permute.xlu0 %655
      %659 = vset.pattern.permute.xlu0 0
      %660 = vperm.xlu0 %659, %v288
      %v661 = vpop.permute.xlu0 %660
      %664 = vset.pattern.permute.xlu0 0
      %665 = vperm.xlu0 %664, %v289
      %v666 = vpop.permute.xlu0 %665
      %669 = vset.pattern.permute.xlu0 0
      %670 = vperm.xlu0 %669, %v290
      %v671 = vpop.permute.xlu0 %670
      %674 = vset.pattern.permute.xlu0 0
      %675 = vperm.xlu0 %674, %v291
      %v676 = vpop.permute.xlu0 %675
      %679 = vset.pattern.permute.xlu0 0
      %680 = vperm.xlu0 %679, %v292
      %v681 = vpop.permute.xlu0 %680
      %684 = vset.pattern.permute.xlu0 0
      %685 = vperm.xlu0 %684, %v293
      %v686 = vpop.permute.xlu0 %685
      %689 = vset.pattern.permute.xlu0 0
      %690 = vperm.xlu0 %689, %v294
      %v691 = vpop.permute.xlu0 %690
      %694 = vset.pattern.permute.xlu0 0
      %695 = vperm.xlu0 %694, %v295
      %v696 = vpop.permute.xlu0 %695
      %699 = vset.pattern.permute.xlu0 0
      %700 = vperm.xlu0 %699, %v296
      %v701 = vpop.permute.xlu0 %700
      %704 = vset.pattern.permute.xlu0 0
      %705 = vperm.xlu0 %704, %v297
      %v706 = vpop.permute.xlu0 %705
      %709 = vset.pattern.permute.xlu0 0
      %710 = vperm.xlu0 %709, %v298
      %v711 = vpop.permute.xlu0 %710
      %714 = vset.pattern.permute.xlu0 0
      %715 = vperm.xlu0 %714, %v299
      %v716 = vpop.permute.xlu0 %715
      %719 = vset.pattern.permute.xlu0 0
      %720 = vperm.xlu0 %719, %v300
      %v721 = vpop.permute.xlu0 %720
      %724 = vset.pattern.permute.xlu0 0
      %725 = vperm.xlu0 %724, %v301
      %v726 = vpop.permute.xlu0 %725
      %729 = vset.pattern.permute.xlu0 0
      %730 = vperm.xlu0 %729, %v302
      %v731 = vpop.permute.xlu0 %730
      %734 = vset.pattern.permute.xlu0 0
      %735 = vperm.xlu0 %734, %v303
      %v736 = vpop.permute.xlu0 %735
      %739 = vset.pattern.permute.xlu0 0
      %740 = vperm.xlu0 %739, %v304
      %v741 = vpop.permute.xlu0 %740
      %744 = vset.pattern.permute.xlu0 0
      %745 = vperm.xlu0 %744, %v305
      %v746 = vpop.permute.xlu0 %745
      %749 = vset.pattern.permute.xlu0 0
      %750 = vperm.xlu0 %749, %v306
      %v751 = vpop.permute.xlu0 %750
      %754 = vset.pattern.permute.xlu0 0
      %755 = vperm.xlu0 %754, %v307
      %v756 = vpop.permute.xlu0 %755
      %759 = vset.pattern.permute.xlu0 0
      %760 = vperm.xlu0 %759, %v308
      %v761 = vpop.permute.xlu0 %760
      %764 = vset.pattern.permute.xlu0 0
      %765 = vperm.xlu0 %764, %v309
      %v766 = vpop.permute.xlu0 %765
      %769 = vset.pattern.permute.xlu0 0
      %770 = vperm.xlu0 %769, %v310
      %v771 = vpop.permute.xlu0 %770
      %774 = vset.pattern.permute.xlu0 0
      %775 = vperm.xlu0 %774, %v311
      %v776 = vpop.permute.xlu0 %775
      %779 = vset.pattern.permute.xlu0 0
      %780 = vperm.xlu0 %779, %v312
      %v781 = vpop.permute.xlu0 %780
      %784 = vset.pattern.permute.xlu0 0
      %785 = vperm.xlu0 %784, %v313
      %v786 = vpop.permute.xlu0 %785
      %789 = vset.pattern.permute.xlu0 0
      %790 = vperm.xlu0 %789, %v314
      %v791 = vpop.permute.xlu0 %790
      %794 = vset.pattern.permute.xlu0 0
      %795 = vperm.xlu0 %794, %v315
      %v796 = vpop.permute.xlu0 %795
      %799 = vset.pattern.permute.xlu0 0
      %800 = vperm.xlu0 %799, %v316
      %v801 = vpop.permute.xlu0 %800
      %804 = vset.pattern.permute.xlu0 0
      %805 = vperm.xlu0 %804, %v317
      %v806 = vpop.permute.xlu0 %805
      %809 = vset.pattern.permute.xlu0 0
      %810 = vperm.xlu0 %809, %v318
      %v811 = vpop.permute.xlu0 %810
      %814 = vset.pattern.permute.xlu0 0
      %815 = vperm.xlu0 %814, %v319
      %v816 = vpop.permute.xlu0 %815
      %819 = vset.pattern.permute.xlu0 0
      %820 = vperm.xlu0 %819, %v320
      %v821 = vpop.permute.xlu0 %820
      %824 = vset.pattern.permute.xlu0 0
      %825 = vperm.xlu0 %824, %v321
      %v826 = vpop.permute.xlu0 %825
      %829 = vset.pattern.permute.xlu0 0
      %830 = vperm.xlu0 %829, %v322
      %v831 = vpop.permute.xlu0 %830
      %834 = vset.pattern.permute.xlu0 0
      %835 = vperm.xlu0 %834, %v323
      %v836 = vpop.permute.xlu0 %835
      %839 = vset.pattern.permute.xlu0 0
      %840 = vperm.xlu0 %839, %v324
      %v841 = vpop.permute.xlu0 %840
      %844 = vset.pattern.permute.xlu0 0
      %845 = vperm.xlu0 %844, %v325
      %v846 = vpop.permute.xlu0 %845
      %849 = vset.pattern.permute.xlu0 0
      %850 = vperm.xlu0 %849, %v326
      %v851 = vpop.permute.xlu0 %850
      %854 = vset.pattern.permute.xlu0 0
      %855 = vperm.xlu0 %854, %v327
      %v856 = vpop.permute.xlu0 %855
      %859 = vset.pattern.permute.xlu0 0
      %860 = vperm.xlu0 %859, %v328
      %v861 = vpop.permute.xlu0 %860
      %864 = vset.pattern.permute.xlu0 0
      %865 = vperm.xlu0 %864, %v329
      %v866 = vpop.permute.xlu0 %865
      %869 = vset.pattern.permute.xlu0 0
      %870 = vperm.xlu0 %869, %v330
      %v871 = vpop.permute.xlu0 %870
      %874 = vset.pattern.permute.xlu0 0
      %875 = vperm.xlu0 %874, %v331
      %v876 = vpop.permute.xlu0 %875
      %879 = vset.pattern.permute.xlu0 0
      %880 = vperm.xlu0 %879, %v332
      %v881 = vpop.permute.xlu0 %880
      %884 = vset.pattern.permute.xlu0 0
      %885 = vperm.xlu0 %884, %v333
      %v886 = vpop.permute.xlu0 %885
      %889 = vset.pattern.permute.xlu0 0
      %890 = vperm.xlu0 %889, %v334
      %v891 = vpop.permute.xlu0 %890
      %894 = vset.pattern.permute.xlu0 0
      %895 = vperm.xlu0 %894, %v335
      %v896 = vpop.permute.xlu0 %895
      %899 = vset.pattern.permute.xlu0 0
      %900 = vperm.xlu0 %899, %v336
      %v901 = vpop.permute.xlu0 %900
      %904 = vset.pattern.permute.xlu0 0
      %905 = vperm.xlu0 %904, %v337
      %v906 = vpop.permute.xlu0 %905
      %v908 = vlaneseq
      %v909 = vshrl.u32 %v908, 7
      %v910 = vsub.s32 0, %v909
      %v911 = vrot.slane %v346, %v910
      %v912 = vmul.f32 %v351, %v911
      %v913 = vmul.f32 %v356, %v911
      %v914 = vmul.f32 %v361, %v911
      %v915 = vmul.f32 %v366, %v911
      %v916 = vmul.f32 %v371, %v911
      %v917 = vmul.f32 %v376, %v911
      %v918 = vmul.f32 %v381, %v911
      %v919 = vmul.f32 %v386, %v911
      %v920 = vmul.f32 %v391, %v911
      %v921 = vmul.f32 %v396, %v911
      %v922 = vmul.f32 %v401, %v911
      %v923 = vmul.f32 %v406, %v911
      %v924 = vmul.f32 %v411, %v911
      %v925 = vmul.f32 %v416, %v911
      %v926 = vmul.f32 %v421, %v911
      %v927 = vmul.f32 %v426, %v911
      %v928 = vmul.f32 %v431, %v911
      %v929 = vmul.f32 %v436, %v911
      %v930 = vmul.f32 %v441, %v911
      %v931 = vmul.f32 %v446, %v911
      %v932 = vmul.f32 %v451, %v911
      %v933 = vmul.f32 %v456, %v911
      %v934 = vmul.f32 %v461, %v911
      %v935 = vmul.f32 %v466, %v911
      %v936 = vmul.f32 %v471, %v911
      %v937 = vmul.f32 %v476, %v911
      %v938 = vmul.f32 %v481, %v911
      %v939 = vmul.f32 %v486, %v911
      %v940 = vmul.f32 %v491, %v911
      %v941 = vmul.f32 %v496, %v911
      %v942 = vmul.f32 %v501, %v911
      %v943 = vmul.f32 %v506, %v911
      %v944 = vmul.f32 %v511, %v911
      %v945 = vmul.f32 %v516, %v911
      %v946 = vmul.f32 %v521, %v911
      %v947 = vmul.f32 %v526, %v911
      %v948 = vmul.f32 %v531, %v911
      %v949 = vmul.f32 %v536, %v911
      %v950 = vmul.f32 %v541, %v911
      %v951 = vmul.f32 %v546, %v911
      %v952 = vmul.f32 %v551, %v911
      %v953 = vmul.f32 %v556, %v911
      %v954 = vmul.f32 %v561, %v911
      %v955 = vmul.f32 %v566, %v911
      %v956 = vmul.f32 %v571, %v911
      %v957 = vmul.f32 %v576, %v911
      %v958 = vmul.f32 %v581, %v911
      %v959 = vmul.f32 %v586, %v911
      %v960 = vmul.f32 %v591, %v911
      %v961 = vmul.f32 %v596, %v911
      %v962 = vmul.f32 %v601, %v911
      %v963 = vmul.f32 %v606, %v911
      %v964 = vmul.f32 %v611, %v911
      %v965 = vmul.f32 %v616, %v911
      %v966 = vmul.f32 %v621, %v911
      %v967 = vmul.f32 %v626, %v911
      %v968 = vmul.f32 %v631, %v911
      %v969 = vmul.f32 %v636, %v911
      %v970 = vmul.f32 %v641, %v911
      %v971 = vmul.f32 %v646, %v911
      %v972 = vmul.f32 %v651, %v911
      %v973 = vmul.f32 %v656, %v911
      %v974 = vmul.f32 %v661, %v911
      %v975 = vmul.f32 %v666, %v911
      %v976 = vmul.f32 %v671, %v911
      %v977 = vmul.f32 %v676, %v911
      %v978 = vmul.f32 %v681, %v911
      %v979 = vmul.f32 %v686, %v911
      %v980 = vmul.f32 %v691, %v911
      %v981 = vmul.f32 %v696, %v911
      %v982 = vmul.f32 %v701, %v911
      %v983 = vmul.f32 %v706, %v911
      %v984 = vmul.f32 %v711, %v911
      %v985 = vmul.f32 %v716, %v911
      %v986 = vmul.f32 %v721, %v911
      %v987 = vmul.f32 %v726, %v911
      %v988 = vmul.f32 %v731, %v911
      %v989 = vmul.f32 %v736, %v911
      %v990 = vmul.f32 %v741, %v911
      %v991 = vmul.f32 %v746, %v911
      %v992 = vmul.f32 %v751, %v911
      %v993 = vmul.f32 %v756, %v911
      %v994 = vmul.f32 %v761, %v911
      %v995 = vmul.f32 %v766, %v911
      %v996 = vmul.f32 %v771, %v911
      %v997 = vmul.f32 %v776, %v911
      %v998 = vmul.f32 %v781, %v911
      %v999 = vmul.f32 %v786, %v911
      %v1000 = vmul.f32 %v791, %v911
      %v1001 = vmul.f32 %v796, %v911
      %v1002 = vmul.f32 %v801, %v911
      %v1003 = vmul.f32 %v806, %v911
      %v1004 = vmul.f32 %v811, %v911
      %v1005 = vmul.f32 %v816, %v911
      %v1006 = vmul.f32 %v821, %v911
      %v1007 = vmul.f32 %v826, %v911
      %v1008 = vmul.f32 %v831, %v911
      %v1009 = vmul.f32 %v836, %v911
      %v1010 = vmul.f32 %v841, %v911
      %v1011 = vmul.f32 %v846, %v911
      %v1012 = vmul.f32 %v851, %v911
      %v1013 = vmul.f32 %v856, %v911
      %v1014 = vmul.f32 %v861, %v911
      %v1015 = vmul.f32 %v866, %v911
      %v1016 = vmul.f32 %v871, %v911
      %v1017 = vmul.f32 %v876, %v911
      %v1018 = vmul.f32 %v881, %v911
      %v1019 = vmul.f32 %v886, %v911
      %v1020 = vmul.f32 %v891, %v911
      %v1021 = vmul.f32 %v896, %v911
      %v1022 = vmul.f32 %v901, %v911
      %v1023 = vmul.f32 %v906, %v911
      %v1024 = vadd.f32 %v912, 0.0
      %v1025 = vadd.f32 %v913, 0.0
      %v1026 = vadd.f32 %v914, 0.0
      %v1027 = vadd.f32 %v915, 0.0
      %v1028 = vadd.f32 %v916, 0.0
      %v1029 = vadd.f32 %v917, 0.0
      %v1030 = vadd.f32 %v918, 0.0
      %v1031 = vadd.f32 %v919, 0.0
      %v1032 = vadd.f32 %v920, 0.0
      %v1033 = vadd.f32 %v921, 0.0
      %v1034 = vadd.f32 %v922, 0.0
      %v1035 = vadd.f32 %v923, 0.0
      %v1036 = vadd.f32 %v924, 0.0
      %v1037 = vadd.f32 %v925, 0.0
      %v1038 = vadd.f32 %v926, 0.0
      %v1039 = vadd.f32 %v927, 0.0
      %v1040 = vadd.f32 %v928, 0.0
      %v1041 = vadd.f32 %v929, 0.0
      %v1042 = vadd.f32 %v930, 0.0
      %v1043 = vadd.f32 %v931, 0.0
      %v1044 = vadd.f32 %v932, 0.0
      %v1045 = vadd.f32 %v933, 0.0
      %v1046 = vadd.f32 %v934, 0.0
      %v1047 = vadd.f32 %v935, 0.0
      %v1048 = vadd.f32 %v936, 0.0
      %v1049 = vadd.f32 %v937, 0.0
      %v1050 = vadd.f32 %v938, 0.0
      %v1051 = vadd.f32 %v939, 0.0
      %v1052 = vadd.f32 %v940, 0.0
      %v1053 = vadd.f32 %v941, 0.0
      %v1054 = vadd.f32 %v942, 0.0
      %v1055 = vadd.f32 %v943, 0.0
      %v1056 = vadd.f32 %v944, 0.0
      %v1057 = vadd.f32 %v945, 0.0
      %v1058 = vadd.f32 %v946, 0.0
      %v1059 = vadd.f32 %v947, 0.0
      %v1060 = vadd.f32 %v948, 0.0
      %v1061 = vadd.f32 %v949, 0.0
      %v1062 = vadd.f32 %v950, 0.0
      %v1063 = vadd.f32 %v951, 0.0
      %v1064 = vadd.f32 %v952, 0.0
      %v1065 = vadd.f32 %v953, 0.0
      %v1066 = vadd.f32 %v954, 0.0
      %v1067 = vadd.f32 %v955, 0.0
      %v1068 = vadd.f32 %v956, 0.0
      %v1069 = vadd.f32 %v957, 0.0
      %v1070 = vadd.f32 %v958, 0.0
      %v1071 = vadd.f32 %v959, 0.0
      %v1072 = vadd.f32 %v960, 0.0
      %v1073 = vadd.f32 %v961, 0.0
      %v1074 = vadd.f32 %v962, 0.0
      %v1075 = vadd.f32 %v963, 0.0
      %v1076 = vadd.f32 %v964, 0.0
      %v1077 = vadd.f32 %v965, 0.0
      %v1078 = vadd.f32 %v966, 0.0
      %v1079 = vadd.f32 %v967, 0.0
      %v1080 = vadd.f32 %v968, 0.0
      %v1081 = vadd.f32 %v969, 0.0
      %v1082 = vadd.f32 %v970, 0.0
      %v1083 = vadd.f32 %v971, 0.0
      %v1084 = vadd.f32 %v972, 0.0
      %v1085 = vadd.f32 %v973, 0.0
      %v1086 = vadd.f32 %v974, 0.0
      %v1087 = vadd.f32 %v975, 0.0
      %v1088 = vadd.f32 %v976, 0.0
      %v1089 = vadd.f32 %v977, 0.0
      %v1090 = vadd.f32 %v978, 0.0
      %v1091 = vadd.f32 %v979, 0.0
      %v1092 = vadd.f32 %v980, 0.0
      %v1093 = vadd.f32 %v981, 0.0
      %v1094 = vadd.f32 %v982, 0.0
      %v1095 = vadd.f32 %v983, 0.0
      %v1096 = vadd.f32 %v984, 0.0
      %v1097 = vadd.f32 %v985, 0.0
      %v1098 = vadd.f32 %v986, 0.0
      %v1099 = vadd.f32 %v987, 0.0
      %v1100 = vadd.f32 %v988, 0.0
      %v1101 = vadd.f32 %v989, 0.0
      %v1102 = vadd.f32 %v990, 0.0
      %v1103 = vadd.f32 %v991, 0.0
      %v1104 = vadd.f32 %v992, 0.0
      %v1105 = vadd.f32 %v993, 0.0
      %v1106 = vadd.f32 %v994, 0.0
      %v1107 = vadd.f32 %v995, 0.0
      %v1108 = vadd.f32 %v996, 0.0
      %v1109 = vadd.f32 %v997, 0.0
      %v1110 = vadd.f32 %v998, 0.0
      %v1111 = vadd.f32 %v999, 0.0
      %v1112 = vadd.f32 %v1000, 0.0
      %v1113 = vadd.f32 %v1001, 0.0
      %v1114 = vadd.f32 %v1002, 0.0
      %v1115 = vadd.f32 %v1003, 0.0
      %v1116 = vadd.f32 %v1004, 0.0
      %v1117 = vadd.f32 %v1005, 0.0
      %v1118 = vadd.f32 %v1006, 0.0
      %v1119 = vadd.f32 %v1007, 0.0
      %v1120 = vadd.f32 %v1008, 0.0
      %v1121 = vadd.f32 %v1009, 0.0
      %v1122 = vadd.f32 %v1010, 0.0
      %v1123 = vadd.f32 %v1011, 0.0
      %v1124 = vadd.f32 %v1012, 0.0
      %v1125 = vadd.f32 %v1013, 0.0
      %v1126 = vadd.f32 %v1014, 0.0
      %v1127 = vadd.f32 %v1015, 0.0
      %v1128 = vadd.f32 %v1016, 0.0
      %v1129 = vadd.f32 %v1017, 0.0
      %v1130 = vadd.f32 %v1018, 0.0
      %v1131 = vadd.f32 %v1019, 0.0
      %v1132 = vadd.f32 %v1020, 0.0
      %v1133 = vadd.f32 %v1021, 0.0
      %v1134 = vadd.f32 %v1022, 0.0
      %v1135 = vadd.f32 %v1023, 0.0
      %v1136 = vlaneseq
      %v1137 = vshrl.u32 %v1136, 7
      %v1138 = vsub.s32 1, %v1137
      %v1139 = vrot.slane %v346, %v1138
      %v1140 = vmul.f32 %v351, %v1139
      %v1141 = vmul.f32 %v356, %v1139
      %v1142 = vmul.f32 %v361, %v1139
      %v1143 = vmul.f32 %v366, %v1139
      %v1144 = vmul.f32 %v371, %v1139
      %v1145 = vmul.f32 %v376, %v1139
      %v1146 = vmul.f32 %v381, %v1139
      %v1147 = vmul.f32 %v386, %v1139
      %v1148 = vmul.f32 %v391, %v1139
      %v1149 = vmul.f32 %v396, %v1139
      %v1150 = vmul.f32 %v401, %v1139
      %v1151 = vmul.f32 %v406, %v1139
      %v1152 = vmul.f32 %v411, %v1139
      %v1153 = vmul.f32 %v416, %v1139
      %v1154 = vmul.f32 %v421, %v1139
      %v1155 = vmul.f32 %v426, %v1139
      %v1156 = vmul.f32 %v431, %v1139
      %v1157 = vmul.f32 %v436, %v1139
      %v1158 = vmul.f32 %v441, %v1139
      %v1159 = vmul.f32 %v446, %v1139
      %v1160 = vmul.f32 %v451, %v1139
      %v1161 = vmul.f32 %v456, %v1139
      %v1162 = vmul.f32 %v461, %v1139
      %v1163 = vmul.f32 %v466, %v1139
      %v1164 = vmul.f32 %v471, %v1139
      %v1165 = vmul.f32 %v476, %v1139
      %v1166 = vmul.f32 %v481, %v1139
      %v1167 = vmul.f32 %v486, %v1139
      %v1168 = vmul.f32 %v491, %v1139
      %v1169 = vmul.f32 %v496, %v1139
      %v1170 = vmul.f32 %v501, %v1139
      %v1171 = vmul.f32 %v506, %v1139
      %v1172 = vmul.f32 %v511, %v1139
      %v1173 = vmul.f32 %v516, %v1139
      %v1174 = vmul.f32 %v521, %v1139
      %v1175 = vmul.f32 %v526, %v1139
      %v1176 = vmul.f32 %v531, %v1139
      %v1177 = vmul.f32 %v536, %v1139
      %v1178 = vmul.f32 %v541, %v1139
      %v1179 = vmul.f32 %v546, %v1139
      %v1180 = vmul.f32 %v551, %v1139
      %v1181 = vmul.f32 %v556, %v1139
      %v1182 = vmul.f32 %v561, %v1139
      %v1183 = vmul.f32 %v566, %v1139
      %v1184 = vmul.f32 %v571, %v1139
      %v1185 = vmul.f32 %v576, %v1139
      %v1186 = vmul.f32 %v581, %v1139
      %v1187 = vmul.f32 %v586, %v1139
      %v1188 = vmul.f32 %v591, %v1139
      %v1189 = vmul.f32 %v596, %v1139
      %v1190 = vmul.f32 %v601, %v1139
      %v1191 = vmul.f32 %v606, %v1139
      %v1192 = vmul.f32 %v611, %v1139
      %v1193 = vmul.f32 %v616, %v1139
      %v1194 = vmul.f32 %v621, %v1139
      %v1195 = vmul.f32 %v626, %v1139
      %v1196 = vmul.f32 %v631, %v1139
      %v1197 = vmul.f32 %v636, %v1139
      %v1198 = vmul.f32 %v641, %v1139
      %v1199 = vmul.f32 %v646, %v1139
      %v1200 = vmul.f32 %v651, %v1139
      %v1201 = vmul.f32 %v656, %v1139
      %v1202 = vmul.f32 %v661, %v1139
      %v1203 = vmul.f32 %v666, %v1139
      %v1204 = vmul.f32 %v671, %v1139
      %v1205 = vmul.f32 %v676, %v1139
      %v1206 = vmul.f32 %v681, %v1139
      %v1207 = vmul.f32 %v686, %v1139
      %v1208 = vmul.f32 %v691, %v1139
      %v1209 = vmul.f32 %v696, %v1139
      %v1210 = vmul.f32 %v701, %v1139
      %v1211 = vmul.f32 %v706, %v1139
      %v1212 = vmul.f32 %v711, %v1139
      %v1213 = vmul.f32 %v716, %v1139
      %v1214 = vmul.f32 %v721, %v1139
      %v1215 = vmul.f32 %v726, %v1139
      %v1216 = vmul.f32 %v731, %v1139
      %v1217 = vmul.f32 %v736, %v1139
      %v1218 = vmul.f32 %v741, %v1139
      %v1219 = vmul.f32 %v746, %v1139
      %v1220 = vmul.f32 %v751, %v1139
      %v1221 = vmul.f32 %v756, %v1139
      %v1222 = vmul.f32 %v761, %v1139
      %v1223 = vmul.f32 %v766, %v1139
      %v1224 = vmul.f32 %v771, %v1139
      %v1225 = vmul.f32 %v776, %v1139
      %v1226 = vmul.f32 %v781, %v1139
      %v1227 = vmul.f32 %v786, %v1139
      %v1228 = vmul.f32 %v791, %v1139
      %v1229 = vmul.f32 %v796, %v1139
      %v1230 = vmul.f32 %v801, %v1139
      %v1231 = vmul.f32 %v806, %v1139
      %v1232 = vmul.f32 %v811, %v1139
      %v1233 = vmul.f32 %v816, %v1139
      %v1234 = vmul.f32 %v821, %v1139
      %v1235 = vmul.f32 %v826, %v1139
      %v1236 = vmul.f32 %v831, %v1139
      %v1237 = vmul.f32 %v836, %v1139
      %v1238 = vmul.f32 %v841, %v1139
      %v1239 = vmul.f32 %v846, %v1139
      %v1240 = vmul.f32 %v851, %v1139
      %v1241 = vmul.f32 %v856, %v1139
      %v1242 = vmul.f32 %v861, %v1139
      %v1243 = vmul.f32 %v866, %v1139
      %v1244 = vmul.f32 %v871, %v1139
      %v1245 = vmul.f32 %v876, %v1139
      %v1246 = vmul.f32 %v881, %v1139
      %v1247 = vmul.f32 %v886, %v1139
      %v1248 = vmul.f32 %v891, %v1139
      %v1249 = vmul.f32 %v896, %v1139
      %v1250 = vmul.f32 %v901, %v1139
      %v1251 = vmul.f32 %v906, %v1139
      %vm1364 = vcmask 1046528
      %v1365 = vrot.slane %v1140, 1
      %v1366 = vrot.slane %v1141, 1
      %v1367 = vsel %vm1364, %v1365, %v1366
      %v1368 = vrot.slane %v1142, 1
      %v1369 = vsel %vm1364, %v1366, %v1368
      %v1370 = vrot.slane %v1143, 1
      %v1371 = vsel %vm1364, %v1368, %v1370
      %v1372 = vrot.slane %v1144, 1
      %v1373 = vrot.slane %v1145, 1
      %v1374 = vsel %vm1364, %v1372, %v1373
      %v1375 = vrot.slane %v1146, 1
      %v1376 = vsel %vm1364, %v1373, %v1375
      %v1377 = vrot.slane %v1147, 1
      %v1378 = vsel %vm1364, %v1375, %v1377
      %v1379 = vrot.slane %v1148, 1
      %v1380 = vrot.slane %v1149, 1
      %v1381 = vsel %vm1364, %v1379, %v1380
      %v1382 = vrot.slane %v1150, 1
      %v1383 = vsel %vm1364, %v1380, %v1382
      %v1384 = vrot.slane %v1151, 1
      %v1385 = vsel %vm1364, %v1382, %v1384
      %v1386 = vrot.slane %v1152, 1
      %v1387 = vrot.slane %v1153, 1
      %v1388 = vsel %vm1364, %v1386, %v1387
      %v1389 = vrot.slane %v1154, 1
      %v1390 = vsel %vm1364, %v1387, %v1389
      %v1391 = vrot.slane %v1155, 1
      %v1392 = vsel %vm1364, %v1389, %v1391
      %v1393 = vrot.slane %v1156, 1
      %v1394 = vrot.slane %v1157, 1
      %v1395 = vsel %vm1364, %v1393, %v1394
      %v1396 = vrot.slane %v1158, 1
      %v1397 = vsel %vm1364, %v1394, %v1396
      %v1398 = vrot.slane %v1159, 1
      %v1399 = vsel %vm1364, %v1396, %v1398
      %v1400 = vrot.slane %v1160, 1
      %v1401 = vrot.slane %v1161, 1
      %v1402 = vsel %vm1364, %v1400, %v1401
      %v1403 = vrot.slane %v1162, 1
      %v1404 = vsel %vm1364, %v1401, %v1403
      %v1405 = vrot.slane %v1163, 1
      %v1406 = vsel %vm1364, %v1403, %v1405
      %v1407 = vrot.slane %v1164, 1
      %v1408 = vrot.slane %v1165, 1
      %v1409 = vsel %vm1364, %v1407, %v1408
      %v1410 = vrot.slane %v1166, 1
      %v1411 = vsel %vm1364, %v1408, %v1410
      %v1412 = vrot.slane %v1167, 1
      %v1413 = vsel %vm1364, %v1410, %v1412
      %v1414 = vrot.slane %v1168, 1
      %v1415 = vrot.slane %v1169, 1
      %v1416 = vsel %vm1364, %v1414, %v1415
      %v1417 = vrot.slane %v1170, 1
      %v1418 = vsel %vm1364, %v1415, %v1417
      %v1419 = vrot.slane %v1171, 1
      %v1420 = vsel %vm1364, %v1417, %v1419
      %v1421 = vrot.slane %v1172, 1
      %v1422 = vrot.slane %v1173, 1
      %v1423 = vsel %vm1364, %v1421, %v1422
      %v1424 = vrot.slane %v1174, 1
      %v1425 = vsel %vm1364, %v1422, %v1424
      %v1426 = vrot.slane %v1175, 1
      %v1427 = vsel %vm1364, %v1424, %v1426
      %v1428 = vrot.slane %v1176, 1
      %v1429 = vrot.slane %v1177, 1
      %v1430 = vsel %vm1364, %v1428, %v1429
      %v1431 = vrot.slane %v1178, 1
      %v1432 = vsel %vm1364, %v1429, %v1431
      %v1433 = vrot.slane %v1179, 1
      %v1434 = vsel %vm1364, %v1431, %v1433
      %v1435 = vrot.slane %v1180, 1
      %v1436 = vrot.slane %v1181, 1
      %v1437 = vsel %vm1364, %v1435, %v1436
      %v1438 = vrot.slane %v1182, 1
      %v1439 = vsel %vm1364, %v1436, %v1438
      %v1440 = vrot.slane %v1183, 1
      %v1441 = vsel %vm1364, %v1438, %v1440
      %v1442 = vrot.slane %v1184, 1
      %v1443 = vrot.slane %v1185, 1
      %v1444 = vsel %vm1364, %v1442, %v1443
      %v1445 = vrot.slane %v1186, 1
      %v1446 = vsel %vm1364, %v1443, %v1445
      %v1447 = vrot.slane %v1187, 1
      %v1448 = vsel %vm1364, %v1445, %v1447
      %v1449 = vrot.slane %v1188, 1
      %v1450 = vrot.slane %v1189, 1
      %v1451 = vsel %vm1364, %v1449, %v1450
      %v1452 = vrot.slane %v1190, 1
      %v1453 = vsel %vm1364, %v1450, %v1452
      %v1454 = vrot.slane %v1191, 1
      %v1455 = vsel %vm1364, %v1452, %v1454
      %v1456 = vrot.slane %v1192, 1
      %v1457 = vrot.slane %v1193, 1
      %v1458 = vsel %vm1364, %v1456, %v1457
      %v1459 = vrot.slane %v1194, 1
      %v1460 = vsel %vm1364, %v1457, %v1459
      %v1461 = vrot.slane %v1195, 1
      %v1462 = vsel %vm1364, %v1459, %v1461
      %v1463 = vrot.slane %v1196, 1
      %v1464 = vrot.slane %v1197, 1
      %v1465 = vsel %vm1364, %v1463, %v1464
      %v1466 = vrot.slane %v1198, 1
      %v1467 = vsel %vm1364, %v1464, %v1466
      %v1468 = vrot.slane %v1199, 1
      %v1469 = vsel %vm1364, %v1466, %v1468
      %v1470 = vrot.slane %v1200, 1
      %v1471 = vrot.slane %v1201, 1
      %v1472 = vsel %vm1364, %v1470, %v1471
      %v1473 = vrot.slane %v1202, 1
      %v1474 = vsel %vm1364, %v1471, %v1473
      %v1475 = vrot.slane %v1203, 1
      %v1476 = vsel %vm1364, %v1473, %v1475
      %v1477 = vrot.slane %v1204, 1
      %v1478 = vrot.slane %v1205, 1
      %v1479 = vsel %vm1364, %v1477, %v1478
      %v1480 = vrot.slane %v1206, 1
      %v1481 = vsel %vm1364, %v1478, %v1480
      %v1482 = vrot.slane %v1207, 1
      %v1483 = vsel %vm1364, %v1480, %v1482
      %v1484 = vrot.slane %v1208, 1
      %v1485 = vrot.slane %v1209, 1
      %v1486 = vsel %vm1364, %v1484, %v1485
      %v1487 = vrot.slane %v1210, 1
      %v1488 = vsel %vm1364, %v1485, %v1487
      %v1489 = vrot.slane %v1211, 1
      %v1490 = vsel %vm1364, %v1487, %v1489
      %v1491 = vrot.slane %v1212, 1
      %v1492 = vrot.slane %v1213, 1
      %v1493 = vsel %vm1364, %v1491, %v1492
      %v1494 = vrot.slane %v1214, 1
      %v1495 = vsel %vm1364, %v1492, %v1494
      %v1496 = vrot.slane %v1215, 1
      %v1497 = vsel %vm1364, %v1494, %v1496
      %v1498 = vrot.slane %v1216, 1
      %v1499 = vrot.slane %v1217, 1
      %v1500 = vsel %vm1364, %v1498, %v1499
      %v1501 = vrot.slane %v1218, 1
      %v1502 = vsel %vm1364, %v1499, %v1501
      %v1503 = vrot.slane %v1219, 1
      %v1504 = vsel %vm1364, %v1501, %v1503
      %v1505 = vrot.slane %v1220, 1
      %v1506 = vrot.slane %v1221, 1
      %v1507 = vsel %vm1364, %v1505, %v1506
      %v1508 = vrot.slane %v1222, 1
      %v1509 = vsel %vm1364, %v1506, %v1508
      %v1510 = vrot.slane %v1223, 1
      %v1511 = vsel %vm1364, %v1508, %v1510
      %v1512 = vrot.slane %v1224, 1
      %v1513 = vrot.slane %v1225, 1
      %v1514 = vsel %vm1364, %v1512, %v1513
      %v1515 = vrot.slane %v1226, 1
      %v1516 = vsel %vm1364, %v1513, %v1515
      %v1517 = vrot.slane %v1227, 1
      %v1518 = vsel %vm1364, %v1515, %v1517
      %v1519 = vrot.slane %v1228, 1
      %v1520 = vrot.slane %v1229, 1
      %v1521 = vsel %vm1364, %v1519, %v1520
      %v1522 = vrot.slane %v1230, 1
      %v1523 = vsel %vm1364, %v1520, %v1522
      %v1524 = vrot.slane %v1231, 1
      %v1525 = vsel %vm1364, %v1522, %v1524
      %v1526 = vrot.slane %v1232, 1
      %v1527 = vrot.slane %v1233, 1
      %v1528 = vsel %vm1364, %v1526, %v1527
      %v1529 = vrot.slane %v1234, 1
      %v1530 = vsel %vm1364, %v1527, %v1529
      %v1531 = vrot.slane %v1235, 1
      %v1532 = vsel %vm1364, %v1529, %v1531
      %v1533 = vrot.slane %v1236, 1
      %v1534 = vrot.slane %v1237, 1
      %v1535 = vsel %vm1364, %v1533, %v1534
      %v1536 = vrot.slane %v1238, 1
      %v1537 = vsel %vm1364, %v1534, %v1536
      %v1538 = vrot.slane %v1239, 1
      %v1539 = vsel %vm1364, %v1536, %v1538
      %v1540 = vrot.slane %v1240, 1
      %v1541 = vrot.slane %v1241, 1
      %v1542 = vsel %vm1364, %v1540, %v1541
      %v1543 = vrot.slane %v1242, 1
      %v1544 = vsel %vm1364, %v1541, %v1543
      %v1545 = vrot.slane %v1243, 1
      %v1546 = vsel %vm1364, %v1543, %v1545
      %v1547 = vrot.slane %v1244, 1
      %v1548 = vrot.slane %v1245, 1
      %v1549 = vsel %vm1364, %v1547, %v1548
      %v1550 = vrot.slane %v1246, 1
      %v1551 = vsel %vm1364, %v1548, %v1550
      %v1552 = vrot.slane %v1247, 1
      %v1553 = vsel %vm1364, %v1550, %v1552
      %v1554 = vrot.slane %v1248, 1
      %v1555 = vrot.slane %v1249, 1
      %v1556 = vsel %vm1364, %v1554, %v1555
      %v1557 = vrot.slane %v1250, 1
      %v1558 = vsel %vm1364, %v1555, %v1557
      %v1559 = vrot.slane %v1251, 1
      %v1560 = vsel %vm1364, %v1557, %v1559
      %v1673 = vadd.f32 %v1024, %v1367
      %v1674 = vadd.f32 %v1025, %v1369
      %v1675 = vadd.f32 %v1026, %v1371
      %v1676 = vadd.f32 %v1027, %v1370
      %v1677 = vadd.f32 %v1028, %v1374
      %v1678 = vadd.f32 %v1029, %v1376
      %v1679 = vadd.f32 %v1030, %v1378
      %v1680 = vadd.f32 %v1031, %v1377
      %v1681 = vadd.f32 %v1032, %v1381
      %v1682 = vadd.f32 %v1033, %v1383
      %v1683 = vadd.f32 %v1034, %v1385
      %v1684 = vadd.f32 %v1035, %v1384
      %v1685 = vadd.f32 %v1036, %v1388
      %v1686 = vadd.f32 %v1037, %v1390
      %v1687 = vadd.f32 %v1038, %v1392
      %v1688 = vadd.f32 %v1039, %v1391
      %v1689 = vadd.f32 %v1040, %v1395
      %v1690 = vadd.f32 %v1041, %v1397
      %v1691 = vadd.f32 %v1042, %v1399
      %v1692 = vadd.f32 %v1043, %v1398
      %v1693 = vadd.f32 %v1044, %v1402
      %v1694 = vadd.f32 %v1045, %v1404
      %v1695 = vadd.f32 %v1046, %v1406
      %v1696 = vadd.f32 %v1047, %v1405
      %v1697 = vadd.f32 %v1048, %v1409
      %v1698 = vadd.f32 %v1049, %v1411
      %v1699 = vadd.f32 %v1050, %v1413
      %v1700 = vadd.f32 %v1051, %v1412
      %v1701 = vadd.f32 %v1052, %v1416
      %v1702 = vadd.f32 %v1053, %v1418
      %v1703 = vadd.f32 %v1054, %v1420
      %v1704 = vadd.f32 %v1055, %v1419
      %v1705 = vadd.f32 %v1056, %v1423
      %v1706 = vadd.f32 %v1057, %v1425
      %v1707 = vadd.f32 %v1058, %v1427
      %v1708 = vadd.f32 %v1059, %v1426
      %v1709 = vadd.f32 %v1060, %v1430
      %v1710 = vadd.f32 %v1061, %v1432
      %v1711 = vadd.f32 %v1062, %v1434
      %v1712 = vadd.f32 %v1063, %v1433
      %v1713 = vadd.f32 %v1064, %v1437
      %v1714 = vadd.f32 %v1065, %v1439
      %v1715 = vadd.f32 %v1066, %v1441
      %v1716 = vadd.f32 %v1067, %v1440
      %v1717 = vadd.f32 %v1068, %v1444
      %v1718 = vadd.f32 %v1069, %v1446
      %v1719 = vadd.f32 %v1070, %v1448
      %v1720 = vadd.f32 %v1071, %v1447
      %v1721 = vadd.f32 %v1072, %v1451
      %v1722 = vadd.f32 %v1073, %v1453
      %v1723 = vadd.f32 %v1074, %v1455
      %v1724 = vadd.f32 %v1075, %v1454
      %v1725 = vadd.f32 %v1076, %v1458
      %v1726 = vadd.f32 %v1077, %v1460
      %v1727 = vadd.f32 %v1078, %v1462
      %v1728 = vadd.f32 %v1079, %v1461
      %v1729 = vadd.f32 %v1080, %v1465
      %v1730 = vadd.f32 %v1081, %v1467
      %v1731 = vadd.f32 %v1082, %v1469
      %v1732 = vadd.f32 %v1083, %v1468
      %v1733 = vadd.f32 %v1084, %v1472
      %v1734 = vadd.f32 %v1085, %v1474
      %v1735 = vadd.f32 %v1086, %v1476
      %v1736 = vadd.f32 %v1087, %v1475
      %v1737 = vadd.f32 %v1088, %v1479
      %v1738 = vadd.f32 %v1089, %v1481
      %v1739 = vadd.f32 %v1090, %v1483
      %v1740 = vadd.f32 %v1091, %v1482
      %v1741 = vadd.f32 %v1092, %v1486
      %v1742 = vadd.f32 %v1093, %v1488
      %v1743 = vadd.f32 %v1094, %v1490
      %v1744 = vadd.f32 %v1095, %v1489
      %v1745 = vadd.f32 %v1096, %v1493
      %v1746 = vadd.f32 %v1097, %v1495
      %v1747 = vadd.f32 %v1098, %v1497
      %v1748 = vadd.f32 %v1099, %v1496
      %v1749 = vadd.f32 %v1100, %v1500
      %v1750 = vadd.f32 %v1101, %v1502
      %v1751 = vadd.f32 %v1102, %v1504
      %v1752 = vadd.f32 %v1103, %v1503
      %v1753 = vadd.f32 %v1104, %v1507
      %v1754 = vadd.f32 %v1105, %v1509
      %v1755 = vadd.f32 %v1106, %v1511
      %v1756 = vadd.f32 %v1107, %v1510
      %v1757 = vadd.f32 %v1108, %v1514
      %v1758 = vadd.f32 %v1109, %v1516
      %v1759 = vadd.f32 %v1110, %v1518
      %v1760 = vadd.f32 %v1111, %v1517
      %v1761 = vadd.f32 %v1112, %v1521
      %v1762 = vadd.f32 %v1113, %v1523
      %v1763 = vadd.f32 %v1114, %v1525
      %v1764 = vadd.f32 %v1115, %v1524
      %v1765 = vadd.f32 %v1116, %v1528
      %v1766 = vadd.f32 %v1117, %v1530
      %v1767 = vadd.f32 %v1118, %v1532
      %v1768 = vadd.f32 %v1119, %v1531
      %v1769 = vadd.f32 %v1120, %v1535
      %v1770 = vadd.f32 %v1121, %v1537
      %v1771 = vadd.f32 %v1122, %v1539
      %v1772 = vadd.f32 %v1123, %v1538
      %v1773 = vadd.f32 %v1124, %v1542
      %v1774 = vadd.f32 %v1125, %v1544
      %v1775 = vadd.f32 %v1126, %v1546
      %v1776 = vadd.f32 %v1127, %v1545
      %v1777 = vadd.f32 %v1128, %v1549
      %v1778 = vadd.f32 %v1129, %v1551
      %v1779 = vadd.f32 %v1130, %v1553
      %v1780 = vadd.f32 %v1131, %v1552
      %v1781 = vadd.f32 %v1132, %v1556
      %v1782 = vadd.f32 %v1133, %v1558
      %v1783 = vadd.f32 %v1134, %v1560
      %v1784 = vadd.f32 %v1135, %v1559
      %v1785 = vlaneseq
      %v1786 = vshrl.u32 %v1785, 7
      %v1787 = vsub.s32 2, %v1786
      %v1788 = vrot.slane %v346, %v1787
      %v1789 = vmul.f32 %v351, %v1788
      %v1790 = vmul.f32 %v356, %v1788
      %v1791 = vmul.f32 %v361, %v1788
      %v1792 = vmul.f32 %v366, %v1788
      %v1793 = vmul.f32 %v371, %v1788
      %v1794 = vmul.f32 %v376, %v1788
      %v1795 = vmul.f32 %v381, %v1788
      %v1796 = vmul.f32 %v386, %v1788
      %v1797 = vmul.f32 %v391, %v1788
      %v1798 = vmul.f32 %v396, %v1788
      %v1799 = vmul.f32 %v401, %v1788
      %v1800 = vmul.f32 %v406, %v1788
      %v1801 = vmul.f32 %v411, %v1788
      %v1802 = vmul.f32 %v416, %v1788
      %v1803 = vmul.f32 %v421, %v1788
      %v1804 = vmul.f32 %v426, %v1788
      %v1805 = vmul.f32 %v431, %v1788
      %v1806 = vmul.f32 %v436, %v1788
      %v1807 = vmul.f32 %v441, %v1788
      %v1808 = vmul.f32 %v446, %v1788
      %v1809 = vmul.f32 %v451, %v1788
      %v1810 = vmul.f32 %v456, %v1788
      %v1811 = vmul.f32 %v461, %v1788
      %v1812 = vmul.f32 %v466, %v1788
      %v1813 = vmul.f32 %v471, %v1788
      %v1814 = vmul.f32 %v476, %v1788
      %v1815 = vmul.f32 %v481, %v1788
      %v1816 = vmul.f32 %v486, %v1788
      %v1817 = vmul.f32 %v491, %v1788
      %v1818 = vmul.f32 %v496, %v1788
      %v1819 = vmul.f32 %v501, %v1788
      %v1820 = vmul.f32 %v506, %v1788
      %v1821 = vmul.f32 %v511, %v1788
      %v1822 = vmul.f32 %v516, %v1788
      %v1823 = vmul.f32 %v521, %v1788
      %v1824 = vmul.f32 %v526, %v1788
      %v1825 = vmul.f32 %v531, %v1788
      %v1826 = vmul.f32 %v536, %v1788
      %v1827 = vmul.f32 %v541, %v1788
      %v1828 = vmul.f32 %v546, %v1788
      %v1829 = vmul.f32 %v551, %v1788
      %v1830 = vmul.f32 %v556, %v1788
      %v1831 = vmul.f32 %v561, %v1788
      %v1832 = vmul.f32 %v566, %v1788
      %v1833 = vmul.f32 %v571, %v1788
      %v1834 = vmul.f32 %v576, %v1788
      %v1835 = vmul.f32 %v581, %v1788
      %v1836 = vmul.f32 %v586, %v1788
      %v1837 = vmul.f32 %v591, %v1788
      %v1838 = vmul.f32 %v596, %v1788
      %v1839 = vmul.f32 %v601, %v1788
      %v1840 = vmul.f32 %v606, %v1788
      %v1841 = vmul.f32 %v611, %v1788
      %v1842 = vmul.f32 %v616, %v1788
      %v1843 = vmul.f32 %v621, %v1788
      %v1844 = vmul.f32 %v626, %v1788
      %v1845 = vmul.f32 %v631, %v1788
      %v1846 = vmul.f32 %v636, %v1788
      %v1847 = vmul.f32 %v641, %v1788
      %v1848 = vmul.f32 %v646, %v1788
      %v1849 = vmul.f32 %v651, %v1788
      %v1850 = vmul.f32 %v656, %v1788
      %v1851 = vmul.f32 %v661, %v1788
      %v1852 = vmul.f32 %v666, %v1788
      %v1853 = vmul.f32 %v671, %v1788
      %v1854 = vmul.f32 %v676, %v1788
      %v1855 = vmul.f32 %v681, %v1788
      %v1856 = vmul.f32 %v686, %v1788
      %v1857 = vmul.f32 %v691, %v1788
      %v1858 = vmul.f32 %v696, %v1788
      %v1859 = vmul.f32 %v701, %v1788
      %v1860 = vmul.f32 %v706, %v1788
      %v1861 = vmul.f32 %v711, %v1788
      %v1862 = vmul.f32 %v716, %v1788
      %v1863 = vmul.f32 %v721, %v1788
      %v1864 = vmul.f32 %v726, %v1788
      %v1865 = vmul.f32 %v731, %v1788
      %v1866 = vmul.f32 %v736, %v1788
      %v1867 = vmul.f32 %v741, %v1788
      %v1868 = vmul.f32 %v746, %v1788
      %v1869 = vmul.f32 %v751, %v1788
      %v1870 = vmul.f32 %v756, %v1788
      %v1871 = vmul.f32 %v761, %v1788
      %v1872 = vmul.f32 %v766, %v1788
      %v1873 = vmul.f32 %v771, %v1788
      %v1874 = vmul.f32 %v776, %v1788
      %v1875 = vmul.f32 %v781, %v1788
      %v1876 = vmul.f32 %v786, %v1788
      %v1877 = vmul.f32 %v791, %v1788
      %v1878 = vmul.f32 %v796, %v1788
      %v1879 = vmul.f32 %v801, %v1788
      %v1880 = vmul.f32 %v806, %v1788
      %v1881 = vmul.f32 %v811, %v1788
      %v1882 = vmul.f32 %v816, %v1788
      %v1883 = vmul.f32 %v821, %v1788
      %v1884 = vmul.f32 %v826, %v1788
      %v1885 = vmul.f32 %v831, %v1788
      %v1886 = vmul.f32 %v836, %v1788
      %v1887 = vmul.f32 %v841, %v1788
      %v1888 = vmul.f32 %v846, %v1788
      %v1889 = vmul.f32 %v851, %v1788
      %v1890 = vmul.f32 %v856, %v1788
      %v1891 = vmul.f32 %v861, %v1788
      %v1892 = vmul.f32 %v866, %v1788
      %v1893 = vmul.f32 %v871, %v1788
      %v1894 = vmul.f32 %v876, %v1788
      %v1895 = vmul.f32 %v881, %v1788
      %v1896 = vmul.f32 %v886, %v1788
      %v1897 = vmul.f32 %v891, %v1788
      %v1898 = vmul.f32 %v896, %v1788
      %v1899 = vmul.f32 %v901, %v1788
      %v1900 = vmul.f32 %v906, %v1788
      %vm2013 = vcmask 1045504
      %v2014 = vrot.slane %v1789, 2
      %v2015 = vrot.slane %v1790, 2
      %v2016 = vsel %vm2013, %v2014, %v2015
      %v2017 = vrot.slane %v1791, 2
      %v2018 = vsel %vm2013, %v2015, %v2017
      %v2019 = vrot.slane %v1792, 2
      %v2020 = vsel %vm2013, %v2017, %v2019
      %v2021 = vrot.slane %v1793, 2
      %v2022 = vrot.slane %v1794, 2
      %v2023 = vsel %vm2013, %v2021, %v2022
      %v2024 = vrot.slane %v1795, 2
      %v2025 = vsel %vm2013, %v2022, %v2024
      %v2026 = vrot.slane %v1796, 2
      %v2027 = vsel %vm2013, %v2024, %v2026
      %v2028 = vrot.slane %v1797, 2
      %v2029 = vrot.slane %v1798, 2
      %v2030 = vsel %vm2013, %v2028, %v2029
      %v2031 = vrot.slane %v1799, 2
      %v2032 = vsel %vm2013, %v2029, %v2031
      %v2033 = vrot.slane %v1800, 2
      %v2034 = vsel %vm2013, %v2031, %v2033
      %v2035 = vrot.slane %v1801, 2
      %v2036 = vrot.slane %v1802, 2
      %v2037 = vsel %vm2013, %v2035, %v2036
      %v2038 = vrot.slane %v1803, 2
      %v2039 = vsel %vm2013, %v2036, %v2038
      %v2040 = vrot.slane %v1804, 2
      %v2041 = vsel %vm2013, %v2038, %v2040
      %v2042 = vrot.slane %v1805, 2
      %v2043 = vrot.slane %v1806, 2
      %v2044 = vsel %vm2013, %v2042, %v2043
      %v2045 = vrot.slane %v1807, 2
      %v2046 = vsel %vm2013, %v2043, %v2045
      %v2047 = vrot.slane %v1808, 2
      %v2048 = vsel %vm2013, %v2045, %v2047
      %v2049 = vrot.slane %v1809, 2
      %v2050 = vrot.slane %v1810, 2
      %v2051 = vsel %vm2013, %v2049, %v2050
      %v2052 = vrot.slane %v1811, 2
      %v2053 = vsel %vm2013, %v2050, %v2052
      %v2054 = vrot.slane %v1812, 2
      %v2055 = vsel %vm2013, %v2052, %v2054
      %v2056 = vrot.slane %v1813, 2
      %v2057 = vrot.slane %v1814, 2
      %v2058 = vsel %vm2013, %v2056, %v2057
      %v2059 = vrot.slane %v1815, 2
      %v2060 = vsel %vm2013, %v2057, %v2059
      %v2061 = vrot.slane %v1816, 2
      %v2062 = vsel %vm2013, %v2059, %v2061
      %v2063 = vrot.slane %v1817, 2
      %v2064 = vrot.slane %v1818, 2
      %v2065 = vsel %vm2013, %v2063, %v2064
      %v2066 = vrot.slane %v1819, 2
      %v2067 = vsel %vm2013, %v2064, %v2066
      %v2068 = vrot.slane %v1820, 2
      %v2069 = vsel %vm2013, %v2066, %v2068
      %v2070 = vrot.slane %v1821, 2
      %v2071 = vrot.slane %v1822, 2
      %v2072 = vsel %vm2013, %v2070, %v2071
      %v2073 = vrot.slane %v1823, 2
      %v2074 = vsel %vm2013, %v2071, %v2073
      %v2075 = vrot.slane %v1824, 2
      %v2076 = vsel %vm2013, %v2073, %v2075
      %v2077 = vrot.slane %v1825, 2
      %v2078 = vrot.slane %v1826, 2
      %v2079 = vsel %vm2013, %v2077, %v2078
      %v2080 = vrot.slane %v1827, 2
      %v2081 = vsel %vm2013, %v2078, %v2080
      %v2082 = vrot.slane %v1828, 2
      %v2083 = vsel %vm2013, %v2080, %v2082
      %v2084 = vrot.slane %v1829, 2
      %v2085 = vrot.slane %v1830, 2
      %v2086 = vsel %vm2013, %v2084, %v2085
      %v2087 = vrot.slane %v1831, 2
      %v2088 = vsel %vm2013, %v2085, %v2087
      %v2089 = vrot.slane %v1832, 2
      %v2090 = vsel %vm2013, %v2087, %v2089
      %v2091 = vrot.slane %v1833, 2
      %v2092 = vrot.slane %v1834, 2
      %v2093 = vsel %vm2013, %v2091, %v2092
      %v2094 = vrot.slane %v1835, 2
      %v2095 = vsel %vm2013, %v2092, %v2094
      %v2096 = vrot.slane %v1836, 2
      %v2097 = vsel %vm2013, %v2094, %v2096
      %v2098 = vrot.slane %v1837, 2
      %v2099 = vrot.slane %v1838, 2
      %v2100 = vsel %vm2013, %v2098, %v2099
      %v2101 = vrot.slane %v1839, 2
      %v2102 = vsel %vm2013, %v2099, %v2101
      %v2103 = vrot.slane %v1840, 2
      %v2104 = vsel %vm2013, %v2101, %v2103
      %v2105 = vrot.slane %v1841, 2
      %v2106 = vrot.slane %v1842, 2
      %v2107 = vsel %vm2013, %v2105, %v2106
      %v2108 = vrot.slane %v1843, 2
      %v2109 = vsel %vm2013, %v2106, %v2108
      %v2110 = vrot.slane %v1844, 2
      %v2111 = vsel %vm2013, %v2108, %v2110
      %v2112 = vrot.slane %v1845, 2
      %v2113 = vrot.slane %v1846, 2
      %v2114 = vsel %vm2013, %v2112, %v2113
      %v2115 = vrot.slane %v1847, 2
      %v2116 = vsel %vm2013, %v2113, %v2115
      %v2117 = vrot.slane %v1848, 2
      %v2118 = vsel %vm2013, %v2115, %v2117
      %v2119 = vrot.slane %v1849, 2
      %v2120 = vrot.slane %v1850, 2
      %v2121 = vsel %vm2013, %v2119, %v2120
      %v2122 = vrot.slane %v1851, 2
      %v2123 = vsel %vm2013, %v2120, %v2122
      %v2124 = vrot.slane %v1852, 2
      %v2125 = vsel %vm2013, %v2122, %v2124
      %v2126 = vrot.slane %v1853, 2
      %v2127 = vrot.slane %v1854, 2
      %v2128 = vsel %vm2013, %v2126, %v2127
      %v2129 = vrot.slane %v1855, 2
      %v2130 = vsel %vm2013, %v2127, %v2129
      %v2131 = vrot.slane %v1856, 2
      %v2132 = vsel %vm2013, %v2129, %v2131
      %v2133 = vrot.slane %v1857, 2
      %v2134 = vrot.slane %v1858, 2
      %v2135 = vsel %vm2013, %v2133, %v2134
      %v2136 = vrot.slane %v1859, 2
      %v2137 = vsel %vm2013, %v2134, %v2136
      %v2138 = vrot.slane %v1860, 2
      %v2139 = vsel %vm2013, %v2136, %v2138
      %v2140 = vrot.slane %v1861, 2
      %v2141 = vrot.slane %v1862, 2
      %v2142 = vsel %vm2013, %v2140, %v2141
      %v2143 = vrot.slane %v1863, 2
      %v2144 = vsel %vm2013, %v2141, %v2143
      %v2145 = vrot.slane %v1864, 2
      %v2146 = vsel %vm2013, %v2143, %v2145
      %v2147 = vrot.slane %v1865, 2
      %v2148 = vrot.slane %v1866, 2
      %v2149 = vsel %vm2013, %v2147, %v2148
      %v2150 = vrot.slane %v1867, 2
      %v2151 = vsel %vm2013, %v2148, %v2150
      %v2152 = vrot.slane %v1868, 2
      %v2153 = vsel %vm2013, %v2150, %v2152
      %v2154 = vrot.slane %v1869, 2
      %v2155 = vrot.slane %v1870, 2
      %v2156 = vsel %vm2013, %v2154, %v2155
      %v2157 = vrot.slane %v1871, 2
      %v2158 = vsel %vm2013, %v2155, %v2157
      %v2159 = vrot.slane %v1872, 2
      %v2160 = vsel %vm2013, %v2157, %v2159
      %v2161 = vrot.slane %v1873, 2
      %v2162 = vrot.slane %v1874, 2
      %v2163 = vsel %vm2013, %v2161, %v2162
      %v2164 = vrot.slane %v1875, 2
      %v2165 = vsel %vm2013, %v2162, %v2164
      %v2166 = vrot.slane %v1876, 2
      %v2167 = vsel %vm2013, %v2164, %v2166
      %v2168 = vrot.slane %v1877, 2
      %v2169 = vrot.slane %v1878, 2
      %v2170 = vsel %vm2013, %v2168, %v2169
      %v2171 = vrot.slane %v1879, 2
      %v2172 = vsel %vm2013, %v2169, %v2171
      %v2173 = vrot.slane %v1880, 2
      %v2174 = vsel %vm2013, %v2171, %v2173
      %v2175 = vrot.slane %v1881, 2
      %v2176 = vrot.slane %v1882, 2
      %v2177 = vsel %vm2013, %v2175, %v2176
      %v2178 = vrot.slane %v1883, 2
      %v2179 = vsel %vm2013, %v2176, %v2178
      %v2180 = vrot.slane %v1884, 2
      %v2181 = vsel %vm2013, %v2178, %v2180
      %v2182 = vrot.slane %v1885, 2
      %v2183 = vrot.slane %v1886, 2
      %v2184 = vsel %vm2013, %v2182, %v2183
      %v2185 = vrot.slane %v1887, 2
      %v2186 = vsel %vm2013, %v2183, %v2185
      %v2187 = vrot.slane %v1888, 2
      %v2188 = vsel %vm2013, %v2185, %v2187
      %v2189 = vrot.slane %v1889, 2
      %v2190 = vrot.slane %v1890, 2
      %v2191 = vsel %vm2013, %v2189, %v2190
      %v2192 = vrot.slane %v1891, 2
      %v2193 = vsel %vm2013, %v2190, %v2192
      %v2194 = vrot.slane %v1892, 2
      %v2195 = vsel %vm2013, %v2192, %v2194
      %v2196 = vrot.slane %v1893, 2
      %v2197 = vrot.slane %v1894, 2
      %v2198 = vsel %vm2013, %v2196, %v2197
      %v2199 = vrot.slane %v1895, 2
      %v2200 = vsel %vm2013, %v2197, %v2199
      %v2201 = vrot.slane %v1896, 2
      %v2202 = vsel %vm2013, %v2199, %v2201
      %v2203 = vrot.slane %v1897, 2
      %v2204 = vrot.slane %v1898, 2
      %v2205 = vsel %vm2013, %v2203, %v2204
      %v2206 = vrot.slane %v1899, 2
      %v2207 = vsel %vm2013, %v2204, %v2206
      %v2208 = vrot.slane %v1900, 2
      %v2209 = vsel %vm2013, %v2206, %v2208
      %v2322 = vadd.f32 %v1673, %v2016
      %v2323 = vadd.f32 %v1674, %v2018
      %v2324 = vadd.f32 %v1675, %v2020
      %v2325 = vadd.f32 %v1676, %v2019
      %v2326 = vadd.f32 %v1677, %v2023
      %v2327 = vadd.f32 %v1678, %v2025
      %v2328 = vadd.f32 %v1679, %v2027
      %v2329 = vadd.f32 %v1680, %v2026
      %v2330 = vadd.f32 %v1681, %v2030
      %v2331 = vadd.f32 %v1682, %v2032
      %v2332 = vadd.f32 %v1683, %v2034
      %v2333 = vadd.f32 %v1684, %v2033
      %v2334 = vadd.f32 %v1685, %v2037
      %v2335 = vadd.f32 %v1686, %v2039
      %v2336 = vadd.f32 %v1687, %v2041
      %v2337 = vadd.f32 %v1688, %v2040
      %v2338 = vadd.f32 %v1689, %v2044
      %v2339 = vadd.f32 %v1690, %v2046
      %v2340 = vadd.f32 %v1691, %v2048
      %v2341 = vadd.f32 %v1692, %v2047
      %v2342 = vadd.f32 %v1693, %v2051
      %v2343 = vadd.f32 %v1694, %v2053
      %v2344 = vadd.f32 %v1695, %v2055
      %v2345 = vadd.f32 %v1696, %v2054
      %v2346 = vadd.f32 %v1697, %v2058
      %v2347 = vadd.f32 %v1698, %v2060
      %v2348 = vadd.f32 %v1699, %v2062
      %v2349 = vadd.f32 %v1700, %v2061
      %v2350 = vadd.f32 %v1701, %v2065
      %v2351 = vadd.f32 %v1702, %v2067
      %v2352 = vadd.f32 %v1703, %v2069
      %v2353 = vadd.f32 %v1704, %v2068
      %v2354 = vadd.f32 %v1705, %v2072
      %v2355 = vadd.f32 %v1706, %v2074
      %v2356 = vadd.f32 %v1707, %v2076
      %v2357 = vadd.f32 %v1708, %v2075
      %v2358 = vadd.f32 %v1709, %v2079
      %v2359 = vadd.f32 %v1710, %v2081
      %v2360 = vadd.f32 %v1711, %v2083
      %v2361 = vadd.f32 %v1712, %v2082
      %v2362 = vadd.f32 %v1713, %v2086
      %v2363 = vadd.f32 %v1714, %v2088
      %v2364 = vadd.f32 %v1715, %v2090
      %v2365 = vadd.f32 %v1716, %v2089
      %v2366 = vadd.f32 %v1717, %v2093
      %v2367 = vadd.f32 %v1718, %v2095
      %v2368 = vadd.f32 %v1719, %v2097
      %v2369 = vadd.f32 %v1720, %v2096
      %v2370 = vadd.f32 %v1721, %v2100
      %v2371 = vadd.f32 %v1722, %v2102
      %v2372 = vadd.f32 %v1723, %v2104
      %v2373 = vadd.f32 %v1724, %v2103
      %v2374 = vadd.f32 %v1725, %v2107
      %v2375 = vadd.f32 %v1726, %v2109
      %v2376 = vadd.f32 %v1727, %v2111
      %v2377 = vadd.f32 %v1728, %v2110
      %v2378 = vadd.f32 %v1729, %v2114
      %v2379 = vadd.f32 %v1730, %v2116
      %v2380 = vadd.f32 %v1731, %v2118
      %v2381 = vadd.f32 %v1732, %v2117
      %v2382 = vadd.f32 %v1733, %v2121
      %v2383 = vadd.f32 %v1734, %v2123
      %v2384 = vadd.f32 %v1735, %v2125
      %v2385 = vadd.f32 %v1736, %v2124
      %v2386 = vadd.f32 %v1737, %v2128
      %v2387 = vadd.f32 %v1738, %v2130
      %v2388 = vadd.f32 %v1739, %v2132
      %v2389 = vadd.f32 %v1740, %v2131
      %v2390 = vadd.f32 %v1741, %v2135
      %v2391 = vadd.f32 %v1742, %v2137
      %v2392 = vadd.f32 %v1743, %v2139
      %v2393 = vadd.f32 %v1744, %v2138
      %v2394 = vadd.f32 %v1745, %v2142
      %v2395 = vadd.f32 %v1746, %v2144
      %v2396 = vadd.f32 %v1747, %v2146
      %v2397 = vadd.f32 %v1748, %v2145
      %v2398 = vadd.f32 %v1749, %v2149
      %v2399 = vadd.f32 %v1750, %v2151
      %v2400 = vadd.f32 %v1751, %v2153
      %v2401 = vadd.f32 %v1752, %v2152
      %v2402 = vadd.f32 %v1753, %v2156
      %v2403 = vadd.f32 %v1754, %v2158
      %v2404 = vadd.f32 %v1755, %v2160
      %v2405 = vadd.f32 %v1756, %v2159
      %v2406 = vadd.f32 %v1757, %v2163
      %v2407 = vadd.f32 %v1758, %v2165
      %v2408 = vadd.f32 %v1759, %v2167
      %v2409 = vadd.f32 %v1760, %v2166
      %v2410 = vadd.f32 %v1761, %v2170
      %v2411 = vadd.f32 %v1762, %v2172
      %v2412 = vadd.f32 %v1763, %v2174
      %v2413 = vadd.f32 %v1764, %v2173
      %v2414 = vadd.f32 %v1765, %v2177
      %v2415 = vadd.f32 %v1766, %v2179
      %v2416 = vadd.f32 %v1767, %v2181
      %v2417 = vadd.f32 %v1768, %v2180
      %v2418 = vadd.f32 %v1769, %v2184
      %v2419 = vadd.f32 %v1770, %v2186
      %v2420 = vadd.f32 %v1771, %v2188
      %v2421 = vadd.f32 %v1772, %v2187
      %v2422 = vadd.f32 %v1773, %v2191
      %v2423 = vadd.f32 %v1774, %v2193
      %v2424 = vadd.f32 %v1775, %v2195
      %v2425 = vadd.f32 %v1776, %v2194
      %v2426 = vadd.f32 %v1777, %v2198
      %v2427 = vadd.f32 %v1778, %v2200
      %v2428 = vadd.f32 %v1779, %v2202
      %v2429 = vadd.f32 %v1780, %v2201
      %v2430 = vadd.f32 %v1781, %v2205
      %v2431 = vadd.f32 %v1782, %v2207
      %v2432 = vadd.f32 %v1783, %v2209
      %v2433 = vadd.f32 %v1784, %v2208
      %2435 = vset.pattern.permute.xlu0 0
      %2436 = vperm.xlu0 %2435, %v338
      %v2437 = vpop.permute.xlu0 %2436
      %2440 = vset.pattern.permute.xlu0 0
      %2441 = vperm.xlu0 %2440, %v339
      %v2442 = vpop.permute.xlu0 %2441
      %2445 = vset.pattern.permute.xlu0 0
      %2446 = vperm.xlu0 %2445, %v340
      %v2447 = vpop.permute.xlu0 %2446
      %2450 = vset.pattern.permute.xlu0 0
      %2451 = vperm.xlu0 %2450, %v341
      %v2452 = vpop.permute.xlu0 %2451
      %v2454 = vlaneseq
      %v2455 = vshrl.u32 %v2454, 7
      %v2456 = vsub.s32 3, %v2455
      %v2457 = vrot.slane %v346, %v2456
      %v2458 = vmul.f32 %v371, %v2457
      %v2459 = vmul.f32 %v376, %v2457
      %v2460 = vmul.f32 %v381, %v2457
      %v2461 = vmul.f32 %v386, %v2457
      %v2462 = vmul.f32 %v391, %v2457
      %v2463 = vmul.f32 %v396, %v2457
      %v2464 = vmul.f32 %v401, %v2457
      %v2465 = vmul.f32 %v406, %v2457
      %v2466 = vmul.f32 %v411, %v2457
      %v2467 = vmul.f32 %v416, %v2457
      %v2468 = vmul.f32 %v421, %v2457
      %v2469 = vmul.f32 %v426, %v2457
      %v2470 = vmul.f32 %v431, %v2457
      %v2471 = vmul.f32 %v436, %v2457
      %v2472 = vmul.f32 %v441, %v2457
      %v2473 = vmul.f32 %v446, %v2457
      %v2474 = vmul.f32 %v451, %v2457
      %v2475 = vmul.f32 %v456, %v2457
      %v2476 = vmul.f32 %v461, %v2457
      %v2477 = vmul.f32 %v466, %v2457
      %v2478 = vmul.f32 %v471, %v2457
      %v2479 = vmul.f32 %v476, %v2457
      %v2480 = vmul.f32 %v481, %v2457
      %v2481 = vmul.f32 %v486, %v2457
      %v2482 = vmul.f32 %v491, %v2457
      %v2483 = vmul.f32 %v496, %v2457
      %v2484 = vmul.f32 %v501, %v2457
      %v2485 = vmul.f32 %v506, %v2457
      %v2486 = vmul.f32 %v511, %v2457
      %v2487 = vmul.f32 %v516, %v2457
      %v2488 = vmul.f32 %v521, %v2457
      %v2489 = vmul.f32 %v526, %v2457
      %v2490 = vmul.f32 %v531, %v2457
      %v2491 = vmul.f32 %v536, %v2457
      %v2492 = vmul.f32 %v541, %v2457
      %v2493 = vmul.f32 %v546, %v2457
      %v2494 = vmul.f32 %v551, %v2457
      %v2495 = vmul.f32 %v556, %v2457
      %v2496 = vmul.f32 %v561, %v2457
      %v2497 = vmul.f32 %v566, %v2457
      %v2498 = vmul.f32 %v571, %v2457
      %v2499 = vmul.f32 %v576, %v2457
      %v2500 = vmul.f32 %v581, %v2457
      %v2501 = vmul.f32 %v586, %v2457
      %v2502 = vmul.f32 %v591, %v2457
      %v2503 = vmul.f32 %v596, %v2457
      %v2504 = vmul.f32 %v601, %v2457
      %v2505 = vmul.f32 %v606, %v2457
      %v2506 = vmul.f32 %v611, %v2457
      %v2507 = vmul.f32 %v616, %v2457
      %v2508 = vmul.f32 %v621, %v2457
      %v2509 = vmul.f32 %v626, %v2457
      %v2510 = vmul.f32 %v631, %v2457
      %v2511 = vmul.f32 %v636, %v2457
      %v2512 = vmul.f32 %v641, %v2457
      %v2513 = vmul.f32 %v646, %v2457
      %v2514 = vmul.f32 %v651, %v2457
      %v2515 = vmul.f32 %v656, %v2457
      %v2516 = vmul.f32 %v661, %v2457
      %v2517 = vmul.f32 %v666, %v2457
      %v2518 = vmul.f32 %v671, %v2457
      %v2519 = vmul.f32 %v676, %v2457
      %v2520 = vmul.f32 %v681, %v2457
      %v2521 = vmul.f32 %v686, %v2457
      %v2522 = vmul.f32 %v691, %v2457
      %v2523 = vmul.f32 %v696, %v2457
      %v2524 = vmul.f32 %v701, %v2457
      %v2525 = vmul.f32 %v706, %v2457
      %v2526 = vmul.f32 %v711, %v2457
      %v2527 = vmul.f32 %v716, %v2457
      %v2528 = vmul.f32 %v721, %v2457
      %v2529 = vmul.f32 %v726, %v2457
      %v2530 = vmul.f32 %v731, %v2457
      %v2531 = vmul.f32 %v736, %v2457
      %v2532 = vmul.f32 %v741, %v2457
      %v2533 = vmul.f32 %v746, %v2457
      %v2534 = vmul.f32 %v751, %v2457
      %v2535 = vmul.f32 %v756, %v2457
      %v2536 = vmul.f32 %v761, %v2457
      %v2537 = vmul.f32 %v766, %v2457
      %v2538 = vmul.f32 %v771, %v2457
      %v2539 = vmul.f32 %v776, %v2457
      %v2540 = vmul.f32 %v781, %v2457
      %v2541 = vmul.f32 %v786, %v2457
      %v2542 = vmul.f32 %v791, %v2457
      %v2543 = vmul.f32 %v796, %v2457
      %v2544 = vmul.f32 %v801, %v2457
      %v2545 = vmul.f32 %v806, %v2457
      %v2546 = vmul.f32 %v811, %v2457
      %v2547 = vmul.f32 %v816, %v2457
      %v2548 = vmul.f32 %v821, %v2457
      %v2549 = vmul.f32 %v826, %v2457
      %v2550 = vmul.f32 %v831, %v2457
      %v2551 = vmul.f32 %v836, %v2457
      %v2552 = vmul.f32 %v841, %v2457
      %v2553 = vmul.f32 %v846, %v2457
      %v2554 = vmul.f32 %v851, %v2457
      %v2555 = vmul.f32 %v856, %v2457
      %v2556 = vmul.f32 %v861, %v2457
      %v2557 = vmul.f32 %v866, %v2457
      %v2558 = vmul.f32 %v871, %v2457
      %v2559 = vmul.f32 %v876, %v2457
      %v2560 = vmul.f32 %v881, %v2457
      %v2561 = vmul.f32 %v886, %v2457
      %v2562 = vmul.f32 %v891, %v2457
      %v2563 = vmul.f32 %v896, %v2457
      %v2564 = vmul.f32 %v901, %v2457
      %v2565 = vmul.f32 %v906, %v2457
      %v2566 = vmul.f32 %v2437, %v2457
      %v2567 = vmul.f32 %v2442, %v2457
      %v2568 = vmul.f32 %v2447, %v2457
      %v2569 = vmul.f32 %v2452, %v2457
      %v2570 = vadd.f32 %v2322, %v2458
      %v2571 = vadd.f32 %v2323, %v2459
      %v2572 = vadd.f32 %v2324, %v2460
      %v2573 = vadd.f32 %v2325, %v2461
      %v2574 = vadd.f32 %v2326, %v2462
      %v2575 = vadd.f32 %v2327, %v2463
      %v2576 = vadd.f32 %v2328, %v2464
      %v2577 = vadd.f32 %v2329, %v2465
      %v2578 = vadd.f32 %v2330, %v2466
      %v2579 = vadd.f32 %v2331, %v2467
      %v2580 = vadd.f32 %v2332, %v2468
      %v2581 = vadd.f32 %v2333, %v2469
      %v2582 = vadd.f32 %v2334, %v2470
      %v2583 = vadd.f32 %v2335, %v2471
      %v2584 = vadd.f32 %v2336, %v2472
      %v2585 = vadd.f32 %v2337, %v2473
      %v2586 = vadd.f32 %v2338, %v2474
      %v2587 = vadd.f32 %v2339, %v2475
      %v2588 = vadd.f32 %v2340, %v2476
      %v2589 = vadd.f32 %v2341, %v2477
      %v2590 = vadd.f32 %v2342, %v2478
      %v2591 = vadd.f32 %v2343, %v2479
      %v2592 = vadd.f32 %v2344, %v2480
      %v2593 = vadd.f32 %v2345, %v2481
      %v2594 = vadd.f32 %v2346, %v2482
      %v2595 = vadd.f32 %v2347, %v2483
      %v2596 = vadd.f32 %v2348, %v2484
      %v2597 = vadd.f32 %v2349, %v2485
      %v2598 = vadd.f32 %v2350, %v2486
      %v2599 = vadd.f32 %v2351, %v2487
      %v2600 = vadd.f32 %v2352, %v2488
      %v2601 = vadd.f32 %v2353, %v2489
      %v2602 = vadd.f32 %v2354, %v2490
      %v2603 = vadd.f32 %v2355, %v2491
      %v2604 = vadd.f32 %v2356, %v2492
      %v2605 = vadd.f32 %v2357, %v2493
      %v2606 = vadd.f32 %v2358, %v2494
      %v2607 = vadd.f32 %v2359, %v2495
      %v2608 = vadd.f32 %v2360, %v2496
      %v2609 = vadd.f32 %v2361, %v2497
      %v2610 = vadd.f32 %v2362, %v2498
      %v2611 = vadd.f32 %v2363, %v2499
      %v2612 = vadd.f32 %v2364, %v2500
      %v2613 = vadd.f32 %v2365, %v2501
      %v2614 = vadd.f32 %v2366, %v2502
      %v2615 = vadd.f32 %v2367, %v2503
      %v2616 = vadd.f32 %v2368, %v2504
      %v2617 = vadd.f32 %v2369, %v2505
      %v2618 = vadd.f32 %v2370, %v2506
      %v2619 = vadd.f32 %v2371, %v2507
      %v2620 = vadd.f32 %v2372, %v2508
      %v2621 = vadd.f32 %v2373, %v2509
      %v2622 = vadd.f32 %v2374, %v2510
      %v2623 = vadd.f32 %v2375, %v2511
      %v2624 = vadd.f32 %v2376, %v2512
      %v2625 = vadd.f32 %v2377, %v2513
      %v2626 = vadd.f32 %v2378, %v2514
      %v2627 = vadd.f32 %v2379, %v2515
      %v2628 = vadd.f32 %v2380, %v2516
      %v2629 = vadd.f32 %v2381, %v2517
      %v2630 = vadd.f32 %v2382, %v2518
      %v2631 = vadd.f32 %v2383, %v2519
      %v2632 = vadd.f32 %v2384, %v2520
      %v2633 = vadd.f32 %v2385, %v2521
      %v2634 = vadd.f32 %v2386, %v2522
      %v2635 = vadd.f32 %v2387, %v2523
      %v2636 = vadd.f32 %v2388, %v2524
      %v2637 = vadd.f32 %v2389, %v2525
      %v2638 = vadd.f32 %v2390, %v2526
      %v2639 = vadd.f32 %v2391, %v2527
      %v2640 = vadd.f32 %v2392, %v2528
      %v2641 = vadd.f32 %v2393, %v2529
      %v2642 = vadd.f32 %v2394, %v2530
      %v2643 = vadd.f32 %v2395, %v2531
      %v2644 = vadd.f32 %v2396, %v2532
      %v2645 = vadd.f32 %v2397, %v2533
      %v2646 = vadd.f32 %v2398, %v2534
      %v2647 = vadd.f32 %v2399, %v2535
      %v2648 = vadd.f32 %v2400, %v2536
      %v2649 = vadd.f32 %v2401, %v2537
      %v2650 = vadd.f32 %v2402, %v2538
      %v2651 = vadd.f32 %v2403, %v2539
      %v2652 = vadd.f32 %v2404, %v2540
      %v2653 = vadd.f32 %v2405, %v2541
      %v2654 = vadd.f32 %v2406, %v2542
      %v2655 = vadd.f32 %v2407, %v2543
      %v2656 = vadd.f32 %v2408, %v2544
      %v2657 = vadd.f32 %v2409, %v2545
      %v2658 = vadd.f32 %v2410, %v2546
      %v2659 = vadd.f32 %v2411, %v2547
      %v2660 = vadd.f32 %v2412, %v2548
      %v2661 = vadd.f32 %v2413, %v2549
      %v2662 = vadd.f32 %v2414, %v2550
      %v2663 = vadd.f32 %v2415, %v2551
      %v2664 = vadd.f32 %v2416, %v2552
      %v2665 = vadd.f32 %v2417, %v2553
      %v2666 = vadd.f32 %v2418, %v2554
      %v2667 = vadd.f32 %v2419, %v2555
      %v2668 = vadd.f32 %v2420, %v2556
      %v2669 = vadd.f32 %v2421, %v2557
      %v2670 = vadd.f32 %v2422, %v2558
      %v2671 = vadd.f32 %v2423, %v2559
      %v2672 = vadd.f32 %v2424, %v2560
      %v2673 = vadd.f32 %v2425, %v2561
      %v2674 = vadd.f32 %v2426, %v2562
      %v2675 = vadd.f32 %v2427, %v2563
      %v2676 = vadd.f32 %v2428, %v2564
      %v2677 = vadd.f32 %v2429, %v2565
      %v2678 = vadd.f32 %v2430, %v2566
      %v2679 = vadd.f32 %v2431, %v2567
      %v2680 = vadd.f32 %v2432, %v2568
      %v2681 = vadd.f32 %v2433, %v2569
      %v2682 = vlaneseq
      %v2683 = vshrl.u32 %v2682, 7
      %v2684 = vsub.s32 4, %v2683
      %v2685 = vrot.slane %v346, %v2684
      %v2686 = vmul.f32 %v371, %v2685
      %v2687 = vmul.f32 %v376, %v2685
      %v2688 = vmul.f32 %v381, %v2685
      %v2689 = vmul.f32 %v386, %v2685
      %v2690 = vmul.f32 %v391, %v2685
      %v2691 = vmul.f32 %v396, %v2685
      %v2692 = vmul.f32 %v401, %v2685
      %v2693 = vmul.f32 %v406, %v2685
      %v2694 = vmul.f32 %v411, %v2685
      %v2695 = vmul.f32 %v416, %v2685
      %v2696 = vmul.f32 %v421, %v2685
      %v2697 = vmul.f32 %v426, %v2685
      %v2698 = vmul.f32 %v431, %v2685
      %v2699 = vmul.f32 %v436, %v2685
      %v2700 = vmul.f32 %v441, %v2685
      %v2701 = vmul.f32 %v446, %v2685
      %v2702 = vmul.f32 %v451, %v2685
      %v2703 = vmul.f32 %v456, %v2685
      %v2704 = vmul.f32 %v461, %v2685
      %v2705 = vmul.f32 %v466, %v2685
      %v2706 = vmul.f32 %v471, %v2685
      %v2707 = vmul.f32 %v476, %v2685
      %v2708 = vmul.f32 %v481, %v2685
      %v2709 = vmul.f32 %v486, %v2685
      %v2710 = vmul.f32 %v491, %v2685
      %v2711 = vmul.f32 %v496, %v2685
      %v2712 = vmul.f32 %v501, %v2685
      %v2713 = vmul.f32 %v506, %v2685
      %v2714 = vmul.f32 %v511, %v2685
      %v2715 = vmul.f32 %v516, %v2685
      %v2716 = vmul.f32 %v521, %v2685
      %v2717 = vmul.f32 %v526, %v2685
      %v2718 = vmul.f32 %v531, %v2685
      %v2719 = vmul.f32 %v536, %v2685
      %v2720 = vmul.f32 %v541, %v2685
      %v2721 = vmul.f32 %v546, %v2685
      %v2722 = vmul.f32 %v551, %v2685
      %v2723 = vmul.f32 %v556, %v2685
      %v2724 = vmul.f32 %v561, %v2685
      %v2725 = vmul.f32 %v566, %v2685
      %v2726 = vmul.f32 %v571, %v2685
      %v2727 = vmul.f32 %v576, %v2685
      %v2728 = vmul.f32 %v581, %v2685
      %v2729 = vmul.f32 %v586, %v2685
      %v2730 = vmul.f32 %v591, %v2685
      %v2731 = vmul.f32 %v596, %v2685
      %v2732 = vmul.f32 %v601, %v2685
      %v2733 = vmul.f32 %v606, %v2685
      %v2734 = vmul.f32 %v611, %v2685
      %v2735 = vmul.f32 %v616, %v2685
      %v2736 = vmul.f32 %v621, %v2685
      %v2737 = vmul.f32 %v626, %v2685
      %v2738 = vmul.f32 %v631, %v2685
      %v2739 = vmul.f32 %v636, %v2685
      %v2740 = vmul.f32 %v641, %v2685
      %v2741 = vmul.f32 %v646, %v2685
      %v2742 = vmul.f32 %v651, %v2685
      %v2743 = vmul.f32 %v656, %v2685
      %v2744 = vmul.f32 %v661, %v2685
      %v2745 = vmul.f32 %v666, %v2685
      %v2746 = vmul.f32 %v671, %v2685
      %v2747 = vmul.f32 %v676, %v2685
      %v2748 = vmul.f32 %v681, %v2685
      %v2749 = vmul.f32 %v686, %v2685
      %v2750 = vmul.f32 %v691, %v2685
      %v2751 = vmul.f32 %v696, %v2685
      %v2752 = vmul.f32 %v701, %v2685
      %v2753 = vmul.f32 %v706, %v2685
      %v2754 = vmul.f32 %v711, %v2685
      %v2755 = vmul.f32 %v716, %v2685
      %v2756 = vmul.f32 %v721, %v2685
      %v2757 = vmul.f32 %v726, %v2685
      %v2758 = vmul.f32 %v731, %v2685
      %v2759 = vmul.f32 %v736, %v2685
      %v2760 = vmul.f32 %v741, %v2685
      %v2761 = vmul.f32 %v746, %v2685
      %v2762 = vmul.f32 %v751, %v2685
      %v2763 = vmul.f32 %v756, %v2685
      %v2764 = vmul.f32 %v761, %v2685
      %v2765 = vmul.f32 %v766, %v2685
      %v2766 = vmul.f32 %v771, %v2685
      %v2767 = vmul.f32 %v776, %v2685
      %v2768 = vmul.f32 %v781, %v2685
      %v2769 = vmul.f32 %v786, %v2685
      %v2770 = vmul.f32 %v791, %v2685
      %v2771 = vmul.f32 %v796, %v2685
      %v2772 = vmul.f32 %v801, %v2685
      %v2773 = vmul.f32 %v806, %v2685
      %v2774 = vmul.f32 %v811, %v2685
      %v2775 = vmul.f32 %v816, %v2685
      %v2776 = vmul.f32 %v821, %v2685
      %v2777 = vmul.f32 %v826, %v2685
      %v2778 = vmul.f32 %v831, %v2685
      %v2779 = vmul.f32 %v836, %v2685
      %v2780 = vmul.f32 %v841, %v2685
      %v2781 = vmul.f32 %v846, %v2685
      %v2782 = vmul.f32 %v851, %v2685
      %v2783 = vmul.f32 %v856, %v2685
      %v2784 = vmul.f32 %v861, %v2685
      %v2785 = vmul.f32 %v866, %v2685
      %v2786 = vmul.f32 %v871, %v2685
      %v2787 = vmul.f32 %v876, %v2685
      %v2788 = vmul.f32 %v881, %v2685
      %v2789 = vmul.f32 %v886, %v2685
      %v2790 = vmul.f32 %v891, %v2685
      %v2791 = vmul.f32 %v896, %v2685
      %v2792 = vmul.f32 %v901, %v2685
      %v2793 = vmul.f32 %v906, %v2685
      %v2794 = vmul.f32 %v2437, %v2685
      %v2795 = vmul.f32 %v2442, %v2685
      %v2796 = vmul.f32 %v2447, %v2685
      %v2797 = vmul.f32 %v2452, %v2685
      %v2910 = vrot.slane %v2686, 1
      %v2911 = vrot.slane %v2687, 1
      %v2912 = vsel %vm1364, %v2910, %v2911
      %v2913 = vrot.slane %v2688, 1
      %v2914 = vsel %vm1364, %v2911, %v2913
      %v2915 = vrot.slane %v2689, 1
      %v2916 = vsel %vm1364, %v2913, %v2915
      %v2917 = vrot.slane %v2690, 1
      %v2918 = vrot.slane %v2691, 1
      %v2919 = vsel %vm1364, %v2917, %v2918
      %v2920 = vrot.slane %v2692, 1
      %v2921 = vsel %vm1364, %v2918, %v2920
      %v2922 = vrot.slane %v2693, 1
      %v2923 = vsel %vm1364, %v2920, %v2922
      %v2924 = vrot.slane %v2694, 1
      %v2925 = vrot.slane %v2695, 1
      %v2926 = vsel %vm1364, %v2924, %v2925
      %v2927 = vrot.slane %v2696, 1
      %v2928 = vsel %vm1364, %v2925, %v2927
      %v2929 = vrot.slane %v2697, 1
      %v2930 = vsel %vm1364, %v2927, %v2929
      %v2931 = vrot.slane %v2698, 1
      %v2932 = vrot.slane %v2699, 1
      %v2933 = vsel %vm1364, %v2931, %v2932
      %v2934 = vrot.slane %v2700, 1
      %v2935 = vsel %vm1364, %v2932, %v2934
      %v2936 = vrot.slane %v2701, 1
      %v2937 = vsel %vm1364, %v2934, %v2936
      %v2938 = vrot.slane %v2702, 1
      %v2939 = vrot.slane %v2703, 1
      %v2940 = vsel %vm1364, %v2938, %v2939
      %v2941 = vrot.slane %v2704, 1
      %v2942 = vsel %vm1364, %v2939, %v2941
      %v2943 = vrot.slane %v2705, 1
      %v2944 = vsel %vm1364, %v2941, %v2943
      %v2945 = vrot.slane %v2706, 1
      %v2946 = vrot.slane %v2707, 1
      %v2947 = vsel %vm1364, %v2945, %v2946
      %v2948 = vrot.slane %v2708, 1
      %v2949 = vsel %vm1364, %v2946, %v2948
      %v2950 = vrot.slane %v2709, 1
      %v2951 = vsel %vm1364, %v2948, %v2950
      %v2952 = vrot.slane %v2710, 1
      %v2953 = vrot.slane %v2711, 1
      %v2954 = vsel %vm1364, %v2952, %v2953
      %v2955 = vrot.slane %v2712, 1
      %v2956 = vsel %vm1364, %v2953, %v2955
      %v2957 = vrot.slane %v2713, 1
      %v2958 = vsel %vm1364, %v2955, %v2957
      %v2959 = vrot.slane %v2714, 1
      %v2960 = vrot.slane %v2715, 1
      %v2961 = vsel %vm1364, %v2959, %v2960
      %v2962 = vrot.slane %v2716, 1
      %v2963 = vsel %vm1364, %v2960, %v2962
      %v2964 = vrot.slane %v2717, 1
      %v2965 = vsel %vm1364, %v2962, %v2964
      %v2966 = vrot.slane %v2718, 1
      %v2967 = vrot.slane %v2719, 1
      %v2968 = vsel %vm1364, %v2966, %v2967
      %v2969 = vrot.slane %v2720, 1
      %v2970 = vsel %vm1364, %v2967, %v2969
      %v2971 = vrot.slane %v2721, 1
      %v2972 = vsel %vm1364, %v2969, %v2971
      %v2973 = vrot.slane %v2722, 1
      %v2974 = vrot.slane %v2723, 1
      %v2975 = vsel %vm1364, %v2973, %v2974
      %v2976 = vrot.slane %v2724, 1
      %v2977 = vsel %vm1364, %v2974, %v2976
      %v2978 = vrot.slane %v2725, 1
      %v2979 = vsel %vm1364, %v2976, %v2978
      %v2980 = vrot.slane %v2726, 1
      %v2981 = vrot.slane %v2727, 1
      %v2982 = vsel %vm1364, %v2980, %v2981
      %v2983 = vrot.slane %v2728, 1
      %v2984 = vsel %vm1364, %v2981, %v2983
      %v2985 = vrot.slane %v2729, 1
      %v2986 = vsel %vm1364, %v2983, %v2985
      %v2987 = vrot.slane %v2730, 1
      %v2988 = vrot.slane %v2731, 1
      %v2989 = vsel %vm1364, %v2987, %v2988
      %v2990 = vrot.slane %v2732, 1
      %v2991 = vsel %vm1364, %v2988, %v2990
      %v2992 = vrot.slane %v2733, 1
      %v2993 = vsel %vm1364, %v2990, %v2992
      %v2994 = vrot.slane %v2734, 1
      %v2995 = vrot.slane %v2735, 1
      %v2996 = vsel %vm1364, %v2994, %v2995
      %v2997 = vrot.slane %v2736, 1
      %v2998 = vsel %vm1364, %v2995, %v2997
      %v2999 = vrot.slane %v2737, 1
      %v3000 = vsel %vm1364, %v2997, %v2999
      %v3001 = vrot.slane %v2738, 1
      %v3002 = vrot.slane %v2739, 1
      %v3003 = vsel %vm1364, %v3001, %v3002
      %v3004 = vrot.slane %v2740, 1
      %v3005 = vsel %vm1364, %v3002, %v3004
      %v3006 = vrot.slane %v2741, 1
      %v3007 = vsel %vm1364, %v3004, %v3006
      %v3008 = vrot.slane %v2742, 1
      %v3009 = vrot.slane %v2743, 1
      %v3010 = vsel %vm1364, %v3008, %v3009
      %v3011 = vrot.slane %v2744, 1
      %v3012 = vsel %vm1364, %v3009, %v3011
      %v3013 = vrot.slane %v2745, 1
      %v3014 = vsel %vm1364, %v3011, %v3013
      %v3015 = vrot.slane %v2746, 1
      %v3016 = vrot.slane %v2747, 1
      %v3017 = vsel %vm1364, %v3015, %v3016
      %v3018 = vrot.slane %v2748, 1
      %v3019 = vsel %vm1364, %v3016, %v3018
      %v3020 = vrot.slane %v2749, 1
      %v3021 = vsel %vm1364, %v3018, %v3020
      %v3022 = vrot.slane %v2750, 1
      %v3023 = vrot.slane %v2751, 1
      %v3024 = vsel %vm1364, %v3022, %v3023
      %v3025 = vrot.slane %v2752, 1
      %v3026 = vsel %vm1364, %v3023, %v3025
      %v3027 = vrot.slane %v2753, 1
      %v3028 = vsel %vm1364, %v3025, %v3027
      %v3029 = vrot.slane %v2754, 1
      %v3030 = vrot.slane %v2755, 1
      %v3031 = vsel %vm1364, %v3029, %v3030
      %v3032 = vrot.slane %v2756, 1
      %v3033 = vsel %vm1364, %v3030, %v3032
      %v3034 = vrot.slane %v2757, 1
      %v3035 = vsel %vm1364, %v3032, %v3034
      %v3036 = vrot.slane %v2758, 1
      %v3037 = vrot.slane %v2759, 1
      %v3038 = vsel %vm1364, %v3036, %v3037
      %v3039 = vrot.slane %v2760, 1
      %v3040 = vsel %vm1364, %v3037, %v3039
      %v3041 = vrot.slane %v2761, 1
      %v3042 = vsel %vm1364, %v3039, %v3041
      %v3043 = vrot.slane %v2762, 1
      %v3044 = vrot.slane %v2763, 1
      %v3045 = vsel %vm1364, %v3043, %v3044
      %v3046 = vrot.slane %v2764, 1
      %v3047 = vsel %vm1364, %v3044, %v3046
      %v3048 = vrot.slane %v2765, 1
      %v3049 = vsel %vm1364, %v3046, %v3048
      %v3050 = vrot.slane %v2766, 1
      %v3051 = vrot.slane %v2767, 1
      %v3052 = vsel %vm1364, %v3050, %v3051
      %v3053 = vrot.slane %v2768, 1
      %v3054 = vsel %vm1364, %v3051, %v3053
      %v3055 = vrot.slane %v2769, 1
      %v3056 = vsel %vm1364, %v3053, %v3055
      %v3057 = vrot.slane %v2770, 1
      %v3058 = vrot.slane %v2771, 1
      %v3059 = vsel %vm1364, %v3057, %v3058
      %v3060 = vrot.slane %v2772, 1
      %v3061 = vsel %vm1364, %v3058, %v3060
      %v3062 = vrot.slane %v2773, 1
      %v3063 = vsel %vm1364, %v3060, %v3062
      %v3064 = vrot.slane %v2774, 1
      %v3065 = vrot.slane %v2775, 1
      %v3066 = vsel %vm1364, %v3064, %v3065
      %v3067 = vrot.slane %v2776, 1
      %v3068 = vsel %vm1364, %v3065, %v3067
      %v3069 = vrot.slane %v2777, 1
      %v3070 = vsel %vm1364, %v3067, %v3069
      %v3071 = vrot.slane %v2778, 1
      %v3072 = vrot.slane %v2779, 1
      %v3073 = vsel %vm1364, %v3071, %v3072
      %v3074 = vrot.slane %v2780, 1
      %v3075 = vsel %vm1364, %v3072, %v3074
      %v3076 = vrot.slane %v2781, 1
      %v3077 = vsel %vm1364, %v3074, %v3076
      %v3078 = vrot.slane %v2782, 1
      %v3079 = vrot.slane %v2783, 1
      %v3080 = vsel %vm1364, %v3078, %v3079
      %v3081 = vrot.slane %v2784, 1
      %v3082 = vsel %vm1364, %v3079, %v3081
      %v3083 = vrot.slane %v2785, 1
      %v3084 = vsel %vm1364, %v3081, %v3083
      %v3085 = vrot.slane %v2786, 1
      %v3086 = vrot.slane %v2787, 1
      %v3087 = vsel %vm1364, %v3085, %v3086
      %v3088 = vrot.slane %v2788, 1
      %v3089 = vsel %vm1364, %v3086, %v3088
      %v3090 = vrot.slane %v2789, 1
      %v3091 = vsel %vm1364, %v3088, %v3090
      %v3092 = vrot.slane %v2790, 1
      %v3093 = vrot.slane %v2791, 1
      %v3094 = vsel %vm1364, %v3092, %v3093
      %v3095 = vrot.slane %v2792, 1
      %v3096 = vsel %vm1364, %v3093, %v3095
      %v3097 = vrot.slane %v2793, 1
      %v3098 = vsel %vm1364, %v3095, %v3097
      %v3099 = vrot.slane %v2794, 1
      %v3100 = vrot.slane %v2795, 1
      %v3101 = vsel %vm1364, %v3099, %v3100
      %v3102 = vrot.slane %v2796, 1
      %v3103 = vsel %vm1364, %v3100, %v3102
      %v3104 = vrot.slane %v2797, 1
      %v3105 = vsel %vm1364, %v3102, %v3104
      %v3218 = vadd.f32 %v2570, %v2912
      %v3219 = vadd.f32 %v2571, %v2914
      %v3220 = vadd.f32 %v2572, %v2916
      %v3221 = vadd.f32 %v2573, %v2915
      %v3222 = vadd.f32 %v2574, %v2919
      %v3223 = vadd.f32 %v2575, %v2921
      %v3224 = vadd.f32 %v2576, %v2923
      %v3225 = vadd.f32 %v2577, %v2922
      %v3226 = vadd.f32 %v2578, %v2926
      %v3227 = vadd.f32 %v2579, %v2928
      %v3228 = vadd.f32 %v2580, %v2930
      %v3229 = vadd.f32 %v2581, %v2929
      %v3230 = vadd.f32 %v2582, %v2933
      %v3231 = vadd.f32 %v2583, %v2935
      %v3232 = vadd.f32 %v2584, %v2937
      %v3233 = vadd.f32 %v2585, %v2936
      %v3234 = vadd.f32 %v2586, %v2940
      %v3235 = vadd.f32 %v2587, %v2942
      %v3236 = vadd.f32 %v2588, %v2944
      %v3237 = vadd.f32 %v2589, %v2943
      %v3238 = vadd.f32 %v2590, %v2947
      %v3239 = vadd.f32 %v2591, %v2949
      %v3240 = vadd.f32 %v2592, %v2951
      %v3241 = vadd.f32 %v2593, %v2950
      %v3242 = vadd.f32 %v2594, %v2954
      %v3243 = vadd.f32 %v2595, %v2956
      %v3244 = vadd.f32 %v2596, %v2958
      %v3245 = vadd.f32 %v2597, %v2957
      %v3246 = vadd.f32 %v2598, %v2961
      %v3247 = vadd.f32 %v2599, %v2963
      %v3248 = vadd.f32 %v2600, %v2965
      %v3249 = vadd.f32 %v2601, %v2964
      %v3250 = vadd.f32 %v2602, %v2968
      %v3251 = vadd.f32 %v2603, %v2970
      %v3252 = vadd.f32 %v2604, %v2972
      %v3253 = vadd.f32 %v2605, %v2971
      %v3254 = vadd.f32 %v2606, %v2975
      %v3255 = vadd.f32 %v2607, %v2977
      %v3256 = vadd.f32 %v2608, %v2979
      %v3257 = vadd.f32 %v2609, %v2978
      %v3258 = vadd.f32 %v2610, %v2982
      %v3259 = vadd.f32 %v2611, %v2984
      %v3260 = vadd.f32 %v2612, %v2986
      %v3261 = vadd.f32 %v2613, %v2985
      %v3262 = vadd.f32 %v2614, %v2989
      %v3263 = vadd.f32 %v2615, %v2991
      %v3264 = vadd.f32 %v2616, %v2993
      %v3265 = vadd.f32 %v2617, %v2992
      %v3266 = vadd.f32 %v2618, %v2996
      %v3267 = vadd.f32 %v2619, %v2998
      %v3268 = vadd.f32 %v2620, %v3000
      %v3269 = vadd.f32 %v2621, %v2999
      %v3270 = vadd.f32 %v2622, %v3003
      %v3271 = vadd.f32 %v2623, %v3005
      %v3272 = vadd.f32 %v2624, %v3007
      %v3273 = vadd.f32 %v2625, %v3006
      %v3274 = vadd.f32 %v2626, %v3010
      %v3275 = vadd.f32 %v2627, %v3012
      %v3276 = vadd.f32 %v2628, %v3014
      %v3277 = vadd.f32 %v2629, %v3013
      %v3278 = vadd.f32 %v2630, %v3017
      %v3279 = vadd.f32 %v2631, %v3019
      %v3280 = vadd.f32 %v2632, %v3021
      %v3281 = vadd.f32 %v2633, %v3020
      %v3282 = vadd.f32 %v2634, %v3024
      %v3283 = vadd.f32 %v2635, %v3026
      %v3284 = vadd.f32 %v2636, %v3028
      %v3285 = vadd.f32 %v2637, %v3027
      %v3286 = vadd.f32 %v2638, %v3031
      %v3287 = vadd.f32 %v2639, %v3033
      %v3288 = vadd.f32 %v2640, %v3035
      %v3289 = vadd.f32 %v2641, %v3034
      %v3290 = vadd.f32 %v2642, %v3038
      %v3291 = vadd.f32 %v2643, %v3040
      %v3292 = vadd.f32 %v2644, %v3042
      %v3293 = vadd.f32 %v2645, %v3041
      %v3294 = vadd.f32 %v2646, %v3045
      %v3295 = vadd.f32 %v2647, %v3047
      %v3296 = vadd.f32 %v2648, %v3049
      %v3297 = vadd.f32 %v2649, %v3048
      %v3298 = vadd.f32 %v2650, %v3052
      %v3299 = vadd.f32 %v2651, %v3054
      %v3300 = vadd.f32 %v2652, %v3056
      %v3301 = vadd.f32 %v2653, %v3055
      %v3302 = vadd.f32 %v2654, %v3059
      %v3303 = vadd.f32 %v2655, %v3061
      %v3304 = vadd.f32 %v2656, %v3063
      %v3305 = vadd.f32 %v2657, %v3062
      %v3306 = vadd.f32 %v2658, %v3066
      %v3307 = vadd.f32 %v2659, %v3068
      %v3308 = vadd.f32 %v2660, %v3070
      %v3309 = vadd.f32 %v2661, %v3069
      %v3310 = vadd.f32 %v2662, %v3073
      %v3311 = vadd.f32 %v2663, %v3075
      %v3312 = vadd.f32 %v2664, %v3077
      %v3313 = vadd.f32 %v2665, %v3076
      %v3314 = vadd.f32 %v2666, %v3080
      %v3315 = vadd.f32 %v2667, %v3082
      %v3316 = vadd.f32 %v2668, %v3084
      %v3317 = vadd.f32 %v2669, %v3083
      %v3318 = vadd.f32 %v2670, %v3087
      %v3319 = vadd.f32 %v2671, %v3089
      %v3320 = vadd.f32 %v2672, %v3091
      %v3321 = vadd.f32 %v2673, %v3090
      %v3322 = vadd.f32 %v2674, %v3094
      %v3323 = vadd.f32 %v2675, %v3096
      %v3324 = vadd.f32 %v2676, %v3098
      %v3325 = vadd.f32 %v2677, %v3097
      %v3326 = vadd.f32 %v2678, %v3101
      %v3327 = vadd.f32 %v2679, %v3103
      %v3328 = vadd.f32 %v2680, %v3105
      %v3329 = vadd.f32 %v2681, %v3104
      %v3330 = vlaneseq
      %v3331 = vshrl.u32 %v3330, 7
      %v3332 = vsub.s32 5, %v3331
      %v3333 = vrot.slane %v346, %v3332
      %v3334 = vmul.f32 %v371, %v3333
      %v3335 = vmul.f32 %v376, %v3333
      %v3336 = vmul.f32 %v381, %v3333
      %v3337 = vmul.f32 %v386, %v3333
      %v3338 = vmul.f32 %v391, %v3333
      %v3339 = vmul.f32 %v396, %v3333
      %v3340 = vmul.f32 %v401, %v3333
      %v3341 = vmul.f32 %v406, %v3333
      %v3342 = vmul.f32 %v411, %v3333
      %v3343 = vmul.f32 %v416, %v3333
      %v3344 = vmul.f32 %v421, %v3333
      %v3345 = vmul.f32 %v426, %v3333
      %v3346 = vmul.f32 %v431, %v3333
      %v3347 = vmul.f32 %v436, %v3333
      %v3348 = vmul.f32 %v441, %v3333
      %v3349 = vmul.f32 %v446, %v3333
      %v3350 = vmul.f32 %v451, %v3333
      %v3351 = vmul.f32 %v456, %v3333
      %v3352 = vmul.f32 %v461, %v3333
      %v3353 = vmul.f32 %v466, %v3333
      %v3354 = vmul.f32 %v471, %v3333
      %v3355 = vmul.f32 %v476, %v3333
      %v3356 = vmul.f32 %v481, %v3333
      %v3357 = vmul.f32 %v486, %v3333
      %v3358 = vmul.f32 %v491, %v3333
      %v3359 = vmul.f32 %v496, %v3333
      %v3360 = vmul.f32 %v501, %v3333
      %v3361 = vmul.f32 %v506, %v3333
      %v3362 = vmul.f32 %v511, %v3333
      %v3363 = vmul.f32 %v516, %v3333
      %v3364 = vmul.f32 %v521, %v3333
      %v3365 = vmul.f32 %v526, %v3333
      %v3366 = vmul.f32 %v531, %v3333
      %v3367 = vmul.f32 %v536, %v3333
      %v3368 = vmul.f32 %v541, %v3333
      %v3369 = vmul.f32 %v546, %v3333
      %v3370 = vmul.f32 %v551, %v3333
      %v3371 = vmul.f32 %v556, %v3333
      %v3372 = vmul.f32 %v561, %v3333
      %v3373 = vmul.f32 %v566, %v3333
      %v3374 = vmul.f32 %v571, %v3333
      %v3375 = vmul.f32 %v576, %v3333
      %v3376 = vmul.f32 %v581, %v3333
      %v3377 = vmul.f32 %v586, %v3333
      %v3378 = vmul.f32 %v591, %v3333
      %v3379 = vmul.f32 %v596, %v3333
      %v3380 = vmul.f32 %v601, %v3333
      %v3381 = vmul.f32 %v606, %v3333
      %v3382 = vmul.f32 %v611, %v3333
      %v3383 = vmul.f32 %v616, %v3333
      %v3384 = vmul.f32 %v621, %v3333
      %v3385 = vmul.f32 %v626, %v3333
      %v3386 = vmul.f32 %v631, %v3333
      %v3387 = vmul.f32 %v636, %v3333
      %v3388 = vmul.f32 %v641, %v3333
      %v3389 = vmul.f32 %v646, %v3333
      %v3390 = vmul.f32 %v651, %v3333
      %v3391 = vmul.f32 %v656, %v3333
      %v3392 = vmul.f32 %v661, %v3333
      %v3393 = vmul.f32 %v666, %v3333
      %v3394 = vmul.f32 %v671, %v3333
      %v3395 = vmul.f32 %v676, %v3333
      %v3396 = vmul.f32 %v681, %v3333
      %v3397 = vmul.f32 %v686, %v3333
      %v3398 = vmul.f32 %v691, %v3333
      %v3399 = vmul.f32 %v696, %v3333
      %v3400 = vmul.f32 %v701, %v3333
      %v3401 = vmul.f32 %v706, %v3333
      %v3402 = vmul.f32 %v711, %v3333
      %v3403 = vmul.f32 %v716, %v3333
      %v3404 = vmul.f32 %v721, %v3333
      %v3405 = vmul.f32 %v726, %v3333
      %v3406 = vmul.f32 %v731, %v3333
      %v3407 = vmul.f32 %v736, %v3333
      %v3408 = vmul.f32 %v741, %v3333
      %v3409 = vmul.f32 %v746, %v3333
      %v3410 = vmul.f32 %v751, %v3333
      %v3411 = vmul.f32 %v756, %v3333
      %v3412 = vmul.f32 %v761, %v3333
      %v3413 = vmul.f32 %v766, %v3333
      %v3414 = vmul.f32 %v771, %v3333
      %v3415 = vmul.f32 %v776, %v3333
      %v3416 = vmul.f32 %v781, %v3333
      %v3417 = vmul.f32 %v786, %v3333
      %v3418 = vmul.f32 %v791, %v3333
      %v3419 = vmul.f32 %v796, %v3333
      %v3420 = vmul.f32 %v801, %v3333
      %v3421 = vmul.f32 %v806, %v3333
      %v3422 = vmul.f32 %v811, %v3333
      %v3423 = vmul.f32 %v816, %v3333
      %v3424 = vmul.f32 %v821, %v3333
      %v3425 = vmul.f32 %v826, %v3333
      %v3426 = vmul.f32 %v831, %v3333
      %v3427 = vmul.f32 %v836, %v3333
      %v3428 = vmul.f32 %v841, %v3333
      %v3429 = vmul.f32 %v846, %v3333
      %v3430 = vmul.f32 %v851, %v3333
      %v3431 = vmul.f32 %v856, %v3333
      %v3432 = vmul.f32 %v861, %v3333
      %v3433 = vmul.f32 %v866, %v3333
      %v3434 = vmul.f32 %v871, %v3333
      %v3435 = vmul.f32 %v876, %v3333
      %v3436 = vmul.f32 %v881, %v3333
      %v3437 = vmul.f32 %v886, %v3333
      %v3438 = vmul.f32 %v891, %v3333
      %v3439 = vmul.f32 %v896, %v3333
      %v3440 = vmul.f32 %v901, %v3333
      %v3441 = vmul.f32 %v906, %v3333
      %v3442 = vmul.f32 %v2437, %v3333
      %v3443 = vmul.f32 %v2442, %v3333
      %v3444 = vmul.f32 %v2447, %v3333
      %v3445 = vmul.f32 %v2452, %v3333
      %v3558 = vrot.slane %v3334, 2
      %v3559 = vrot.slane %v3335, 2
      %v3560 = vsel %vm2013, %v3558, %v3559
      %v3561 = vrot.slane %v3336, 2
      %v3562 = vsel %vm2013, %v3559, %v3561
      %v3563 = vrot.slane %v3337, 2
      %v3564 = vsel %vm2013, %v3561, %v3563
      %v3565 = vrot.slane %v3338, 2
      %v3566 = vrot.slane %v3339, 2
      %v3567 = vsel %vm2013, %v3565, %v3566
      %v3568 = vrot.slane %v3340, 2
      %v3569 = vsel %vm2013, %v3566, %v3568
      %v3570 = vrot.slane %v3341, 2
      %v3571 = vsel %vm2013, %v3568, %v3570
      %v3572 = vrot.slane %v3342, 2
      %v3573 = vrot.slane %v3343, 2
      %v3574 = vsel %vm2013, %v3572, %v3573
      %v3575 = vrot.slane %v3344, 2
      %v3576 = vsel %vm2013, %v3573, %v3575
      %v3577 = vrot.slane %v3345, 2
      %v3578 = vsel %vm2013, %v3575, %v3577
      %v3579 = vrot.slane %v3346, 2
      %v3580 = vrot.slane %v3347, 2
      %v3581 = vsel %vm2013, %v3579, %v3580
      %v3582 = vrot.slane %v3348, 2
      %v3583 = vsel %vm2013, %v3580, %v3582
      %v3584 = vrot.slane %v3349, 2
      %v3585 = vsel %vm2013, %v3582, %v3584
      %v3586 = vrot.slane %v3350, 2
      %v3587 = vrot.slane %v3351, 2
      %v3588 = vsel %vm2013, %v3586, %v3587
      %v3589 = vrot.slane %v3352, 2
      %v3590 = vsel %vm2013, %v3587, %v3589
      %v3591 = vrot.slane %v3353, 2
      %v3592 = vsel %vm2013, %v3589, %v3591
      %v3593 = vrot.slane %v3354, 2
      %v3594 = vrot.slane %v3355, 2
      %v3595 = vsel %vm2013, %v3593, %v3594
      %v3596 = vrot.slane %v3356, 2
      %v3597 = vsel %vm2013, %v3594, %v3596
      %v3598 = vrot.slane %v3357, 2
      %v3599 = vsel %vm2013, %v3596, %v3598
      %v3600 = vrot.slane %v3358, 2
      %v3601 = vrot.slane %v3359, 2
      %v3602 = vsel %vm2013, %v3600, %v3601
      %v3603 = vrot.slane %v3360, 2
      %v3604 = vsel %vm2013, %v3601, %v3603
      %v3605 = vrot.slane %v3361, 2
      %v3606 = vsel %vm2013, %v3603, %v3605
      %v3607 = vrot.slane %v3362, 2
      %v3608 = vrot.slane %v3363, 2
      %v3609 = vsel %vm2013, %v3607, %v3608
      %v3610 = vrot.slane %v3364, 2
      %v3611 = vsel %vm2013, %v3608, %v3610
      %v3612 = vrot.slane %v3365, 2
      %v3613 = vsel %vm2013, %v3610, %v3612
      %v3614 = vrot.slane %v3366, 2
      %v3615 = vrot.slane %v3367, 2
      %v3616 = vsel %vm2013, %v3614, %v3615
      %v3617 = vrot.slane %v3368, 2
      %v3618 = vsel %vm2013, %v3615, %v3617
      %v3619 = vrot.slane %v3369, 2
      %v3620 = vsel %vm2013, %v3617, %v3619
      %v3621 = vrot.slane %v3370, 2
      %v3622 = vrot.slane %v3371, 2
      %v3623 = vsel %vm2013, %v3621, %v3622
      %v3624 = vrot.slane %v3372, 2
      %v3625 = vsel %vm2013, %v3622, %v3624
      %v3626 = vrot.slane %v3373, 2
      %v3627 = vsel %vm2013, %v3624, %v3626
      %v3628 = vrot.slane %v3374, 2
      %v3629 = vrot.slane %v3375, 2
      %v3630 = vsel %vm2013, %v3628, %v3629
      %v3631 = vrot.slane %v3376, 2
      %v3632 = vsel %vm2013, %v3629, %v3631
      %v3633 = vrot.slane %v3377, 2
      %v3634 = vsel %vm2013, %v3631, %v3633
      %v3635 = vrot.slane %v3378, 2
      %v3636 = vrot.slane %v3379, 2
      %v3637 = vsel %vm2013, %v3635, %v3636
      %v3638 = vrot.slane %v3380, 2
      %v3639 = vsel %vm2013, %v3636, %v3638
      %v3640 = vrot.slane %v3381, 2
      %v3641 = vsel %vm2013, %v3638, %v3640
      %v3642 = vrot.slane %v3382, 2
      %v3643 = vrot.slane %v3383, 2
      %v3644 = vsel %vm2013, %v3642, %v3643
      %v3645 = vrot.slane %v3384, 2
      %v3646 = vsel %vm2013, %v3643, %v3645
      %v3647 = vrot.slane %v3385, 2
      %v3648 = vsel %vm2013, %v3645, %v3647
      %v3649 = vrot.slane %v3386, 2
      %v3650 = vrot.slane %v3387, 2
      %v3651 = vsel %vm2013, %v3649, %v3650
      %v3652 = vrot.slane %v3388, 2
      %v3653 = vsel %vm2013, %v3650, %v3652
      %v3654 = vrot.slane %v3389, 2
      %v3655 = vsel %vm2013, %v3652, %v3654
      %v3656 = vrot.slane %v3390, 2
      %v3657 = vrot.slane %v3391, 2
      %v3658 = vsel %vm2013, %v3656, %v3657
      %v3659 = vrot.slane %v3392, 2
      %v3660 = vsel %vm2013, %v3657, %v3659
      %v3661 = vrot.slane %v3393, 2
      %v3662 = vsel %vm2013, %v3659, %v3661
      %v3663 = vrot.slane %v3394, 2
      %v3664 = vrot.slane %v3395, 2
      %v3665 = vsel %vm2013, %v3663, %v3664
      %v3666 = vrot.slane %v3396, 2
      %v3667 = vsel %vm2013, %v3664, %v3666
      %v3668 = vrot.slane %v3397, 2
      %v3669 = vsel %vm2013, %v3666, %v3668
      %v3670 = vrot.slane %v3398, 2
      %v3671 = vrot.slane %v3399, 2
      %v3672 = vsel %vm2013, %v3670, %v3671
      %v3673 = vrot.slane %v3400, 2
      %v3674 = vsel %vm2013, %v3671, %v3673
      %v3675 = vrot.slane %v3401, 2
      %v3676 = vsel %vm2013, %v3673, %v3675
      %v3677 = vrot.slane %v3402, 2
      %v3678 = vrot.slane %v3403, 2
      %v3679 = vsel %vm2013, %v3677, %v3678
      %v3680 = vrot.slane %v3404, 2
      %v3681 = vsel %vm2013, %v3678, %v3680
      %v3682 = vrot.slane %v3405, 2
      %v3683 = vsel %vm2013, %v3680, %v3682
      %v3684 = vrot.slane %v3406, 2
      %v3685 = vrot.slane %v3407, 2
      %v3686 = vsel %vm2013, %v3684, %v3685
      %v3687 = vrot.slane %v3408, 2
      %v3688 = vsel %vm2013, %v3685, %v3687
      %v3689 = vrot.slane %v3409, 2
      %v3690 = vsel %vm2013, %v3687, %v3689
      %v3691 = vrot.slane %v3410, 2
      %v3692 = vrot.slane %v3411, 2
      %v3693 = vsel %vm2013, %v3691, %v3692
      %v3694 = vrot.slane %v3412, 2
      %v3695 = vsel %vm2013, %v3692, %v3694
      %v3696 = vrot.slane %v3413, 2
      %v3697 = vsel %vm2013, %v3694, %v3696
      %v3698 = vrot.slane %v3414, 2
      %v3699 = vrot.slane %v3415, 2
      %v3700 = vsel %vm2013, %v3698, %v3699
      %v3701 = vrot.slane %v3416, 2
      %v3702 = vsel %vm2013, %v3699, %v3701
      %v3703 = vrot.slane %v3417, 2
      %v3704 = vsel %vm2013, %v3701, %v3703
      %v3705 = vrot.slane %v3418, 2
      %v3706 = vrot.slane %v3419, 2
      %v3707 = vsel %vm2013, %v3705, %v3706
      %v3708 = vrot.slane %v3420, 2
      %v3709 = vsel %vm2013, %v3706, %v3708
      %v3710 = vrot.slane %v3421, 2
      %v3711 = vsel %vm2013, %v3708, %v3710
      %v3712 = vrot.slane %v3422, 2
      %v3713 = vrot.slane %v3423, 2
      %v3714 = vsel %vm2013, %v3712, %v3713
      %v3715 = vrot.slane %v3424, 2
      %v3716 = vsel %vm2013, %v3713, %v3715
      %v3717 = vrot.slane %v3425, 2
      %v3718 = vsel %vm2013, %v3715, %v3717
      %v3719 = vrot.slane %v3426, 2
      %v3720 = vrot.slane %v3427, 2
      %v3721 = vsel %vm2013, %v3719, %v3720
      %v3722 = vrot.slane %v3428, 2
      %v3723 = vsel %vm2013, %v3720, %v3722
      %v3724 = vrot.slane %v3429, 2
      %v3725 = vsel %vm2013, %v3722, %v3724
      %v3726 = vrot.slane %v3430, 2
      %v3727 = vrot.slane %v3431, 2
      %v3728 = vsel %vm2013, %v3726, %v3727
      %v3729 = vrot.slane %v3432, 2
      %v3730 = vsel %vm2013, %v3727, %v3729
      %v3731 = vrot.slane %v3433, 2
      %v3732 = vsel %vm2013, %v3729, %v3731
      %v3733 = vrot.slane %v3434, 2
      %v3734 = vrot.slane %v3435, 2
      %v3735 = vsel %vm2013, %v3733, %v3734
      %v3736 = vrot.slane %v3436, 2
      %v3737 = vsel %vm2013, %v3734, %v3736
      %v3738 = vrot.slane %v3437, 2
      %v3739 = vsel %vm2013, %v3736, %v3738
      %v3740 = vrot.slane %v3438, 2
      %v3741 = vrot.slane %v3439, 2
      %v3742 = vsel %vm2013, %v3740, %v3741
      %v3743 = vrot.slane %v3440, 2
      %v3744 = vsel %vm2013, %v3741, %v3743
      %v3745 = vrot.slane %v3441, 2
      %v3746 = vsel %vm2013, %v3743, %v3745
      %v3747 = vrot.slane %v3442, 2
      %v3748 = vrot.slane %v3443, 2
      %v3749 = vsel %vm2013, %v3747, %v3748
      %v3750 = vrot.slane %v3444, 2
      %v3751 = vsel %vm2013, %v3748, %v3750
      %v3752 = vrot.slane %v3445, 2
      %v3753 = vsel %vm2013, %v3750, %v3752
      %v3866 = vadd.f32 %v3218, %v3560
      %v3867 = vadd.f32 %v3219, %v3562
      %v3868 = vadd.f32 %v3220, %v3564
      %v3869 = vadd.f32 %v3221, %v3563
      %v3870 = vadd.f32 %v3222, %v3567
      %v3871 = vadd.f32 %v3223, %v3569
      %v3872 = vadd.f32 %v3224, %v3571
      %v3873 = vadd.f32 %v3225, %v3570
      %v3874 = vadd.f32 %v3226, %v3574
      %v3875 = vadd.f32 %v3227, %v3576
      %v3876 = vadd.f32 %v3228, %v3578
      %v3877 = vadd.f32 %v3229, %v3577
      %v3878 = vadd.f32 %v3230, %v3581
      %v3879 = vadd.f32 %v3231, %v3583
      %v3880 = vadd.f32 %v3232, %v3585
      %v3881 = vadd.f32 %v3233, %v3584
      %v3882 = vadd.f32 %v3234, %v3588
      %v3883 = vadd.f32 %v3235, %v3590
      %v3884 = vadd.f32 %v3236, %v3592
      %v3885 = vadd.f32 %v3237, %v3591
      %v3886 = vadd.f32 %v3238, %v3595
      %v3887 = vadd.f32 %v3239, %v3597
      %v3888 = vadd.f32 %v3240, %v3599
      %v3889 = vadd.f32 %v3241, %v3598
      %v3890 = vadd.f32 %v3242, %v3602
      %v3891 = vadd.f32 %v3243, %v3604
      %v3892 = vadd.f32 %v3244, %v3606
      %v3893 = vadd.f32 %v3245, %v3605
      %v3894 = vadd.f32 %v3246, %v3609
      %v3895 = vadd.f32 %v3247, %v3611
      %v3896 = vadd.f32 %v3248, %v3613
      %v3897 = vadd.f32 %v3249, %v3612
      %v3898 = vadd.f32 %v3250, %v3616
      %v3899 = vadd.f32 %v3251, %v3618
      %v3900 = vadd.f32 %v3252, %v3620
      %v3901 = vadd.f32 %v3253, %v3619
      %v3902 = vadd.f32 %v3254, %v3623
      %v3903 = vadd.f32 %v3255, %v3625
      %v3904 = vadd.f32 %v3256, %v3627
      %v3905 = vadd.f32 %v3257, %v3626
      %v3906 = vadd.f32 %v3258, %v3630
      %v3907 = vadd.f32 %v3259, %v3632
      %v3908 = vadd.f32 %v3260, %v3634
      %v3909 = vadd.f32 %v3261, %v3633
      %v3910 = vadd.f32 %v3262, %v3637
      %v3911 = vadd.f32 %v3263, %v3639
      %v3912 = vadd.f32 %v3264, %v3641
      %v3913 = vadd.f32 %v3265, %v3640
      %v3914 = vadd.f32 %v3266, %v3644
      %v3915 = vadd.f32 %v3267, %v3646
      %v3916 = vadd.f32 %v3268, %v3648
      %v3917 = vadd.f32 %v3269, %v3647
      %v3918 = vadd.f32 %v3270, %v3651
      %v3919 = vadd.f32 %v3271, %v3653
      %v3920 = vadd.f32 %v3272, %v3655
      %v3921 = vadd.f32 %v3273, %v3654
      %v3922 = vadd.f32 %v3274, %v3658
      %v3923 = vadd.f32 %v3275, %v3660
      %v3924 = vadd.f32 %v3276, %v3662
      %v3925 = vadd.f32 %v3277, %v3661
      %v3926 = vadd.f32 %v3278, %v3665
      %v3927 = vadd.f32 %v3279, %v3667
      %v3928 = vadd.f32 %v3280, %v3669
      %v3929 = vadd.f32 %v3281, %v3668
      %v3930 = vadd.f32 %v3282, %v3672
      %v3931 = vadd.f32 %v3283, %v3674
      %v3932 = vadd.f32 %v3284, %v3676
      %v3933 = vadd.f32 %v3285, %v3675
      %v3934 = vadd.f32 %v3286, %v3679
      %v3935 = vadd.f32 %v3287, %v3681
      %v3936 = vadd.f32 %v3288, %v3683
      %v3937 = vadd.f32 %v3289, %v3682
      %v3938 = vadd.f32 %v3290, %v3686
      %v3939 = vadd.f32 %v3291, %v3688
      %v3940 = vadd.f32 %v3292, %v3690
      %v3941 = vadd.f32 %v3293, %v3689
      %v3942 = vadd.f32 %v3294, %v3693
      %v3943 = vadd.f32 %v3295, %v3695
      %v3944 = vadd.f32 %v3296, %v3697
      %v3945 = vadd.f32 %v3297, %v3696
      %v3946 = vadd.f32 %v3298, %v3700
      %v3947 = vadd.f32 %v3299, %v3702
      %v3948 = vadd.f32 %v3300, %v3704
      %v3949 = vadd.f32 %v3301, %v3703
      %v3950 = vadd.f32 %v3302, %v3707
      %v3951 = vadd.f32 %v3303, %v3709
      %v3952 = vadd.f32 %v3304, %v3711
      %v3953 = vadd.f32 %v3305, %v3710
      %v3954 = vadd.f32 %v3306, %v3714
      %v3955 = vadd.f32 %v3307, %v3716
      %v3956 = vadd.f32 %v3308, %v3718
      %v3957 = vadd.f32 %v3309, %v3717
      %v3958 = vadd.f32 %v3310, %v3721
      %v3959 = vadd.f32 %v3311, %v3723
      %v3960 = vadd.f32 %v3312, %v3725
      %v3961 = vadd.f32 %v3313, %v3724
      %v3962 = vadd.f32 %v3314, %v3728
      %v3963 = vadd.f32 %v3315, %v3730
      %v3964 = vadd.f32 %v3316, %v3732
      %v3965 = vadd.f32 %v3317, %v3731
      %v3966 = vadd.f32 %v3318, %v3735
      %v3967 = vadd.f32 %v3319, %v3737
      %v3968 = vadd.f32 %v3320, %v3739
      %v3969 = vadd.f32 %v3321, %v3738
      %v3970 = vadd.f32 %v3322, %v3742
      %v3971 = vadd.f32 %v3323, %v3744
      %v3972 = vadd.f32 %v3324, %v3746
      %v3973 = vadd.f32 %v3325, %v3745
      %v3974 = vadd.f32 %v3326, %v3749
      %v3975 = vadd.f32 %v3327, %v3751
      %v3976 = vadd.f32 %v3328, %v3753
      %v3977 = vadd.f32 %v3329, %v3752
      %3979 = vset.pattern.permute.xlu0 0
      %3980 = vperm.xlu0 %3979, %v342
      %v3981 = vpop.permute.xlu0 %3980
      %3984 = vset.pattern.permute.xlu0 0
      %3985 = vperm.xlu0 %3984, %v343
      %v3986 = vpop.permute.xlu0 %3985
      %3989 = vset.pattern.permute.xlu0 0
      %3990 = vperm.xlu0 %3989, %v344
      %v3991 = vpop.permute.xlu0 %3990
      %3994 = vset.pattern.permute.xlu0 0
      %3995 = vperm.xlu0 %3994, %v345
      %v3996 = vpop.permute.xlu0 %3995
      %v3998 = vlaneseq
      %v3999 = vshrl.u32 %v3998, 7
      %v4000 = vsub.s32 6, %v3999
      %v4001 = vrot.slane %v346, %v4000
      %v4002 = vmul.f32 %v391, %v4001
      %v4003 = vmul.f32 %v396, %v4001
      %v4004 = vmul.f32 %v401, %v4001
      %v4005 = vmul.f32 %v406, %v4001
      %v4006 = vmul.f32 %v411, %v4001
      %v4007 = vmul.f32 %v416, %v4001
      %v4008 = vmul.f32 %v421, %v4001
      %v4009 = vmul.f32 %v426, %v4001
      %v4010 = vmul.f32 %v431, %v4001
      %v4011 = vmul.f32 %v436, %v4001
      %v4012 = vmul.f32 %v441, %v4001
      %v4013 = vmul.f32 %v446, %v4001
      %v4014 = vmul.f32 %v451, %v4001
      %v4015 = vmul.f32 %v456, %v4001
      %v4016 = vmul.f32 %v461, %v4001
      %v4017 = vmul.f32 %v466, %v4001
      %v4018 = vmul.f32 %v471, %v4001
      %v4019 = vmul.f32 %v476, %v4001
      %v4020 = vmul.f32 %v481, %v4001
      %v4021 = vmul.f32 %v486, %v4001
      %v4022 = vmul.f32 %v491, %v4001
      %v4023 = vmul.f32 %v496, %v4001
      %v4024 = vmul.f32 %v501, %v4001
      %v4025 = vmul.f32 %v506, %v4001
      %v4026 = vmul.f32 %v511, %v4001
      %v4027 = vmul.f32 %v516, %v4001
      %v4028 = vmul.f32 %v521, %v4001
      %v4029 = vmul.f32 %v526, %v4001
      %v4030 = vmul.f32 %v531, %v4001
      %v4031 = vmul.f32 %v536, %v4001
      %v4032 = vmul.f32 %v541, %v4001
      %v4033 = vmul.f32 %v546, %v4001
      %v4034 = vmul.f32 %v551, %v4001
      %v4035 = vmul.f32 %v556, %v4001
      %v4036 = vmul.f32 %v561, %v4001
      %v4037 = vmul.f32 %v566, %v4001
      %v4038 = vmul.f32 %v571, %v4001
      %v4039 = vmul.f32 %v576, %v4001
      %v4040 = vmul.f32 %v581, %v4001
      %v4041 = vmul.f32 %v586, %v4001
      %v4042 = vmul.f32 %v591, %v4001
      %v4043 = vmul.f32 %v596, %v4001
      %v4044 = vmul.f32 %v601, %v4001
      %v4045 = vmul.f32 %v606, %v4001
      %v4046 = vmul.f32 %v611, %v4001
      %v4047 = vmul.f32 %v616, %v4001
      %v4048 = vmul.f32 %v621, %v4001
      %v4049 = vmul.f32 %v626, %v4001
      %v4050 = vmul.f32 %v631, %v4001
      %v4051 = vmul.f32 %v636, %v4001
      %v4052 = vmul.f32 %v641, %v4001
      %v4053 = vmul.f32 %v646, %v4001
      %v4054 = vmul.f32 %v651, %v4001
      %v4055 = vmul.f32 %v656, %v4001
      %v4056 = vmul.f32 %v661, %v4001
      %v4057 = vmul.f32 %v666, %v4001
      %v4058 = vmul.f32 %v671, %v4001
      %v4059 = vmul.f32 %v676, %v4001
      %v4060 = vmul.f32 %v681, %v4001
      %v4061 = vmul.f32 %v686, %v4001
      %v4062 = vmul.f32 %v691, %v4001
      %v4063 = vmul.f32 %v696, %v4001
      %v4064 = vmul.f32 %v701, %v4001
      %v4065 = vmul.f32 %v706, %v4001
      %v4066 = vmul.f32 %v711, %v4001
      %v4067 = vmul.f32 %v716, %v4001
      %v4068 = vmul.f32 %v721, %v4001
      %v4069 = vmul.f32 %v726, %v4001
      %v4070 = vmul.f32 %v731, %v4001
      %v4071 = vmul.f32 %v736, %v4001
      %v4072 = vmul.f32 %v741, %v4001
      %v4073 = vmul.f32 %v746, %v4001
      %v4074 = vmul.f32 %v751, %v4001
      %v4075 = vmul.f32 %v756, %v4001
      %v4076 = vmul.f32 %v761, %v4001
      %v4077 = vmul.f32 %v766, %v4001
      %v4078 = vmul.f32 %v771, %v4001
      %v4079 = vmul.f32 %v776, %v4001
      %v4080 = vmul.f32 %v781, %v4001
      %v4081 = vmul.f32 %v786, %v4001
      %v4082 = vmul.f32 %v791, %v4001
      %v4083 = vmul.f32 %v796, %v4001
      %v4084 = vmul.f32 %v801, %v4001
      %v4085 = vmul.f32 %v806, %v4001
      %v4086 = vmul.f32 %v811, %v4001
      %v4087 = vmul.f32 %v816, %v4001
      %v4088 = vmul.f32 %v821, %v4001
      %v4089 = vmul.f32 %v826, %v4001
      %v4090 = vmul.f32 %v831, %v4001
      %v4091 = vmul.f32 %v836, %v4001
      %v4092 = vmul.f32 %v841, %v4001
      %v4093 = vmul.f32 %v846, %v4001
      %v4094 = vmul.f32 %v851, %v4001
      %v4095 = vmul.f32 %v856, %v4001
      %v4096 = vmul.f32 %v861, %v4001
      %v4097 = vmul.f32 %v866, %v4001
      %v4098 = vmul.f32 %v871, %v4001
      %v4099 = vmul.f32 %v876, %v4001
      %v4100 = vmul.f32 %v881, %v4001
      %v4101 = vmul.f32 %v886, %v4001
      %v4102 = vmul.f32 %v891, %v4001
      %v4103 = vmul.f32 %v896, %v4001
      %v4104 = vmul.f32 %v901, %v4001
      %v4105 = vmul.f32 %v906, %v4001
      %v4106 = vmul.f32 %v2437, %v4001
      %v4107 = vmul.f32 %v2442, %v4001
      %v4108 = vmul.f32 %v2447, %v4001
      %v4109 = vmul.f32 %v2452, %v4001
      %v4110 = vmul.f32 %v3981, %v4001
      %v4111 = vmul.f32 %v3986, %v4001
      %v4112 = vmul.f32 %v3991, %v4001
      %v4113 = vmul.f32 %v3996, %v4001
      %v4114 = vadd.f32 %v3866, %v4002
      %v4115 = vadd.f32 %v3867, %v4003
      %v4116 = vadd.f32 %v3868, %v4004
      %v4117 = vadd.f32 %v3869, %v4005
      %v4118 = vadd.f32 %v3870, %v4006
      %v4119 = vadd.f32 %v3871, %v4007
      %v4120 = vadd.f32 %v3872, %v4008
      %v4121 = vadd.f32 %v3873, %v4009
      %v4122 = vadd.f32 %v3874, %v4010
      %v4123 = vadd.f32 %v3875, %v4011
      %v4124 = vadd.f32 %v3876, %v4012
      %v4125 = vadd.f32 %v3877, %v4013
      %v4126 = vadd.f32 %v3878, %v4014
      %v4127 = vadd.f32 %v3879, %v4015
      %v4128 = vadd.f32 %v3880, %v4016
      %v4129 = vadd.f32 %v3881, %v4017
      %v4130 = vadd.f32 %v3882, %v4018
      %v4131 = vadd.f32 %v3883, %v4019
      %v4132 = vadd.f32 %v3884, %v4020
      %v4133 = vadd.f32 %v3885, %v4021
      %v4134 = vadd.f32 %v3886, %v4022
      %v4135 = vadd.f32 %v3887, %v4023
      %v4136 = vadd.f32 %v3888, %v4024
      %v4137 = vadd.f32 %v3889, %v4025
      %v4138 = vadd.f32 %v3890, %v4026
      %v4139 = vadd.f32 %v3891, %v4027
      %v4140 = vadd.f32 %v3892, %v4028
      %v4141 = vadd.f32 %v3893, %v4029
      %v4142 = vadd.f32 %v3894, %v4030
      %v4143 = vadd.f32 %v3895, %v4031
      %v4144 = vadd.f32 %v3896, %v4032
      %v4145 = vadd.f32 %v3897, %v4033
      %v4146 = vadd.f32 %v3898, %v4034
      %v4147 = vadd.f32 %v3899, %v4035
      %v4148 = vadd.f32 %v3900, %v4036
      %v4149 = vadd.f32 %v3901, %v4037
      %v4150 = vadd.f32 %v3902, %v4038
      %v4151 = vadd.f32 %v3903, %v4039
      %v4152 = vadd.f32 %v3904, %v4040
      %v4153 = vadd.f32 %v3905, %v4041
      %v4154 = vadd.f32 %v3906, %v4042
      %v4155 = vadd.f32 %v3907, %v4043
      %v4156 = vadd.f32 %v3908, %v4044
      %v4157 = vadd.f32 %v3909, %v4045
      %v4158 = vadd.f32 %v3910, %v4046
      %v4159 = vadd.f32 %v3911, %v4047
      %v4160 = vadd.f32 %v3912, %v4048
      %v4161 = vadd.f32 %v3913, %v4049
      %v4162 = vadd.f32 %v3914, %v4050
      %v4163 = vadd.f32 %v3915, %v4051
      %v4164 = vadd.f32 %v3916, %v4052
      %v4165 = vadd.f32 %v3917, %v4053
      %v4166 = vadd.f32 %v3918, %v4054
      %v4167 = vadd.f32 %v3919, %v4055
      %v4168 = vadd.f32 %v3920, %v4056
      %v4169 = vadd.f32 %v3921, %v4057
      %v4170 = vadd.f32 %v3922, %v4058
      %v4171 = vadd.f32 %v3923, %v4059
      %v4172 = vadd.f32 %v3924, %v4060
      %v4173 = vadd.f32 %v3925, %v4061
      %v4174 = vadd.f32 %v3926, %v4062
      %v4175 = vadd.f32 %v3927, %v4063
      %v4176 = vadd.f32 %v3928, %v4064
      %v4177 = vadd.f32 %v3929, %v4065
      %v4178 = vadd.f32 %v3930, %v4066
      %v4179 = vadd.f32 %v3931, %v4067
      %v4180 = vadd.f32 %v3932, %v4068
      %v4181 = vadd.f32 %v3933, %v4069
      %v4182 = vadd.f32 %v3934, %v4070
      %v4183 = vadd.f32 %v3935, %v4071
      %v4184 = vadd.f32 %v3936, %v4072
      %v4185 = vadd.f32 %v3937, %v4073
      %v4186 = vadd.f32 %v3938, %v4074
      %v4187 = vadd.f32 %v3939, %v4075
      %v4188 = vadd.f32 %v3940, %v4076
      %v4189 = vadd.f32 %v3941, %v4077
      %v4190 = vadd.f32 %v3942, %v4078
      %v4191 = vadd.f32 %v3943, %v4079
      %v4192 = vadd.f32 %v3944, %v4080
      %v4193 = vadd.f32 %v3945, %v4081
      %v4194 = vadd.f32 %v3946, %v4082
      %v4195 = vadd.f32 %v3947, %v4083
      %v4196 = vadd.f32 %v3948, %v4084
      %v4197 = vadd.f32 %v3949, %v4085
      %v4198 = vadd.f32 %v3950, %v4086
      %v4199 = vadd.f32 %v3951, %v4087
      %v4200 = vadd.f32 %v3952, %v4088
      %v4201 = vadd.f32 %v3953, %v4089
      %v4202 = vadd.f32 %v3954, %v4090
      %v4203 = vadd.f32 %v3955, %v4091
      %v4204 = vadd.f32 %v3956, %v4092
      %v4205 = vadd.f32 %v3957, %v4093
      %v4206 = vadd.f32 %v3958, %v4094
      %v4207 = vadd.f32 %v3959, %v4095
      %v4208 = vadd.f32 %v3960, %v4096
      %v4209 = vadd.f32 %v3961, %v4097
      %v4210 = vadd.f32 %v3962, %v4098
      %v4211 = vadd.f32 %v3963, %v4099
      %v4212 = vadd.f32 %v3964, %v4100
      %v4213 = vadd.f32 %v3965, %v4101
      %v4214 = vadd.f32 %v3966, %v4102
      %v4215 = vadd.f32 %v3967, %v4103
      %v4216 = vadd.f32 %v3968, %v4104
      %v4217 = vadd.f32 %v3969, %v4105
      %v4218 = vadd.f32 %v3970, %v4106
      %v4219 = vadd.f32 %v3971, %v4107
      %v4220 = vadd.f32 %v3972, %v4108
      %v4221 = vadd.f32 %v3973, %v4109
      %v4222 = vadd.f32 %v3974, %v4110
      %v4223 = vadd.f32 %v3975, %v4111
      %v4224 = vadd.f32 %v3976, %v4112
      %v4225 = vadd.f32 %v3977, %v4113
      %v4226 = vlaneseq
      %v4227 = vshrl.u32 %v4226, 7
      %v4228 = vsub.s32 7, %v4227
      %v4229 = vrot.slane %v346, %v4228
      %v4230 = vmul.f32 %v391, %v4229
      %v4231 = vmul.f32 %v396, %v4229
      %v4232 = vmul.f32 %v401, %v4229
      %v4233 = vmul.f32 %v406, %v4229
      %v4234 = vmul.f32 %v411, %v4229
      %v4235 = vmul.f32 %v416, %v4229
      %v4236 = vmul.f32 %v421, %v4229
      %v4237 = vmul.f32 %v426, %v4229
      %v4238 = vmul.f32 %v431, %v4229
      %v4239 = vmul.f32 %v436, %v4229
      %v4240 = vmul.f32 %v441, %v4229
      %v4241 = vmul.f32 %v446, %v4229
      %v4242 = vmul.f32 %v451, %v4229
      %v4243 = vmul.f32 %v456, %v4229
      %v4244 = vmul.f32 %v461, %v4229
      %v4245 = vmul.f32 %v466, %v4229
      %v4246 = vmul.f32 %v471, %v4229
      %v4247 = vmul.f32 %v476, %v4229
      %v4248 = vmul.f32 %v481, %v4229
      %v4249 = vmul.f32 %v486, %v4229
      %v4250 = vmul.f32 %v491, %v4229
      %v4251 = vmul.f32 %v496, %v4229
      %v4252 = vmul.f32 %v501, %v4229
      %v4253 = vmul.f32 %v506, %v4229
      %v4254 = vmul.f32 %v511, %v4229
      %v4255 = vmul.f32 %v516, %v4229
      %v4256 = vmul.f32 %v521, %v4229
      %v4257 = vmul.f32 %v526, %v4229
      %v4258 = vmul.f32 %v531, %v4229
      %v4259 = vmul.f32 %v536, %v4229
      %v4260 = vmul.f32 %v541, %v4229
      %v4261 = vmul.f32 %v546, %v4229
      %v4262 = vmul.f32 %v551, %v4229
      %v4263 = vmul.f32 %v556, %v4229
      %v4264 = vmul.f32 %v561, %v4229
      %v4265 = vmul.f32 %v566, %v4229
      %v4266 = vmul.f32 %v571, %v4229
      %v4267 = vmul.f32 %v576, %v4229
      %v4268 = vmul.f32 %v581, %v4229
      %v4269 = vmul.f32 %v586, %v4229
      %v4270 = vmul.f32 %v591, %v4229
      %v4271 = vmul.f32 %v596, %v4229
      %v4272 = vmul.f32 %v601, %v4229
      %v4273 = vmul.f32 %v606, %v4229
      %v4274 = vmul.f32 %v611, %v4229
      %v4275 = vmul.f32 %v616, %v4229
      %v4276 = vmul.f32 %v621, %v4229
      %v4277 = vmul.f32 %v626, %v4229
      %v4278 = vmul.f32 %v631, %v4229
      %v4279 = vmul.f32 %v636, %v4229
      %v4280 = vmul.f32 %v641, %v4229
      %v4281 = vmul.f32 %v646, %v4229
      %v4282 = vmul.f32 %v651, %v4229
      %v4283 = vmul.f32 %v656, %v4229
      %v4284 = vmul.f32 %v661, %v4229
      %v4285 = vmul.f32 %v666, %v4229
      %v4286 = vmul.f32 %v671, %v4229
      %v4287 = vmul.f32 %v676, %v4229
      %v4288 = vmul.f32 %v681, %v4229
      %v4289 = vmul.f32 %v686, %v4229
      %v4290 = vmul.f32 %v691, %v4229
      %v4291 = vmul.f32 %v696, %v4229
      %v4292 = vmul.f32 %v701, %v4229
      %v4293 = vmul.f32 %v706, %v4229
      %v4294 = vmul.f32 %v711, %v4229
      %v4295 = vmul.f32 %v716, %v4229
      %v4296 = vmul.f32 %v721, %v4229
      %v4297 = vmul.f32 %v726, %v4229
      %v4298 = vmul.f32 %v731, %v4229
      %v4299 = vmul.f32 %v736, %v4229
      %v4300 = vmul.f32 %v741, %v4229
      %v4301 = vmul.f32 %v746, %v4229
      %v4302 = vmul.f32 %v751, %v4229
      %v4303 = vmul.f32 %v756, %v4229
      %v4304 = vmul.f32 %v761, %v4229
      %v4305 = vmul.f32 %v766, %v4229
      %v4306 = vmul.f32 %v771, %v4229
      %v4307 = vmul.f32 %v776, %v4229
      %v4308 = vmul.f32 %v781, %v4229
      %v4309 = vmul.f32 %v786, %v4229
      %v4310 = vmul.f32 %v791, %v4229
      %v4311 = vmul.f32 %v796, %v4229
      %v4312 = vmul.f32 %v801, %v4229
      %v4313 = vmul.f32 %v806, %v4229
      %v4314 = vmul.f32 %v811, %v4229
      %v4315 = vmul.f32 %v816, %v4229
      %v4316 = vmul.f32 %v821, %v4229
      %v4317 = vmul.f32 %v826, %v4229
      %v4318 = vmul.f32 %v831, %v4229
      %v4319 = vmul.f32 %v836, %v4229
      %v4320 = vmul.f32 %v841, %v4229
      %v4321 = vmul.f32 %v846, %v4229
      %v4322 = vmul.f32 %v851, %v4229
      %v4323 = vmul.f32 %v856, %v4229
      %v4324 = vmul.f32 %v861, %v4229
      %v4325 = vmul.f32 %v866, %v4229
      %v4326 = vmul.f32 %v871, %v4229
      %v4327 = vmul.f32 %v876, %v4229
      %v4328 = vmul.f32 %v881, %v4229
      %v4329 = vmul.f32 %v886, %v4229
      %v4330 = vmul.f32 %v891, %v4229
      %v4331 = vmul.f32 %v896, %v4229
      %v4332 = vmul.f32 %v901, %v4229
      %v4333 = vmul.f32 %v906, %v4229
      %v4334 = vmul.f32 %v2437, %v4229
      %v4335 = vmul.f32 %v2442, %v4229
      %v4336 = vmul.f32 %v2447, %v4229
      %v4337 = vmul.f32 %v2452, %v4229
      %v4338 = vmul.f32 %v3981, %v4229
      %v4339 = vmul.f32 %v3986, %v4229
      %v4340 = vmul.f32 %v3991, %v4229
      %v4341 = vmul.f32 %v3996, %v4229
      %v4454 = vrot.slane %v4230, 1
      %v4455 = vrot.slane %v4231, 1
      %v4456 = vsel %vm1364, %v4454, %v4455
      %v4457 = vrot.slane %v4232, 1
      %v4458 = vsel %vm1364, %v4455, %v4457
      %v4459 = vrot.slane %v4233, 1
      %v4460 = vsel %vm1364, %v4457, %v4459
      %v4461 = vrot.slane %v4234, 1
      %v4462 = vrot.slane %v4235, 1
      %v4463 = vsel %vm1364, %v4461, %v4462
      %v4464 = vrot.slane %v4236, 1
      %v4465 = vsel %vm1364, %v4462, %v4464
      %v4466 = vrot.slane %v4237, 1
      %v4467 = vsel %vm1364, %v4464, %v4466
      %v4468 = vrot.slane %v4238, 1
      %v4469 = vrot.slane %v4239, 1
      %v4470 = vsel %vm1364, %v4468, %v4469
      %v4471 = vrot.slane %v4240, 1
      %v4472 = vsel %vm1364, %v4469, %v4471
      %v4473 = vrot.slane %v4241, 1
      %v4474 = vsel %vm1364, %v4471, %v4473
      %v4475 = vrot.slane %v4242, 1
      %v4476 = vrot.slane %v4243, 1
      %v4477 = vsel %vm1364, %v4475, %v4476
      %v4478 = vrot.slane %v4244, 1
      %v4479 = vsel %vm1364, %v4476, %v4478
      %v4480 = vrot.slane %v4245, 1
      %v4481 = vsel %vm1364, %v4478, %v4480
      %v4482 = vrot.slane %v4246, 1
      %v4483 = vrot.slane %v4247, 1
      %v4484 = vsel %vm1364, %v4482, %v4483
      %v4485 = vrot.slane %v4248, 1
      %v4486 = vsel %vm1364, %v4483, %v4485
      %v4487 = vrot.slane %v4249, 1
      %v4488 = vsel %vm1364, %v4485, %v4487
      %v4489 = vrot.slane %v4250, 1
      %v4490 = vrot.slane %v4251, 1
      %v4491 = vsel %vm1364, %v4489, %v4490
      %v4492 = vrot.slane %v4252, 1
      %v4493 = vsel %vm1364, %v4490, %v4492
      %v4494 = vrot.slane %v4253, 1
      %v4495 = vsel %vm1364, %v4492, %v4494
      %v4496 = vrot.slane %v4254, 1
      %v4497 = vrot.slane %v4255, 1
      %v4498 = vsel %vm1364, %v4496, %v4497
      %v4499 = vrot.slane %v4256, 1
      %v4500 = vsel %vm1364, %v4497, %v4499
      %v4501 = vrot.slane %v4257, 1
      %v4502 = vsel %vm1364, %v4499, %v4501
      %v4503 = vrot.slane %v4258, 1
      %v4504 = vrot.slane %v4259, 1
      %v4505 = vsel %vm1364, %v4503, %v4504
      %v4506 = vrot.slane %v4260, 1
      %v4507 = vsel %vm1364, %v4504, %v4506
      %v4508 = vrot.slane %v4261, 1
      %v4509 = vsel %vm1364, %v4506, %v4508
      %v4510 = vrot.slane %v4262, 1
      %v4511 = vrot.slane %v4263, 1
      %v4512 = vsel %vm1364, %v4510, %v4511
      %v4513 = vrot.slane %v4264, 1
      %v4514 = vsel %vm1364, %v4511, %v4513
      %v4515 = vrot.slane %v4265, 1
      %v4516 = vsel %vm1364, %v4513, %v4515
      %v4517 = vrot.slane %v4266, 1
      %v4518 = vrot.slane %v4267, 1
      %v4519 = vsel %vm1364, %v4517, %v4518
      %v4520 = vrot.slane %v4268, 1
      %v4521 = vsel %vm1364, %v4518, %v4520
      %v4522 = vrot.slane %v4269, 1
      %v4523 = vsel %vm1364, %v4520, %v4522
      %v4524 = vrot.slane %v4270, 1
      %v4525 = vrot.slane %v4271, 1
      %v4526 = vsel %vm1364, %v4524, %v4525
      %v4527 = vrot.slane %v4272, 1
      %v4528 = vsel %vm1364, %v4525, %v4527
      %v4529 = vrot.slane %v4273, 1
      %v4530 = vsel %vm1364, %v4527, %v4529
      %v4531 = vrot.slane %v4274, 1
      %v4532 = vrot.slane %v4275, 1
      %v4533 = vsel %vm1364, %v4531, %v4532
      %v4534 = vrot.slane %v4276, 1
      %v4535 = vsel %vm1364, %v4532, %v4534
      %v4536 = vrot.slane %v4277, 1
      %v4537 = vsel %vm1364, %v4534, %v4536
      %v4538 = vrot.slane %v4278, 1
      %v4539 = vrot.slane %v4279, 1
      %v4540 = vsel %vm1364, %v4538, %v4539
      %v4541 = vrot.slane %v4280, 1
      %v4542 = vsel %vm1364, %v4539, %v4541
      %v4543 = vrot.slane %v4281, 1
      %v4544 = vsel %vm1364, %v4541, %v4543
      %v4545 = vrot.slane %v4282, 1
      %v4546 = vrot.slane %v4283, 1
      %v4547 = vsel %vm1364, %v4545, %v4546
      %v4548 = vrot.slane %v4284, 1
      %v4549 = vsel %vm1364, %v4546, %v4548
      %v4550 = vrot.slane %v4285, 1
      %v4551 = vsel %vm1364, %v4548, %v4550
      %v4552 = vrot.slane %v4286, 1
      %v4553 = vrot.slane %v4287, 1
      %v4554 = vsel %vm1364, %v4552, %v4553
      %v4555 = vrot.slane %v4288, 1
      %v4556 = vsel %vm1364, %v4553, %v4555
      %v4557 = vrot.slane %v4289, 1
      %v4558 = vsel %vm1364, %v4555, %v4557
      %v4559 = vrot.slane %v4290, 1
      %v4560 = vrot.slane %v4291, 1
      %v4561 = vsel %vm1364, %v4559, %v4560
      %v4562 = vrot.slane %v4292, 1
      %v4563 = vsel %vm1364, %v4560, %v4562
      %v4564 = vrot.slane %v4293, 1
      %v4565 = vsel %vm1364, %v4562, %v4564
      %v4566 = vrot.slane %v4294, 1
      %v4567 = vrot.slane %v4295, 1
      %v4568 = vsel %vm1364, %v4566, %v4567
      %v4569 = vrot.slane %v4296, 1
      %v4570 = vsel %vm1364, %v4567, %v4569
      %v4571 = vrot.slane %v4297, 1
      %v4572 = vsel %vm1364, %v4569, %v4571
      %v4573 = vrot.slane %v4298, 1
      %v4574 = vrot.slane %v4299, 1
      %v4575 = vsel %vm1364, %v4573, %v4574
      %v4576 = vrot.slane %v4300, 1
      %v4577 = vsel %vm1364, %v4574, %v4576
      %v4578 = vrot.slane %v4301, 1
      %v4579 = vsel %vm1364, %v4576, %v4578
      %v4580 = vrot.slane %v4302, 1
      %v4581 = vrot.slane %v4303, 1
      %v4582 = vsel %vm1364, %v4580, %v4581
      %v4583 = vrot.slane %v4304, 1
      %v4584 = vsel %vm1364, %v4581, %v4583
      %v4585 = vrot.slane %v4305, 1
      %v4586 = vsel %vm1364, %v4583, %v4585
      %v4587 = vrot.slane %v4306, 1
      %v4588 = vrot.slane %v4307, 1
      %v4589 = vsel %vm1364, %v4587, %v4588
      %v4590 = vrot.slane %v4308, 1
      %v4591 = vsel %vm1364, %v4588, %v4590
      %v4592 = vrot.slane %v4309, 1
      %v4593 = vsel %vm1364, %v4590, %v4592
      %v4594 = vrot.slane %v4310, 1
      %v4595 = vrot.slane %v4311, 1
      %v4596 = vsel %vm1364, %v4594, %v4595
      %v4597 = vrot.slane %v4312, 1
      %v4598 = vsel %vm1364, %v4595, %v4597
      %v4599 = vrot.slane %v4313, 1
      %v4600 = vsel %vm1364, %v4597, %v4599
      %v4601 = vrot.slane %v4314, 1
      %v4602 = vrot.slane %v4315, 1
      %v4603 = vsel %vm1364, %v4601, %v4602
      %v4604 = vrot.slane %v4316, 1
      %v4605 = vsel %vm1364, %v4602, %v4604
      %v4606 = vrot.slane %v4317, 1
      %v4607 = vsel %vm1364, %v4604, %v4606
      %v4608 = vrot.slane %v4318, 1
      %v4609 = vrot.slane %v4319, 1
      %v4610 = vsel %vm1364, %v4608, %v4609
      %v4611 = vrot.slane %v4320, 1
      %v4612 = vsel %vm1364, %v4609, %v4611
      %v4613 = vrot.slane %v4321, 1
      %v4614 = vsel %vm1364, %v4611, %v4613
      %v4615 = vrot.slane %v4322, 1
      %v4616 = vrot.slane %v4323, 1
      %v4617 = vsel %vm1364, %v4615, %v4616
      %v4618 = vrot.slane %v4324, 1
      %v4619 = vsel %vm1364, %v4616, %v4618
      %v4620 = vrot.slane %v4325, 1
      %v4621 = vsel %vm1364, %v4618, %v4620
      %v4622 = vrot.slane %v4326, 1
      %v4623 = vrot.slane %v4327, 1
      %v4624 = vsel %vm1364, %v4622, %v4623
      %v4625 = vrot.slane %v4328, 1
      %v4626 = vsel %vm1364, %v4623, %v4625
      %v4627 = vrot.slane %v4329, 1
      %v4628 = vsel %vm1364, %v4625, %v4627
      %v4629 = vrot.slane %v4330, 1
      %v4630 = vrot.slane %v4331, 1
      %v4631 = vsel %vm1364, %v4629, %v4630
      %v4632 = vrot.slane %v4332, 1
      %v4633 = vsel %vm1364, %v4630, %v4632
      %v4634 = vrot.slane %v4333, 1
      %v4635 = vsel %vm1364, %v4632, %v4634
      %v4636 = vrot.slane %v4334, 1
      %v4637 = vrot.slane %v4335, 1
      %v4638 = vsel %vm1364, %v4636, %v4637
      %v4639 = vrot.slane %v4336, 1
      %v4640 = vsel %vm1364, %v4637, %v4639
      %v4641 = vrot.slane %v4337, 1
      %v4642 = vsel %vm1364, %v4639, %v4641
      %v4643 = vrot.slane %v4338, 1
      %v4644 = vrot.slane %v4339, 1
      %v4645 = vsel %vm1364, %v4643, %v4644
      %v4646 = vrot.slane %v4340, 1
      %v4647 = vsel %vm1364, %v4644, %v4646
      %v4648 = vrot.slane %v4341, 1
      %v4649 = vsel %vm1364, %v4646, %v4648
      %v4762 = vadd.f32 %v4114, %v4456
      %v4763 = vadd.f32 %v4115, %v4458
      %v4764 = vadd.f32 %v4116, %v4460
      %v4765 = vadd.f32 %v4117, %v4459
      %v4766 = vadd.f32 %v4118, %v4463
      %v4767 = vadd.f32 %v4119, %v4465
      %v4768 = vadd.f32 %v4120, %v4467
      %v4769 = vadd.f32 %v4121, %v4466
      %v4770 = vadd.f32 %v4122, %v4470
      %v4771 = vadd.f32 %v4123, %v4472
      %v4772 = vadd.f32 %v4124, %v4474
      %v4773 = vadd.f32 %v4125, %v4473
      %v4774 = vadd.f32 %v4126, %v4477
      %v4775 = vadd.f32 %v4127, %v4479
      %v4776 = vadd.f32 %v4128, %v4481
      %v4777 = vadd.f32 %v4129, %v4480
      %v4778 = vadd.f32 %v4130, %v4484
      %v4779 = vadd.f32 %v4131, %v4486
      %v4780 = vadd.f32 %v4132, %v4488
      %v4781 = vadd.f32 %v4133, %v4487
      %v4782 = vadd.f32 %v4134, %v4491
      %v4783 = vadd.f32 %v4135, %v4493
      %v4784 = vadd.f32 %v4136, %v4495
      %v4785 = vadd.f32 %v4137, %v4494
      %v4786 = vadd.f32 %v4138, %v4498
      %v4787 = vadd.f32 %v4139, %v4500
      %v4788 = vadd.f32 %v4140, %v4502
      %v4789 = vadd.f32 %v4141, %v4501
      %v4790 = vadd.f32 %v4142, %v4505
      %v4791 = vadd.f32 %v4143, %v4507
      %v4792 = vadd.f32 %v4144, %v4509
      %v4793 = vadd.f32 %v4145, %v4508
      %v4794 = vadd.f32 %v4146, %v4512
      %v4795 = vadd.f32 %v4147, %v4514
      %v4796 = vadd.f32 %v4148, %v4516
      %v4797 = vadd.f32 %v4149, %v4515
      %v4798 = vadd.f32 %v4150, %v4519
      %v4799 = vadd.f32 %v4151, %v4521
      %v4800 = vadd.f32 %v4152, %v4523
      %v4801 = vadd.f32 %v4153, %v4522
      %v4802 = vadd.f32 %v4154, %v4526
      %v4803 = vadd.f32 %v4155, %v4528
      %v4804 = vadd.f32 %v4156, %v4530
      %v4805 = vadd.f32 %v4157, %v4529
      %v4806 = vadd.f32 %v4158, %v4533
      %v4807 = vadd.f32 %v4159, %v4535
      %v4808 = vadd.f32 %v4160, %v4537
      %v4809 = vadd.f32 %v4161, %v4536
      %v4810 = vadd.f32 %v4162, %v4540
      %v4811 = vadd.f32 %v4163, %v4542
      %v4812 = vadd.f32 %v4164, %v4544
      %v4813 = vadd.f32 %v4165, %v4543
      %v4814 = vadd.f32 %v4166, %v4547
      %v4815 = vadd.f32 %v4167, %v4549
      %v4816 = vadd.f32 %v4168, %v4551
      %v4817 = vadd.f32 %v4169, %v4550
      %v4818 = vadd.f32 %v4170, %v4554
      %v4819 = vadd.f32 %v4171, %v4556
      %v4820 = vadd.f32 %v4172, %v4558
      %v4821 = vadd.f32 %v4173, %v4557
      %v4822 = vadd.f32 %v4174, %v4561
      %v4823 = vadd.f32 %v4175, %v4563
      %v4824 = vadd.f32 %v4176, %v4565
      %v4825 = vadd.f32 %v4177, %v4564
      %v4826 = vadd.f32 %v4178, %v4568
      %v4827 = vadd.f32 %v4179, %v4570
      %v4828 = vadd.f32 %v4180, %v4572
      %v4829 = vadd.f32 %v4181, %v4571
      %v4830 = vadd.f32 %v4182, %v4575
      %v4831 = vadd.f32 %v4183, %v4577
      %v4832 = vadd.f32 %v4184, %v4579
      %v4833 = vadd.f32 %v4185, %v4578
      %v4834 = vadd.f32 %v4186, %v4582
      %v4835 = vadd.f32 %v4187, %v4584
      %v4836 = vadd.f32 %v4188, %v4586
      %v4837 = vadd.f32 %v4189, %v4585
      %v4838 = vadd.f32 %v4190, %v4589
      %v4839 = vadd.f32 %v4191, %v4591
      %v4840 = vadd.f32 %v4192, %v4593
      %v4841 = vadd.f32 %v4193, %v4592
      %v4842 = vadd.f32 %v4194, %v4596
      %v4843 = vadd.f32 %v4195, %v4598
      %v4844 = vadd.f32 %v4196, %v4600
      %v4845 = vadd.f32 %v4197, %v4599
      %v4846 = vadd.f32 %v4198, %v4603
      %v4847 = vadd.f32 %v4199, %v4605
      %v4848 = vadd.f32 %v4200, %v4607
      %v4849 = vadd.f32 %v4201, %v4606
      %v4850 = vadd.f32 %v4202, %v4610
      %v4851 = vadd.f32 %v4203, %v4612
      %v4852 = vadd.f32 %v4204, %v4614
      %v4853 = vadd.f32 %v4205, %v4613
      %v4854 = vadd.f32 %v4206, %v4617
      %v4855 = vadd.f32 %v4207, %v4619
      %v4856 = vadd.f32 %v4208, %v4621
      %v4857 = vadd.f32 %v4209, %v4620
      %v4858 = vadd.f32 %v4210, %v4624
      %v4859 = vadd.f32 %v4211, %v4626
      %v4860 = vadd.f32 %v4212, %v4628
      %v4861 = vadd.f32 %v4213, %v4627
      %v4862 = vadd.f32 %v4214, %v4631
      %v4863 = vadd.f32 %v4215, %v4633
      %v4864 = vadd.f32 %v4216, %v4635
      %v4865 = vadd.f32 %v4217, %v4634
      %v4866 = vadd.f32 %v4218, %v4638
      %v4867 = vadd.f32 %v4219, %v4640
      %v4868 = vadd.f32 %v4220, %v4642
      %v4869 = vadd.f32 %v4221, %v4641
      %v4870 = vadd.f32 %v4222, %v4645
      %v4871 = vadd.f32 %v4223, %v4647
      %v4872 = vadd.f32 %v4224, %v4649
      %v4873 = vadd.f32 %v4225, %v4648
      %v4874 = vlaneseq
      %v4875 = vshrl.u32 %v4874, 7
      %v4876 = vsub.s32 0, %v4875
      %v4877 = vrot.slane %v347, %v4876
      %v4878 = vmul.f32 %v391, %v4877
      %v4879 = vmul.f32 %v396, %v4877
      %v4880 = vmul.f32 %v401, %v4877
      %v4881 = vmul.f32 %v406, %v4877
      %v4882 = vmul.f32 %v411, %v4877
      %v4883 = vmul.f32 %v416, %v4877
      %v4884 = vmul.f32 %v421, %v4877
      %v4885 = vmul.f32 %v426, %v4877
      %v4886 = vmul.f32 %v431, %v4877
      %v4887 = vmul.f32 %v436, %v4877
      %v4888 = vmul.f32 %v441, %v4877
      %v4889 = vmul.f32 %v446, %v4877
      %v4890 = vmul.f32 %v451, %v4877
      %v4891 = vmul.f32 %v456, %v4877
      %v4892 = vmul.f32 %v461, %v4877
      %v4893 = vmul.f32 %v466, %v4877
      %v4894 = vmul.f32 %v471, %v4877
      %v4895 = vmul.f32 %v476, %v4877
      %v4896 = vmul.f32 %v481, %v4877
      %v4897 = vmul.f32 %v486, %v4877
      %v4898 = vmul.f32 %v491, %v4877
      %v4899 = vmul.f32 %v496, %v4877
      %v4900 = vmul.f32 %v501, %v4877
      %v4901 = vmul.f32 %v506, %v4877
      %v4902 = vmul.f32 %v511, %v4877
      %v4903 = vmul.f32 %v516, %v4877
      %v4904 = vmul.f32 %v521, %v4877
      %v4905 = vmul.f32 %v526, %v4877
      %v4906 = vmul.f32 %v531, %v4877
      %v4907 = vmul.f32 %v536, %v4877
      %v4908 = vmul.f32 %v541, %v4877
      %v4909 = vmul.f32 %v546, %v4877
      %v4910 = vmul.f32 %v551, %v4877
      %v4911 = vmul.f32 %v556, %v4877
      %v4912 = vmul.f32 %v561, %v4877
      %v4913 = vmul.f32 %v566, %v4877
      %v4914 = vmul.f32 %v571, %v4877
      %v4915 = vmul.f32 %v576, %v4877
      %v4916 = vmul.f32 %v581, %v4877
      %v4917 = vmul.f32 %v586, %v4877
      %v4918 = vmul.f32 %v591, %v4877
      %v4919 = vmul.f32 %v596, %v4877
      %v4920 = vmul.f32 %v601, %v4877
      %v4921 = vmul.f32 %v606, %v4877
      %v4922 = vmul.f32 %v611, %v4877
      %v4923 = vmul.f32 %v616, %v4877
      %v4924 = vmul.f32 %v621, %v4877
      %v4925 = vmul.f32 %v626, %v4877
      %v4926 = vmul.f32 %v631, %v4877
      %v4927 = vmul.f32 %v636, %v4877
      %v4928 = vmul.f32 %v641, %v4877
      %v4929 = vmul.f32 %v646, %v4877
      %v4930 = vmul.f32 %v651, %v4877
      %v4931 = vmul.f32 %v656, %v4877
      %v4932 = vmul.f32 %v661, %v4877
      %v4933 = vmul.f32 %v666, %v4877
      %v4934 = vmul.f32 %v671, %v4877
      %v4935 = vmul.f32 %v676, %v4877
      %v4936 = vmul.f32 %v681, %v4877
      %v4937 = vmul.f32 %v686, %v4877
      %v4938 = vmul.f32 %v691, %v4877
      %v4939 = vmul.f32 %v696, %v4877
      %v4940 = vmul.f32 %v701, %v4877
      %v4941 = vmul.f32 %v706, %v4877
      %v4942 = vmul.f32 %v711, %v4877
      %v4943 = vmul.f32 %v716, %v4877
      %v4944 = vmul.f32 %v721, %v4877
      %v4945 = vmul.f32 %v726, %v4877
      %v4946 = vmul.f32 %v731, %v4877
      %v4947 = vmul.f32 %v736, %v4877
      %v4948 = vmul.f32 %v741, %v4877
      %v4949 = vmul.f32 %v746, %v4877
      %v4950 = vmul.f32 %v751, %v4877
      %v4951 = vmul.f32 %v756, %v4877
      %v4952 = vmul.f32 %v761, %v4877
      %v4953 = vmul.f32 %v766, %v4877
      %v4954 = vmul.f32 %v771, %v4877
      %v4955 = vmul.f32 %v776, %v4877
      %v4956 = vmul.f32 %v781, %v4877
      %v4957 = vmul.f32 %v786, %v4877
      %v4958 = vmul.f32 %v791, %v4877
      %v4959 = vmul.f32 %v796, %v4877
      %v4960 = vmul.f32 %v801, %v4877
      %v4961 = vmul.f32 %v806, %v4877
      %v4962 = vmul.f32 %v811, %v4877
      %v4963 = vmul.f32 %v816, %v4877
      %v4964 = vmul.f32 %v821, %v4877
      %v4965 = vmul.f32 %v826, %v4877
      %v4966 = vmul.f32 %v831, %v4877
      %v4967 = vmul.f32 %v836, %v4877
      %v4968 = vmul.f32 %v841, %v4877
      %v4969 = vmul.f32 %v846, %v4877
      %v4970 = vmul.f32 %v851, %v4877
      %v4971 = vmul.f32 %v856, %v4877
      %v4972 = vmul.f32 %v861, %v4877
      %v4973 = vmul.f32 %v866, %v4877
      %v4974 = vmul.f32 %v871, %v4877
      %v4975 = vmul.f32 %v876, %v4877
      %v4976 = vmul.f32 %v881, %v4877
      %v4977 = vmul.f32 %v886, %v4877
      %v4978 = vmul.f32 %v891, %v4877
      %v4979 = vmul.f32 %v896, %v4877
      %v4980 = vmul.f32 %v901, %v4877
      %v4981 = vmul.f32 %v906, %v4877
      %v4982 = vmul.f32 %v2437, %v4877
      %v4983 = vmul.f32 %v2442, %v4877
      %v4984 = vmul.f32 %v2447, %v4877
      %v4985 = vmul.f32 %v2452, %v4877
      %v4986 = vmul.f32 %v3981, %v4877
      %v4987 = vmul.f32 %v3986, %v4877
      %v4988 = vmul.f32 %v3991, %v4877
      %v4989 = vmul.f32 %v3996, %v4877
      %v5102 = vrot.slane %v4878, 2
      %v5103 = vrot.slane %v4879, 2
      %v5104 = vsel %vm2013, %v5102, %v5103
      %v5105 = vrot.slane %v4880, 2
      %v5106 = vsel %vm2013, %v5103, %v5105
      %v5107 = vrot.slane %v4881, 2
      %v5108 = vsel %vm2013, %v5105, %v5107
      %v5109 = vrot.slane %v4882, 2
      %v5110 = vrot.slane %v4883, 2
      %v5111 = vsel %vm2013, %v5109, %v5110
      %v5112 = vrot.slane %v4884, 2
      %v5113 = vsel %vm2013, %v5110, %v5112
      %v5114 = vrot.slane %v4885, 2
      %v5115 = vsel %vm2013, %v5112, %v5114
      %v5116 = vrot.slane %v4886, 2
      %v5117 = vrot.slane %v4887, 2
      %v5118 = vsel %vm2013, %v5116, %v5117
      %v5119 = vrot.slane %v4888, 2
      %v5120 = vsel %vm2013, %v5117, %v5119
      %v5121 = vrot.slane %v4889, 2
      %v5122 = vsel %vm2013, %v5119, %v5121
      %v5123 = vrot.slane %v4890, 2
      %v5124 = vrot.slane %v4891, 2
      %v5125 = vsel %vm2013, %v5123, %v5124
      %v5126 = vrot.slane %v4892, 2
      %v5127 = vsel %vm2013, %v5124, %v5126
      %v5128 = vrot.slane %v4893, 2
      %v5129 = vsel %vm2013, %v5126, %v5128
      %v5130 = vrot.slane %v4894, 2
      %v5131 = vrot.slane %v4895, 2
      %v5132 = vsel %vm2013, %v5130, %v5131
      %v5133 = vrot.slane %v4896, 2
      %v5134 = vsel %vm2013, %v5131, %v5133
      %v5135 = vrot.slane %v4897, 2
      %v5136 = vsel %vm2013, %v5133, %v5135
      %v5137 = vrot.slane %v4898, 2
      %v5138 = vrot.slane %v4899, 2
      %v5139 = vsel %vm2013, %v5137, %v5138
      %v5140 = vrot.slane %v4900, 2
      %v5141 = vsel %vm2013, %v5138, %v5140
      %v5142 = vrot.slane %v4901, 2
      %v5143 = vsel %vm2013, %v5140, %v5142
      %v5144 = vrot.slane %v4902, 2
      %v5145 = vrot.slane %v4903, 2
      %v5146 = vsel %vm2013, %v5144, %v5145
      %v5147 = vrot.slane %v4904, 2
      %v5148 = vsel %vm2013, %v5145, %v5147
      %v5149 = vrot.slane %v4905, 2
      %v5150 = vsel %vm2013, %v5147, %v5149
      %v5151 = vrot.slane %v4906, 2
      %v5152 = vrot.slane %v4907, 2
      %v5153 = vsel %vm2013, %v5151, %v5152
      %v5154 = vrot.slane %v4908, 2
      %v5155 = vsel %vm2013, %v5152, %v5154
      %v5156 = vrot.slane %v4909, 2
      %v5157 = vsel %vm2013, %v5154, %v5156
      %v5158 = vrot.slane %v4910, 2
      %v5159 = vrot.slane %v4911, 2
      %v5160 = vsel %vm2013, %v5158, %v5159
      %v5161 = vrot.slane %v4912, 2
      %v5162 = vsel %vm2013, %v5159, %v5161
      %v5163 = vrot.slane %v4913, 2
      %v5164 = vsel %vm2013, %v5161, %v5163
      %v5165 = vrot.slane %v4914, 2
      %v5166 = vrot.slane %v4915, 2
      %v5167 = vsel %vm2013, %v5165, %v5166
      %v5168 = vrot.slane %v4916, 2
      %v5169 = vsel %vm2013, %v5166, %v5168
      %v5170 = vrot.slane %v4917, 2
      %v5171 = vsel %vm2013, %v5168, %v5170
      %v5172 = vrot.slane %v4918, 2
      %v5173 = vrot.slane %v4919, 2
      %v5174 = vsel %vm2013, %v5172, %v5173
      %v5175 = vrot.slane %v4920, 2
      %v5176 = vsel %vm2013, %v5173, %v5175
      %v5177 = vrot.slane %v4921, 2
      %v5178 = vsel %vm2013, %v5175, %v5177
      %v5179 = vrot.slane %v4922, 2
      %v5180 = vrot.slane %v4923, 2
      %v5181 = vsel %vm2013, %v5179, %v5180
      %v5182 = vrot.slane %v4924, 2
      %v5183 = vsel %vm2013, %v5180, %v5182
      %v5184 = vrot.slane %v4925, 2
      %v5185 = vsel %vm2013, %v5182, %v5184
      %v5186 = vrot.slane %v4926, 2
      %v5187 = vrot.slane %v4927, 2
      %v5188 = vsel %vm2013, %v5186, %v5187
      %v5189 = vrot.slane %v4928, 2
      %v5190 = vsel %vm2013, %v5187, %v5189
      %v5191 = vrot.slane %v4929, 2
      %v5192 = vsel %vm2013, %v5189, %v5191
      %v5193 = vrot.slane %v4930, 2
      %v5194 = vrot.slane %v4931, 2
      %v5195 = vsel %vm2013, %v5193, %v5194
      %v5196 = vrot.slane %v4932, 2
      %v5197 = vsel %vm2013, %v5194, %v5196
      %v5198 = vrot.slane %v4933, 2
      %v5199 = vsel %vm2013, %v5196, %v5198
      %v5200 = vrot.slane %v4934, 2
      %v5201 = vrot.slane %v4935, 2
      %v5202 = vsel %vm2013, %v5200, %v5201
      %v5203 = vrot.slane %v4936, 2
      %v5204 = vsel %vm2013, %v5201, %v5203
      %v5205 = vrot.slane %v4937, 2
      %v5206 = vsel %vm2013, %v5203, %v5205
      %v5207 = vrot.slane %v4938, 2
      %v5208 = vrot.slane %v4939, 2
      %v5209 = vsel %vm2013, %v5207, %v5208
      %v5210 = vrot.slane %v4940, 2
      %v5211 = vsel %vm2013, %v5208, %v5210
      %v5212 = vrot.slane %v4941, 2
      %v5213 = vsel %vm2013, %v5210, %v5212
      %v5214 = vrot.slane %v4942, 2
      %v5215 = vrot.slane %v4943, 2
      %v5216 = vsel %vm2013, %v5214, %v5215
      %v5217 = vrot.slane %v4944, 2
      %v5218 = vsel %vm2013, %v5215, %v5217
      %v5219 = vrot.slane %v4945, 2
      %v5220 = vsel %vm2013, %v5217, %v5219
      %v5221 = vrot.slane %v4946, 2
      %v5222 = vrot.slane %v4947, 2
      %v5223 = vsel %vm2013, %v5221, %v5222
      %v5224 = vrot.slane %v4948, 2
      %v5225 = vsel %vm2013, %v5222, %v5224
      %v5226 = vrot.slane %v4949, 2
      %v5227 = vsel %vm2013, %v5224, %v5226
      %v5228 = vrot.slane %v4950, 2
      %v5229 = vrot.slane %v4951, 2
      %v5230 = vsel %vm2013, %v5228, %v5229
      %v5231 = vrot.slane %v4952, 2
      %v5232 = vsel %vm2013, %v5229, %v5231
      %v5233 = vrot.slane %v4953, 2
      %v5234 = vsel %vm2013, %v5231, %v5233
      %v5235 = vrot.slane %v4954, 2
      %v5236 = vrot.slane %v4955, 2
      %v5237 = vsel %vm2013, %v5235, %v5236
      %v5238 = vrot.slane %v4956, 2
      %v5239 = vsel %vm2013, %v5236, %v5238
      %v5240 = vrot.slane %v4957, 2
      %v5241 = vsel %vm2013, %v5238, %v5240
      %v5242 = vrot.slane %v4958, 2
      %v5243 = vrot.slane %v4959, 2
      %v5244 = vsel %vm2013, %v5242, %v5243
      %v5245 = vrot.slane %v4960, 2
      %v5246 = vsel %vm2013, %v5243, %v5245
      %v5247 = vrot.slane %v4961, 2
      %v5248 = vsel %vm2013, %v5245, %v5247
      %v5249 = vrot.slane %v4962, 2
      %v5250 = vrot.slane %v4963, 2
      %v5251 = vsel %vm2013, %v5249, %v5250
      %v5252 = vrot.slane %v4964, 2
      %v5253 = vsel %vm2013, %v5250, %v5252
      %v5254 = vrot.slane %v4965, 2
      %v5255 = vsel %vm2013, %v5252, %v5254
      %v5256 = vrot.slane %v4966, 2
      %v5257 = vrot.slane %v4967, 2
      %v5258 = vsel %vm2013, %v5256, %v5257
      %v5259 = vrot.slane %v4968, 2
      %v5260 = vsel %vm2013, %v5257, %v5259
      %v5261 = vrot.slane %v4969, 2
      %v5262 = vsel %vm2013, %v5259, %v5261
      %v5263 = vrot.slane %v4970, 2
      %v5264 = vrot.slane %v4971, 2
      %v5265 = vsel %vm2013, %v5263, %v5264
      %v5266 = vrot.slane %v4972, 2
      %v5267 = vsel %vm2013, %v5264, %v5266
      %v5268 = vrot.slane %v4973, 2
      %v5269 = vsel %vm2013, %v5266, %v5268
      %v5270 = vrot.slane %v4974, 2
      %v5271 = vrot.slane %v4975, 2
      %v5272 = vsel %vm2013, %v5270, %v5271
      %v5273 = vrot.slane %v4976, 2
      %v5274 = vsel %vm2013, %v5271, %v5273
      %v5275 = vrot.slane %v4977, 2
      %v5276 = vsel %vm2013, %v5273, %v5275
      %v5277 = vrot.slane %v4978, 2
      %v5278 = vrot.slane %v4979, 2
      %v5279 = vsel %vm2013, %v5277, %v5278
      %v5280 = vrot.slane %v4980, 2
      %v5281 = vsel %vm2013, %v5278, %v5280
      %v5282 = vrot.slane %v4981, 2
      %v5283 = vsel %vm2013, %v5280, %v5282
      %v5284 = vrot.slane %v4982, 2
      %v5285 = vrot.slane %v4983, 2
      %v5286 = vsel %vm2013, %v5284, %v5285
      %v5287 = vrot.slane %v4984, 2
      %v5288 = vsel %vm2013, %v5285, %v5287
      %v5289 = vrot.slane %v4985, 2
      %v5290 = vsel %vm2013, %v5287, %v5289
      %v5291 = vrot.slane %v4986, 2
      %v5292 = vrot.slane %v4987, 2
      %v5293 = vsel %vm2013, %v5291, %v5292
      %v5294 = vrot.slane %v4988, 2
      %v5295 = vsel %vm2013, %v5292, %v5294
      %v5296 = vrot.slane %v4989, 2
      %v5297 = vsel %vm2013, %v5294, %v5296
      %v5410 = vadd.f32 %v4762, %v5104
      %v5411 = vadd.f32 %v4763, %v5106
      %v5412 = vadd.f32 %v4764, %v5108
      %v5413 = vadd.f32 %v4765, %v5107
      %v5414 = vadd.f32 %v4766, %v5111
      %v5415 = vadd.f32 %v4767, %v5113
      %v5416 = vadd.f32 %v4768, %v5115
      %v5417 = vadd.f32 %v4769, %v5114
      %v5418 = vadd.f32 %v4770, %v5118
      %v5419 = vadd.f32 %v4771, %v5120
      %v5420 = vadd.f32 %v4772, %v5122
      %v5421 = vadd.f32 %v4773, %v5121
      %v5422 = vadd.f32 %v4774, %v5125
      %v5423 = vadd.f32 %v4775, %v5127
      %v5424 = vadd.f32 %v4776, %v5129
      %v5425 = vadd.f32 %v4777, %v5128
      %v5426 = vadd.f32 %v4778, %v5132
      %v5427 = vadd.f32 %v4779, %v5134
      %v5428 = vadd.f32 %v4780, %v5136
      %v5429 = vadd.f32 %v4781, %v5135
      %v5430 = vadd.f32 %v4782, %v5139
      %v5431 = vadd.f32 %v4783, %v5141
      %v5432 = vadd.f32 %v4784, %v5143
      %v5433 = vadd.f32 %v4785, %v5142
      %v5434 = vadd.f32 %v4786, %v5146
      %v5435 = vadd.f32 %v4787, %v5148
      %v5436 = vadd.f32 %v4788, %v5150
      %v5437 = vadd.f32 %v4789, %v5149
      %v5438 = vadd.f32 %v4790, %v5153
      %v5439 = vadd.f32 %v4791, %v5155
      %v5440 = vadd.f32 %v4792, %v5157
      %v5441 = vadd.f32 %v4793, %v5156
      %v5442 = vadd.f32 %v4794, %v5160
      %v5443 = vadd.f32 %v4795, %v5162
      %v5444 = vadd.f32 %v4796, %v5164
      %v5445 = vadd.f32 %v4797, %v5163
      %v5446 = vadd.f32 %v4798, %v5167
      %v5447 = vadd.f32 %v4799, %v5169
      %v5448 = vadd.f32 %v4800, %v5171
      %v5449 = vadd.f32 %v4801, %v5170
      %v5450 = vadd.f32 %v4802, %v5174
      %v5451 = vadd.f32 %v4803, %v5176
      %v5452 = vadd.f32 %v4804, %v5178
      %v5453 = vadd.f32 %v4805, %v5177
      %v5454 = vadd.f32 %v4806, %v5181
      %v5455 = vadd.f32 %v4807, %v5183
      %v5456 = vadd.f32 %v4808, %v5185
      %v5457 = vadd.f32 %v4809, %v5184
      %v5458 = vadd.f32 %v4810, %v5188
      %v5459 = vadd.f32 %v4811, %v5190
      %v5460 = vadd.f32 %v4812, %v5192
      %v5461 = vadd.f32 %v4813, %v5191
      %v5462 = vadd.f32 %v4814, %v5195
      %v5463 = vadd.f32 %v4815, %v5197
      %v5464 = vadd.f32 %v4816, %v5199
      %v5465 = vadd.f32 %v4817, %v5198
      %v5466 = vadd.f32 %v4818, %v5202
      %v5467 = vadd.f32 %v4819, %v5204
      %v5468 = vadd.f32 %v4820, %v5206
      %v5469 = vadd.f32 %v4821, %v5205
      %v5470 = vadd.f32 %v4822, %v5209
      %v5471 = vadd.f32 %v4823, %v5211
      %v5472 = vadd.f32 %v4824, %v5213
      %v5473 = vadd.f32 %v4825, %v5212
      %v5474 = vadd.f32 %v4826, %v5216
      %v5475 = vadd.f32 %v4827, %v5218
      %v5476 = vadd.f32 %v4828, %v5220
      %v5477 = vadd.f32 %v4829, %v5219
      %v5478 = vadd.f32 %v4830, %v5223
      %v5479 = vadd.f32 %v4831, %v5225
      %v5480 = vadd.f32 %v4832, %v5227
      %v5481 = vadd.f32 %v4833, %v5226
      %v5482 = vadd.f32 %v4834, %v5230
      %v5483 = vadd.f32 %v4835, %v5232
      %v5484 = vadd.f32 %v4836, %v5234
      %v5485 = vadd.f32 %v4837, %v5233
      %v5486 = vadd.f32 %v4838, %v5237
      %v5487 = vadd.f32 %v4839, %v5239
      %v5488 = vadd.f32 %v4840, %v5241
      %v5489 = vadd.f32 %v4841, %v5240
      %v5490 = vadd.f32 %v4842, %v5244
      %v5491 = vadd.f32 %v4843, %v5246
      %v5492 = vadd.f32 %v4844, %v5248
      %v5493 = vadd.f32 %v4845, %v5247
      %v5494 = vadd.f32 %v4846, %v5251
      %v5495 = vadd.f32 %v4847, %v5253
      %v5496 = vadd.f32 %v4848, %v5255
      %v5497 = vadd.f32 %v4849, %v5254
      %v5498 = vadd.f32 %v4850, %v5258
      %v5499 = vadd.f32 %v4851, %v5260
      %v5500 = vadd.f32 %v4852, %v5262
      %v5501 = vadd.f32 %v4853, %v5261
      %v5502 = vadd.f32 %v4854, %v5265
      %v5503 = vadd.f32 %v4855, %v5267
      %v5504 = vadd.f32 %v4856, %v5269
      %v5505 = vadd.f32 %v4857, %v5268
      %v5506 = vadd.f32 %v4858, %v5272
      %v5507 = vadd.f32 %v4859, %v5274
      %v5508 = vadd.f32 %v4860, %v5276
      %v5509 = vadd.f32 %v4861, %v5275
      %v5510 = vadd.f32 %v4862, %v5279
      %v5511 = vadd.f32 %v4863, %v5281
      %v5512 = vadd.f32 %v4864, %v5283
      %v5513 = vadd.f32 %v4865, %v5282
      %v5514 = vadd.f32 %v4866, %v5286
      %v5515 = vadd.f32 %v4867, %v5288
      %v5516 = vadd.f32 %v4868, %v5290
      %v5517 = vadd.f32 %v4869, %v5289
      %v5518 = vadd.f32 %v4870, %v5293
      %v5519 = vadd.f32 %v4871, %v5295
      %v5520 = vadd.f32 %v4872, %v5297
      %v5521 = vadd.f32 %v4873, %v5296
      %v5522 = vld [vmem:[%s2] sm:$0x1]
      %v5524 = vlaneseq
      %v5525 = vshrl.u32 %v5524, 7
      %v5526 = vsub.s32 0, %v5525
      %v5527 = vrot.slane %v5522, %v5526
      %v5529 = vadd.f32 %v5410, %v5527
      %v5530 = vadd.f32 %v5411, %v5527
      %v5531 = vadd.f32 %v5412, %v5527
      %v5532 = vadd.f32 %v5413, %v5527
      %v5533 = vadd.f32 %v5414, %v5527
      %v5534 = vadd.f32 %v5415, %v5527
      %v5535 = vadd.f32 %v5416, %v5527
      %v5536 = vadd.f32 %v5417, %v5527
      %v5537 = vadd.f32 %v5418, %v5527
      %v5538 = vadd.f32 %v5419, %v5527
      %v5539 = vadd.f32 %v5420, %v5527
      %v5540 = vadd.f32 %v5421, %v5527
      %v5541 = vadd.f32 %v5422, %v5527
      %v5542 = vadd.f32 %v5423, %v5527
      %v5543 = vadd.f32 %v5424, %v5527
      %v5544 = vadd.f32 %v5425, %v5527
      %v5545 = vadd.f32 %v5426, %v5527
      %v5546 = vadd.f32 %v5427, %v5527
      %v5547 = vadd.f32 %v5428, %v5527
      %v5548 = vadd.f32 %v5429, %v5527
      %v5549 = vadd.f32 %v5430, %v5527
      %v5550 = vadd.f32 %v5431, %v5527
      %v5551 = vadd.f32 %v5432, %v5527
      %v5552 = vadd.f32 %v5433, %v5527
      %v5553 = vadd.f32 %v5434, %v5527
      %v5554 = vadd.f32 %v5435, %v5527
      %v5555 = vadd.f32 %v5436, %v5527
      %v5556 = vadd.f32 %v5437, %v5527
      %v5557 = vadd.f32 %v5438, %v5527
      %v5558 = vadd.f32 %v5439, %v5527
      %v5559 = vadd.f32 %v5440, %v5527
      %v5560 = vadd.f32 %v5441, %v5527
      %v5561 = vadd.f32 %v5442, %v5527
      %v5562 = vadd.f32 %v5443, %v5527
      %v5563 = vadd.f32 %v5444, %v5527
      %v5564 = vadd.f32 %v5445, %v5527
      %v5565 = vadd.f32 %v5446, %v5527
      %v5566 = vadd.f32 %v5447, %v5527
      %v5567 = vadd.f32 %v5448, %v5527
      %v5568 = vadd.f32 %v5449, %v5527
      %v5569 = vadd.f32 %v5450, %v5527
      %v5570 = vadd.f32 %v5451, %v5527
      %v5571 = vadd.f32 %v5452, %v5527
      %v5572 = vadd.f32 %v5453, %v5527
      %v5573 = vadd.f32 %v5454, %v5527
      %v5574 = vadd.f32 %v5455, %v5527
      %v5575 = vadd.f32 %v5456, %v5527
      %v5576 = vadd.f32 %v5457, %v5527
      %v5577 = vadd.f32 %v5458, %v5527
      %v5578 = vadd.f32 %v5459, %v5527
      %v5579 = vadd.f32 %v5460, %v5527
      %v5580 = vadd.f32 %v5461, %v5527
      %v5581 = vadd.f32 %v5462, %v5527
      %v5582 = vadd.f32 %v5463, %v5527
      %v5583 = vadd.f32 %v5464, %v5527
      %v5584 = vadd.f32 %v5465, %v5527
      %v5585 = vadd.f32 %v5466, %v5527
      %v5586 = vadd.f32 %v5467, %v5527
      %v5587 = vadd.f32 %v5468, %v5527
      %v5588 = vadd.f32 %v5469, %v5527
      %v5589 = vadd.f32 %v5470, %v5527
      %v5590 = vadd.f32 %v5471, %v5527
      %v5591 = vadd.f32 %v5472, %v5527
      %v5592 = vadd.f32 %v5473, %v5527
      %v5593 = vadd.f32 %v5474, %v5527
      %v5594 = vadd.f32 %v5475, %v5527
      %v5595 = vadd.f32 %v5476, %v5527
      %v5596 = vadd.f32 %v5477, %v5527
      %v5597 = vadd.f32 %v5478, %v5527
      %v5598 = vadd.f32 %v5479, %v5527
      %v5599 = vadd.f32 %v5480, %v5527
      %v5600 = vadd.f32 %v5481, %v5527
      %v5601 = vadd.f32 %v5482, %v5527
      %v5602 = vadd.f32 %v5483, %v5527
      %v5603 = vadd.f32 %v5484, %v5527
      %v5604 = vadd.f32 %v5485, %v5527
      %v5605 = vadd.f32 %v5486, %v5527
      %v5606 = vadd.f32 %v5487, %v5527
      %v5607 = vadd.f32 %v5488, %v5527
      %v5608 = vadd.f32 %v5489, %v5527
      %v5609 = vadd.f32 %v5490, %v5527
      %v5610 = vadd.f32 %v5491, %v5527
      %v5611 = vadd.f32 %v5492, %v5527
      %v5612 = vadd.f32 %v5493, %v5527
      %v5613 = vadd.f32 %v5494, %v5527
      %v5614 = vadd.f32 %v5495, %v5527
      %v5615 = vadd.f32 %v5496, %v5527
      %v5616 = vadd.f32 %v5497, %v5527
      %v5617 = vadd.f32 %v5498, %v5527
      %v5618 = vadd.f32 %v5499, %v5527
      %v5619 = vadd.f32 %v5500, %v5527
      %v5620 = vadd.f32 %v5501, %v5527
      %v5621 = vadd.f32 %v5502, %v5527
      %v5622 = vadd.f32 %v5503, %v5527
      %v5623 = vadd.f32 %v5504, %v5527
      %v5624 = vadd.f32 %v5505, %v5527
      %v5625 = vadd.f32 %v5506, %v5527
      %v5626 = vadd.f32 %v5507, %v5527
      %v5627 = vadd.f32 %v5508, %v5527
      %v5628 = vadd.f32 %v5509, %v5527
      %v5629 = vadd.f32 %v5510, %v5527
      %v5630 = vadd.f32 %v5511, %v5527
      %v5631 = vadd.f32 %v5512, %v5527
      %v5632 = vadd.f32 %v5513, %v5527
      %v5633 = vadd.f32 %v5514, %v5527
      %v5634 = vadd.f32 %v5515, %v5527
      %v5635 = vadd.f32 %v5516, %v5527
      %v5636 = vadd.f32 %v5517, %v5527
      %v5637 = vadd.f32 %v5518, %v5527
      %v5638 = vadd.f32 %v5519, %v5527
      %v5639 = vadd.f32 %v5520, %v5527
      %v5640 = vadd.f32 %v5521, %v5527
      %v5641 = vmax.f32 %v5529, 0.0
      %v5642 = vmax.f32 %v5530, 0.0
      %v5643 = vmax.f32 %v5531, 0.0
      %v5644 = vmax.f32 %v5532, 0.0
      %v5645 = vmax.f32 %v5533, 0.0
      %v5646 = vmax.f32 %v5534, 0.0
      %v5647 = vmax.f32 %v5535, 0.0
      %v5648 = vmax.f32 %v5536, 0.0
      %v5649 = vmax.f32 %v5537, 0.0
      %v5650 = vmax.f32 %v5538, 0.0
      %v5651 = vmax.f32 %v5539, 0.0
      %v5652 = vmax.f32 %v5540, 0.0
      %v5653 = vmax.f32 %v5541, 0.0
      %v5654 = vmax.f32 %v5542, 0.0
      %v5655 = vmax.f32 %v5543, 0.0
      %v5656 = vmax.f32 %v5544, 0.0
      %v5657 = vmax.f32 %v5545, 0.0
      %v5658 = vmax.f32 %v5546, 0.0
      %v5659 = vmax.f32 %v5547, 0.0
      %v5660 = vmax.f32 %v5548, 0.0
      %v5661 = vmax.f32 %v5549, 0.0
      %v5662 = vmax.f32 %v5550, 0.0
      %v5663 = vmax.f32 %v5551, 0.0
      %v5664 = vmax.f32 %v5552, 0.0
      %v5665 = vmax.f32 %v5553, 0.0
      %v5666 = vmax.f32 %v5554, 0.0
      %v5667 = vmax.f32 %v5555, 0.0
      %v5668 = vmax.f32 %v5556, 0.0
      %v5669 = vmax.f32 %v5557, 0.0
      %v5670 = vmax.f32 %v5558, 0.0
      %v5671 = vmax.f32 %v5559, 0.0
      %v5672 = vmax.f32 %v5560, 0.0
      %v5673 = vmax.f32 %v5561, 0.0
      %v5674 = vmax.f32 %v5562, 0.0
      %v5675 = vmax.f32 %v5563, 0.0
      %v5676 = vmax.f32 %v5564, 0.0
      %v5677 = vmax.f32 %v5565, 0.0
      %v5678 = vmax.f32 %v5566, 0.0
      %v5679 = vmax.f32 %v5567, 0.0
      %v5680 = vmax.f32 %v5568, 0.0
      %v5681 = vmax.f32 %v5569, 0.0
      %v5682 = vmax.f32 %v5570, 0.0
      %v5683 = vmax.f32 %v5571, 0.0
      %v5684 = vmax.f32 %v5572, 0.0
      %v5685 = vmax.f32 %v5573, 0.0
      %v5686 = vmax.f32 %v5574, 0.0
      %v5687 = vmax.f32 %v5575, 0.0
      %v5688 = vmax.f32 %v5576, 0.0
      %v5689 = vmax.f32 %v5577, 0.0
      %v5690 = vmax.f32 %v5578, 0.0
      %v5691 = vmax.f32 %v5579, 0.0
      %v5692 = vmax.f32 %v5580, 0.0
      %v5693 = vmax.f32 %v5581, 0.0
      %v5694 = vmax.f32 %v5582, 0.0
      %v5695 = vmax.f32 %v5583, 0.0
      %v5696 = vmax.f32 %v5584, 0.0
      %v5697 = vmax.f32 %v5585, 0.0
      %v5698 = vmax.f32 %v5586, 0.0
      %v5699 = vmax.f32 %v5587, 0.0
      %v5700 = vmax.f32 %v5588, 0.0
      %v5701 = vmax.f32 %v5589, 0.0
      %v5702 = vmax.f32 %v5590, 0.0
      %v5703 = vmax.f32 %v5591, 0.0
      %v5704 = vmax.f32 %v5592, 0.0
      %v5705 = vmax.f32 %v5593, 0.0
      %v5706 = vmax.f32 %v5594, 0.0
      %v5707 = vmax.f32 %v5595, 0.0
      %v5708 = vmax.f32 %v5596, 0.0
      %v5709 = vmax.f32 %v5597, 0.0
      %v5710 = vmax.f32 %v5598, 0.0
      %v5711 = vmax.f32 %v5599, 0.0
      %v5712 = vmax.f32 %v5600, 0.0
      %v5713 = vmax.f32 %v5601, 0.0
      %v5714 = vmax.f32 %v5602, 0.0
      %v5715 = vmax.f32 %v5603, 0.0
      %v5716 = vmax.f32 %v5604, 0.0
      %v5717 = vmax.f32 %v5605, 0.0
      %v5718 = vmax.f32 %v5606, 0.0
      %v5719 = vmax.f32 %v5607, 0.0
      %v5720 = vmax.f32 %v5608, 0.0
      %v5721 = vmax.f32 %v5609, 0.0
      %v5722 = vmax.f32 %v5610, 0.0
      %v5723 = vmax.f32 %v5611, 0.0
      %v5724 = vmax.f32 %v5612, 0.0
      %v5725 = vmax.f32 %v5613, 0.0
      %v5726 = vmax.f32 %v5614, 0.0
      %v5727 = vmax.f32 %v5615, 0.0
      %v5728 = vmax.f32 %v5616, 0.0
      %v5729 = vmax.f32 %v5617, 0.0
      %v5730 = vmax.f32 %v5618, 0.0
      %v5731 = vmax.f32 %v5619, 0.0
      %v5732 = vmax.f32 %v5620, 0.0
      %v5733 = vmax.f32 %v5621, 0.0
      %v5734 = vmax.f32 %v5622, 0.0
      %v5735 = vmax.f32 %v5623, 0.0
      %v5736 = vmax.f32 %v5624, 0.0
      %v5737 = vmax.f32 %v5625, 0.0
      %v5738 = vmax.f32 %v5626, 0.0
      %v5739 = vmax.f32 %v5627, 0.0
      %v5740 = vmax.f32 %v5628, 0.0
      %v5741 = vmax.f32 %v5629, 0.0
      %v5742 = vmax.f32 %v5630, 0.0
      %v5743 = vmax.f32 %v5631, 0.0
      %v5744 = vmax.f32 %v5632, 0.0
      %v5745 = vmax.f32 %v5633, 0.0
      %v5746 = vmax.f32 %v5634, 0.0
      %v5747 = vmax.f32 %v5635, 0.0
      %v5748 = vmax.f32 %v5636, 0.0
      %v5749 = vmax.f32 %v5637, 0.0
      %v5750 = vmax.f32 %v5638, 0.0
      %v5751 = vmax.f32 %v5639, 0.0
      %v5752 = vmax.f32 %v5640, 0.0
      %vm5753 = vcmask 408576
      %v5754 = vsel %vm5753, %v5641, -inf
      %v5755 = vsel %vm5753, %v5645, -inf
      %v5756 = vmax.f32 %v5754, %v5755
      %v5757 = vsel %vm5753, %v5642, -inf
      %v5758 = vsel %vm5753, %v5646, -inf
      %v5759 = vmax.f32 %v5757, %v5758
      %v5760 = vsel %vm5753, %v5643, -inf
      %v5761 = vsel %vm5753, %v5647, -inf
      %v5762 = vmax.f32 %v5760, %v5761
      %vm5763 = vcmask 404480
      %v5764 = vsel %vm5763, %v5644, -inf
      %v5765 = vsel %vm5763, %v5648, -inf
      %v5766 = vmax.f32 %v5764, %v5765
      %v5767 = vsel %vm5753, %v5649, -inf
      %v5768 = vsel %vm5753, %v5653, -inf
      %v5769 = vmax.f32 %v5767, %v5768
      %v5770 = vsel %vm5753, %v5650, -inf
      %v5771 = vsel %vm5753, %v5654, -inf
      %v5772 = vmax.f32 %v5770, %v5771
      %v5773 = vsel %vm5753, %v5651, -inf
      %v5774 = vsel %vm5753, %v5655, -inf
      %v5775 = vmax.f32 %v5773, %v5774
      %v5776 = vsel %vm5763, %v5652, -inf
      %v5777 = vsel %vm5763, %v5656, -inf
      %v5778 = vmax.f32 %v5776, %v5777
      %v5779 = vsel %vm5753, %v5657, -inf
      %v5780 = vsel %vm5753, %v5661, -inf
      %v5781 = vmax.f32 %v5779, %v5780
      %v5782 = vsel %vm5753, %v5658, -inf
      %v5783 = vsel %vm5753, %v5662, -inf
      %v5784 = vmax.f32 %v5782, %v5783
      %v5785 = vsel %vm5753, %v5659, -inf
      %v5786 = vsel %vm5753, %v5663, -inf
      %v5787 = vmax.f32 %v5785, %v5786
      %v5788 = vsel %vm5763, %v5660, -inf
      %v5789 = vsel %vm5763, %v5664, -inf
      %v5790 = vmax.f32 %v5788, %v5789
      %v5791 = vsel %vm5753, %v5665, -inf
      %v5792 = vsel %vm5753, %v5669, -inf
      %v5793 = vmax.f32 %v5791, %v5792
      %v5794 = vsel %vm5753, %v5666, -inf
      %v5795 = vsel %vm5753, %v5670, -inf
      %v5796 = vmax.f32 %v5794, %v5795
      %v5797 = vsel %vm5753, %v5667, -inf
      %v5798 = vsel %vm5753, %v5671, -inf
      %v5799 = vmax.f32 %v5797, %v5798
      %v5800 = vsel %vm5763, %v5668, -inf
      %v5801 = vsel %vm5763, %v5672, -inf
      %v5802 = vmax.f32 %v5800, %v5801
      %v5803 = vsel %vm5753, %v5673, -inf
      %v5804 = vsel %vm5753, %v5677, -inf
      %v5805 = vmax.f32 %v5803, %v5804
      %v5806 = vsel %vm5753, %v5674, -inf
      %v5807 = vsel %vm5753, %v5678, -inf
      %v5808 = vmax.f32 %v5806, %v5807
      %v5809 = vsel %vm5753, %v5675, -inf
      %v5810 = vsel %vm5753, %v5679, -inf
      %v5811 = vmax.f32 %v5809, %v5810
      %v5812 = vsel %vm5763, %v5676, -inf
      %v5813 = vsel %vm5763, %v5680, -inf
      %v5814 = vmax.f32 %v5812, %v5813
      %v5815 = vsel %vm5753, %v5681, -inf
      %v5816 = vsel %vm5753, %v5685, -inf
      %v5817 = vmax.f32 %v5815, %v5816
      %v5818 = vsel %vm5753, %v5682, -inf
      %v5819 = vsel %vm5753, %v5686, -inf
      %v5820 = vmax.f32 %v5818, %v5819
      %v5821 = vsel %vm5753, %v5683, -inf
      %v5822 = vsel %vm5753, %v5687, -inf
      %v5823 = vmax.f32 %v5821, %v5822
      %v5824 = vsel %vm5763, %v5684, -inf
      %v5825 = vsel %vm5763, %v5688, -inf
      %v5826 = vmax.f32 %v5824, %v5825
      %v5827 = vsel %vm5753, %v5689, -inf
      %v5828 = vsel %vm5753, %v5693, -inf
      %v5829 = vmax.f32 %v5827, %v5828
      %v5830 = vsel %vm5753, %v5690, -inf
      %v5831 = vsel %vm5753, %v5694, -inf
      %v5832 = vmax.f32 %v5830, %v5831
      %v5833 = vsel %vm5753, %v5691, -inf
      %v5834 = vsel %vm5753, %v5695, -inf
      %v5835 = vmax.f32 %v5833, %v5834
      %v5836 = vsel %vm5763, %v5692, -inf
      %v5837 = vsel %vm5763, %v5696, -inf
      %v5838 = vmax.f32 %v5836, %v5837
      %v5839 = vsel %vm5753, %v5697, -inf
      %v5840 = vsel %vm5753, %v5701, -inf
      %v5841 = vmax.f32 %v5839, %v5840
      %v5842 = vsel %vm5753, %v5698, -inf
      %v5843 = vsel %vm5753, %v5702, -inf
      %v5844 = vmax.f32 %v5842, %v5843
      %v5845 = vsel %vm5753, %v5699, -inf
      %v5846 = vsel %vm5753, %v5703, -inf
      %v5847 = vmax.f32 %v5845, %v5846
      %v5848 = vsel %vm5763, %v5700, -inf
      %v5849 = vsel %vm5763, %v5704, -inf
      %v5850 = vmax.f32 %v5848, %v5849
      %v5851 = vsel %vm5753, %v5705, -inf
      %v5852 = vsel %vm5753, %v5709, -inf
      %v5853 = vmax.f32 %v5851, %v5852
      %v5854 = vsel %vm5753, %v5706, -inf
      %v5855 = vsel %vm5753, %v5710, -inf
      %v5856 = vmax.f32 %v5854, %v5855
      %v5857 = vsel %vm5753, %v5707, -inf
      %v5858 = vsel %vm5753, %v5711, -inf
      %v5859 = vmax.f32 %v5857, %v5858
      %v5860 = vsel %vm5763, %v5708, -inf
      %v5861 = vsel %vm5763, %v5712, -inf
      %v5862 = vmax.f32 %v5860, %v5861
      %v5863 = vsel %vm5753, %v5713, -inf
      %v5864 = vsel %vm5753, %v5717, -inf
      %v5865 = vmax.f32 %v5863, %v5864
      %v5866 = vsel %vm5753, %v5714, -inf
      %v5867 = vsel %vm5753, %v5718, -inf
      %v5868 = vmax.f32 %v5866, %v5867
      %v5869 = vsel %vm5753, %v5715, -inf
      %v5870 = vsel %vm5753, %v5719, -inf
      %v5871 = vmax.f32 %v5869, %v5870
      %v5872 = vsel %vm5763, %v5716, -inf
      %v5873 = vsel %vm5763, %v5720, -inf
      %v5874 = vmax.f32 %v5872, %v5873
      %v5875 = vsel %vm5753, %v5721, -inf
      %v5876 = vsel %vm5753, %v5725, -inf
      %v5877 = vmax.f32 %v5875, %v5876
      %v5878 = vsel %vm5753, %v5722, -inf
      %v5879 = vsel %vm5753, %v5726, -inf
      %v5880 = vmax.f32 %v5878, %v5879
      %v5881 = vsel %vm5753, %v5723, -inf
      %v5882 = vsel %vm5753, %v5727, -inf
      %v5883 = vmax.f32 %v5881, %v5882
      %v5884 = vsel %vm5763, %v5724, -inf
      %v5885 = vsel %vm5763, %v5728, -inf
      %v5886 = vmax.f32 %v5884, %v5885
      %v5887 = vsel %vm5753, %v5729, -inf
      %v5888 = vsel %vm5753, %v5733, -inf
      %v5889 = vmax.f32 %v5887, %v5888
      %v5890 = vsel %vm5753, %v5730, -inf
      %v5891 = vsel %vm5753, %v5734, -inf
      %v5892 = vmax.f32 %v5890, %v5891
      %v5893 = vsel %vm5753, %v5731, -inf
      %v5894 = vsel %vm5753, %v5735, -inf
      %v5895 = vmax.f32 %v5893, %v5894
      %v5896 = vsel %vm5763, %v5732, -inf
      %v5897 = vsel %vm5763, %v5736, -inf
      %v5898 = vmax.f32 %v5896, %v5897
      %v5899 = vsel %vm5753, %v5737, -inf
      %v5900 = vsel %vm5753, %v5741, -inf
      %v5901 = vmax.f32 %v5899, %v5900
      %v5902 = vsel %vm5753, %v5738, -inf
      %v5903 = vsel %vm5753, %v5742, -inf
      %v5904 = vmax.f32 %v5902, %v5903
      %v5905 = vsel %vm5753, %v5739, -inf
      %v5906 = vsel %vm5753, %v5743, -inf
      %v5907 = vmax.f32 %v5905, %v5906
      %v5908 = vsel %vm5763, %v5740, -inf
      %v5909 = vsel %vm5763, %v5744, -inf
      %v5910 = vmax.f32 %v5908, %v5909
      %v5911 = vsel %vm5753, %v5745, -inf
      %v5912 = vsel %vm5753, %v5749, -inf
      %v5913 = vmax.f32 %v5911, %v5912
      %v5914 = vsel %vm5753, %v5746, -inf
      %v5915 = vsel %vm5753, %v5750, -inf
      %v5916 = vmax.f32 %v5914, %v5915
      %v5917 = vsel %vm5753, %v5747, -inf
      %v5918 = vsel %vm5753, %v5751, -inf
      %v5919 = vmax.f32 %v5917, %v5918
      %v5920 = vsel %vm5763, %v5748, -inf
      %v5921 = vsel %vm5763, %v5752, -inf
      %v5922 = vmax.f32 %v5920, %v5921
      %5923 = vst.msk [vmem:[#allocation2] sm:$0xff] %vm5753, %v5756
      %5924 = vst.msk [vmem:[#allocation2 + $0x8] sm:$0xff] %vm5753, %v5759
      %5925 = vst.msk [vmem:[#allocation2 + $0x10] sm:$0xff] %vm5753, %v5762
      %5926 = vst.msk [vmem:[#allocation2 + $0x18] sm:$0xf] %vm5763, %v5766
      %5927 = vst.msk [vmem:[#allocation2 + $0x20] sm:$0xff] %vm5753, %v5769
      %5928 = vst.msk [vmem:[#allocation2 + $0x28] sm:$0xff] %vm5753, %v5772
      %5929 = vst.msk [vmem:[#allocation2 + $0x30] sm:$0xff] %vm5753, %v5775
      %5930 = vst.msk [vmem:[#allocation2 + $0x38] sm:$0xf] %vm5763, %v5778
      %5931 = vst.msk [vmem:[#allocation2 + $0x40] sm:$0xff] %vm5753, %v5781
      %5932 = vst.msk [vmem:[#allocation2 + $0x48] sm:$0xff] %vm5753, %v5784
      %5933 = vst.msk [vmem:[#allocation2 + $0x50] sm:$0xff] %vm5753, %v5787
      %5934 = vst.msk [vmem:[#allocation2 + $0x58] sm:$0xf] %vm5763, %v5790
      %5935 = vst.msk [vmem:[#allocation2 + $0x60] sm:$0xff] %vm5753, %v5793
      %5936 = vst.msk [vmem:[#allocation2 + $0x68] sm:$0xff] %vm5753, %v5796
      %5937 = vst.msk [vmem:[#allocation2 + $0x70] sm:$0xff] %vm5753, %v5799
      %5938 = vst.msk [vmem:[#allocation2 + $0x78] sm:$0xf] %vm5763, %v5802
      %5939 = vst.msk [vmem:[#allocation2 + $0x80] sm:$0xff] %vm5753, %v5805
      %5940 = vst.msk [vmem:[#allocation2 + $0x88] sm:$0xff] %vm5753, %v5808
      %5941 = vst.msk [vmem:[#allocation2 + $0x90] sm:$0xff] %vm5753, %v5811
      %5942 = vst.msk [vmem:[#allocation2 + $0x98] sm:$0xf] %vm5763, %v5814
      %5943 = vst.msk [vmem:[#allocation2 + $0xa0] sm:$0xff] %vm5753, %v5817
      %5944 = vst.msk [vmem:[#allocation2 + $0xa8] sm:$0xff] %vm5753, %v5820
      %5945 = vst.msk [vmem:[#allocation2 + $0xb0] sm:$0xff] %vm5753, %v5823
      %5946 = vst.msk [vmem:[#allocation2 + $0xb8] sm:$0xf] %vm5763, %v5826
      %5947 = vst.msk [vmem:[#allocation2 + $0xc0] sm:$0xff] %vm5753, %v5829
      %5948 = vst.msk [vmem:[#allocation2 + $0xc8] sm:$0xff] %vm5753, %v5832
      %5949 = vst.msk [vmem:[#allocation2 + $0xd0] sm:$0xff] %vm5753, %v5835
      %5950 = vst.msk [vmem:[#allocation2 + $0xd8] sm:$0xf] %vm5763, %v5838
      %5951 = vst.msk [vmem:[#allocation2 + $0xe0] sm:$0xff] %vm5753, %v5841
      %5952 = vst.msk [vmem:[#allocation2 + $0xe8] sm:$0xff] %vm5753, %v5844
      %5953 = vst.msk [vmem:[#allocation2 + $0xf0] sm:$0xff] %vm5753, %v5847
      %5954 = vst.msk [vmem:[#allocation2 + $0xf8] sm:$0xf] %vm5763, %v5850
      %5955 = vst.msk [vmem:[#allocation2 + $0x100] sm:$0xff] %vm5753, %v5853
      %5956 = vst.msk [vmem:[#allocation2 + $0x108] sm:$0xff] %vm5753, %v5856
      %5957 = vst.msk [vmem:[#allocation2 + $0x110] sm:$0xff] %vm5753, %v5859
      %5958 = vst.msk [vmem:[#allocation2 + $0x118] sm:$0xf] %vm5763, %v5862
      %5959 = vst.msk [vmem:[#allocation2 + $0x120] sm:$0xff] %vm5753, %v5865
      %5960 = vst.msk [vmem:[#allocation2 + $0x128] sm:$0xff] %vm5753, %v5868
      %5961 = vst.msk [vmem:[#allocation2 + $0x130] sm:$0xff] %vm5753, %v5871
      %5962 = vst.msk [vmem:[#allocation2 + $0x138] sm:$0xf] %vm5763, %v5874
      %5963 = vst.msk [vmem:[#allocation2 + $0x140] sm:$0xff] %vm5753, %v5877
      %5964 = vst.msk [vmem:[#allocation2 + $0x148] sm:$0xff] %vm5753, %v5880
      %5965 = vst.msk [vmem:[#allocation2 + $0x150] sm:$0xff] %vm5753, %v5883
      %5966 = vst.msk [vmem:[#allocation2 + $0x158] sm:$0xf] %vm5763, %v5886
      %5967 = vst.msk [vmem:[#allocation2 + $0x160] sm:$0xff] %vm5753, %v5889
      %5968 = vst.msk [vmem:[#allocation2 + $0x168] sm:$0xff] %vm5753, %v5892
      %5969 = vst.msk [vmem:[#allocation2 + $0x170] sm:$0xff] %vm5753, %v5895
      %5970 = vst.msk [vmem:[#allocation2 + $0x178] sm:$0xf] %vm5763, %v5898
      %5971 = vst.msk [vmem:[#allocation2 + $0x180] sm:$0xff] %vm5753, %v5901
      %5972 = vst.msk [vmem:[#allocation2 + $0x188] sm:$0xff] %vm5753, %v5904
      %5973 = vst.msk [vmem:[#allocation2 + $0x190] sm:$0xff] %vm5753, %v5907
      %5974 = vst.msk [vmem:[#allocation2 + $0x198] sm:$0xf] %vm5763, %v5910
      %5975 = vst.msk [vmem:[#allocation2 + $0x1a0] sm:$0xff] %vm5753, %v5913
      %5976 = vst.msk [vmem:[#allocation2 + $0x1a8] sm:$0xff] %vm5753, %v5916
      %5977 = vst.msk [vmem:[#allocation2 + $0x1b0] sm:$0xff] %vm5753, %v5919
      %5978 = vst.msk [vmem:[#allocation2 + $0x1b8] sm:$0xf] %vm5763, %v5922
      %v5979 = vld [vmem:[#allocation2] ss:$2 sm:$0xff]
      %s5980 = scalar_lea.vmem [#allocation2], 16
      %v5981 = vld [vmem:[%s5980] ss:$2 sm:$0x3f]
      %s5982 = scalar_lea.vmem [#allocation2], 32
      %v5983 = vld [vmem:[%s5982] ss:$2 sm:$0xff]
      %s5984 = scalar_lea.vmem [#allocation2], 48
      %v5985 = vld [vmem:[%s5984] ss:$2 sm:$0x3f]
      %s5986 = scalar_lea.vmem [#allocation2], 64
      %v5987 = vld [vmem:[%s5986] ss:$2 sm:$0xff]
      %s5988 = scalar_lea.vmem [#allocation2], 80
      %v5989 = vld [vmem:[%s5988] ss:$2 sm:$0x3f]
      %s5990 = scalar_lea.vmem [#allocation2], 96
      %v5991 = vld [vmem:[%s5990] ss:$2 sm:$0xff]
      %s5992 = scalar_lea.vmem [#allocation2], 112
      %v5993 = vld [vmem:[%s5992] ss:$2 sm:$0x3f]
      %s5994 = scalar_lea.vmem [#allocation2], 128
      %v5995 = vld [vmem:[%s5994] ss:$2 sm:$0xff]
      %s5996 = scalar_lea.vmem [#allocation2], 144
      %v5997 = vld [vmem:[%s5996] ss:$2 sm:$0x3f]
      %s5998 = scalar_lea.vmem [#allocation2], 160
      %v5999 = vld [vmem:[%s5998] ss:$2 sm:$0xff]
      %s6000 = scalar_lea.vmem [#allocation2], 176
      %v6001 = vld [vmem:[%s6000] ss:$2 sm:$0x3f]
      %s6002 = scalar_lea.vmem [#allocation2], 192
      %v6003 = vld [vmem:[%s6002] ss:$2 sm:$0xff]
      %s6004 = scalar_lea.vmem [#allocation2], 208
      %v6005 = vld [vmem:[%s6004] ss:$2 sm:$0x3f]
      %s6006 = scalar_lea.vmem [#allocation2], 224
      %v6007 = vld [vmem:[%s6006] ss:$2 sm:$0xff]
      %s6008 = scalar_lea.vmem [#allocation2], 240
      %v6009 = vld [vmem:[%s6008] ss:$2 sm:$0x3f]
      %s6010 = scalar_lea.vmem [#allocation2], 256
      %v6011 = vld [vmem:[%s6010] ss:$2 sm:$0xff]
      %s6012 = scalar_lea.vmem [#allocation2], 272
      %v6013 = vld [vmem:[%s6012] ss:$2 sm:$0x3f]
      %s6014 = scalar_lea.vmem [#allocation2], 288
      %v6015 = vld [vmem:[%s6014] ss:$2 sm:$0xff]
      %s6016 = scalar_lea.vmem [#allocation2], 304
      %v6017 = vld [vmem:[%s6016] ss:$2 sm:$0x3f]
      %s6018 = scalar_lea.vmem [#allocation2], 320
      %v6019 = vld [vmem:[%s6018] ss:$2 sm:$0xff]
      %s6020 = scalar_lea.vmem [#allocation2], 336
      %v6021 = vld [vmem:[%s6020] ss:$2 sm:$0x3f]
      %s6022 = scalar_lea.vmem [#allocation2], 352
      %v6023 = vld [vmem:[%s6022] ss:$2 sm:$0xff]
      %s6024 = scalar_lea.vmem [#allocation2], 368
      %v6025 = vld [vmem:[%s6024] ss:$2 sm:$0x3f]
      %s6026 = scalar_lea.vmem [#allocation2], 384
      %v6027 = vld [vmem:[%s6026] ss:$2 sm:$0xff]
      %s6028 = scalar_lea.vmem [#allocation2], 400
      %v6029 = vld [vmem:[%s6028] ss:$2 sm:$0x3f]
      %s6030 = scalar_lea.vmem [#allocation2], 416
      %v6031 = vld [vmem:[%s6030] ss:$2 sm:$0xff]
      %s6032 = scalar_lea.vmem [#allocation2], 432
      %v6033 = vld [vmem:[%s6032] ss:$2 sm:$0x3f]
      %s6034 = scalar_lea.vmem [#allocation2], 1
      %v6035 = vld [vmem:[%s6034] ss:$2 sm:$0xff]
      %s6036 = scalar_lea.vmem [#allocation2], 17
      %v6037 = vld [vmem:[%s6036] ss:$2 sm:$0x3f]
      %s6038 = scalar_lea.vmem [#allocation2], 33
      %v6039 = vld [vmem:[%s6038] ss:$2 sm:$0xff]
      %s6040 = scalar_lea.vmem [#allocation2], 49
      %v6041 = vld [vmem:[%s6040] ss:$2 sm:$0x3f]
      %s6042 = scalar_lea.vmem [#allocation2], 65
      %v6043 = vld [vmem:[%s6042] ss:$2 sm:$0xff]
      %s6044 = scalar_lea.vmem [#allocation2], 81
      %v6045 = vld [vmem:[%s6044] ss:$2 sm:$0x3f]
      %s6046 = scalar_lea.vmem [#allocation2], 97
      %v6047 = vld [vmem:[%s6046] ss:$2 sm:$0xff]
      %s6048 = scalar_lea.vmem [#allocation2], 113
      %v6049 = vld [vmem:[%s6048] ss:$2 sm:$0x3f]
      %s6050 = scalar_lea.vmem [#allocation2], 129
      %v6051 = vld [vmem:[%s6050] ss:$2 sm:$0xff]
      %s6052 = scalar_lea.vmem [#allocation2], 145
      %v6053 = vld [vmem:[%s6052] ss:$2 sm:$0x3f]
      %s6054 = scalar_lea.vmem [#allocation2], 161
      %v6055 = vld [vmem:[%s6054] ss:$2 sm:$0xff]
      %s6056 = scalar_lea.vmem [#allocation2], 177
      %v6057 = vld [vmem:[%s6056] ss:$2 sm:$0x3f]
      %s6058 = scalar_lea.vmem [#allocation2], 193
      %v6059 = vld [vmem:[%s6058] ss:$2 sm:$0xff]
      %s6060 = scalar_lea.vmem [#allocation2], 209
      %v6061 = vld [vmem:[%s6060] ss:$2 sm:$0x3f]
      %s6062 = scalar_lea.vmem [#allocation2], 225
      %v6063 = vld [vmem:[%s6062] ss:$2 sm:$0xff]
      %s6064 = scalar_lea.vmem [#allocation2], 241
      %v6065 = vld [vmem:[%s6064] ss:$2 sm:$0x3f]
      %s6066 = scalar_lea.vmem [#allocation2], 257
      %v6067 = vld [vmem:[%s6066] ss:$2 sm:$0xff]
      %s6068 = scalar_lea.vmem [#allocation2], 273
      %v6069 = vld [vmem:[%s6068] ss:$2 sm:$0x3f]
      %s6070 = scalar_lea.vmem [#allocation2], 289
      %v6071 = vld [vmem:[%s6070] ss:$2 sm:$0xff]
      %s6072 = scalar_lea.vmem [#allocation2], 305
      %v6073 = vld [vmem:[%s6072] ss:$2 sm:$0x3f]
      %s6074 = scalar_lea.vmem [#allocation2], 321
      %v6075 = vld [vmem:[%s6074] ss:$2 sm:$0xff]
      %s6076 = scalar_lea.vmem [#allocation2], 337
      %v6077 = vld [vmem:[%s6076] ss:$2 sm:$0x3f]
      %s6078 = scalar_lea.vmem [#allocation2], 353
      %v6079 = vld [vmem:[%s6078] ss:$2 sm:$0xff]
      %s6080 = scalar_lea.vmem [#allocation2], 369
      %v6081 = vld [vmem:[%s6080] ss:$2 sm:$0x3f]
      %s6082 = scalar_lea.vmem [#allocation2], 385
      %v6083 = vld [vmem:[%s6082] ss:$2 sm:$0xff]
      %s6084 = scalar_lea.vmem [#allocation2], 401
      %v6085 = vld [vmem:[%s6084] ss:$2 sm:$0x3f]
      %s6086 = scalar_lea.vmem [#allocation2], 417
      %v6087 = vld [vmem:[%s6086] ss:$2 sm:$0xff]
      %s6088 = scalar_lea.vmem [#allocation2], 433
      %v6089 = vld [vmem:[%s6088] ss:$2 sm:$0x3f]
      %v6090 = vmax.f32 %v5979, %v6035
      %v6091 = vmax.f32 %v5981, %v6037
      %v6092 = vmax.f32 %v5983, %v6039
      %v6093 = vmax.f32 %v5985, %v6041
      %v6094 = vmax.f32 %v5987, %v6043
      %v6095 = vmax.f32 %v5989, %v6045
      %v6096 = vmax.f32 %v5991, %v6047
      %v6097 = vmax.f32 %v5993, %v6049
      %v6098 = vmax.f32 %v5995, %v6051
      %v6099 = vmax.f32 %v5997, %v6053
      %v6100 = vmax.f32 %v5999, %v6055
      %v6101 = vmax.f32 %v6001, %v6057
      %v6102 = vmax.f32 %v6003, %v6059
      %v6103 = vmax.f32 %v6005, %v6061
      %v6104 = vmax.f32 %v6007, %v6063
      %v6105 = vmax.f32 %v6009, %v6065
      %v6106 = vmax.f32 %v6011, %v6067
      %v6107 = vmax.f32 %v6013, %v6069
      %v6108 = vmax.f32 %v6015, %v6071
      %v6109 = vmax.f32 %v6017, %v6073
      %v6110 = vmax.f32 %v6019, %v6075
      %v6111 = vmax.f32 %v6021, %v6077
      %v6112 = vmax.f32 %v6023, %v6079
      %v6113 = vmax.f32 %v6025, %v6081
      %v6114 = vmax.f32 %v6027, %v6083
      %v6115 = vmax.f32 %v6029, %v6085
      %v6116 = vmax.f32 %v6031, %v6087
      %v6117 = vmax.f32 %v6033, %v6089
      %6118 = vst.msk [vmem:[#allocation3] sm:$0xff] %vm5753, 0.0
      %6119 = vst.msk [vmem:[#allocation3 + $0x8] sm:$0xff] %vm5753, 0.0
      %vm6120 = vcmask 402432
      %6121 = vst.msk [vmem:[#allocation3 + $0x10] sm:$0x3] %vm6120, 0.0
      %6122 = vst.msk [vmem:[#allocation3 + $0x18] sm:$0xff] %vm5753, 0.0
      %6123 = vst.msk [vmem:[#allocation3 + $0x20] sm:$0xff] %vm5753, 0.0
      %6124 = vst.msk [vmem:[#allocation3 + $0x28] sm:$0x3] %vm6120, 0.0
      %6125 = vst.msk [vmem:[#allocation3 + $0x30] sm:$0xff] %vm5753, 0.0
      %6126 = vst.msk [vmem:[#allocation3 + $0x38] sm:$0xff] %vm5753, 0.0
      %6127 = vst.msk [vmem:[#allocation3 + $0x40] sm:$0x3] %vm6120, 0.0
      %6128 = vst.msk [vmem:[#allocation3 + $0x48] sm:$0xff] %vm5753, 0.0
      %6129 = vst.msk [vmem:[#allocation3 + $0x50] sm:$0xff] %vm5753, 0.0
      %6130 = vst.msk [vmem:[#allocation3 + $0x58] sm:$0x3] %vm6120, 0.0
      %6131 = vst.msk [vmem:[#allocation3 + $0x60] sm:$0xff] %vm5753, 0.0
      %6132 = vst.msk [vmem:[#allocation3 + $0x68] sm:$0xff] %vm5753, 0.0
      %6133 = vst.msk [vmem:[#allocation3 + $0x70] sm:$0x3] %vm6120, 0.0
      %6134 = vst.msk [vmem:[#allocation3 + $0x78] sm:$0xff] %vm5753, 0.0
      %6135 = vst.msk [vmem:[#allocation3 + $0x80] sm:$0xff] %vm5753, 0.0
      %6136 = vst.msk [vmem:[#allocation3 + $0x88] sm:$0x3] %vm6120, 0.0
      %6137 = vst.msk [vmem:[#allocation3 + $0x90] sm:$0xff] %vm5753, 0.0
      %6138 = vst.msk [vmem:[#allocation3 + $0x98] sm:$0xff] %vm5753, 0.0
      %6139 = vst.msk [vmem:[#allocation3 + $0xa0] sm:$0x3] %vm6120, 0.0
      %6140 = vst.msk [vmem:[#allocation3 + $0xa8] sm:$0xff] %vm5753, 0.0
      %6141 = vst.msk [vmem:[#allocation3 + $0xb0] sm:$0xff] %vm5753, 0.0
      %6142 = vst.msk [vmem:[#allocation3 + $0xb8] sm:$0x3] %vm6120, 0.0
      %6143 = vst.msk [vmem:[#allocation3 + $0xc0] sm:$0xff] %vm5753, 0.0
      %6144 = vst.msk [vmem:[#allocation3 + $0xc8] sm:$0xff] %vm5753, 0.0
      %6145 = vst.msk [vmem:[#allocation3 + $0xd0] sm:$0x3] %vm6120, 0.0
      %6146 = vst.msk [vmem:[#allocation3 + $0xd8] sm:$0xff] %vm5753, 0.0
      %6147 = vst.msk [vmem:[#allocation3 + $0xe0] sm:$0xff] %vm5753, 0.0
      %6148 = vst.msk [vmem:[#allocation3 + $0xe8] sm:$0x3] %vm6120, 0.0
      %6149 = vst.msk [vmem:[#allocation3 + $0xf0] sm:$0xff] %vm5753, 0.0
      %6150 = vst.msk [vmem:[#allocation3 + $0xf8] sm:$0xff] %vm5753, 0.0
      %6151 = vst.msk [vmem:[#allocation3 + $0x100] sm:$0x3] %vm6120, 0.0
      %6152 = vst.msk [vmem:[#allocation3 + $0x108] sm:$0xff] %vm5753, 0.0
      %6153 = vst.msk [vmem:[#allocation3 + $0x110] sm:$0xff] %vm5753, 0.0
      %6154 = vst.msk [vmem:[#allocation3 + $0x118] sm:$0x3] %vm6120, 0.0
      %6155 = vst.msk [vmem:[#allocation3 + $0x120] sm:$0xff] %vm5753, 0.0
      %6156 = vst.msk [vmem:[#allocation3 + $0x128] sm:$0xff] %vm5753, 0.0
      %6157 = vst.msk [vmem:[#allocation3 + $0x130] sm:$0x3] %vm6120, 0.0
      %6158 = vst.msk [vmem:[#allocation3 + $0x138] sm:$0xff] %vm5753, 0.0
      %6159 = vst.msk [vmem:[#allocation3 + $0x140] sm:$0xff] %vm5753, 0.0
      %6160 = vst.msk [vmem:[#allocation3 + $0x148] sm:$0x3] %vm6120, 0.0
      %6161 = vst.msk [vmem:[#allocation3 + $0x150] sm:$0xff] %vm5753, 0.0
      %6162 = vst.msk [vmem:[#allocation3 + $0x158] sm:$0xff] %vm5753, 0.0
      %6163 = vst.msk [vmem:[#allocation3 + $0x160] sm:$0x3] %vm6120, 0.0
      %6164 = vst.msk [vmem:[#allocation3 + $0x168] sm:$0xff] %vm5753, 0.0
      %6165 = vst.msk [vmem:[#allocation3 + $0x170] sm:$0xff] %vm5753, 0.0
      %6166 = vst.msk [vmem:[#allocation3 + $0x178] sm:$0x3] %vm6120, 0.0
      %s6167 = scalar_lea.vmem [#allocation3], 24
      %6168 = vst.msk [vmem:[%s6167 + $0x1] sm:$0xff] %vm5753, %v6090
      %vm6169 = vcmask 406528
      %6170 = vst.msk [vmem:[%s6167 + $0x9] sm:$0x3f] %vm6169, %v6091
      %6171 = vst.msk [vmem:[%s6167 + $0x19] sm:$0xff] %vm5753, %v6092
      %6172 = vst.msk [vmem:[%s6167 + $0x21] sm:$0x3f] %vm6169, %v6093
      %6173 = vst.msk [vmem:[%s6167 + $0x31] sm:$0xff] %vm5753, %v6094
      %6174 = vst.msk [vmem:[%s6167 + $0x39] sm:$0x3f] %vm6169, %v6095
      %6175 = vst.msk [vmem:[%s6167 + $0x49] sm:$0xff] %vm5753, %v6096
      %6176 = vst.msk [vmem:[%s6167 + $0x51] sm:$0x3f] %vm6169, %v6097
      %6177 = vst.msk [vmem:[%s6167 + $0x61] sm:$0xff] %vm5753, %v6098
      %6178 = vst.msk [vmem:[%s6167 + $0x69] sm:$0x3f] %vm6169, %v6099
      %6179 = vst.msk [vmem:[%s6167 + $0x79] sm:$0xff] %vm5753, %v6100
      %6180 = vst.msk [vmem:[%s6167 + $0x81] sm:$0x3f] %vm6169, %v6101
      %6181 = vst.msk [vmem:[%s6167 + $0x91] sm:$0xff] %vm5753, %v6102
      %6182 = vst.msk [vmem:[%s6167 + $0x99] sm:$0x3f] %vm6169, %v6103
      %6183 = vst.msk [vmem:[%s6167 + $0xa9] sm:$0xff] %vm5753, %v6104
      %6184 = vst.msk [vmem:[%s6167 + $0xb1] sm:$0x3f] %vm6169, %v6105
      %6185 = vst.msk [vmem:[%s6167 + $0xc1] sm:$0xff] %vm5753, %v6106
      %6186 = vst.msk [vmem:[%s6167 + $0xc9] sm:$0x3f] %vm6169, %v6107
      %6187 = vst.msk [vmem:[%s6167 + $0xd9] sm:$0xff] %vm5753, %v6108
      %6188 = vst.msk [vmem:[%s6167 + $0xe1] sm:$0x3f] %vm6169, %v6109
      %6189 = vst.msk [vmem:[%s6167 + $0xf1] sm:$0xff] %vm5753, %v6110
      %6190 = vst.msk [vmem:[%s6167 + $0xf9] sm:$0x3f] %vm6169, %v6111
      %6191 = vst.msk [vmem:[%s6167 + $0x109] sm:$0xff] %vm5753, %v6112
      %6192 = vst.msk [vmem:[%s6167 + $0x111] sm:$0x3f] %vm6169, %v6113
      %6193 = vst.msk [vmem:[%s6167 + $0x121] sm:$0xff] %vm5753, %v6114
      %6194 = vst.msk [vmem:[%s6167 + $0x129] sm:$0x3f] %vm6169, %v6115
      %6195 = vst.msk [vmem:[%s6167 + $0x139] sm:$0xff] %vm5753, %v6116
      %6196 = vst.msk [vmem:[%s6167 + $0x141] sm:$0x3f] %vm6169, %v6117
      %v6197 = vld [vmem:[#allocation3] sm:$0xff]
      %v6198 = vld [vmem:[#allocation3 + $0x8] sm:$0xff]
      %v6199 = vld [vmem:[#allocation3 + $0x18] sm:$0xff]
      %v6200 = vld [vmem:[#allocation3 + $0x20] sm:$0xff]
      %v6201 = vld [vmem:[#allocation3 + $0x30] sm:$0xff]
      %v6202 = vld [vmem:[#allocation3 + $0x38] sm:$0xff]
      %v6203 = vld [vmem:[#allocation3 + $0x48] sm:$0xff]
      %v6204 = vld [vmem:[#allocation3 + $0x50] sm:$0xff]
      %v6205 = vld [vmem:[#allocation3 + $0x60] sm:$0xff]
      %v6206 = vld [vmem:[#allocation3 + $0x68] sm:$0xff]
      %v6207 = vld [vmem:[#allocation3 + $0x78] sm:$0xff]
      %v6208 = vld [vmem:[#allocation3 + $0x80] sm:$0xff]
      %v6209 = vld [vmem:[#allocation3 + $0x90] sm:$0xff]
      %v6210 = vld [vmem:[#allocation3 + $0x98] sm:$0xff]
      %v6211 = vld [vmem:[#allocation3 + $0xa8] sm:$0xff]
      %v6212 = vld [vmem:[#allocation3 + $0xb0] sm:$0xff]
      %v6213 = vld [vmem:[#allocation3 + $0xc0] sm:$0xff]
      %v6214 = vld [vmem:[#allocation3 + $0xc8] sm:$0xff]
      %v6215 = vld [vmem:[#allocation3 + $0xd8] sm:$0xff]
      %v6216 = vld [vmem:[#allocation3 + $0xe0] sm:$0xff]
      %v6217 = vld [vmem:[#allocation3 + $0xf0] sm:$0xff]
      %v6218 = vld [vmem:[#allocation3 + $0xf8] sm:$0xff]
      %v6219 = vld [vmem:[#allocation3 + $0x108] sm:$0xff]
      %v6220 = vld [vmem:[#allocation3 + $0x110] sm:$0xff]
      %v6221 = vld [vmem:[#allocation3 + $0x120] sm:$0xff]
      %v6222 = vld [vmem:[#allocation3 + $0x128] sm:$0xff]
      %v6223 = vld [vmem:[#allocation3 + $0x138] sm:$0xff]
      %v6224 = vld [vmem:[#allocation3 + $0x140] sm:$0xff]
      %v6225 = vpack.c.bf16 %v6198, %v6197
      %v6226 = vpack.c.bf16 %v6200, %v6199
      %v6227 = vpack.c.bf16 %v6202, %v6201
      %v6228 = vpack.c.bf16 %v6204, %v6203
      %v6229 = vpack.c.bf16 %v6206, %v6205
      %v6230 = vpack.c.bf16 %v6208, %v6207
      %v6231 = vpack.c.bf16 %v6210, %v6209
      %v6232 = vpack.c.bf16 %v6212, %v6211
      %v6233 = vpack.c.bf16 %v6214, %v6213
      %v6234 = vpack.c.bf16 %v6216, %v6215
      %v6235 = vpack.c.bf16 %v6218, %v6217
      %v6236 = vpack.c.bf16 %v6220, %v6219
      %v6237 = vpack.c.bf16 %v6222, %v6221
      %v6238 = vpack.c.bf16 %v6224, %v6223
      %v6239 = vld [vmem:[%s3] sm:$0xf]
      %v6240 = vld [vmem:[%s3 + $0x4] sm:$0xf]
      %v6241 = vld [vmem:[%s3 + $0x8] sm:$0xf]
      %v6242 = vld [vmem:[%s3 + $0xc] sm:$0xf]
      %v6243 = vld [vmem:[%s3 + $0x10] sm:$0xf]
      %v6244 = vld [vmem:[%s3 + $0x14] sm:$0xf]
      %v6245 = vld [vmem:[%s3 + $0x18] sm:$0x1]
      %v6246 = vld [vmem:[#allocation3 + $0x1] sm:$0xff]
      %v6247 = vld [vmem:[#allocation3 + $0x9] sm:$0xff]
      %v6248 = vld [vmem:[#allocation3 + $0x19] sm:$0xff]
      %v6249 = vld [vmem:[#allocation3 + $0x21] sm:$0xff]
      %v6250 = vld [vmem:[#allocation3 + $0x31] sm:$0xff]
      %v6251 = vld [vmem:[#allocation3 + $0x39] sm:$0xff]
      %v6252 = vld [vmem:[#allocation3 + $0x49] sm:$0xff]
      %v6253 = vld [vmem:[#allocation3 + $0x51] sm:$0xff]
      %v6254 = vld [vmem:[#allocation3 + $0x61] sm:$0xff]
      %v6255 = vld [vmem:[#allocation3 + $0x69] sm:$0xff]
      %v6256 = vld [vmem:[#allocation3 + $0x79] sm:$0xff]
      %v6257 = vld [vmem:[#allocation3 + $0x81] sm:$0xff]
      %v6258 = vld [vmem:[#allocation3 + $0x91] sm:$0xff]
      %v6259 = vld [vmem:[#allocation3 + $0x99] sm:$0xff]
      %v6260 = vld [vmem:[#allocation3 + $0xa9] sm:$0xff]
      %v6261 = vld [vmem:[#allocation3 + $0xb1] sm:$0xff]
      %v6262 = vld [vmem:[#allocation3 + $0xc1] sm:$0xff]
      %v6263 = vld [vmem:[#allocation3 + $0xc9] sm:$0xff]
      %v6264 = vld [vmem:[#allocation3 + $0xd9] sm:$0xff]
      %v6265 = vld [vmem:[#allocation3 + $0xe1] sm:$0xff]
      %v6266 = vld [vmem:[#allocation3 + $0xf1] sm:$0xff]
      %v6267 = vld [vmem:[#allocation3 + $0xf9] sm:$0xff]
      %v6268 = vld [vmem:[#allocation3 + $0x109] sm:$0xff]
      %v6269 = vld [vmem:[#allocation3 + $0x111] sm:$0xff]
      %v6270 = vld [vmem:[#allocation3 + $0x121] sm:$0xff]
      %v6271 = vld [vmem:[#allocation3 + $0x129] sm:$0xff]
      %v6272 = vld [vmem:[#allocation3 + $0x139] sm:$0xff]
      %v6273 = vld [vmem:[#allocation3 + $0x141] sm:$0xff]
      %v6274 = vpack.c.bf16 %v6247, %v6246
      %v6275 = vpack.c.bf16 %v6249, %v6248
      %v6276 = vpack.c.bf16 %v6251, %v6250
      %v6277 = vpack.c.bf16 %v6253, %v6252
      %v6278 = vpack.c.bf16 %v6255, %v6254
      %v6279 = vpack.c.bf16 %v6257, %v6256
      %v6280 = vpack.c.bf16 %v6259, %v6258
      %v6281 = vpack.c.bf16 %v6261, %v6260
      %v6282 = vpack.c.bf16 %v6263, %v6262
      %v6283 = vpack.c.bf16 %v6265, %v6264
      %v6284 = vpack.c.bf16 %v6267, %v6266
      %v6285 = vpack.c.bf16 %v6269, %v6268
      %v6286 = vpack.c.bf16 %v6271, %v6270
      %v6287 = vpack.c.bf16 %v6273, %v6272
      %s6288 = scalar_lea.vmem %s3, 28
      %v6289 = vld [vmem:[%s6288] sm:$0xf]
      %v6290 = vld [vmem:[%s6288 + $0x4] sm:$0xf]
      %v6291 = vld [vmem:[%s6288 + $0x8] sm:$0xf]
      %v6292 = vld [vmem:[%s6288 + $0xc] sm:$0xf]
      %v6293 = vld [vmem:[%s6288 + $0x10] sm:$0xf]
      %v6294 = vld [vmem:[%s6288 + $0x14] sm:$0xf]
      %v6295 = vld [vmem:[%s6288 + $0x18] sm:$0x1]
      %v6303 = vunpack.c.l.b16 %v6289
      %v6304 = vunpack.c.l.b16 %v6290
      %v6305 = vunpack.c.l.b16 %v6291
      %v6306 = vunpack.c.l.b16 %v6292
      %v6307 = vunpack.c.l.b16 %v6293
      %v6308 = vunpack.c.l.b16 %v6294
      %v6309 = vunpack.c.l.b16 %v6295
      %v6310 = vpack.c.b16 %v6304, %v6303
      %v6311 = vpack.c.b16 %v6306, %v6305
      %v6312 = vpack.c.b16 %v6308, %v6307
      %v6313 = vpack.c.b16 %v6309, %v6309
      %v6318 = vsel %vm5753, %v6274, 0
      %v6321 = vsel %vm5753, %v6275, 0
      %v6324 = vsel %vm5753, %v6276, 0
      %v6327 = vsel %vm5753, %v6277, 0
      %v6330 = vsel %vm5753, %v6278, 0
      %v6333 = vsel %vm5753, %v6279, 0
      %v6336 = vsel %vm5753, %v6280, 0
      %v6339 = vsel %vm5753, %v6281, 0
      %v6342 = vsel %vm5753, %v6282, 0
      %v6345 = vsel %vm5753, %v6283, 0
      %v6348 = vsel %vm5753, %v6284, 0
      %v6351 = vsel %vm5753, %v6285, 0
      %v6354 = vsel %vm5753, %v6286, 0
      %v6357 = vsel %vm5753, %v6287, 0
      %vm6359 = vcmask 1040384
      %v6361 = vsel %vm6359, %v6313, 0
      %6363 = vmatprep.subr.bf16.mxu0 0
      %6364 = vmatpush1.bf16.msra.mxu0 0
      %6365 = vmatprep.subr.bf16.mxu0 0
      %6366 = vmatpush1.bf16.msra.mxu0 0
      %6367 = vmatprep.subr.bf16.mxu0 0
      %6368 = vmatpush1.bf16.msra.mxu0 0
      %6369 = vmatprep.subr.bf16.mxu0 0
      %6370 = vmatpush1.bf16.msra.mxu0 0
      %6371 = vmatprep.subr.bf16.mxu0 0
      %6372 = vmatpush1.bf16.msra.mxu0 %v6361
      %6373 = vmatprep.subr.bf16.mxu0 0
      %6374 = vmatpush1.bf16.msra.mxu0 %v6312
      %6375 = vmatprep.subr.bf16.mxu0 0
      %6376 = vmatpush1.bf16.msra.mxu0 %v6311
      %6377 = vmatprep.subr.bf16.mxu0 0
      %6378 = vmatpush1.bf16.msra.mxu0 %v6310
      %6379 = vmatprep.subr.bf16.mxu0 0
      %6380 = vmatpush2.bf16.msra.mxu0 0
      %6381 = vmatprep.subr.bf16.mxu0 0
      %6382 = vmatpush2.bf16.msra.mxu0 0
      %6383 = vmatprep.subr.bf16.mxu0 0
      %6384 = vmatpush2.bf16.msra.mxu0 0
      %6385 = vmatprep.subr.bf16.mxu0 0
      %6386 = vmatpush2.bf16.msra.mxu0 0
      %6387 = vmatprep.subr.bf16.mxu0 0
      %6388 = vmatpush2.bf16.msra.mxu0 0
      %6389 = vmatprep.subr.bf16.mxu0 0
      %6390 = vmatpush2.bf16.msra.mxu0 0
      %6391 = vmatprep.subr.bf16.mxu0 0
      %6392 = vmatpush2.bf16.msra.mxu0 0
      %6393 = vmatprep.subr.bf16.mxu0 0
      %6394 = vmatpush2.bf16.msra.mxu0 0
      %6395 = vmatprep.mubr.bf16.mxu0 0
      %6396 = vmatmul.mubr.bf16.gmra.mxu0 %v6318
      %v6397 = vpop.f32.mrf.mxu0
      %v6398 = vadd.f32 0.0, %v6397
      %v6399 = vpop.f32.mrf.mxu0
      %v6400 = vpop.f32.mrf.mxu0
      %v6401 = vadd.f32 0.0, %v6400
      %v6402 = vpop.f32.mrf.mxu0
      %6403 = vmatprep.mubr.bf16.mxu0 0
      %6404 = vmatmul.mubr.bf16.gmra.mxu0 %v6321
      %v6405 = vpop.f32.mrf.mxu0
      %v6406 = vadd.f32 0.0, %v6405
      %v6407 = vpop.f32.mrf.mxu0
      %v6408 = vpop.f32.mrf.mxu0
      %v6409 = vadd.f32 0.0, %v6408
      %v6410 = vpop.f32.mrf.mxu0
      %6411 = vmatprep.mubr.bf16.mxu0 0
      %6412 = vmatmul.mubr.bf16.gmra.mxu0 %v6324
      %v6413 = vpop.f32.mrf.mxu0
      %v6414 = vadd.f32 0.0, %v6413
      %v6415 = vpop.f32.mrf.mxu0
      %v6416 = vpop.f32.mrf.mxu0
      %v6417 = vadd.f32 0.0, %v6416
      %v6418 = vpop.f32.mrf.mxu0
      %6419 = vmatprep.mubr.bf16.mxu0 0
      %6420 = vmatmul.mubr.bf16.gmra.mxu0 %v6327
      %v6421 = vpop.f32.mrf.mxu0
      %v6422 = vadd.f32 0.0, %v6421
      %v6423 = vpop.f32.mrf.mxu0
      %v6424 = vpop.f32.mrf.mxu0
      %v6425 = vadd.f32 0.0, %v6424
      %v6426 = vpop.f32.mrf.mxu0
      %6427 = vmatprep.mubr.bf16.mxu0 0
      %6428 = vmatmul.mubr.bf16.gmra.mxu0 %v6330
      %v6429 = vpop.f32.mrf.mxu0
      %v6430 = vadd.f32 0.0, %v6429
      %v6431 = vpop.f32.mrf.mxu0
      %v6432 = vpop.f32.mrf.mxu0
      %v6433 = vadd.f32 0.0, %v6432
      %v6434 = vpop.f32.mrf.mxu0
      %6435 = vmatprep.mubr.bf16.mxu0 0
      %6436 = vmatmul.mubr.bf16.gmra.mxu0 %v6333
      %v6437 = vpop.f32.mrf.mxu0
      %v6438 = vadd.f32 0.0, %v6437
      %v6439 = vpop.f32.mrf.mxu0
      %v6440 = vpop.f32.mrf.mxu0
      %v6441 = vadd.f32 0.0, %v6440
      %v6442 = vpop.f32.mrf.mxu0
      %6443 = vmatprep.mubr.bf16.mxu0 0
      %6444 = vmatmul.mubr.bf16.gmra.mxu0 %v6336
      %v6445 = vpop.f32.mrf.mxu0
      %v6446 = vadd.f32 0.0, %v6445
      %v6447 = vpop.f32.mrf.mxu0
      %v6448 = vpop.f32.mrf.mxu0
      %v6449 = vadd.f32 0.0, %v6448
      %v6450 = vpop.f32.mrf.mxu0
      %6451 = vmatprep.mubr.bf16.mxu0 0
      %6452 = vmatmul.mubr.bf16.gmra.mxu0 %v6339
      %v6453 = vpop.f32.mrf.mxu0
      %v6454 = vadd.f32 0.0, %v6453
      %v6455 = vpop.f32.mrf.mxu0
      %v6456 = vpop.f32.mrf.mxu0
      %v6457 = vadd.f32 0.0, %v6456
      %v6458 = vpop.f32.mrf.mxu0
      %6459 = vmatprep.mubr.bf16.mxu0 0
      %6460 = vmatmul.mubr.bf16.gmra.mxu0 %v6342
      %v6461 = vpop.f32.mrf.mxu0
      %v6462 = vadd.f32 0.0, %v6461
      %v6463 = vpop.f32.mrf.mxu0
      %v6464 = vpop.f32.mrf.mxu0
      %v6465 = vadd.f32 0.0, %v6464
      %v6466 = vpop.f32.mrf.mxu0
      %6467 = vmatprep.mubr.bf16.mxu0 0
      %6468 = vmatmul.mubr.bf16.gmra.mxu0 %v6345
      %v6469 = vpop.f32.mrf.mxu0
      %v6470 = vadd.f32 0.0, %v6469
      %v6471 = vpop.f32.mrf.mxu0
      %v6472 = vpop.f32.mrf.mxu0
      %v6473 = vadd.f32 0.0, %v6472
      %v6474 = vpop.f32.mrf.mxu0
      %6475 = vmatprep.mubr.bf16.mxu0 0
      %6476 = vmatmul.mubr.bf16.gmra.mxu0 %v6348
      %v6477 = vpop.f32.mrf.mxu0
      %v6478 = vadd.f32 0.0, %v6477
      %v6479 = vpop.f32.mrf.mxu0
      %v6480 = vpop.f32.mrf.mxu0
      %v6481 = vadd.f32 0.0, %v6480
      %v6482 = vpop.f32.mrf.mxu0
      %6483 = vmatprep.mubr.bf16.mxu0 0
      %6484 = vmatmul.mubr.bf16.gmra.mxu0 %v6351
      %v6485 = vpop.f32.mrf.mxu0
      %v6486 = vadd.f32 0.0, %v6485
      %v6487 = vpop.f32.mrf.mxu0
      %v6488 = vpop.f32.mrf.mxu0
      %v6489 = vadd.f32 0.0, %v6488
      %v6490 = vpop.f32.mrf.mxu0
      %6491 = vmatprep.mubr.bf16.mxu0 0
      %6492 = vmatmul.mubr.bf16.gmra.mxu0 %v6354
      %v6493 = vpop.f32.mrf.mxu0
      %v6494 = vadd.f32 0.0, %v6493
      %v6495 = vpop.f32.mrf.mxu0
      %v6496 = vpop.f32.mrf.mxu0
      %v6497 = vadd.f32 0.0, %v6496
      %v6498 = vpop.f32.mrf.mxu0
      %6499 = vmatprep.mubr.bf16.mxu0 0
      %6500 = vmatmul.mubr.bf16.gmra.mxu0 %v6357
      %v6501 = vpop.f32.mrf.mxu0
      %v6502 = vadd.f32 0.0, %v6501
      %v6503 = vpop.f32.mrf.mxu0
      %v6504 = vpop.f32.mrf.mxu0
      %v6505 = vadd.f32 0.0, %v6504
      %v6506 = vpop.f32.mrf.mxu0
      %6507 = vdwg.mxu0
      %v6515 = vunpack.c.l.b16 %v6239
      %v6516 = vunpack.c.l.b16 %v6240
      %v6517 = vunpack.c.l.b16 %v6241
      %v6518 = vunpack.c.l.b16 %v6242
      %v6519 = vunpack.c.l.b16 %v6243
      %v6520 = vunpack.c.l.b16 %v6244
      %v6521 = vunpack.c.l.b16 %v6245
      %v6522 = vpack.c.b16 %v6516, %v6515
      %v6523 = vpack.c.b16 %v6518, %v6517
      %v6524 = vpack.c.b16 %v6520, %v6519
      %v6525 = vpack.c.b16 %v6521, %v6521
      %v6530 = vsel %vm5753, %v6225, 0
      %v6533 = vsel %vm5753, %v6226, 0
      %v6536 = vsel %vm5753, %v6227, 0
      %v6539 = vsel %vm5753, %v6228, 0
      %v6542 = vsel %vm5753, %v6229, 0
      %v6545 = vsel %vm5753, %v6230, 0
      %v6548 = vsel %vm5753, %v6231, 0
      %v6551 = vsel %vm5753, %v6232, 0
      %v6554 = vsel %vm5753, %v6233, 0
      %v6557 = vsel %vm5753, %v6234, 0
      %v6560 = vsel %vm5753, %v6235, 0
      %v6563 = vsel %vm5753, %v6236, 0
      %v6566 = vsel %vm5753, %v6237, 0
      %v6569 = vsel %vm5753, %v6238, 0
      %v6572 = vsel %vm6359, %v6525, 0
      %6574 = vmatprep.subr.bf16.mxu0 0
      %6575 = vmatpush1.bf16.msra.mxu0 0
      %6576 = vmatprep.subr.bf16.mxu0 0
      %6577 = vmatpush1.bf16.msra.mxu0 0
      %6578 = vmatprep.subr.bf16.mxu0 0
      %6579 = vmatpush1.bf16.msra.mxu0 0
      %6580 = vmatprep.subr.bf16.mxu0 0
      %6581 = vmatpush1.bf16.msra.mxu0 0
      %6582 = vmatprep.subr.bf16.mxu0 0
      %6583 = vmatpush1.bf16.msra.mxu0 %v6572
      %6584 = vmatprep.subr.bf16.mxu0 0
      %6585 = vmatpush1.bf16.msra.mxu0 %v6524
      %6586 = vmatprep.subr.bf16.mxu0 0
      %6587 = vmatpush1.bf16.msra.mxu0 %v6523
      %6588 = vmatprep.subr.bf16.mxu0 0
      %6589 = vmatpush1.bf16.msra.mxu0 %v6522
      %6590 = vmatprep.subr.bf16.mxu0 0
      %6591 = vmatpush2.bf16.msra.mxu0 0
      %6592 = vmatprep.subr.bf16.mxu0 0
      %6593 = vmatpush2.bf16.msra.mxu0 0
      %6594 = vmatprep.subr.bf16.mxu0 0
      %6595 = vmatpush2.bf16.msra.mxu0 0
      %6596 = vmatprep.subr.bf16.mxu0 0
      %6597 = vmatpush2.bf16.msra.mxu0 0
      %6598 = vmatprep.subr.bf16.mxu0 0
      %6599 = vmatpush2.bf16.msra.mxu0 0
      %6600 = vmatprep.subr.bf16.mxu0 0
      %6601 = vmatpush2.bf16.msra.mxu0 0
      %6602 = vmatprep.subr.bf16.mxu0 0
      %6603 = vmatpush2.bf16.msra.mxu0 0
      %6604 = vmatprep.subr.bf16.mxu0 0
      %6605 = vmatpush2.bf16.msra.mxu0 0
      %6606 = vmatprep.mubr.bf16.mxu0 0
      %6607 = vmatmul.mubr.bf16.gmra.mxu0 %v6530
      %v6608 = vpop.f32.mrf.mxu0
      %v6609 = vadd.f32 %v6398, %v6608
      %v6610 = vpop.f32.mrf.mxu0
      %v6611 = vpop.f32.mrf.mxu0
      %v6612 = vadd.f32 %v6401, %v6611
      %v6613 = vpop.f32.mrf.mxu0
      %6614 = vmatprep.mubr.bf16.mxu0 0
      %6615 = vmatmul.mubr.bf16.gmra.mxu0 %v6533
      %v6616 = vpop.f32.mrf.mxu0
      %v6617 = vadd.f32 %v6406, %v6616
      %v6618 = vpop.f32.mrf.mxu0
      %v6619 = vpop.f32.mrf.mxu0
      %v6620 = vadd.f32 %v6409, %v6619
      %v6621 = vpop.f32.mrf.mxu0
      %6622 = vmatprep.mubr.bf16.mxu0 0
      %6623 = vmatmul.mubr.bf16.gmra.mxu0 %v6536
      %v6624 = vpop.f32.mrf.mxu0
      %v6625 = vadd.f32 %v6414, %v6624
      %v6626 = vpop.f32.mrf.mxu0
      %v6627 = vpop.f32.mrf.mxu0
      %v6628 = vadd.f32 %v6417, %v6627
      %v6629 = vpop.f32.mrf.mxu0
      %6630 = vmatprep.mubr.bf16.mxu0 0
      %6631 = vmatmul.mubr.bf16.gmra.mxu0 %v6539
      %v6632 = vpop.f32.mrf.mxu0
      %v6633 = vadd.f32 %v6422, %v6632
      %v6634 = vpop.f32.mrf.mxu0
      %v6635 = vpop.f32.mrf.mxu0
      %v6636 = vadd.f32 %v6425, %v6635
      %v6637 = vpop.f32.mrf.mxu0
      %6638 = vmatprep.mubr.bf16.mxu0 0
      %6639 = vmatmul.mubr.bf16.gmra.mxu0 %v6542
      %v6640 = vpop.f32.mrf.mxu0
      %v6641 = vadd.f32 %v6430, %v6640
      %v6642 = vpop.f32.mrf.mxu0
      %v6643 = vpop.f32.mrf.mxu0
      %v6644 = vadd.f32 %v6433, %v6643
      %v6645 = vpop.f32.mrf.mxu0
      %6646 = vmatprep.mubr.bf16.mxu0 0
      %6647 = vmatmul.mubr.bf16.gmra.mxu0 %v6545
      %v6648 = vpop.f32.mrf.mxu0
      %v6649 = vadd.f32 %v6438, %v6648
      %v6650 = vpop.f32.mrf.mxu0
      %v6651 = vpop.f32.mrf.mxu0
      %v6652 = vadd.f32 %v6441, %v6651
      %v6653 = vpop.f32.mrf.mxu0
      %6654 = vmatprep.mubr.bf16.mxu0 0
      %6655 = vmatmul.mubr.bf16.gmra.mxu0 %v6548
      %v6656 = vpop.f32.mrf.mxu0
      %v6657 = vadd.f32 %v6446, %v6656
      %v6658 = vpop.f32.mrf.mxu0
      %v6659 = vpop.f32.mrf.mxu0
      %v6660 = vadd.f32 %v6449, %v6659
      %v6661 = vpop.f32.mrf.mxu0
      %6662 = vmatprep.mubr.bf16.mxu0 0
      %6663 = vmatmul.mubr.bf16.gmra.mxu0 %v6551
      %v6664 = vpop.f32.mrf.mxu0
      %v6665 = vadd.f32 %v6454, %v6664
      %v6666 = vpop.f32.mrf.mxu0
      %v6667 = vpop.f32.mrf.mxu0
      %v6668 = vadd.f32 %v6457, %v6667
      %v6669 = vpop.f32.mrf.mxu0
      %6670 = vmatprep.mubr.bf16.mxu0 0
      %6671 = vmatmul.mubr.bf16.gmra.mxu0 %v6554
      %v6672 = vpop.f32.mrf.mxu0
      %v6673 = vadd.f32 %v6462, %v6672
      %v6674 = vpop.f32.mrf.mxu0
      %v6675 = vpop.f32.mrf.mxu0
      %v6676 = vadd.f32 %v6465, %v6675
      %v6677 = vpop.f32.mrf.mxu0
      %6678 = vmatprep.mubr.bf16.mxu0 0
      %6679 = vmatmul.mubr.bf16.gmra.mxu0 %v6557
      %v6680 = vpop.f32.mrf.mxu0
      %v6681 = vadd.f32 %v6470, %v6680
      %v6682 = vpop.f32.mrf.mxu0
      %v6683 = vpop.f32.mrf.mxu0
      %v6684 = vadd.f32 %v6473, %v6683
      %v6685 = vpop.f32.mrf.mxu0
      %6686 = vmatprep.mubr.bf16.mxu0 0
      %6687 = vmatmul.mubr.bf16.gmra.mxu0 %v6560
      %v6688 = vpop.f32.mrf.mxu0
      %v6689 = vadd.f32 %v6478, %v6688
      %v6690 = vpop.f32.mrf.mxu0
      %v6691 = vpop.f32.mrf.mxu0
      %v6692 = vadd.f32 %v6481, %v6691
      %v6693 = vpop.f32.mrf.mxu0
      %6694 = vmatprep.mubr.bf16.mxu0 0
      %6695 = vmatmul.mubr.bf16.gmra.mxu0 %v6563
      %v6696 = vpop.f32.mrf.mxu0
      %v6697 = vadd.f32 %v6486, %v6696
      %v6698 = vpop.f32.mrf.mxu0
      %v6699 = vpop.f32.mrf.mxu0
      %v6700 = vadd.f32 %v6489, %v6699
      %v6701 = vpop.f32.mrf.mxu0
      %6702 = vmatprep.mubr.bf16.mxu0 0
      %6703 = vmatmul.mubr.bf16.gmra.mxu0 %v6566
      %v6704 = vpop.f32.mrf.mxu0
      %v6705 = vadd.f32 %v6494, %v6704
      %v6706 = vpop.f32.mrf.mxu0
      %v6707 = vpop.f32.mrf.mxu0
      %v6708 = vadd.f32 %v6497, %v6707
      %v6709 = vpop.f32.mrf.mxu0
      %6710 = vmatprep.mubr.bf16.mxu0 0
      %6711 = vmatmul.mubr.bf16.gmra.mxu0 %v6569
      %v6712 = vpop.f32.mrf.mxu0
      %v6713 = vadd.f32 %v6502, %v6712
      %v6714 = vpop.f32.mrf.mxu0
      %v6715 = vpop.f32.mrf.mxu0
      %v6716 = vadd.f32 %v6505, %v6715
      %v6717 = vpop.f32.mrf.mxu0
      %6718 = vdwg.mxu0
      %v6719 = vld [vmem:[#allocation3 + $0x2] sm:$0xff]
      %v6720 = vld [vmem:[#allocation3 + $0xa] sm:$0xff]
      %v6721 = vld [vmem:[#allocation3 + $0x1a] sm:$0xff]
      %v6722 = vld [vmem:[#allocation3 + $0x22] sm:$0xff]
      %v6723 = vld [vmem:[#allocation3 + $0x32] sm:$0xff]
      %v6724 = vld [vmem:[#allocation3 + $0x3a] sm:$0xff]
      %v6725 = vld [vmem:[#allocation3 + $0x4a] sm:$0xff]
      %v6726 = vld [vmem:[#allocation3 + $0x52] sm:$0xff]
      %v6727 = vld [vmem:[#allocation3 + $0x62] sm:$0xff]
      %v6728 = vld [vmem:[#allocation3 + $0x6a] sm:$0xff]
      %v6729 = vld [vmem:[#allocation3 + $0x7a] sm:$0xff]
      %v6730 = vld [vmem:[#allocation3 + $0x82] sm:$0xff]
      %v6731 = vld [vmem:[#allocation3 + $0x92] sm:$0xff]
      %v6732 = vld [vmem:[#allocation3 + $0x9a] sm:$0xff]
      %v6733 = vld [vmem:[#allocation3 + $0xaa] sm:$0xff]
      %v6734 = vld [vmem:[#allocation3 + $0xb2] sm:$0xff]
      %v6735 = vld [vmem:[#allocation3 + $0xc2] sm:$0xff]
      %v6736 = vld [vmem:[#allocation3 + $0xca] sm:$0xff]
      %v6737 = vld [vmem:[#allocation3 + $0xda] sm:$0xff]
      %v6738 = vld [vmem:[#allocation3 + $0xe2] sm:$0xff]
      %v6739 = vld [vmem:[#allocation3 + $0xf2] sm:$0xff]
      %v6740 = vld [vmem:[#allocation3 + $0xfa] sm:$0xff]
      %v6741 = vld [vmem:[#allocation3 + $0x10a] sm:$0xff]
      %v6742 = vld [vmem:[#allocation3 + $0x112] sm:$0xff]
      %v6743 = vld [vmem:[#allocation3 + $0x122] sm:$0xff]
      %v6744 = vld [vmem:[#allocation3 + $0x12a] sm:$0xff]
      %v6745 = vld [vmem:[#allocation3 + $0x13a] sm:$0xff]
      %v6746 = vld [vmem:[#allocation3 + $0x142] sm:$0xff]
      %v6747 = vpack.c.bf16 %v6720, %v6719
      %v6748 = vpack.c.bf16 %v6722, %v6721
      %v6749 = vpack.c.bf16 %v6724, %v6723
      %v6750 = vpack.c.bf16 %v6726, %v6725
      %v6751 = vpack.c.bf16 %v6728, %v6727
      %v6752 = vpack.c.bf16 %v6730, %v6729
      %v6753 = vpack.c.bf16 %v6732, %v6731
      %v6754 = vpack.c.bf16 %v6734, %v6733
      %v6755 = vpack.c.bf16 %v6736, %v6735
      %v6756 = vpack.c.bf16 %v6738, %v6737
      %v6757 = vpack.c.bf16 %v6740, %v6739
      %v6758 = vpack.c.bf16 %v6742, %v6741
      %v6759 = vpack.c.bf16 %v6744, %v6743
      %v6760 = vpack.c.bf16 %v6746, %v6745
      %s6761 = scalar_lea.vmem %s3, 56
      %v6762 = vld [vmem:[%s6761] sm:$0xf]
      %v6763 = vld [vmem:[%s6761 + $0x4] sm:$0xf]
      %v6764 = vld [vmem:[%s6761 + $0x8] sm:$0xf]
      %v6765 = vld [vmem:[%s6761 + $0xc] sm:$0xf]
      %v6766 = vld [vmem:[%s6761 + $0x10] sm:$0xf]
      %v6767 = vld [vmem:[%s6761 + $0x14] sm:$0xf]
      %v6768 = vld [vmem:[%s6761 + $0x18] sm:$0x1]
      %v6776 = vunpack.c.l.b16 %v6762
      %v6777 = vunpack.c.l.b16 %v6763
      %v6778 = vunpack.c.l.b16 %v6764
      %v6779 = vunpack.c.l.b16 %v6765
      %v6780 = vunpack.c.l.b16 %v6766
      %v6781 = vunpack.c.l.b16 %v6767
      %v6782 = vunpack.c.l.b16 %v6768
      %v6783 = vpack.c.b16 %v6777, %v6776
      %v6784 = vpack.c.b16 %v6779, %v6778
      %v6785 = vpack.c.b16 %v6781, %v6780
      %v6786 = vpack.c.b16 %v6782, %v6782
      %v6791 = vsel %vm5753, %v6747, 0
      %v6794 = vsel %vm5753, %v6748, 0
      %v6797 = vsel %vm5753, %v6749, 0
      %v6800 = vsel %vm5753, %v6750, 0
      %v6803 = vsel %vm5753, %v6751, 0
      %v6806 = vsel %vm5753, %v6752, 0
      %v6809 = vsel %vm5753, %v6753, 0
      %v6812 = vsel %vm5753, %v6754, 0
      %v6815 = vsel %vm5753, %v6755, 0
      %v6818 = vsel %vm5753, %v6756, 0
      %v6821 = vsel %vm5753, %v6757, 0
      %v6824 = vsel %vm5753, %v6758, 0
      %v6827 = vsel %vm5753, %v6759, 0
      %v6830 = vsel %vm5753, %v6760, 0
      %v6833 = vsel %vm6359, %v6786, 0
      %6835 = vmatprep.subr.bf16.mxu0 0
      %6836 = vmatpush1.bf16.msra.mxu0 0
      %6837 = vmatprep.subr.bf16.mxu0 0
      %6838 = vmatpush1.bf16.msra.mxu0 0
      %6839 = vmatprep.subr.bf16.mxu0 0
      %6840 = vmatpush1.bf16.msra.mxu0 0
      %6841 = vmatprep.subr.bf16.mxu0 0
      %6842 = vmatpush1.bf16.msra.mxu0 0
      %6843 = vmatprep.subr.bf16.mxu0 0
      %6844 = vmatpush1.bf16.msra.mxu0 %v6833
      %6845 = vmatprep.subr.bf16.mxu0 0
      %6846 = vmatpush1.bf16.msra.mxu0 %v6785
      %6847 = vmatprep.subr.bf16.mxu0 0
      %6848 = vmatpush1.bf16.msra.mxu0 %v6784
      %6849 = vmatprep.subr.bf16.mxu0 0
      %6850 = vmatpush1.bf16.msra.mxu0 %v6783
      %6851 = vmatprep.subr.bf16.mxu0 0
      %6852 = vmatpush2.bf16.msra.mxu0 0
      %6853 = vmatprep.subr.bf16.mxu0 0
      %6854 = vmatpush2.bf16.msra.mxu0 0
      %6855 = vmatprep.subr.bf16.mxu0 0
      %6856 = vmatpush2.bf16.msra.mxu0 0
      %6857 = vmatprep.subr.bf16.mxu0 0
      %6858 = vmatpush2.bf16.msra.mxu0 0
      %6859 = vmatprep.subr.bf16.mxu0 0
      %6860 = vmatpush2.bf16.msra.mxu0 0
      %6861 = vmatprep.subr.bf16.mxu0 0
      %6862 = vmatpush2.bf16.msra.mxu0 0
      %6863 = vmatprep.subr.bf16.mxu0 0
      %6864 = vmatpush2.bf16.msra.mxu0 0
      %6865 = vmatprep.subr.bf16.mxu0 0
      %6866 = vmatpush2.bf16.msra.mxu0 0
      %6867 = vmatprep.mubr.bf16.mxu0 0
      %6868 = vmatmul.mubr.bf16.gmra.mxu0 %v6791
      %v6869 = vpop.f32.mrf.mxu0
      %v6870 = vadd.f32 0.0, %v6869
      %v6871 = vpop.f32.mrf.mxu0
      %v6872 = vpop.f32.mrf.mxu0
      %v6873 = vadd.f32 0.0, %v6872
      %v6874 = vpop.f32.mrf.mxu0
      %6875 = vmatprep.mubr.bf16.mxu0 0
      %6876 = vmatmul.mubr.bf16.gmra.mxu0 %v6794
      %v6877 = vpop.f32.mrf.mxu0
      %v6878 = vadd.f32 0.0, %v6877
      %v6879 = vpop.f32.mrf.mxu0
      %v6880 = vpop.f32.mrf.mxu0
      %v6881 = vadd.f32 0.0, %v6880
      %v6882 = vpop.f32.mrf.mxu0
      %6883 = vmatprep.mubr.bf16.mxu0 0
      %6884 = vmatmul.mubr.bf16.gmra.mxu0 %v6797
      %v6885 = vpop.f32.mrf.mxu0
      %v6886 = vadd.f32 0.0, %v6885
      %v6887 = vpop.f32.mrf.mxu0
      %v6888 = vpop.f32.mrf.mxu0
      %v6889 = vadd.f32 0.0, %v6888
      %v6890 = vpop.f32.mrf.mxu0
      %6891 = vmatprep.mubr.bf16.mxu0 0
      %6892 = vmatmul.mubr.bf16.gmra.mxu0 %v6800
      %v6893 = vpop.f32.mrf.mxu0
      %v6894 = vadd.f32 0.0, %v6893
      %v6895 = vpop.f32.mrf.mxu0
      %v6896 = vpop.f32.mrf.mxu0
      %v6897 = vadd.f32 0.0, %v6896
      %v6898 = vpop.f32.mrf.mxu0
      %6899 = vmatprep.mubr.bf16.mxu0 0
      %6900 = vmatmul.mubr.bf16.gmra.mxu0 %v6803
      %v6901 = vpop.f32.mrf.mxu0
      %v6902 = vadd.f32 0.0, %v6901
      %v6903 = vpop.f32.mrf.mxu0
      %v6904 = vpop.f32.mrf.mxu0
      %v6905 = vadd.f32 0.0, %v6904
      %v6906 = vpop.f32.mrf.mxu0
      %6907 = vmatprep.mubr.bf16.mxu0 0
      %6908 = vmatmul.mubr.bf16.gmra.mxu0 %v6806
      %v6909 = vpop.f32.mrf.mxu0
      %v6910 = vadd.f32 0.0, %v6909
      %v6911 = vpop.f32.mrf.mxu0
      %v6912 = vpop.f32.mrf.mxu0
      %v6913 = vadd.f32 0.0, %v6912
      %v6914 = vpop.f32.mrf.mxu0
      %6915 = vmatprep.mubr.bf16.mxu0 0
      %6916 = vmatmul.mubr.bf16.gmra.mxu0 %v6809
      %v6917 = vpop.f32.mrf.mxu0
      %v6918 = vadd.f32 0.0, %v6917
      %v6919 = vpop.f32.mrf.mxu0
      %v6920 = vpop.f32.mrf.mxu0
      %v6921 = vadd.f32 0.0, %v6920
      %v6922 = vpop.f32.mrf.mxu0
      %6923 = vmatprep.mubr.bf16.mxu0 0
      %6924 = vmatmul.mubr.bf16.gmra.mxu0 %v6812
      %v6925 = vpop.f32.mrf.mxu0
      %v6926 = vadd.f32 0.0, %v6925
      %v6927 = vpop.f32.mrf.mxu0
      %v6928 = vpop.f32.mrf.mxu0
      %v6929 = vadd.f32 0.0, %v6928
      %v6930 = vpop.f32.mrf.mxu0
      %6931 = vmatprep.mubr.bf16.mxu0 0
      %6932 = vmatmul.mubr.bf16.gmra.mxu0 %v6815
      %v6933 = vpop.f32.mrf.mxu0
      %v6934 = vadd.f32 0.0, %v6933
      %v6935 = vpop.f32.mrf.mxu0
      %v6936 = vpop.f32.mrf.mxu0
      %v6937 = vadd.f32 0.0, %v6936
      %v6938 = vpop.f32.mrf.mxu0
      %6939 = vmatprep.mubr.bf16.mxu0 0
      %6940 = vmatmul.mubr.bf16.gmra.mxu0 %v6818
      %v6941 = vpop.f32.mrf.mxu0
      %v6942 = vadd.f32 0.0, %v6941
      %v6943 = vpop.f32.mrf.mxu0
      %v6944 = vpop.f32.mrf.mxu0
      %v6945 = vadd.f32 0.0, %v6944
      %v6946 = vpop.f32.mrf.mxu0
      %6947 = vmatprep.mubr.bf16.mxu0 0
      %6948 = vmatmul.mubr.bf16.gmra.mxu0 %v6821
      %v6949 = vpop.f32.mrf.mxu0
      %v6950 = vadd.f32 0.0, %v6949
      %v6951 = vpop.f32.mrf.mxu0
      %v6952 = vpop.f32.mrf.mxu0
      %v6953 = vadd.f32 0.0, %v6952
      %v6954 = vpop.f32.mrf.mxu0
      %6955 = vmatprep.mubr.bf16.mxu0 0
      %6956 = vmatmul.mubr.bf16.gmra.mxu0 %v6824
      %v6957 = vpop.f32.mrf.mxu0
      %v6958 = vadd.f32 0.0, %v6957
      %v6959 = vpop.f32.mrf.mxu0
      %v6960 = vpop.f32.mrf.mxu0
      %v6961 = vadd.f32 0.0, %v6960
      %v6962 = vpop.f32.mrf.mxu0
      %6963 = vmatprep.mubr.bf16.mxu0 0
      %6964 = vmatmul.mubr.bf16.gmra.mxu0 %v6827
      %v6965 = vpop.f32.mrf.mxu0
      %v6966 = vadd.f32 0.0, %v6965
      %v6967 = vpop.f32.mrf.mxu0
      %v6968 = vpop.f32.mrf.mxu0
      %v6969 = vadd.f32 0.0, %v6968
      %v6970 = vpop.f32.mrf.mxu0
      %6971 = vmatprep.mubr.bf16.mxu0 0
      %6972 = vmatmul.mubr.bf16.gmra.mxu0 %v6830
      %v6973 = vpop.f32.mrf.mxu0
      %v6974 = vadd.f32 0.0, %v6973
      %v6975 = vpop.f32.mrf.mxu0
      %v6976 = vpop.f32.mrf.mxu0
      %v6977 = vadd.f32 0.0, %v6976
      %v6978 = vpop.f32.mrf.mxu0
      %6979 = vdwg.mxu0
      %v6980 = vadd.f32 %v6609, %v6870
      %v6981 = vadd.f32 %v6612, %v6873
      %v6982 = vadd.f32 %v6617, %v6878
      %v6983 = vadd.f32 %v6620, %v6881
      %v6984 = vadd.f32 %v6625, %v6886
      %v6985 = vadd.f32 %v6628, %v6889
      %v6986 = vadd.f32 %v6633, %v6894
      %v6987 = vadd.f32 %v6636, %v6897
      %v6988 = vadd.f32 %v6641, %v6902
      %v6989 = vadd.f32 %v6644, %v6905
      %v6990 = vadd.f32 %v6649, %v6910
      %v6991 = vadd.f32 %v6652, %v6913
      %v6992 = vadd.f32 %v6657, %v6918
      %v6993 = vadd.f32 %v6660, %v6921
      %v6994 = vadd.f32 %v6665, %v6926
      %v6995 = vadd.f32 %v6668, %v6929
      %v6996 = vadd.f32 %v6673, %v6934
      %v6997 = vadd.f32 %v6676, %v6937
      %v6998 = vadd.f32 %v6681, %v6942
      %v6999 = vadd.f32 %v6684, %v6945
      %v7000 = vadd.f32 %v6689, %v6950
      %v7001 = vadd.f32 %v6692, %v6953
      %v7002 = vadd.f32 %v6697, %v6958
      %v7003 = vadd.f32 %v6700, %v6961
      %v7004 = vadd.f32 %v6705, %v6966
      %v7005 = vadd.f32 %v6708, %v6969
      %v7006 = vadd.f32 %v6713, %v6974
      %v7007 = vadd.f32 %v6716, %v6977
      %v7008 = vld [vmem:[%s6167] sm:$0xff]
      %v7009 = vld [vmem:[%s6167 + $0x8] sm:$0xff]
      %v7010 = vld [vmem:[%s6167 + $0x18] sm:$0xff]
      %v7011 = vld [vmem:[%s6167 + $0x20] sm:$0xff]
      %v7012 = vld [vmem:[%s6167 + $0x30] sm:$0xff]
      %v7013 = vld [vmem:[%s6167 + $0x38] sm:$0xff]
      %v7014 = vld [vmem:[%s6167 + $0x48] sm:$0xff]
      %v7015 = vld [vmem:[%s6167 + $0x50] sm:$0xff]
      %v7016 = vld [vmem:[%s6167 + $0x60] sm:$0xff]
      %v7017 = vld [vmem:[%s6167 + $0x68] sm:$0xff]
      %v7018 = vld [vmem:[%s6167 + $0x78] sm:$0xff]
      %v7019 = vld [vmem:[%s6167 + $0x80] sm:$0xff]
      %v7020 = vld [vmem:[%s6167 + $0x90] sm:$0xff]
      %v7021 = vld [vmem:[%s6167 + $0x98] sm:$0xff]
      %v7022 = vld [vmem:[%s6167 + $0xa8] sm:$0xff]
      %v7023 = vld [vmem:[%s6167 + $0xb0] sm:$0xff]
      %v7024 = vld [vmem:[%s6167 + $0xc0] sm:$0xff]
      %v7025 = vld [vmem:[%s6167 + $0xc8] sm:$0xff]
      %v7026 = vld [vmem:[%s6167 + $0xd8] sm:$0xff]
      %v7027 = vld [vmem:[%s6167 + $0xe0] sm:$0xff]
      %v7028 = vld [vmem:[%s6167 + $0xf0] sm:$0xff]
      %v7029 = vld [vmem:[%s6167 + $0xf8] sm:$0xff]
      %v7030 = vld [vmem:[%s6167 + $0x108] sm:$0xff]
      %v7031 = vld [vmem:[%s6167 + $0x110] sm:$0xff]
      %v7032 = vld [vmem:[%s6167 + $0x120] sm:$0xff]
      %v7033 = vld [vmem:[%s6167 + $0x128] sm:$0xff]
      %v7034 = vld [vmem:[%s6167 + $0x138] sm:$0xff]
      %v7035 = vld [vmem:[%s6167 + $0x140] sm:$0xff]
      %v7036 = vpack.c.bf16 %v7009, %v7008
      %v7037 = vpack.c.bf16 %v7011, %v7010
      %v7038 = vpack.c.bf16 %v7013, %v7012
      %v7039 = vpack.c.bf16 %v7015, %v7014
      %v7040 = vpack.c.bf16 %v7017, %v7016
      %v7041 = vpack.c.bf16 %v7019, %v7018
      %v7042 = vpack.c.bf16 %v7021, %v7020
      %v7043 = vpack.c.bf16 %v7023, %v7022
      %v7044 = vpack.c.bf16 %v7025, %v7024
      %v7045 = vpack.c.bf16 %v7027, %v7026
      %v7046 = vpack.c.bf16 %v7029, %v7028
      %v7047 = vpack.c.bf16 %v7031, %v7030
      %v7048 = vpack.c.bf16 %v7033, %v7032
      %v7049 = vpack.c.bf16 %v7035, %v7034
      %s7050 = scalar_lea.vmem %s3, 84
      %v7051 = vld [vmem:[%s7050] sm:$0xf]
      %v7052 = vld [vmem:[%s7050 + $0x4] sm:$0xf]
      %v7053 = vld [vmem:[%s7050 + $0x8] sm:$0xf]
      %v7054 = vld [vmem:[%s7050 + $0xc] sm:$0xf]
      %v7055 = vld [vmem:[%s7050 + $0x10] sm:$0xf]
      %v7056 = vld [vmem:[%s7050 + $0x14] sm:$0xf]
      %v7057 = vld [vmem:[%s7050 + $0x18] sm:$0x1]
      %v7065 = vunpack.c.l.b16 %v7051
      %v7066 = vunpack.c.l.b16 %v7052
      %v7067 = vunpack.c.l.b16 %v7053
      %v7068 = vunpack.c.l.b16 %v7054
      %v7069 = vunpack.c.l.b16 %v7055
      %v7070 = vunpack.c.l.b16 %v7056
      %v7071 = vunpack.c.l.b16 %v7057
      %v7072 = vpack.c.b16 %v7066, %v7065
      %v7073 = vpack.c.b16 %v7068, %v7067
      %v7074 = vpack.c.b16 %v7070, %v7069
      %v7075 = vpack.c.b16 %v7071, %v7071
      %v7080 = vsel %vm5753, %v7036, 0
      %v7083 = vsel %vm5753, %v7037, 0
      %v7086 = vsel %vm5753, %v7038, 0
      %v7089 = vsel %vm5753, %v7039, 0
      %v7092 = vsel %vm5753, %v7040, 0
      %v7095 = vsel %vm5753, %v7041, 0
      %v7098 = vsel %vm5753, %v7042, 0
      %v7101 = vsel %vm5753, %v7043, 0
      %v7104 = vsel %vm5753, %v7044, 0
      %v7107 = vsel %vm5753, %v7045, 0
      %v7110 = vsel %vm5753, %v7046, 0
      %v7113 = vsel %vm5753, %v7047, 0
      %v7116 = vsel %vm5753, %v7048, 0
      %v7119 = vsel %vm5753, %v7049, 0
      %v7122 = vsel %vm6359, %v7075, 0
      %7124 = vmatprep.subr.bf16.mxu0 0
      %7125 = vmatpush1.bf16.msra.mxu0 0
      %7126 = vmatprep.subr.bf16.mxu0 0
      %7127 = vmatpush1.bf16.msra.mxu0 0
      %7128 = vmatprep.subr.bf16.mxu0 0
      %7129 = vmatpush1.bf16.msra.mxu0 0
      %7130 = vmatprep.subr.bf16.mxu0 0
      %7131 = vmatpush1.bf16.msra.mxu0 0
      %7132 = vmatprep.subr.bf16.mxu0 0
      %7133 = vmatpush1.bf16.msra.mxu0 %v7122
      %7134 = vmatprep.subr.bf16.mxu0 0
      %7135 = vmatpush1.bf16.msra.mxu0 %v7074
      %7136 = vmatprep.subr.bf16.mxu0 0
      %7137 = vmatpush1.bf16.msra.mxu0 %v7073
      %7138 = vmatprep.subr.bf16.mxu0 0
      %7139 = vmatpush1.bf16.msra.mxu0 %v7072
      %7140 = vmatprep.subr.bf16.mxu0 0
      %7141 = vmatpush2.bf16.msra.mxu0 0
      %7142 = vmatprep.subr.bf16.mxu0 0
      %7143 = vmatpush2.bf16.msra.mxu0 0
      %7144 = vmatprep.subr.bf16.mxu0 0
      %7145 = vmatpush2.bf16.msra.mxu0 0
      %7146 = vmatprep.subr.bf16.mxu0 0
      %7147 = vmatpush2.bf16.msra.mxu0 0
      %7148 = vmatprep.subr.bf16.mxu0 0
      %7149 = vmatpush2.bf16.msra.mxu0 0
      %7150 = vmatprep.subr.bf16.mxu0 0
      %7151 = vmatpush2.bf16.msra.mxu0 0
      %7152 = vmatprep.subr.bf16.mxu0 0
      %7153 = vmatpush2.bf16.msra.mxu0 0
      %7154 = vmatprep.subr.bf16.mxu0 0
      %7155 = vmatpush2.bf16.msra.mxu0 0
      %7156 = vmatprep.mubr.bf16.mxu0 0
      %7157 = vmatmul.mubr.bf16.gmra.mxu0 %v7080
      %v7158 = vpop.f32.mrf.mxu0
      %v7159 = vadd.f32 0.0, %v7158
      %v7160 = vpop.f32.mrf.mxu0
      %v7161 = vpop.f32.mrf.mxu0
      %v7162 = vadd.f32 0.0, %v7161
      %v7163 = vpop.f32.mrf.mxu0
      %7164 = vmatprep.mubr.bf16.mxu0 0
      %7165 = vmatmul.mubr.bf16.gmra.mxu0 %v7083
      %v7166 = vpop.f32.mrf.mxu0
      %v7167 = vadd.f32 0.0, %v7166
      %v7168 = vpop.f32.mrf.mxu0
      %v7169 = vpop.f32.mrf.mxu0
      %v7170 = vadd.f32 0.0, %v7169
      %v7171 = vpop.f32.mrf.mxu0
      %7172 = vmatprep.mubr.bf16.mxu0 0
      %7173 = vmatmul.mubr.bf16.gmra.mxu0 %v7086
      %v7174 = vpop.f32.mrf.mxu0
      %v7175 = vadd.f32 0.0, %v7174
      %v7176 = vpop.f32.mrf.mxu0
      %v7177 = vpop.f32.mrf.mxu0
      %v7178 = vadd.f32 0.0, %v7177
      %v7179 = vpop.f32.mrf.mxu0
      %7180 = vmatprep.mubr.bf16.mxu0 0
      %7181 = vmatmul.mubr.bf16.gmra.mxu0 %v7089
      %v7182 = vpop.f32.mrf.mxu0
      %v7183 = vadd.f32 0.0, %v7182
      %v7184 = vpop.f32.mrf.mxu0
      %v7185 = vpop.f32.mrf.mxu0
      %v7186 = vadd.f32 0.0, %v7185
      %v7187 = vpop.f32.mrf.mxu0
      %7188 = vmatprep.mubr.bf16.mxu0 0
      %7189 = vmatmul.mubr.bf16.gmra.mxu0 %v7092
      %v7190 = vpop.f32.mrf.mxu0
      %v7191 = vadd.f32 0.0, %v7190
      %v7192 = vpop.f32.mrf.mxu0
      %v7193 = vpop.f32.mrf.mxu0
      %v7194 = vadd.f32 0.0, %v7193
      %v7195 = vpop.f32.mrf.mxu0
      %7196 = vmatprep.mubr.bf16.mxu0 0
      %7197 = vmatmul.mubr.bf16.gmra.mxu0 %v7095
      %v7198 = vpop.f32.mrf.mxu0
      %v7199 = vadd.f32 0.0, %v7198
      %v7200 = vpop.f32.mrf.mxu0
      %v7201 = vpop.f32.mrf.mxu0
      %v7202 = vadd.f32 0.0, %v7201
      %v7203 = vpop.f32.mrf.mxu0
      %7204 = vmatprep.mubr.bf16.mxu0 0
      %7205 = vmatmul.mubr.bf16.gmra.mxu0 %v7098
      %v7206 = vpop.f32.mrf.mxu0
      %v7207 = vadd.f32 0.0, %v7206
      %v7208 = vpop.f32.mrf.mxu0
      %v7209 = vpop.f32.mrf.mxu0
      %v7210 = vadd.f32 0.0, %v7209
      %v7211 = vpop.f32.mrf.mxu0
      %7212 = vmatprep.mubr.bf16.mxu0 0
      %7213 = vmatmul.mubr.bf16.gmra.mxu0 %v7101
      %v7214 = vpop.f32.mrf.mxu0
      %v7215 = vadd.f32 0.0, %v7214
      %v7216 = vpop.f32.mrf.mxu0
      %v7217 = vpop.f32.mrf.mxu0
      %v7218 = vadd.f32 0.0, %v7217
      %v7219 = vpop.f32.mrf.mxu0
      %7220 = vmatprep.mubr.bf16.mxu0 0
      %7221 = vmatmul.mubr.bf16.gmra.mxu0 %v7104
      %v7222 = vpop.f32.mrf.mxu0
      %v7223 = vadd.f32 0.0, %v7222
      %v7224 = vpop.f32.mrf.mxu0
      %v7225 = vpop.f32.mrf.mxu0
      %v7226 = vadd.f32 0.0, %v7225
      %v7227 = vpop.f32.mrf.mxu0
      %7228 = vmatprep.mubr.bf16.mxu0 0
      %7229 = vmatmul.mubr.bf16.gmra.mxu0 %v7107
      %v7230 = vpop.f32.mrf.mxu0
      %v7231 = vadd.f32 0.0, %v7230
      %v7232 = vpop.f32.mrf.mxu0
      %v7233 = vpop.f32.mrf.mxu0
      %v7234 = vadd.f32 0.0, %v7233
      %v7235 = vpop.f32.mrf.mxu0
      %7236 = vmatprep.mubr.bf16.mxu0 0
      %7237 = vmatmul.mubr.bf16.gmra.mxu0 %v7110
      %v7238 = vpop.f32.mrf.mxu0
      %v7239 = vadd.f32 0.0, %v7238
      %v7240 = vpop.f32.mrf.mxu0
      %v7241 = vpop.f32.mrf.mxu0
      %v7242 = vadd.f32 0.0, %v7241
      %v7243 = vpop.f32.mrf.mxu0
      %7244 = vmatprep.mubr.bf16.mxu0 0
      %7245 = vmatmul.mubr.bf16.gmra.mxu0 %v7113
      %v7246 = vpop.f32.mrf.mxu0
      %v7247 = vadd.f32 0.0, %v7246
      %v7248 = vpop.f32.mrf.mxu0
      %v7249 = vpop.f32.mrf.mxu0
      %v7250 = vadd.f32 0.0, %v7249
      %v7251 = vpop.f32.mrf.mxu0
      %7252 = vmatprep.mubr.bf16.mxu0 0
      %7253 = vmatmul.mubr.bf16.gmra.mxu0 %v7116
      %v7254 = vpop.f32.mrf.mxu0
      %v7255 = vadd.f32 0.0, %v7254
      %v7256 = vpop.f32.mrf.mxu0
      %v7257 = vpop.f32.mrf.mxu0
      %v7258 = vadd.f32 0.0, %v7257
      %v7259 = vpop.f32.mrf.mxu0
      %7260 = vmatprep.mubr.bf16.mxu0 0
      %7261 = vmatmul.mubr.bf16.gmra.mxu0 %v7119
      %v7262 = vpop.f32.mrf.mxu0
      %v7263 = vadd.f32 0.0, %v7262
      %v7264 = vpop.f32.mrf.mxu0
      %v7265 = vpop.f32.mrf.mxu0
      %v7266 = vadd.f32 0.0, %v7265
      %v7267 = vpop.f32.mrf.mxu0
      %7268 = vdwg.mxu0
      %v7269 = vadd.f32 %v6980, %v7159
      %v7270 = vadd.f32 %v6981, %v7162
      %v7271 = vadd.f32 %v6982, %v7167
      %v7272 = vadd.f32 %v6983, %v7170
      %v7273 = vadd.f32 %v6984, %v7175
      %v7274 = vadd.f32 %v6985, %v7178
      %v7275 = vadd.f32 %v6986, %v7183
      %v7276 = vadd.f32 %v6987, %v7186
      %v7277 = vadd.f32 %v6988, %v7191
      %v7278 = vadd.f32 %v6989, %v7194
      %v7279 = vadd.f32 %v6990, %v7199
      %v7280 = vadd.f32 %v6991, %v7202
      %v7281 = vadd.f32 %v6992, %v7207
      %v7282 = vadd.f32 %v6993, %v7210
      %v7283 = vadd.f32 %v6994, %v7215
      %v7284 = vadd.f32 %v6995, %v7218
      %v7285 = vadd.f32 %v6996, %v7223
      %v7286 = vadd.f32 %v6997, %v7226
      %v7287 = vadd.f32 %v6998, %v7231
      %v7288 = vadd.f32 %v6999, %v7234
      %v7289 = vadd.f32 %v7000, %v7239
      %v7290 = vadd.f32 %v7001, %v7242
      %v7291 = vadd.f32 %v7002, %v7247
      %v7292 = vadd.f32 %v7003, %v7250
      %v7293 = vadd.f32 %v7004, %v7255
      %v7294 = vadd.f32 %v7005, %v7258
      %v7295 = vadd.f32 %v7006, %v7263
      %v7296 = vadd.f32 %v7007, %v7266
      %v7297 = vld [vmem:[%s6167 + $0x1] sm:$0xff]
      %v7298 = vld [vmem:[%s6167 + $0x9] sm:$0xff]
      %v7299 = vld [vmem:[%s6167 + $0x19] sm:$0xff]
      %v7300 = vld [vmem:[%s6167 + $0x21] sm:$0xff]
      %v7301 = vld [vmem:[%s6167 + $0x31] sm:$0xff]
      %v7302 = vld [vmem:[%s6167 + $0x39] sm:$0xff]
      %v7303 = vld [vmem:[%s6167 + $0x49] sm:$0xff]
      %v7304 = vld [vmem:[%s6167 + $0x51] sm:$0xff]
      %v7305 = vld [vmem:[%s6167 + $0x61] sm:$0xff]
      %v7306 = vld [vmem:[%s6167 + $0x69] sm:$0xff]
      %v7307 = vld [vmem:[%s6167 + $0x79] sm:$0xff]
      %v7308 = vld [vmem:[%s6167 + $0x81] sm:$0xff]
      %v7309 = vld [vmem:[%s6167 + $0x91] sm:$0xff]
      %v7310 = vld [vmem:[%s6167 + $0x99] sm:$0xff]
      %v7311 = vld [vmem:[%s6167 + $0xa9] sm:$0xff]
      %v7312 = vld [vmem:[%s6167 + $0xb1] sm:$0xff]
      %v7313 = vld [vmem:[%s6167 + $0xc1] sm:$0xff]
      %v7314 = vld [vmem:[%s6167 + $0xc9] sm:$0xff]
      %v7315 = vld [vmem:[%s6167 + $0xd9] sm:$0xff]
      %v7316 = vld [vmem:[%s6167 + $0xe1] sm:$0xff]
      %v7317 = vld [vmem:[%s6167 + $0xf1] sm:$0xff]
      %v7318 = vld [vmem:[%s6167 + $0xf9] sm:$0xff]
      %v7319 = vld [vmem:[%s6167 + $0x109] sm:$0xff]
      %v7320 = vld [vmem:[%s6167 + $0x111] sm:$0xff]
      %v7321 = vld [vmem:[%s6167 + $0x121] sm:$0xff]
      %v7322 = vld [vmem:[%s6167 + $0x129] sm:$0xff]
      %v7323 = vld [vmem:[%s6167 + $0x139] sm:$0xff]
      %v7324 = vld [vmem:[%s6167 + $0x141] sm:$0xff]
      %v7325 = vpack.c.bf16 %v7298, %v7297
      %v7326 = vpack.c.bf16 %v7300, %v7299
      %v7327 = vpack.c.bf16 %v7302, %v7301
      %v7328 = vpack.c.bf16 %v7304, %v7303
      %v7329 = vpack.c.bf16 %v7306, %v7305
      %v7330 = vpack.c.bf16 %v7308, %v7307
      %v7331 = vpack.c.bf16 %v7310, %v7309
      %v7332 = vpack.c.bf16 %v7312, %v7311
      %v7333 = vpack.c.bf16 %v7314, %v7313
      %v7334 = vpack.c.bf16 %v7316, %v7315
      %v7335 = vpack.c.bf16 %v7318, %v7317
      %v7336 = vpack.c.bf16 %v7320, %v7319
      %v7337 = vpack.c.bf16 %v7322, %v7321
      %v7338 = vpack.c.bf16 %v7324, %v7323
      %s7339 = scalar_lea.vmem %s3, 112
      %v7340 = vld [vmem:[%s7339] sm:$0xf]
      %v7341 = vld [vmem:[%s7339 + $0x4] sm:$0xf]
      %v7342 = vld [vmem:[%s7339 + $0x8] sm:$0xf]
      %v7343 = vld [vmem:[%s7339 + $0xc] sm:$0xf]
      %v7344 = vld [vmem:[%s7339 + $0x10] sm:$0xf]
      %v7345 = vld [vmem:[%s7339 + $0x14] sm:$0xf]
      %v7346 = vld [vmem:[%s7339 + $0x18] sm:$0x1]
      %v7354 = vunpack.c.l.b16 %v7340
      %v7355 = vunpack.c.l.b16 %v7341
      %v7356 = vunpack.c.l.b16 %v7342
      %v7357 = vunpack.c.l.b16 %v7343
      %v7358 = vunpack.c.l.b16 %v7344
      %v7359 = vunpack.c.l.b16 %v7345
      %v7360 = vunpack.c.l.b16 %v7346
      %v7361 = vpack.c.b16 %v7355, %v7354
      %v7362 = vpack.c.b16 %v7357, %v7356
      %v7363 = vpack.c.b16 %v7359, %v7358
      %v7364 = vpack.c.b16 %v7360, %v7360
      %v7369 = vsel %vm5753, %v7325, 0
      %v7372 = vsel %vm5753, %v7326, 0
      %v7375 = vsel %vm5753, %v7327, 0
      %v7378 = vsel %vm5753, %v7328, 0
      %v7381 = vsel %vm5753, %v7329, 0
      %v7384 = vsel %vm5753, %v7330, 0
      %v7387 = vsel %vm5753, %v7331, 0
      %v7390 = vsel %vm5753, %v7332, 0
      %v7393 = vsel %vm5753, %v7333, 0
      %v7396 = vsel %vm5753, %v7334, 0
      %v7399 = vsel %vm5753, %v7335, 0
      %v7402 = vsel %vm5753, %v7336, 0
      %v7405 = vsel %vm5753, %v7337, 0
      %v7408 = vsel %vm5753, %v7338, 0
      %v7411 = vsel %vm6359, %v7364, 0
      %7413 = vmatprep.subr.bf16.mxu0 0
      %7414 = vmatpush1.bf16.msra.mxu0 0
      %7415 = vmatprep.subr.bf16.mxu0 0
      %7416 = vmatpush1.bf16.msra.mxu0 0
      %7417 = vmatprep.subr.bf16.mxu0 0
      %7418 = vmatpush1.bf16.msra.mxu0 0
      %7419 = vmatprep.subr.bf16.mxu0 0
      %7420 = vmatpush1.bf16.msra.mxu0 0
      %7421 = vmatprep.subr.bf16.mxu0 0
      %7422 = vmatpush1.bf16.msra.mxu0 %v7411
      %7423 = vmatprep.subr.bf16.mxu0 0
      %7424 = vmatpush1.bf16.msra.mxu0 %v7363
      %7425 = vmatprep.subr.bf16.mxu0 0
      %7426 = vmatpush1.bf16.msra.mxu0 %v7362
      %7427 = vmatprep.subr.bf16.mxu0 0
      %7428 = vmatpush1.bf16.msra.mxu0 %v7361
      %7429 = vmatprep.subr.bf16.mxu0 0
      %7430 = vmatpush2.bf16.msra.mxu0 0
      %7431 = vmatprep.subr.bf16.mxu0 0
      %7432 = vmatpush2.bf16.msra.mxu0 0
      %7433 = vmatprep.subr.bf16.mxu0 0
      %7434 = vmatpush2.bf16.msra.mxu0 0
      %7435 = vmatprep.subr.bf16.mxu0 0
      %7436 = vmatpush2.bf16.msra.mxu0 0
      %7437 = vmatprep.subr.bf16.mxu0 0
      %7438 = vmatpush2.bf16.msra.mxu0 0
      %7439 = vmatprep.subr.bf16.mxu0 0
      %7440 = vmatpush2.bf16.msra.mxu0 0
      %7441 = vmatprep.subr.bf16.mxu0 0
      %7442 = vmatpush2.bf16.msra.mxu0 0
      %7443 = vmatprep.subr.bf16.mxu0 0
      %7444 = vmatpush2.bf16.msra.mxu0 0
      %7445 = vmatprep.mubr.bf16.mxu0 0
      %7446 = vmatmul.mubr.bf16.gmra.mxu0 %v7369
      %v7447 = vpop.f32.mrf.mxu0
      %v7448 = vadd.f32 0.0, %v7447
      %v7449 = vpop.f32.mrf.mxu0
      %v7450 = vpop.f32.mrf.mxu0
      %v7451 = vadd.f32 0.0, %v7450
      %v7452 = vpop.f32.mrf.mxu0
      %7453 = vmatprep.mubr.bf16.mxu0 0
      %7454 = vmatmul.mubr.bf16.gmra.mxu0 %v7372
      %v7455 = vpop.f32.mrf.mxu0
      %v7456 = vadd.f32 0.0, %v7455
      %v7457 = vpop.f32.mrf.mxu0
      %v7458 = vpop.f32.mrf.mxu0
      %v7459 = vadd.f32 0.0, %v7458
      %v7460 = vpop.f32.mrf.mxu0
      %7461 = vmatprep.mubr.bf16.mxu0 0
      %7462 = vmatmul.mubr.bf16.gmra.mxu0 %v7375
      %v7463 = vpop.f32.mrf.mxu0
      %v7464 = vadd.f32 0.0, %v7463
      %v7465 = vpop.f32.mrf.mxu0
      %v7466 = vpop.f32.mrf.mxu0
      %v7467 = vadd.f32 0.0, %v7466
      %v7468 = vpop.f32.mrf.mxu0
      %7469 = vmatprep.mubr.bf16.mxu0 0
      %7470 = vmatmul.mubr.bf16.gmra.mxu0 %v7378
      %v7471 = vpop.f32.mrf.mxu0
      %v7472 = vadd.f32 0.0, %v7471
      %v7473 = vpop.f32.mrf.mxu0
      %v7474 = vpop.f32.mrf.mxu0
      %v7475 = vadd.f32 0.0, %v7474
      %v7476 = vpop.f32.mrf.mxu0
      %7477 = vmatprep.mubr.bf16.mxu0 0
      %7478 = vmatmul.mubr.bf16.gmra.mxu0 %v7381
      %v7479 = vpop.f32.mrf.mxu0
      %v7480 = vadd.f32 0.0, %v7479
      %v7481 = vpop.f32.mrf.mxu0
      %v7482 = vpop.f32.mrf.mxu0
      %v7483 = vadd.f32 0.0, %v7482
      %v7484 = vpop.f32.mrf.mxu0
      %7485 = vmatprep.mubr.bf16.mxu0 0
      %7486 = vmatmul.mubr.bf16.gmra.mxu0 %v7384
      %v7487 = vpop.f32.mrf.mxu0
      %v7488 = vadd.f32 0.0, %v7487
      %v7489 = vpop.f32.mrf.mxu0
      %v7490 = vpop.f32.mrf.mxu0
      %v7491 = vadd.f32 0.0, %v7490
      %v7492 = vpop.f32.mrf.mxu0
      %7493 = vmatprep.mubr.bf16.mxu0 0
      %7494 = vmatmul.mubr.bf16.gmra.mxu0 %v7387
      %v7495 = vpop.f32.mrf.mxu0
      %v7496 = vadd.f32 0.0, %v7495
      %v7497 = vpop.f32.mrf.mxu0
      %v7498 = vpop.f32.mrf.mxu0
      %v7499 = vadd.f32 0.0, %v7498
      %v7500 = vpop.f32.mrf.mxu0
      %7501 = vmatprep.mubr.bf16.mxu0 0
      %7502 = vmatmul.mubr.bf16.gmra.mxu0 %v7390
      %v7503 = vpop.f32.mrf.mxu0
      %v7504 = vadd.f32 0.0, %v7503
      %v7505 = vpop.f32.mrf.mxu0
      %v7506 = vpop.f32.mrf.mxu0
      %v7507 = vadd.f32 0.0, %v7506
      %v7508 = vpop.f32.mrf.mxu0
      %7509 = vmatprep.mubr.bf16.mxu0 0
      %7510 = vmatmul.mubr.bf16.gmra.mxu0 %v7393
      %v7511 = vpop.f32.mrf.mxu0
      %v7512 = vadd.f32 0.0, %v7511
      %v7513 = vpop.f32.mrf.mxu0
      %v7514 = vpop.f32.mrf.mxu0
      %v7515 = vadd.f32 0.0, %v7514
      %v7516 = vpop.f32.mrf.mxu0
      %7517 = vmatprep.mubr.bf16.mxu0 0
      %7518 = vmatmul.mubr.bf16.gmra.mxu0 %v7396
      %v7519 = vpop.f32.mrf.mxu0
      %v7520 = vadd.f32 0.0, %v7519
      %v7521 = vpop.f32.mrf.mxu0
      %v7522 = vpop.f32.mrf.mxu0
      %v7523 = vadd.f32 0.0, %v7522
      %v7524 = vpop.f32.mrf.mxu0
      %7525 = vmatprep.mubr.bf16.mxu0 0
      %7526 = vmatmul.mubr.bf16.gmra.mxu0 %v7399
      %v7527 = vpop.f32.mrf.mxu0
      %v7528 = vadd.f32 0.0, %v7527
      %v7529 = vpop.f32.mrf.mxu0
      %v7530 = vpop.f32.mrf.mxu0
      %v7531 = vadd.f32 0.0, %v7530
      %v7532 = vpop.f32.mrf.mxu0
      %7533 = vmatprep.mubr.bf16.mxu0 0
      %7534 = vmatmul.mubr.bf16.gmra.mxu0 %v7402
      %v7535 = vpop.f32.mrf.mxu0
      %v7536 = vadd.f32 0.0, %v7535
      %v7537 = vpop.f32.mrf.mxu0
      %v7538 = vpop.f32.mrf.mxu0
      %v7539 = vadd.f32 0.0, %v7538
      %v7540 = vpop.f32.mrf.mxu0
      %7541 = vmatprep.mubr.bf16.mxu0 0
      %7542 = vmatmul.mubr.bf16.gmra.mxu0 %v7405
      %v7543 = vpop.f32.mrf.mxu0
      %v7544 = vadd.f32 0.0, %v7543
      %v7545 = vpop.f32.mrf.mxu0
      %v7546 = vpop.f32.mrf.mxu0
      %v7547 = vadd.f32 0.0, %v7546
      %v7548 = vpop.f32.mrf.mxu0
      %7549 = vmatprep.mubr.bf16.mxu0 0
      %7550 = vmatmul.mubr.bf16.gmra.mxu0 %v7408
      %v7551 = vpop.f32.mrf.mxu0
      %v7552 = vadd.f32 0.0, %v7551
      %v7553 = vpop.f32.mrf.mxu0
      %v7554 = vpop.f32.mrf.mxu0
      %v7555 = vadd.f32 0.0, %v7554
      %v7556 = vpop.f32.mrf.mxu0
      %7557 = vdwg.mxu0
      %v7558 = vadd.f32 %v7269, %v7448
      %v7559 = vadd.f32 %v7270, %v7451
      %v7560 = vadd.f32 %v7271, %v7456
      %v7561 = vadd.f32 %v7272, %v7459
      %v7562 = vadd.f32 %v7273, %v7464
      %v7563 = vadd.f32 %v7274, %v7467
      %v7564 = vadd.f32 %v7275, %v7472
      %v7565 = vadd.f32 %v7276, %v7475
      %v7566 = vadd.f32 %v7277, %v7480
      %v7567 = vadd.f32 %v7278, %v7483
      %v7568 = vadd.f32 %v7279, %v7488
      %v7569 = vadd.f32 %v7280, %v7491
      %v7570 = vadd.f32 %v7281, %v7496
      %v7571 = vadd.f32 %v7282, %v7499
      %v7572 = vadd.f32 %v7283, %v7504
      %v7573 = vadd.f32 %v7284, %v7507
      %v7574 = vadd.f32 %v7285, %v7512
      %v7575 = vadd.f32 %v7286, %v7515
      %v7576 = vadd.f32 %v7287, %v7520
      %v7577 = vadd.f32 %v7288, %v7523
      %v7578 = vadd.f32 %v7289, %v7528
      %v7579 = vadd.f32 %v7290, %v7531
      %v7580 = vadd.f32 %v7291, %v7536
      %v7581 = vadd.f32 %v7292, %v7539
      %v7582 = vadd.f32 %v7293, %v7544
      %v7583 = vadd.f32 %v7294, %v7547
      %v7584 = vadd.f32 %v7295, %v7552
      %v7585 = vadd.f32 %v7296, %v7555
      %v7586 = vld [vmem:[%s6167 + $0x2] sm:$0xff]
      %v7587 = vld [vmem:[%s6167 + $0xa] sm:$0xff]
      %v7588 = vld [vmem:[%s6167 + $0x1a] sm:$0xff]
      %v7589 = vld [vmem:[%s6167 + $0x22] sm:$0xff]
      %v7590 = vld [vmem:[%s6167 + $0x32] sm:$0xff]
      %v7591 = vld [vmem:[%s6167 + $0x3a] sm:$0xff]
      %v7592 = vld [vmem:[%s6167 + $0x4a] sm:$0xff]
      %v7593 = vld [vmem:[%s6167 + $0x52] sm:$0xff]
      %v7594 = vld [vmem:[%s6167 + $0x62] sm:$0xff]
      %v7595 = vld [vmem:[%s6167 + $0x6a] sm:$0xff]
      %v7596 = vld [vmem:[%s6167 + $0x7a] sm:$0xff]
      %v7597 = vld [vmem:[%s6167 + $0x82] sm:$0xff]
      %v7598 = vld [vmem:[%s6167 + $0x92] sm:$0xff]
      %v7599 = vld [vmem:[%s6167 + $0x9a] sm:$0xff]
      %v7600 = vld [vmem:[%s6167 + $0xaa] sm:$0xff]
      %v7601 = vld [vmem:[%s6167 + $0xb2] sm:$0xff]
      %v7602 = vld [vmem:[%s6167 + $0xc2] sm:$0xff]
      %v7603 = vld [vmem:[%s6167 + $0xca] sm:$0xff]
      %v7604 = vld [vmem:[%s6167 + $0xda] sm:$0xff]
      %v7605 = vld [vmem:[%s6167 + $0xe2] sm:$0xff]
      %v7606 = vld [vmem:[%s6167 + $0xf2] sm:$0xff]
      %v7607 = vld [vmem:[%s6167 + $0xfa] sm:$0xff]
      %v7608 = vld [vmem:[%s6167 + $0x10a] sm:$0xff]
      %v7609 = vld [vmem:[%s6167 + $0x112] sm:$0xff]
      %v7610 = vld [vmem:[%s6167 + $0x122] sm:$0xff]
      %v7611 = vld [vmem:[%s6167 + $0x12a] sm:$0xff]
      %v7612 = vld [vmem:[%s6167 + $0x13a] sm:$0xff]
      %v7613 = vld [vmem:[%s6167 + $0x142] sm:$0xff]
      %v7614 = vpack.c.bf16 %v7587, %v7586
      %v7615 = vpack.c.bf16 %v7589, %v7588
      %v7616 = vpack.c.bf16 %v7591, %v7590
      %v7617 = vpack.c.bf16 %v7593, %v7592
      %v7618 = vpack.c.bf16 %v7595, %v7594
      %v7619 = vpack.c.bf16 %v7597, %v7596
      %v7620 = vpack.c.bf16 %v7599, %v7598
      %v7621 = vpack.c.bf16 %v7601, %v7600
      %v7622 = vpack.c.bf16 %v7603, %v7602
      %v7623 = vpack.c.bf16 %v7605, %v7604
      %v7624 = vpack.c.bf16 %v7607, %v7606
      %v7625 = vpack.c.bf16 %v7609, %v7608
      %v7626 = vpack.c.bf16 %v7611, %v7610
      %v7627 = vpack.c.bf16 %v7613, %v7612
      %s7628 = scalar_lea.vmem %s3, 140
      %v7629 = vld [vmem:[%s7628] sm:$0xf]
      %v7630 = vld [vmem:[%s7628 + $0x4] sm:$0xf]
      %v7631 = vld [vmem:[%s7628 + $0x8] sm:$0xf]
      %v7632 = vld [vmem:[%s7628 + $0xc] sm:$0xf]
      %v7633 = vld [vmem:[%s7628 + $0x10] sm:$0xf]
      %v7634 = vld [vmem:[%s7628 + $0x14] sm:$0xf]
      %v7635 = vld [vmem:[%s7628 + $0x18] sm:$0x1]
      %v7643 = vunpack.c.l.b16 %v7629
      %v7644 = vunpack.c.l.b16 %v7630
      %v7645 = vunpack.c.l.b16 %v7631
      %v7646 = vunpack.c.l.b16 %v7632
      %v7647 = vunpack.c.l.b16 %v7633
      %v7648 = vunpack.c.l.b16 %v7634
      %v7649 = vunpack.c.l.b16 %v7635
      %v7650 = vpack.c.b16 %v7644, %v7643
      %v7651 = vpack.c.b16 %v7646, %v7645
      %v7652 = vpack.c.b16 %v7648, %v7647
      %v7653 = vpack.c.b16 %v7649, %v7649
      %v7658 = vsel %vm5753, %v7614, 0
      %v7661 = vsel %vm5753, %v7615, 0
      %v7664 = vsel %vm5753, %v7616, 0
      %v7667 = vsel %vm5753, %v7617, 0
      %v7670 = vsel %vm5753, %v7618, 0
      %v7673 = vsel %vm5753, %v7619, 0
      %v7676 = vsel %vm5753, %v7620, 0
      %v7679 = vsel %vm5753, %v7621, 0
      %v7682 = vsel %vm5753, %v7622, 0
      %v7685 = vsel %vm5753, %v7623, 0
      %v7688 = vsel %vm5753, %v7624, 0
      %v7691 = vsel %vm5753, %v7625, 0
      %v7694 = vsel %vm5753, %v7626, 0
      %v7697 = vsel %vm5753, %v7627, 0
      %v7700 = vsel %vm6359, %v7653, 0
      %7702 = vmatprep.subr.bf16.mxu0 0
      %7703 = vmatpush1.bf16.msra.mxu0 0
      %7704 = vmatprep.subr.bf16.mxu0 0
      %7705 = vmatpush1.bf16.msra.mxu0 0
      %7706 = vmatprep.subr.bf16.mxu0 0
      %7707 = vmatpush1.bf16.msra.mxu0 0
      %7708 = vmatprep.subr.bf16.mxu0 0
      %7709 = vmatpush1.bf16.msra.mxu0 0
      %7710 = vmatprep.subr.bf16.mxu0 0
      %7711 = vmatpush1.bf16.msra.mxu0 %v7700
      %7712 = vmatprep.subr.bf16.mxu0 0
      %7713 = vmatpush1.bf16.msra.mxu0 %v7652
      %7714 = vmatprep.subr.bf16.mxu0 0
      %7715 = vmatpush1.bf16.msra.mxu0 %v7651
      %7716 = vmatprep.subr.bf16.mxu0 0
      %7717 = vmatpush1.bf16.msra.mxu0 %v7650
      %7718 = vmatprep.subr.bf16.mxu0 0
      %7719 = vmatpush2.bf16.msra.mxu0 0
      %7720 = vmatprep.subr.bf16.mxu0 0
      %7721 = vmatpush2.bf16.msra.mxu0 0
      %7722 = vmatprep.subr.bf16.mxu0 0
      %7723 = vmatpush2.bf16.msra.mxu0 0
      %7724 = vmatprep.subr.bf16.mxu0 0
      %7725 = vmatpush2.bf16.msra.mxu0 0
      %7726 = vmatprep.subr.bf16.mxu0 0
      %7727 = vmatpush2.bf16.msra.mxu0 0
      %7728 = vmatprep.subr.bf16.mxu0 0
      %7729 = vmatpush2.bf16.msra.mxu0 0
      %7730 = vmatprep.subr.bf16.mxu0 0
      %7731 = vmatpush2.bf16.msra.mxu0 0
      %7732 = vmatprep.subr.bf16.mxu0 0
      %7733 = vmatpush2.bf16.msra.mxu0 0
      %7734 = vmatprep.mubr.bf16.mxu0 0
      %7735 = vmatmul.mubr.bf16.gmra.mxu0 %v7658
      %v7736 = vpop.f32.mrf.mxu0
      %v7737 = vadd.f32 0.0, %v7736
      %v7738 = vpop.f32.mrf.mxu0
      %v7739 = vpop.f32.mrf.mxu0
      %v7740 = vadd.f32 0.0, %v7739
      %v7741 = vpop.f32.mrf.mxu0
      %7742 = vmatprep.mubr.bf16.mxu0 0
      %7743 = vmatmul.mubr.bf16.gmra.mxu0 %v7661
      %v7744 = vpop.f32.mrf.mxu0
      %v7745 = vadd.f32 0.0, %v7744
      %v7746 = vpop.f32.mrf.mxu0
      %v7747 = vpop.f32.mrf.mxu0
      %v7748 = vadd.f32 0.0, %v7747
      %v7749 = vpop.f32.mrf.mxu0
      %7750 = vmatprep.mubr.bf16.mxu0 0
      %7751 = vmatmul.mubr.bf16.gmra.mxu0 %v7664
      %v7752 = vpop.f32.mrf.mxu0
      %v7753 = vadd.f32 0.0, %v7752
      %v7754 = vpop.f32.mrf.mxu0
      %v7755 = vpop.f32.mrf.mxu0
      %v7756 = vadd.f32 0.0, %v7755
      %v7757 = vpop.f32.mrf.mxu0
      %7758 = vmatprep.mubr.bf16.mxu0 0
      %7759 = vmatmul.mubr.bf16.gmra.mxu0 %v7667
      %v7760 = vpop.f32.mrf.mxu0
      %v7761 = vadd.f32 0.0, %v7760
      %v7762 = vpop.f32.mrf.mxu0
      %v7763 = vpop.f32.mrf.mxu0
      %v7764 = vadd.f32 0.0, %v7763
      %v7765 = vpop.f32.mrf.mxu0
      %7766 = vmatprep.mubr.bf16.mxu0 0
      %7767 = vmatmul.mubr.bf16.gmra.mxu0 %v7670
      %v7768 = vpop.f32.mrf.mxu0
      %v7769 = vadd.f32 0.0, %v7768
      %v7770 = vpop.f32.mrf.mxu0
      %v7771 = vpop.f32.mrf.mxu0
      %v7772 = vadd.f32 0.0, %v7771
      %v7773 = vpop.f32.mrf.mxu0
      %7774 = vmatprep.mubr.bf16.mxu0 0
      %7775 = vmatmul.mubr.bf16.gmra.mxu0 %v7673
      %v7776 = vpop.f32.mrf.mxu0
      %v7777 = vadd.f32 0.0, %v7776
      %v7778 = vpop.f32.mrf.mxu0
      %v7779 = vpop.f32.mrf.mxu0
      %v7780 = vadd.f32 0.0, %v7779
      %v7781 = vpop.f32.mrf.mxu0
      %7782 = vmatprep.mubr.bf16.mxu0 0
      %7783 = vmatmul.mubr.bf16.gmra.mxu0 %v7676
      %v7784 = vpop.f32.mrf.mxu0
      %v7785 = vadd.f32 0.0, %v7784
      %v7786 = vpop.f32.mrf.mxu0
      %v7787 = vpop.f32.mrf.mxu0
      %v7788 = vadd.f32 0.0, %v7787
      %v7789 = vpop.f32.mrf.mxu0
      %7790 = vmatprep.mubr.bf16.mxu0 0
      %7791 = vmatmul.mubr.bf16.gmra.mxu0 %v7679
      %v7792 = vpop.f32.mrf.mxu0
      %v7793 = vadd.f32 0.0, %v7792
      %v7794 = vpop.f32.mrf.mxu0
      %v7795 = vpop.f32.mrf.mxu0
      %v7796 = vadd.f32 0.0, %v7795
      %v7797 = vpop.f32.mrf.mxu0
      %7798 = vmatprep.mubr.bf16.mxu0 0
      %7799 = vmatmul.mubr.bf16.gmra.mxu0 %v7682
      %v7800 = vpop.f32.mrf.mxu0
      %v7801 = vadd.f32 0.0, %v7800
      %v7802 = vpop.f32.mrf.mxu0
      %v7803 = vpop.f32.mrf.mxu0
      %v7804 = vadd.f32 0.0, %v7803
      %v7805 = vpop.f32.mrf.mxu0
      %7806 = vmatprep.mubr.bf16.mxu0 0
      %7807 = vmatmul.mubr.bf16.gmra.mxu0 %v7685
      %v7808 = vpop.f32.mrf.mxu0
      %v7809 = vadd.f32 0.0, %v7808
      %v7810 = vpop.f32.mrf.mxu0
      %v7811 = vpop.f32.mrf.mxu0
      %v7812 = vadd.f32 0.0, %v7811
      %v7813 = vpop.f32.mrf.mxu0
      %7814 = vmatprep.mubr.bf16.mxu0 0
      %7815 = vmatmul.mubr.bf16.gmra.mxu0 %v7688
      %v7816 = vpop.f32.mrf.mxu0
      %v7817 = vadd.f32 0.0, %v7816
      %v7818 = vpop.f32.mrf.mxu0
      %v7819 = vpop.f32.mrf.mxu0
      %v7820 = vadd.f32 0.0, %v7819
      %v7821 = vpop.f32.mrf.mxu0
      %7822 = vmatprep.mubr.bf16.mxu0 0
      %7823 = vmatmul.mubr.bf16.gmra.mxu0 %v7691
      %v7824 = vpop.f32.mrf.mxu0
      %v7825 = vadd.f32 0.0, %v7824
      %v7826 = vpop.f32.mrf.mxu0
      %v7827 = vpop.f32.mrf.mxu0
      %v7828 = vadd.f32 0.0, %v7827
      %v7829 = vpop.f32.mrf.mxu0
      %7830 = vmatprep.mubr.bf16.mxu0 0
      %7831 = vmatmul.mubr.bf16.gmra.mxu0 %v7694
      %v7832 = vpop.f32.mrf.mxu0
      %v7833 = vadd.f32 0.0, %v7832
      %v7834 = vpop.f32.mrf.mxu0
      %v7835 = vpop.f32.mrf.mxu0
      %v7836 = vadd.f32 0.0, %v7835
      %v7837 = vpop.f32.mrf.mxu0
      %7838 = vmatprep.mubr.bf16.mxu0 0
      %7839 = vmatmul.mubr.bf16.gmra.mxu0 %v7697
      %v7840 = vpop.f32.mrf.mxu0
      %v7841 = vadd.f32 0.0, %v7840
      %v7842 = vpop.f32.mrf.mxu0
      %v7843 = vpop.f32.mrf.mxu0
      %v7844 = vadd.f32 0.0, %v7843
      %v7845 = vpop.f32.mrf.mxu0
      %7846 = vdwg.mxu0
      %v7847 = vadd.f32 %v7558, %v7737
      %v7848 = vadd.f32 %v7559, %v7740
      %v7849 = vadd.f32 %v7560, %v7745
      %v7850 = vadd.f32 %v7561, %v7748
      %v7851 = vadd.f32 %v7562, %v7753
      %v7852 = vadd.f32 %v7563, %v7756
      %v7853 = vadd.f32 %v7564, %v7761
      %v7854 = vadd.f32 %v7565, %v7764
      %v7855 = vadd.f32 %v7566, %v7769
      %v7856 = vadd.f32 %v7567, %v7772
      %v7857 = vadd.f32 %v7568, %v7777
      %v7858 = vadd.f32 %v7569, %v7780
      %v7859 = vadd.f32 %v7570, %v7785
      %v7860 = vadd.f32 %v7571, %v7788
      %v7861 = vadd.f32 %v7572, %v7793
      %v7862 = vadd.f32 %v7573, %v7796
      %v7863 = vadd.f32 %v7574, %v7801
      %v7864 = vadd.f32 %v7575, %v7804
      %v7865 = vadd.f32 %v7576, %v7809
      %v7866 = vadd.f32 %v7577, %v7812
      %v7867 = vadd.f32 %v7578, %v7817
      %v7868 = vadd.f32 %v7579, %v7820
      %v7869 = vadd.f32 %v7580, %v7825
      %v7870 = vadd.f32 %v7581, %v7828
      %v7871 = vadd.f32 %v7582, %v7833
      %v7872 = vadd.f32 %v7583, %v7836
      %v7873 = vadd.f32 %v7584, %v7841
      %v7874 = vadd.f32 %v7585, %v7844
      %s7875 = scalar_lea.vmem [#allocation3], 48
      %v7876 = vld [vmem:[%s7875] sm:$0xff]
      %v7877 = vld [vmem:[%s7875 + $0x8] sm:$0xff]
      %v7878 = vld [vmem:[%s7875 + $0x18] sm:$0xff]
      %v7879 = vld [vmem:[%s7875 + $0x20] sm:$0xff]
      %v7880 = vld [vmem:[%s7875 + $0x30] sm:$0xff]
      %v7881 = vld [vmem:[%s7875 + $0x38] sm:$0xff]
      %v7882 = vld [vmem:[%s7875 + $0x48] sm:$0xff]
      %v7883 = vld [vmem:[%s7875 + $0x50] sm:$0xff]
      %v7884 = vld [vmem:[%s7875 + $0x60] sm:$0xff]
      %v7885 = vld [vmem:[%s7875 + $0x68] sm:$0xff]
      %v7886 = vld [vmem:[%s7875 + $0x78] sm:$0xff]
      %v7887 = vld [vmem:[%s7875 + $0x80] sm:$0xff]
      %v7888 = vld [vmem:[%s7875 + $0x90] sm:$0xff]
      %v7889 = vld [vmem:[%s7875 + $0x98] sm:$0xff]
      %v7890 = vld [vmem:[%s7875 + $0xa8] sm:$0xff]
      %v7891 = vld [vmem:[%s7875 + $0xb0] sm:$0xff]
      %v7892 = vld [vmem:[%s7875 + $0xc0] sm:$0xff]
      %v7893 = vld [vmem:[%s7875 + $0xc8] sm:$0xff]
      %v7894 = vld [vmem:[%s7875 + $0xd8] sm:$0xff]
      %v7895 = vld [vmem:[%s7875 + $0xe0] sm:$0xff]
      %v7896 = vld [vmem:[%s7875 + $0xf0] sm:$0xff]
      %v7897 = vld [vmem:[%s7875 + $0xf8] sm:$0xff]
      %v7898 = vld [vmem:[%s7875 + $0x108] sm:$0xff]
      %v7899 = vld [vmem:[%s7875 + $0x110] sm:$0xff]
      %v7900 = vld [vmem:[%s7875 + $0x120] sm:$0xff]
      %v7901 = vld [vmem:[%s7875 + $0x128] sm:$0xff]
      %v7902 = vld [vmem:[%s7875 + $0x138] sm:$0xff]
      %v7903 = vld [vmem:[%s7875 + $0x140] sm:$0xff]
      %v7904 = vpack.c.bf16 %v7877, %v7876
      %v7905 = vpack.c.bf16 %v7879, %v7878
      %v7906 = vpack.c.bf16 %v7881, %v7880
      %v7907 = vpack.c.bf16 %v7883, %v7882
      %v7908 = vpack.c.bf16 %v7885, %v7884
      %v7909 = vpack.c.bf16 %v7887, %v7886
      %v7910 = vpack.c.bf16 %v7889, %v7888
      %v7911 = vpack.c.bf16 %v7891, %v7890
      %v7912 = vpack.c.bf16 %v7893, %v7892
      %v7913 = vpack.c.bf16 %v7895, %v7894
      %v7914 = vpack.c.bf16 %v7897, %v7896
      %v7915 = vpack.c.bf16 %v7899, %v7898
      %v7916 = vpack.c.bf16 %v7901, %v7900
      %v7917 = vpack.c.bf16 %v7903, %v7902
      %s7918 = scalar_lea.vmem %s3, 168
      %v7919 = vld [vmem:[%s7918] sm:$0xf]
      %v7920 = vld [vmem:[%s7918 + $0x4] sm:$0xf]
      %v7921 = vld [vmem:[%s7918 + $0x8] sm:$0xf]
      %v7922 = vld [vmem:[%s7918 + $0xc] sm:$0xf]
      %v7923 = vld [vmem:[%s7918 + $0x10] sm:$0xf]
      %v7924 = vld [vmem:[%s7918 + $0x14] sm:$0xf]
      %v7925 = vld [vmem:[%s7918 + $0x18] sm:$0x1]
      %v7933 = vunpack.c.l.b16 %v7919
      %v7934 = vunpack.c.l.b16 %v7920
      %v7935 = vunpack.c.l.b16 %v7921
      %v7936 = vunpack.c.l.b16 %v7922
      %v7937 = vunpack.c.l.b16 %v7923
      %v7938 = vunpack.c.l.b16 %v7924
      %v7939 = vunpack.c.l.b16 %v7925
      %v7940 = vpack.c.b16 %v7934, %v7933
      %v7941 = vpack.c.b16 %v7936, %v7935
      %v7942 = vpack.c.b16 %v7938, %v7937
      %v7943 = vpack.c.b16 %v7939, %v7939
      %v7948 = vsel %vm5753, %v7904, 0
      %v7951 = vsel %vm5753, %v7905, 0
      %v7954 = vsel %vm5753, %v7906, 0
      %v7957 = vsel %vm5753, %v7907, 0
      %v7960 = vsel %vm5753, %v7908, 0
      %v7963 = vsel %vm5753, %v7909, 0
      %v7966 = vsel %vm5753, %v7910, 0
      %v7969 = vsel %vm5753, %v7911, 0
      %v7972 = vsel %vm5753, %v7912, 0
      %v7975 = vsel %vm5753, %v7913, 0
      %v7978 = vsel %vm5753, %v7914, 0
      %v7981 = vsel %vm5753, %v7915, 0
      %v7984 = vsel %vm5753, %v7916, 0
      %v7987 = vsel %vm5753, %v7917, 0
      %v7990 = vsel %vm6359, %v7943, 0
      %7992 = vmatprep.subr.bf16.mxu0 0
      %7993 = vmatpush1.bf16.msra.mxu0 0
      %7994 = vmatprep.subr.bf16.mxu0 0
      %7995 = vmatpush1.bf16.msra.mxu0 0
      %7996 = vmatprep.subr.bf16.mxu0 0
      %7997 = vmatpush1.bf16.msra.mxu0 0
      %7998 = vmatprep.subr.bf16.mxu0 0
      %7999 = vmatpush1.bf16.msra.mxu0 0
      %8000 = vmatprep.subr.bf16.mxu0 0
      %8001 = vmatpush1.bf16.msra.mxu0 %v7990
      %8002 = vmatprep.subr.bf16.mxu0 0
      %8003 = vmatpush1.bf16.msra.mxu0 %v7942
      %8004 = vmatprep.subr.bf16.mxu0 0
      %8005 = vmatpush1.bf16.msra.mxu0 %v7941
      %8006 = vmatprep.subr.bf16.mxu0 0
      %8007 = vmatpush1.bf16.msra.mxu0 %v7940
      %8008 = vmatprep.subr.bf16.mxu0 0
      %8009 = vmatpush2.bf16.msra.mxu0 0
      %8010 = vmatprep.subr.bf16.mxu0 0
      %8011 = vmatpush2.bf16.msra.mxu0 0
      %8012 = vmatprep.subr.bf16.mxu0 0
      %8013 = vmatpush2.bf16.msra.mxu0 0
      %8014 = vmatprep.subr.bf16.mxu0 0
      %8015 = vmatpush2.bf16.msra.mxu0 0
      %8016 = vmatprep.subr.bf16.mxu0 0
      %8017 = vmatpush2.bf16.msra.mxu0 0
      %8018 = vmatprep.subr.bf16.mxu0 0
      %8019 = vmatpush2.bf16.msra.mxu0 0
      %8020 = vmatprep.subr.bf16.mxu0 0
      %8021 = vmatpush2.bf16.msra.mxu0 0
      %8022 = vmatprep.subr.bf16.mxu0 0
      %8023 = vmatpush2.bf16.msra.mxu0 0
      %8024 = vmatprep.mubr.bf16.mxu0 0
      %8025 = vmatmul.mubr.bf16.gmra.mxu0 %v7948
      %v8026 = vpop.f32.mrf.mxu0
      %v8027 = vadd.f32 0.0, %v8026
      %v8028 = vpop.f32.mrf.mxu0
      %v8029 = vpop.f32.mrf.mxu0
      %v8030 = vadd.f32 0.0, %v8029
      %v8031 = vpop.f32.mrf.mxu0
      %8032 = vmatprep.mubr.bf16.mxu0 0
      %8033 = vmatmul.mubr.bf16.gmra.mxu0 %v7951
      %v8034 = vpop.f32.mrf.mxu0
      %v8035 = vadd.f32 0.0, %v8034
      %v8036 = vpop.f32.mrf.mxu0
      %v8037 = vpop.f32.mrf.mxu0
      %v8038 = vadd.f32 0.0, %v8037
      %v8039 = vpop.f32.mrf.mxu0
      %8040 = vmatprep.mubr.bf16.mxu0 0
      %8041 = vmatmul.mubr.bf16.gmra.mxu0 %v7954
      %v8042 = vpop.f32.mrf.mxu0
      %v8043 = vadd.f32 0.0, %v8042
      %v8044 = vpop.f32.mrf.mxu0
      %v8045 = vpop.f32.mrf.mxu0
      %v8046 = vadd.f32 0.0, %v8045
      %v8047 = vpop.f32.mrf.mxu0
      %8048 = vmatprep.mubr.bf16.mxu0 0
      %8049 = vmatmul.mubr.bf16.gmra.mxu0 %v7957
      %v8050 = vpop.f32.mrf.mxu0
      %v8051 = vadd.f32 0.0, %v8050
      %v8052 = vpop.f32.mrf.mxu0
      %v8053 = vpop.f32.mrf.mxu0
      %v8054 = vadd.f32 0.0, %v8053
      %v8055 = vpop.f32.mrf.mxu0
      %8056 = vmatprep.mubr.bf16.mxu0 0
      %8057 = vmatmul.mubr.bf16.gmra.mxu0 %v7960
      %v8058 = vpop.f32.mrf.mxu0
      %v8059 = vadd.f32 0.0, %v8058
      %v8060 = vpop.f32.mrf.mxu0
      %v8061 = vpop.f32.mrf.mxu0
      %v8062 = vadd.f32 0.0, %v8061
      %v8063 = vpop.f32.mrf.mxu0
      %8064 = vmatprep.mubr.bf16.mxu0 0
      %8065 = vmatmul.mubr.bf16.gmra.mxu0 %v7963
      %v8066 = vpop.f32.mrf.mxu0
      %v8067 = vadd.f32 0.0, %v8066
      %v8068 = vpop.f32.mrf.mxu0
      %v8069 = vpop.f32.mrf.mxu0
      %v8070 = vadd.f32 0.0, %v8069
      %v8071 = vpop.f32.mrf.mxu0
      %8072 = vmatprep.mubr.bf16.mxu0 0
      %8073 = vmatmul.mubr.bf16.gmra.mxu0 %v7966
      %v8074 = vpop.f32.mrf.mxu0
      %v8075 = vadd.f32 0.0, %v8074
      %v8076 = vpop.f32.mrf.mxu0
      %v8077 = vpop.f32.mrf.mxu0
      %v8078 = vadd.f32 0.0, %v8077
      %v8079 = vpop.f32.mrf.mxu0
      %8080 = vmatprep.mubr.bf16.mxu0 0
      %8081 = vmatmul.mubr.bf16.gmra.mxu0 %v7969
      %v8082 = vpop.f32.mrf.mxu0
      %v8083 = vadd.f32 0.0, %v8082
      %v8084 = vpop.f32.mrf.mxu0
      %v8085 = vpop.f32.mrf.mxu0
      %v8086 = vadd.f32 0.0, %v8085
      %v8087 = vpop.f32.mrf.mxu0
      %8088 = vmatprep.mubr.bf16.mxu0 0
      %8089 = vmatmul.mubr.bf16.gmra.mxu0 %v7972
      %v8090 = vpop.f32.mrf.mxu0
      %v8091 = vadd.f32 0.0, %v8090
      %v8092 = vpop.f32.mrf.mxu0
      %v8093 = vpop.f32.mrf.mxu0
      %v8094 = vadd.f32 0.0, %v8093
      %v8095 = vpop.f32.mrf.mxu0
      %8096 = vmatprep.mubr.bf16.mxu0 0
      %8097 = vmatmul.mubr.bf16.gmra.mxu0 %v7975
      %v8098 = vpop.f32.mrf.mxu0
      %v8099 = vadd.f32 0.0, %v8098
      %v8100 = vpop.f32.mrf.mxu0
      %v8101 = vpop.f32.mrf.mxu0
      %v8102 = vadd.f32 0.0, %v8101
      %v8103 = vpop.f32.mrf.mxu0
      %8104 = vmatprep.mubr.bf16.mxu0 0
      %8105 = vmatmul.mubr.bf16.gmra.mxu0 %v7978
      %v8106 = vpop.f32.mrf.mxu0
      %v8107 = vadd.f32 0.0, %v8106
      %v8108 = vpop.f32.mrf.mxu0
      %v8109 = vpop.f32.mrf.mxu0
      %v8110 = vadd.f32 0.0, %v8109
      %v8111 = vpop.f32.mrf.mxu0
      %8112 = vmatprep.mubr.bf16.mxu0 0
      %8113 = vmatmul.mubr.bf16.gmra.mxu0 %v7981
      %v8114 = vpop.f32.mrf.mxu0
      %v8115 = vadd.f32 0.0, %v8114
      %v8116 = vpop.f32.mrf.mxu0
      %v8117 = vpop.f32.mrf.mxu0
      %v8118 = vadd.f32 0.0, %v8117
      %v8119 = vpop.f32.mrf.mxu0
      %8120 = vmatprep.mubr.bf16.mxu0 0
      %8121 = vmatmul.mubr.bf16.gmra.mxu0 %v7984
      %v8122 = vpop.f32.mrf.mxu0
      %v8123 = vadd.f32 0.0, %v8122
      %v8124 = vpop.f32.mrf.mxu0
      %v8125 = vpop.f32.mrf.mxu0
      %v8126 = vadd.f32 0.0, %v8125
      %v8127 = vpop.f32.mrf.mxu0
      %8128 = vmatprep.mubr.bf16.mxu0 0
      %8129 = vmatmul.mubr.bf16.gmra.mxu0 %v7987
      %v8130 = vpop.f32.mrf.mxu0
      %v8131 = vadd.f32 0.0, %v8130
      %v8132 = vpop.f32.mrf.mxu0
      %v8133 = vpop.f32.mrf.mxu0
      %v8134 = vadd.f32 0.0, %v8133
      %v8135 = vpop.f32.mrf.mxu0
      %8136 = vdwg.mxu0
      %v8137 = vadd.f32 %v7847, %v8027
      %v8138 = vadd.f32 %v7848, %v8030
      %v8139 = vadd.f32 %v7849, %v8035
      %v8140 = vadd.f32 %v7850, %v8038
      %v8141 = vadd.f32 %v7851, %v8043
      %v8142 = vadd.f32 %v7852, %v8046
      %v8143 = vadd.f32 %v7853, %v8051
      %v8144 = vadd.f32 %v7854, %v8054
      %v8145 = vadd.f32 %v7855, %v8059
      %v8146 = vadd.f32 %v7856, %v8062
      %v8147 = vadd.f32 %v7857, %v8067
      %v8148 = vadd.f32 %v7858, %v8070
      %v8149 = vadd.f32 %v7859, %v8075
      %v8150 = vadd.f32 %v7860, %v8078
      %v8151 = vadd.f32 %v7861, %v8083
      %v8152 = vadd.f32 %v7862, %v8086
      %v8153 = vadd.f32 %v7863, %v8091
      %v8154 = vadd.f32 %v7864, %v8094
      %v8155 = vadd.f32 %v7865, %v8099
      %v8156 = vadd.f32 %v7866, %v8102
      %v8157 = vadd.f32 %v7867, %v8107
      %v8158 = vadd.f32 %v7868, %v8110
      %v8159 = vadd.f32 %v7869, %v8115
      %v8160 = vadd.f32 %v7870, %v8118
      %v8161 = vadd.f32 %v7871, %v8123
      %v8162 = vadd.f32 %v7872, %v8126
      %v8163 = vadd.f32 %v7873, %v8131
      %v8164 = vadd.f32 %v7874, %v8134
      %v8165 = vld [vmem:[%s7875 + $0x1] sm:$0xff]
      %v8166 = vld [vmem:[%s7875 + $0x9] sm:$0xff]
      %v8167 = vld [vmem:[%s7875 + $0x19] sm:$0xff]
      %v8168 = vld [vmem:[%s7875 + $0x21] sm:$0xff]
      %v8169 = vld [vmem:[%s7875 + $0x31] sm:$0xff]
      %v8170 = vld [vmem:[%s7875 + $0x39] sm:$0xff]
      %v8171 = vld [vmem:[%s7875 + $0x49] sm:$0xff]
      %v8172 = vld [vmem:[%s7875 + $0x51] sm:$0xff]
      %v8173 = vld [vmem:[%s7875 + $0x61] sm:$0xff]
      %v8174 = vld [vmem:[%s7875 + $0x69] sm:$0xff]
      %v8175 = vld [vmem:[%s7875 + $0x79] sm:$0xff]
      %v8176 = vld [vmem:[%s7875 + $0x81] sm:$0xff]
      %v8177 = vld [vmem:[%s7875 + $0x91] sm:$0xff]
      %v8178 = vld [vmem:[%s7875 + $0x99] sm:$0xff]
      %v8179 = vld [vmem:[%s7875 + $0xa9] sm:$0xff]
      %v8180 = vld [vmem:[%s7875 + $0xb1] sm:$0xff]
      %v8181 = vld [vmem:[%s7875 + $0xc1] sm:$0xff]
      %v8182 = vld [vmem:[%s7875 + $0xc9] sm:$0xff]
      %v8183 = vld [vmem:[%s7875 + $0xd9] sm:$0xff]
      %v8184 = vld [vmem:[%s7875 + $0xe1] sm:$0xff]
      %v8185 = vld [vmem:[%s7875 + $0xf1] sm:$0xff]
      %v8186 = vld [vmem:[%s7875 + $0xf9] sm:$0xff]
      %v8187 = vld [vmem:[%s7875 + $0x109] sm:$0xff]
      %v8188 = vld [vmem:[%s7875 + $0x111] sm:$0xff]
      %v8189 = vld [vmem:[%s7875 + $0x121] sm:$0xff]
      %v8190 = vld [vmem:[%s7875 + $0x129] sm:$0xff]
      %v8191 = vld [vmem:[%s7875 + $0x139] sm:$0xff]
      %v8192 = vld [vmem:[%s7875 + $0x141] sm:$0xff]
      %v8193 = vpack.c.bf16 %v8166, %v8165
      %v8194 = vpack.c.bf16 %v8168, %v8167
      %v8195 = vpack.c.bf16 %v8170, %v8169
      %v8196 = vpack.c.bf16 %v8172, %v8171
      %v8197 = vpack.c.bf16 %v8174, %v8173
      %v8198 = vpack.c.bf16 %v8176, %v8175
      %v8199 = vpack.c.bf16 %v8178, %v8177
      %v8200 = vpack.c.bf16 %v8180, %v8179
      %v8201 = vpack.c.bf16 %v8182, %v8181
      %v8202 = vpack.c.bf16 %v8184, %v8183
      %v8203 = vpack.c.bf16 %v8186, %v8185
      %v8204 = vpack.c.bf16 %v8188, %v8187
      %v8205 = vpack.c.bf16 %v8190, %v8189
      %v8206 = vpack.c.bf16 %v8192, %v8191
      %s8207 = scalar_lea.vmem %s3, 196
      %v8208 = vld [vmem:[%s8207] sm:$0xf]
      %v8209 = vld [vmem:[%s8207 + $0x4] sm:$0xf]
      %v8210 = vld [vmem:[%s8207 + $0x8] sm:$0xf]
      %v8211 = vld [vmem:[%s8207 + $0xc] sm:$0xf]
      %v8212 = vld [vmem:[%s8207 + $0x10] sm:$0xf]
      %v8213 = vld [vmem:[%s8207 + $0x14] sm:$0xf]
      %v8214 = vld [vmem:[%s8207 + $0x18] sm:$0x1]
      %v8222 = vunpack.c.l.b16 %v8208
      %v8223 = vunpack.c.l.b16 %v8209
      %v8224 = vunpack.c.l.b16 %v8210
      %v8225 = vunpack.c.l.b16 %v8211
      %v8226 = vunpack.c.l.b16 %v8212
      %v8227 = vunpack.c.l.b16 %v8213
      %v8228 = vunpack.c.l.b16 %v8214
      %v8229 = vpack.c.b16 %v8223, %v8222
      %v8230 = vpack.c.b16 %v8225, %v8224
      %v8231 = vpack.c.b16 %v8227, %v8226
      %v8232 = vpack.c.b16 %v8228, %v8228
      %v8237 = vsel %vm5753, %v8193, 0
      %v8240 = vsel %vm5753, %v8194, 0
      %v8243 = vsel %vm5753, %v8195, 0
      %v8246 = vsel %vm5753, %v8196, 0
      %v8249 = vsel %vm5753, %v8197, 0
      %v8252 = vsel %vm5753, %v8198, 0
      %v8255 = vsel %vm5753, %v8199, 0
      %v8258 = vsel %vm5753, %v8200, 0
      %v8261 = vsel %vm5753, %v8201, 0
      %v8264 = vsel %vm5753, %v8202, 0
      %v8267 = vsel %vm5753, %v8203, 0
      %v8270 = vsel %vm5753, %v8204, 0
      %v8273 = vsel %vm5753, %v8205, 0
      %v8276 = vsel %vm5753, %v8206, 0
      %v8279 = vsel %vm6359, %v8232, 0
      %8281 = vmatprep.subr.bf16.mxu0 0
      %8282 = vmatpush1.bf16.msra.mxu0 0
      %8283 = vmatprep.subr.bf16.mxu0 0
      %8284 = vmatpush1.bf16.msra.mxu0 0
      %8285 = vmatprep.subr.bf16.mxu0 0
      %8286 = vmatpush1.bf16.msra.mxu0 0
      %8287 = vmatprep.subr.bf16.mxu0 0
      %8288 = vmatpush1.bf16.msra.mxu0 0
      %8289 = vmatprep.subr.bf16.mxu0 0
      %8290 = vmatpush1.bf16.msra.mxu0 %v8279
      %8291 = vmatprep.subr.bf16.mxu0 0
      %8292 = vmatpush1.bf16.msra.mxu0 %v8231
      %8293 = vmatprep.subr.bf16.mxu0 0
      %8294 = vmatpush1.bf16.msra.mxu0 %v8230
      %8295 = vmatprep.subr.bf16.mxu0 0
      %8296 = vmatpush1.bf16.msra.mxu0 %v8229
      %8297 = vmatprep.subr.bf16.mxu0 0
      %8298 = vmatpush2.bf16.msra.mxu0 0
      %8299 = vmatprep.subr.bf16.mxu0 0
      %8300 = vmatpush2.bf16.msra.mxu0 0
      %8301 = vmatprep.subr.bf16.mxu0 0
      %8302 = vmatpush2.bf16.msra.mxu0 0
      %8303 = vmatprep.subr.bf16.mxu0 0
      %8304 = vmatpush2.bf16.msra.mxu0 0
      %8305 = vmatprep.subr.bf16.mxu0 0
      %8306 = vmatpush2.bf16.msra.mxu0 0
      %8307 = vmatprep.subr.bf16.mxu0 0
      %8308 = vmatpush2.bf16.msra.mxu0 0
      %8309 = vmatprep.subr.bf16.mxu0 0
      %8310 = vmatpush2.bf16.msra.mxu0 0
      %8311 = vmatprep.subr.bf16.mxu0 0
      %8312 = vmatpush2.bf16.msra.mxu0 0
      %8313 = vmatprep.mubr.bf16.mxu0 0
      %8314 = vmatmul.mubr.bf16.gmra.mxu0 %v8237
      %v8315 = vpop.f32.mrf.mxu0
      %v8316 = vadd.f32 0.0, %v8315
      %v8317 = vpop.f32.mrf.mxu0
      %v8318 = vpop.f32.mrf.mxu0
      %v8319 = vadd.f32 0.0, %v8318
      %v8320 = vpop.f32.mrf.mxu0
      %8321 = vmatprep.mubr.bf16.mxu0 0
      %8322 = vmatmul.mubr.bf16.gmra.mxu0 %v8240
      %v8323 = vpop.f32.mrf.mxu0
      %v8324 = vadd.f32 0.0, %v8323
      %v8325 = vpop.f32.mrf.mxu0
      %v8326 = vpop.f32.mrf.mxu0
      %v8327 = vadd.f32 0.0, %v8326
      %v8328 = vpop.f32.mrf.mxu0
      %8329 = vmatprep.mubr.bf16.mxu0 0
      %8330 = vmatmul.mubr.bf16.gmra.mxu0 %v8243
      %v8331 = vpop.f32.mrf.mxu0
      %v8332 = vadd.f32 0.0, %v8331
      %v8333 = vpop.f32.mrf.mxu0
      %v8334 = vpop.f32.mrf.mxu0
      %v8335 = vadd.f32 0.0, %v8334
      %v8336 = vpop.f32.mrf.mxu0
      %8337 = vmatprep.mubr.bf16.mxu0 0
      %8338 = vmatmul.mubr.bf16.gmra.mxu0 %v8246
      %v8339 = vpop.f32.mrf.mxu0
      %v8340 = vadd.f32 0.0, %v8339
      %v8341 = vpop.f32.mrf.mxu0
      %v8342 = vpop.f32.mrf.mxu0
      %v8343 = vadd.f32 0.0, %v8342
      %v8344 = vpop.f32.mrf.mxu0
      %8345 = vmatprep.mubr.bf16.mxu0 0
      %8346 = vmatmul.mubr.bf16.gmra.mxu0 %v8249
      %v8347 = vpop.f32.mrf.mxu0
      %v8348 = vadd.f32 0.0, %v8347
      %v8349 = vpop.f32.mrf.mxu0
      %v8350 = vpop.f32.mrf.mxu0
      %v8351 = vadd.f32 0.0, %v8350
      %v8352 = vpop.f32.mrf.mxu0
      %8353 = vmatprep.mubr.bf16.mxu0 0
      %8354 = vmatmul.mubr.bf16.gmra.mxu0 %v8252
      %v8355 = vpop.f32.mrf.mxu0
      %v8356 = vadd.f32 0.0, %v8355
      %v8357 = vpop.f32.mrf.mxu0
      %v8358 = vpop.f32.mrf.mxu0
      %v8359 = vadd.f32 0.0, %v8358
      %v8360 = vpop.f32.mrf.mxu0
      %8361 = vmatprep.mubr.bf16.mxu0 0
      %8362 = vmatmul.mubr.bf16.gmra.mxu0 %v8255
      %v8363 = vpop.f32.mrf.mxu0
      %v8364 = vadd.f32 0.0, %v8363
      %v8365 = vpop.f32.mrf.mxu0
      %v8366 = vpop.f32.mrf.mxu0
      %v8367 = vadd.f32 0.0, %v8366
      %v8368 = vpop.f32.mrf.mxu0
      %8369 = vmatprep.mubr.bf16.mxu0 0
      %8370 = vmatmul.mubr.bf16.gmra.mxu0 %v8258
      %v8371 = vpop.f32.mrf.mxu0
      %v8372 = vadd.f32 0.0, %v8371
      %v8373 = vpop.f32.mrf.mxu0
      %v8374 = vpop.f32.mrf.mxu0
      %v8375 = vadd.f32 0.0, %v8374
      %v8376 = vpop.f32.mrf.mxu0
      %8377 = vmatprep.mubr.bf16.mxu0 0
      %8378 = vmatmul.mubr.bf16.gmra.mxu0 %v8261
      %v8379 = vpop.f32.mrf.mxu0
      %v8380 = vadd.f32 0.0, %v8379
      %v8381 = vpop.f32.mrf.mxu0
      %v8382 = vpop.f32.mrf.mxu0
      %v8383 = vadd.f32 0.0, %v8382
      %v8384 = vpop.f32.mrf.mxu0
      %8385 = vmatprep.mubr.bf16.mxu0 0
      %8386 = vmatmul.mubr.bf16.gmra.mxu0 %v8264
      %v8387 = vpop.f32.mrf.mxu0
      %v8388 = vadd.f32 0.0, %v8387
      %v8389 = vpop.f32.mrf.mxu0
      %v8390 = vpop.f32.mrf.mxu0
      %v8391 = vadd.f32 0.0, %v8390
      %v8392 = vpop.f32.mrf.mxu0
      %8393 = vmatprep.mubr.bf16.mxu0 0
      %8394 = vmatmul.mubr.bf16.gmra.mxu0 %v8267
      %v8395 = vpop.f32.mrf.mxu0
      %v8396 = vadd.f32 0.0, %v8395
      %v8397 = vpop.f32.mrf.mxu0
      %v8398 = vpop.f32.mrf.mxu0
      %v8399 = vadd.f32 0.0, %v8398
      %v8400 = vpop.f32.mrf.mxu0
      %8401 = vmatprep.mubr.bf16.mxu0 0
      %8402 = vmatmul.mubr.bf16.gmra.mxu0 %v8270
      %v8403 = vpop.f32.mrf.mxu0
      %v8404 = vadd.f32 0.0, %v8403
      %v8405 = vpop.f32.mrf.mxu0
      %v8406 = vpop.f32.mrf.mxu0
      %v8407 = vadd.f32 0.0, %v8406
      %v8408 = vpop.f32.mrf.mxu0
      %8409 = vmatprep.mubr.bf16.mxu0 0
      %8410 = vmatmul.mubr.bf16.gmra.mxu0 %v8273
      %v8411 = vpop.f32.mrf.mxu0
      %v8412 = vadd.f32 0.0, %v8411
      %v8413 = vpop.f32.mrf.mxu0
      %v8414 = vpop.f32.mrf.mxu0
      %v8415 = vadd.f32 0.0, %v8414
      %v8416 = vpop.f32.mrf.mxu0
      %8417 = vmatprep.mubr.bf16.mxu0 0
      %8418 = vmatmul.mubr.bf16.gmra.mxu0 %v8276
      %v8419 = vpop.f32.mrf.mxu0
      %v8420 = vadd.f32 0.0, %v8419
      %v8421 = vpop.f32.mrf.mxu0
      %v8422 = vpop.f32.mrf.mxu0
      %v8423 = vadd.f32 0.0, %v8422
      %v8424 = vpop.f32.mrf.mxu0
      %8425 = vdwg.mxu0
      %v8426 = vadd.f32 %v8137, %v8316
      %v8427 = vadd.f32 %v8138, %v8319
      %v8428 = vadd.f32 %v8139, %v8324
      %v8429 = vadd.f32 %v8140, %v8327
      %v8430 = vadd.f32 %v8141, %v8332
      %v8431 = vadd.f32 %v8142, %v8335
      %v8432 = vadd.f32 %v8143, %v8340
      %v8433 = vadd.f32 %v8144, %v8343
      %v8434 = vadd.f32 %v8145, %v8348
      %v8435 = vadd.f32 %v8146, %v8351
      %v8436 = vadd.f32 %v8147, %v8356
      %v8437 = vadd.f32 %v8148, %v8359
      %v8438 = vadd.f32 %v8149, %v8364
      %v8439 = vadd.f32 %v8150, %v8367
      %v8440 = vadd.f32 %v8151, %v8372
      %v8441 = vadd.f32 %v8152, %v8375
      %v8442 = vadd.f32 %v8153, %v8380
      %v8443 = vadd.f32 %v8154, %v8383
      %v8444 = vadd.f32 %v8155, %v8388
      %v8445 = vadd.f32 %v8156, %v8391
      %v8446 = vadd.f32 %v8157, %v8396
      %v8447 = vadd.f32 %v8158, %v8399
      %v8448 = vadd.f32 %v8159, %v8404
      %v8449 = vadd.f32 %v8160, %v8407
      %v8450 = vadd.f32 %v8161, %v8412
      %v8451 = vadd.f32 %v8162, %v8415
      %v8452 = vadd.f32 %v8163, %v8420
      %v8453 = vadd.f32 %v8164, %v8423
      %v8454 = vld [vmem:[%s7875 + $0x2] sm:$0xff]
      %v8455 = vld [vmem:[%s7875 + $0xa] sm:$0xff]
      %v8456 = vld [vmem:[%s7875 + $0x1a] sm:$0xff]
      %v8457 = vld [vmem:[%s7875 + $0x22] sm:$0xff]
      %v8458 = vld [vmem:[%s7875 + $0x32] sm:$0xff]
      %v8459 = vld [vmem:[%s7875 + $0x3a] sm:$0xff]
      %v8460 = vld [vmem:[%s7875 + $0x4a] sm:$0xff]
      %v8461 = vld [vmem:[%s7875 + $0x52] sm:$0xff]
      %v8462 = vld [vmem:[%s7875 + $0x62] sm:$0xff]
      %v8463 = vld [vmem:[%s7875 + $0x6a] sm:$0xff]
      %v8464 = vld [vmem:[%s7875 + $0x7a] sm:$0xff]
      %v8465 = vld [vmem:[%s7875 + $0x82] sm:$0xff]
      %v8466 = vld [vmem:[%s7875 + $0x92] sm:$0xff]
      %v8467 = vld [vmem:[%s7875 + $0x9a] sm:$0xff]
      %v8468 = vld [vmem:[%s7875 + $0xaa] sm:$0xff]
      %v8469 = vld [vmem:[%s7875 + $0xb2] sm:$0xff]
      %v8470 = vld [vmem:[%s7875 + $0xc2] sm:$0xff]
      %v8471 = vld [vmem:[%s7875 + $0xca] sm:$0xff]
      %v8472 = vld [vmem:[%s7875 + $0xda] sm:$0xff]
      %v8473 = vld [vmem:[%s7875 + $0xe2] sm:$0xff]
      %v8474 = vld [vmem:[%s7875 + $0xf2] sm:$0xff]
      %v8475 = vld [vmem:[%s7875 + $0xfa] sm:$0xff]
      %v8476 = vld [vmem:[%s7875 + $0x10a] sm:$0xff]
      %v8477 = vld [vmem:[%s7875 + $0x112] sm:$0xff]
      %v8478 = vld [vmem:[%s7875 + $0x122] sm:$0xff]
      %v8479 = vld [vmem:[%s7875 + $0x12a] sm:$0xff]
      %v8480 = vld [vmem:[%s7875 + $0x13a] sm:$0xff]
      %v8481 = vld [vmem:[%s7875 + $0x142] sm:$0xff]
      %v8482 = vpack.c.bf16 %v8455, %v8454
      %v8483 = vpack.c.bf16 %v8457, %v8456
      %v8484 = vpack.c.bf16 %v8459, %v8458
      %v8485 = vpack.c.bf16 %v8461, %v8460
      %v8486 = vpack.c.bf16 %v8463, %v8462
      %v8487 = vpack.c.bf16 %v8465, %v8464
      %v8488 = vpack.c.bf16 %v8467, %v8466
      %v8489 = vpack.c.bf16 %v8469, %v8468
      %v8490 = vpack.c.bf16 %v8471, %v8470
      %v8491 = vpack.c.bf16 %v8473, %v8472
      %v8492 = vpack.c.bf16 %v8475, %v8474
      %v8493 = vpack.c.bf16 %v8477, %v8476
      %v8494 = vpack.c.bf16 %v8479, %v8478
      %v8495 = vpack.c.bf16 %v8481, %v8480
      %s8496 = scalar_lea.vmem %s3, 224
      %v8497 = vld [vmem:[%s8496] sm:$0xf]
      %v8498 = vld [vmem:[%s8496 + $0x4] sm:$0xf]
      %v8499 = vld [vmem:[%s8496 + $0x8] sm:$0xf]
      %v8500 = vld [vmem:[%s8496 + $0xc] sm:$0xf]
      %v8501 = vld [vmem:[%s8496 + $0x10] sm:$0xf]
      %v8502 = vld [vmem:[%s8496 + $0x14] sm:$0xf]
      %v8503 = vld [vmem:[%s8496 + $0x18] sm:$0x1]
      %v8511 = vunpack.c.l.b16 %v8497
      %v8512 = vunpack.c.l.b16 %v8498
      %v8513 = vunpack.c.l.b16 %v8499
      %v8514 = vunpack.c.l.b16 %v8500
      %v8515 = vunpack.c.l.b16 %v8501
      %v8516 = vunpack.c.l.b16 %v8502
      %v8517 = vunpack.c.l.b16 %v8503
      %v8518 = vpack.c.b16 %v8512, %v8511
      %v8519 = vpack.c.b16 %v8514, %v8513
      %v8520 = vpack.c.b16 %v8516, %v8515
      %v8521 = vpack.c.b16 %v8517, %v8517
      %v8526 = vsel %vm5753, %v8482, 0
      %v8529 = vsel %vm5753, %v8483, 0
      %v8532 = vsel %vm5753, %v8484, 0
      %v8535 = vsel %vm5753, %v8485, 0
      %v8538 = vsel %vm5753, %v8486, 0
      %v8541 = vsel %vm5753, %v8487, 0
      %v8544 = vsel %vm5753, %v8488, 0
      %v8547 = vsel %vm5753, %v8489, 0
      %v8550 = vsel %vm5753, %v8490, 0
      %v8553 = vsel %vm5753, %v8491, 0
      %v8556 = vsel %vm5753, %v8492, 0
      %v8559 = vsel %vm5753, %v8493, 0
      %v8562 = vsel %vm5753, %v8494, 0
      %v8565 = vsel %vm5753, %v8495, 0
      %v8568 = vsel %vm6359, %v8521, 0
      %8570 = vmatprep.subr.bf16.mxu0 0
      %8571 = vmatpush1.bf16.msra.mxu0 0
      %8572 = vmatprep.subr.bf16.mxu0 0
      %8573 = vmatpush1.bf16.msra.mxu0 0
      %8574 = vmatprep.subr.bf16.mxu0 0
      %8575 = vmatpush1.bf16.msra.mxu0 0
      %8576 = vmatprep.subr.bf16.mxu0 0
      %8577 = vmatpush1.bf16.msra.mxu0 0
      %8578 = vmatprep.subr.bf16.mxu0 0
      %8579 = vmatpush1.bf16.msra.mxu0 %v8568
      %8580 = vmatprep.subr.bf16.mxu0 0
      %8581 = vmatpush1.bf16.msra.mxu0 %v8520
      %8582 = vmatprep.subr.bf16.mxu0 0
      %8583 = vmatpush1.bf16.msra.mxu0 %v8519
      %8584 = vmatprep.subr.bf16.mxu0 0
      %8585 = vmatpush1.bf16.msra.mxu0 %v8518
      %8586 = vmatprep.subr.bf16.mxu0 0
      %8587 = vmatpush2.bf16.msra.mxu0 0
      %8588 = vmatprep.subr.bf16.mxu0 0
      %8589 = vmatpush2.bf16.msra.mxu0 0
      %8590 = vmatprep.subr.bf16.mxu0 0
      %8591 = vmatpush2.bf16.msra.mxu0 0
      %8592 = vmatprep.subr.bf16.mxu0 0
      %8593 = vmatpush2.bf16.msra.mxu0 0
      %8594 = vmatprep.subr.bf16.mxu0 0
      %8595 = vmatpush2.bf16.msra.mxu0 0
      %8596 = vmatprep.subr.bf16.mxu0 0
      %8597 = vmatpush2.bf16.msra.mxu0 0
      %8598 = vmatprep.subr.bf16.mxu0 0
      %8599 = vmatpush2.bf16.msra.mxu0 0
      %8600 = vmatprep.subr.bf16.mxu0 0
      %8601 = vmatpush2.bf16.msra.mxu0 0
      %8602 = vmatprep.mubr.bf16.mxu0 0
      %8603 = vmatmul.mubr.bf16.gmra.mxu0 %v8526
      %v8604 = vpop.f32.mrf.mxu0
      %v8605 = vadd.f32 0.0, %v8604
      %v8606 = vpop.f32.mrf.mxu0
      %v8607 = vpop.f32.mrf.mxu0
      %v8608 = vadd.f32 0.0, %v8607
      %v8609 = vpop.f32.mrf.mxu0
      %8610 = vmatprep.mubr.bf16.mxu0 0
      %8611 = vmatmul.mubr.bf16.gmra.mxu0 %v8529
      %v8612 = vpop.f32.mrf.mxu0
      %v8613 = vadd.f32 0.0, %v8612
      %v8614 = vpop.f32.mrf.mxu0
      %v8615 = vpop.f32.mrf.mxu0
      %v8616 = vadd.f32 0.0, %v8615
      %v8617 = vpop.f32.mrf.mxu0
      %8618 = vmatprep.mubr.bf16.mxu0 0
      %8619 = vmatmul.mubr.bf16.gmra.mxu0 %v8532
      %v8620 = vpop.f32.mrf.mxu0
      %v8621 = vadd.f32 0.0, %v8620
      %v8622 = vpop.f32.mrf.mxu0
      %v8623 = vpop.f32.mrf.mxu0
      %v8624 = vadd.f32 0.0, %v8623
      %v8625 = vpop.f32.mrf.mxu0
      %8626 = vmatprep.mubr.bf16.mxu0 0
      %8627 = vmatmul.mubr.bf16.gmra.mxu0 %v8535
      %v8628 = vpop.f32.mrf.mxu0
      %v8629 = vadd.f32 0.0, %v8628
      %v8630 = vpop.f32.mrf.mxu0
      %v8631 = vpop.f32.mrf.mxu0
      %v8632 = vadd.f32 0.0, %v8631
      %v8633 = vpop.f32.mrf.mxu0
      %8634 = vmatprep.mubr.bf16.mxu0 0
      %8635 = vmatmul.mubr.bf16.gmra.mxu0 %v8538
      %v8636 = vpop.f32.mrf.mxu0
      %v8637 = vadd.f32 0.0, %v8636
      %v8638 = vpop.f32.mrf.mxu0
      %v8639 = vpop.f32.mrf.mxu0
      %v8640 = vadd.f32 0.0, %v8639
      %v8641 = vpop.f32.mrf.mxu0
      %8642 = vmatprep.mubr.bf16.mxu0 0
      %8643 = vmatmul.mubr.bf16.gmra.mxu0 %v8541
      %v8644 = vpop.f32.mrf.mxu0
      %v8645 = vadd.f32 0.0, %v8644
      %v8646 = vpop.f32.mrf.mxu0
      %v8647 = vpop.f32.mrf.mxu0
      %v8648 = vadd.f32 0.0, %v8647
      %v8649 = vpop.f32.mrf.mxu0
      %8650 = vmatprep.mubr.bf16.mxu0 0
      %8651 = vmatmul.mubr.bf16.gmra.mxu0 %v8544
      %v8652 = vpop.f32.mrf.mxu0
      %v8653 = vadd.f32 0.0, %v8652
      %v8654 = vpop.f32.mrf.mxu0
      %v8655 = vpop.f32.mrf.mxu0
      %v8656 = vadd.f32 0.0, %v8655
      %v8657 = vpop.f32.mrf.mxu0
      %8658 = vmatprep.mubr.bf16.mxu0 0
      %8659 = vmatmul.mubr.bf16.gmra.mxu0 %v8547
      %v8660 = vpop.f32.mrf.mxu0
      %v8661 = vadd.f32 0.0, %v8660
      %v8662 = vpop.f32.mrf.mxu0
      %v8663 = vpop.f32.mrf.mxu0
      %v8664 = vadd.f32 0.0, %v8663
      %v8665 = vpop.f32.mrf.mxu0
      %8666 = vmatprep.mubr.bf16.mxu0 0
      %8667 = vmatmul.mubr.bf16.gmra.mxu0 %v8550
      %v8668 = vpop.f32.mrf.mxu0
      %v8669 = vadd.f32 0.0, %v8668
      %v8670 = vpop.f32.mrf.mxu0
      %v8671 = vpop.f32.mrf.mxu0
      %v8672 = vadd.f32 0.0, %v8671
      %v8673 = vpop.f32.mrf.mxu0
      %8674 = vmatprep.mubr.bf16.mxu0 0
      %8675 = vmatmul.mubr.bf16.gmra.mxu0 %v8553
      %v8676 = vpop.f32.mrf.mxu0
      %v8677 = vadd.f32 0.0, %v8676
      %v8678 = vpop.f32.mrf.mxu0
      %v8679 = vpop.f32.mrf.mxu0
      %v8680 = vadd.f32 0.0, %v8679
      %v8681 = vpop.f32.mrf.mxu0
      %8682 = vmatprep.mubr.bf16.mxu0 0
      %8683 = vmatmul.mubr.bf16.gmra.mxu0 %v8556
      %v8684 = vpop.f32.mrf.mxu0
      %v8685 = vadd.f32 0.0, %v8684
      %v8686 = vpop.f32.mrf.mxu0
      %v8687 = vpop.f32.mrf.mxu0
      %v8688 = vadd.f32 0.0, %v8687
      %v8689 = vpop.f32.mrf.mxu0
      %8690 = vmatprep.mubr.bf16.mxu0 0
      %8691 = vmatmul.mubr.bf16.gmra.mxu0 %v8559
      %v8692 = vpop.f32.mrf.mxu0
      %v8693 = vadd.f32 0.0, %v8692
      %v8694 = vpop.f32.mrf.mxu0
      %v8695 = vpop.f32.mrf.mxu0
      %v8696 = vadd.f32 0.0, %v8695
      %v8697 = vpop.f32.mrf.mxu0
      %8698 = vmatprep.mubr.bf16.mxu0 0
      %8699 = vmatmul.mubr.bf16.gmra.mxu0 %v8562
      %v8700 = vpop.f32.mrf.mxu0
      %v8701 = vadd.f32 0.0, %v8700
      %v8702 = vpop.f32.mrf.mxu0
      %v8703 = vpop.f32.mrf.mxu0
      %v8704 = vadd.f32 0.0, %v8703
      %v8705 = vpop.f32.mrf.mxu0
      %8706 = vmatprep.mubr.bf16.mxu0 0
      %8707 = vmatmul.mubr.bf16.gmra.mxu0 %v8565
      %v8708 = vpop.f32.mrf.mxu0
      %v8709 = vadd.f32 0.0, %v8708
      %v8710 = vpop.f32.mrf.mxu0
      %v8711 = vpop.f32.mrf.mxu0
      %v8712 = vadd.f32 0.0, %v8711
      %v8713 = vpop.f32.mrf.mxu0
      %8714 = vdwg.mxu0
      %v8715 = vadd.f32 %v8426, %v8605
      %v8716 = vadd.f32 %v8427, %v8608
      %v8717 = vadd.f32 %v8428, %v8613
      %v8718 = vadd.f32 %v8429, %v8616
      %v8719 = vadd.f32 %v8430, %v8621
      %v8720 = vadd.f32 %v8431, %v8624
      %v8721 = vadd.f32 %v8432, %v8629
      %v8722 = vadd.f32 %v8433, %v8632
      %v8723 = vadd.f32 %v8434, %v8637
      %v8724 = vadd.f32 %v8435, %v8640
      %v8725 = vadd.f32 %v8436, %v8645
      %v8726 = vadd.f32 %v8437, %v8648
      %v8727 = vadd.f32 %v8438, %v8653
      %v8728 = vadd.f32 %v8439, %v8656
      %v8729 = vadd.f32 %v8440, %v8661
      %v8730 = vadd.f32 %v8441, %v8664
      %v8731 = vadd.f32 %v8442, %v8669
      %v8732 = vadd.f32 %v8443, %v8672
      %v8733 = vadd.f32 %v8444, %v8677
      %v8734 = vadd.f32 %v8445, %v8680
      %v8735 = vadd.f32 %v8446, %v8685
      %v8736 = vadd.f32 %v8447, %v8688
      %v8737 = vadd.f32 %v8448, %v8693
      %v8738 = vadd.f32 %v8449, %v8696
      %v8739 = vadd.f32 %v8450, %v8701
      %v8740 = vadd.f32 %v8451, %v8704
      %v8741 = vadd.f32 %v8452, %v8709
      %v8742 = vadd.f32 %v8453, %v8712
      %v8743 = vld [vmem:[%s4] sm:$0x1]
      %v8745 = vlaneseq
      %v8746 = vshrl.u32 %v8745, 7
      %v8747 = vsub.s32 0, %v8746
      %v8748 = vrot.slane %v8743, %v8747
      %v8750 = vadd.f32 %v8715, %v8748
      %v8751 = vadd.f32 %v8716, %v8748
      %v8752 = vadd.f32 %v8717, %v8748
      %v8753 = vadd.f32 %v8718, %v8748
      %v8754 = vadd.f32 %v8719, %v8748
      %v8755 = vadd.f32 %v8720, %v8748
      %v8756 = vadd.f32 %v8721, %v8748
      %v8757 = vadd.f32 %v8722, %v8748
      %v8758 = vadd.f32 %v8723, %v8748
      %v8759 = vadd.f32 %v8724, %v8748
      %v8760 = vadd.f32 %v8725, %v8748
      %v8761 = vadd.f32 %v8726, %v8748
      %v8762 = vadd.f32 %v8727, %v8748
      %v8763 = vadd.f32 %v8728, %v8748
      %v8764 = vadd.f32 %v8729, %v8748
      %v8765 = vadd.f32 %v8730, %v8748
      %v8766 = vadd.f32 %v8731, %v8748
      %v8767 = vadd.f32 %v8732, %v8748
      %v8768 = vadd.f32 %v8733, %v8748
      %v8769 = vadd.f32 %v8734, %v8748
      %v8770 = vadd.f32 %v8735, %v8748
      %v8771 = vadd.f32 %v8736, %v8748
      %v8772 = vadd.f32 %v8737, %v8748
      %v8773 = vadd.f32 %v8738, %v8748
      %v8774 = vadd.f32 %v8739, %v8748
      %v8775 = vadd.f32 %v8740, %v8748
      %v8776 = vadd.f32 %v8741, %v8748
      %v8777 = vadd.f32 %v8742, %v8748
      %v8778 = vmax.f32 %v8750, 0.0
      %v8779 = vmax.f32 %v8751, 0.0
      %v8780 = vmax.f32 %v8752, 0.0
      %v8781 = vmax.f32 %v8753, 0.0
      %v8782 = vmax.f32 %v8754, 0.0
      %v8783 = vmax.f32 %v8755, 0.0
      %v8784 = vmax.f32 %v8756, 0.0
      %v8785 = vmax.f32 %v8757, 0.0
      %v8786 = vmax.f32 %v8758, 0.0
      %v8787 = vmax.f32 %v8759, 0.0
      %v8788 = vmax.f32 %v8760, 0.0
      %v8789 = vmax.f32 %v8761, 0.0
      %v8790 = vmax.f32 %v8762, 0.0
      %v8791 = vmax.f32 %v8763, 0.0
      %v8792 = vmax.f32 %v8764, 0.0
      %v8793 = vmax.f32 %v8765, 0.0
      %v8794 = vmax.f32 %v8766, 0.0
      %v8795 = vmax.f32 %v8767, 0.0
      %v8796 = vmax.f32 %v8768, 0.0
      %v8797 = vmax.f32 %v8769, 0.0
      %v8798 = vmax.f32 %v8770, 0.0
      %v8799 = vmax.f32 %v8771, 0.0
      %v8800 = vmax.f32 %v8772, 0.0
      %v8801 = vmax.f32 %v8773, 0.0
      %v8802 = vmax.f32 %v8774, 0.0
      %v8803 = vmax.f32 %v8775, 0.0
      %v8804 = vmax.f32 %v8776, 0.0
      %v8805 = vmax.f32 %v8777, 0.0
      %vm8806 = vcmask 162816
      %v8807 = vsel %vm8806, %v8778, -inf
      %v8808 = vsel %vm8806, %v8780, -inf
      %v8809 = vmax.f32 %v8807, %v8808
      %v8810 = vsel %vm8806, %v8779, -inf
      %v8811 = vsel %vm8806, %v8781, -inf
      %v8812 = vmax.f32 %v8810, %v8811
      %v8813 = vsel %vm8806, %v8782, -inf
      %v8814 = vsel %vm8806, %v8784, -inf
      %v8815 = vmax.f32 %v8813, %v8814
      %v8816 = vsel %vm8806, %v8783, -inf
      %v8817 = vsel %vm8806, %v8785, -inf
      %v8818 = vmax.f32 %v8816, %v8817
      %v8819 = vsel %vm8806, %v8786, -inf
      %v8820 = vsel %vm8806, %v8788, -inf
      %v8821 = vmax.f32 %v8819, %v8820
      %v8822 = vsel %vm8806, %v8787, -inf
      %v8823 = vsel %vm8806, %v8789, -inf
      %v8824 = vmax.f32 %v8822, %v8823
      %v8825 = vsel %vm8806, %v8790, -inf
      %v8826 = vsel %vm8806, %v8792, -inf
      %v8827 = vmax.f32 %v8825, %v8826
      %v8828 = vsel %vm8806, %v8791, -inf
      %v8829 = vsel %vm8806, %v8793, -inf
      %v8830 = vmax.f32 %v8828, %v8829
      %v8831 = vsel %vm8806, %v8794, -inf
      %v8832 = vsel %vm8806, %v8796, -inf
      %v8833 = vmax.f32 %v8831, %v8832
      %v8834 = vsel %vm8806, %v8795, -inf
      %v8835 = vsel %vm8806, %v8797, -inf
      %v8836 = vmax.f32 %v8834, %v8835
      %v8837 = vsel %vm8806, %v8798, -inf
      %v8838 = vsel %vm8806, %v8800, -inf
      %v8839 = vmax.f32 %v8837, %v8838
      %v8840 = vsel %vm8806, %v8799, -inf
      %v8841 = vsel %vm8806, %v8801, -inf
      %v8842 = vmax.f32 %v8840, %v8841
      %v8843 = vsel %vm8806, %v8802, -inf
      %v8844 = vsel %vm8806, %v8804, -inf
      %v8845 = vmax.f32 %v8843, %v8844
      %v8846 = vsel %vm8806, %v8803, -inf
      %v8847 = vsel %vm8806, %v8805, -inf
      %v8848 = vmax.f32 %v8846, %v8847
      %8849 = vst.msk [vmem:[#allocation4] sm:$0xff] %vm8806, %v8809
      %8850 = vst.msk [vmem:[#allocation4 + $0x8] sm:$0xff] %vm8806, %v8812
      %8851 = vst.msk [vmem:[#allocation4 + $0x10] sm:$0xff] %vm8806, %v8815
      %8852 = vst.msk [vmem:[#allocation4 + $0x18] sm:$0xff] %vm8806, %v8818
      %8853 = vst.msk [vmem:[#allocation4 + $0x20] sm:$0xff] %vm8806, %v8821
      %8854 = vst.msk [vmem:[#allocation4 + $0x28] sm:$0xff] %vm8806, %v8824
      %8855 = vst.msk [vmem:[#allocation4 + $0x30] sm:$0xff] %vm8806, %v8827
      %8856 = vst.msk [vmem:[#allocation4 + $0x38] sm:$0xff] %vm8806, %v8830
      %8857 = vst.msk [vmem:[#allocation4 + $0x40] sm:$0xff] %vm8806, %v8833
      %8858 = vst.msk [vmem:[#allocation4 + $0x48] sm:$0xff] %vm8806, %v8836
      %8859 = vst.msk [vmem:[#allocation4 + $0x50] sm:$0xff] %vm8806, %v8839
      %8860 = vst.msk [vmem:[#allocation4 + $0x58] sm:$0xff] %vm8806, %v8842
      %8861 = vst.msk [vmem:[#allocation4 + $0x60] sm:$0xff] %vm8806, %v8845
      %8862 = vst.msk [vmem:[#allocation4 + $0x68] sm:$0xff] %vm8806, %v8848
      %v8863 = vld [vmem:[#allocation4] ss:$2 sm:$0xff]
      %s8864 = scalar_lea.vmem [#allocation4], 16
      %v8865 = vld [vmem:[%s8864] ss:$2 sm:$0xff]
      %s8866 = scalar_lea.vmem [#allocation4], 32
      %v8867 = vld [vmem:[%s8866] ss:$2 sm:$0xff]
      %s8868 = scalar_lea.vmem [#allocation4], 48
      %v8869 = vld [vmem:[%s8868] ss:$2 sm:$0xff]
      %s8870 = scalar_lea.vmem [#allocation4], 64
      %v8871 = vld [vmem:[%s8870] ss:$2 sm:$0xff]
      %s8872 = scalar_lea.vmem [#allocation4], 80
      %v8873 = vld [vmem:[%s8872] ss:$2 sm:$0xff]
      %s8874 = scalar_lea.vmem [#allocation4], 96
      %v8875 = vld [vmem:[%s8874] ss:$2 sm:$0xff]
      %s8876 = scalar_lea.vmem [#allocation4], 1
      %v8877 = vld [vmem:[%s8876] ss:$2 sm:$0xff]
      %s8878 = scalar_lea.vmem [#allocation4], 17
      %v8879 = vld [vmem:[%s8878] ss:$2 sm:$0xff]
      %s8880 = scalar_lea.vmem [#allocation4], 33
      %v8881 = vld [vmem:[%s8880] ss:$2 sm:$0xff]
      %s8882 = scalar_lea.vmem [#allocation4], 49
      %v8883 = vld [vmem:[%s8882] ss:$2 sm:$0xff]
      %s8884 = scalar_lea.vmem [#allocation4], 65
      %v8885 = vld [vmem:[%s8884] ss:$2 sm:$0xff]
      %s8886 = scalar_lea.vmem [#allocation4], 81
      %v8887 = vld [vmem:[%s8886] ss:$2 sm:$0xff]
      %s8888 = scalar_lea.vmem [#allocation4], 97
      %v8889 = vld [vmem:[%s8888] ss:$2 sm:$0xff]
      %v8890 = vmax.f32 %v8863, %v8877
      %v8891 = vmax.f32 %v8865, %v8879
      %v8892 = vmax.f32 %v8867, %v8881
      %v8893 = vmax.f32 %v8869, %v8883
      %v8894 = vmax.f32 %v8871, %v8885
      %v8895 = vmax.f32 %v8873, %v8887
      %v8896 = vmax.f32 %v8875, %v8889
      %vm8897 = vcmask 161792
      %8898 = vst.msk [vmem:[%s224] sm:$0x7f] %vm8897, %v8890
      %8899 = vst.msk [vmem:[%s224 + $0x8] sm:$0x7f] %vm8897, %v8891
      %8900 = vst.msk [vmem:[%s224 + $0x10] sm:$0x7f] %vm8897, %v8892
      %8901 = vst.msk [vmem:[%s224 + $0x18] sm:$0x7f] %vm8897, %v8893
      %8902 = vst.msk [vmem:[%s224 + $0x20] sm:$0x7f] %vm8897, %v8894
      %8903 = vst.msk [vmem:[%s224 + $0x28] sm:$0x7f] %vm8897, %v8895
      %8904 = vst.msk [vmem:[%s224 + $0x30] sm:$0x7f] %vm8897, %v8896
      %p8905 = scmp.lt.s32.totalorder %s16, 1
      %s8906 = scalar_select %p8905, %s16, 1
      %s8907 = smul.addr %s8906, 7
      %s8908 = smul.addr %s8907, 8
      %s8909 = scalar_lea.vmem %s5, %s8908
      // Predicated region
      $region41: #{cnn_forward.2} parent=39 // pred_check
        %p8910 = pneg %p144
      $region42: #{cnn_forward.2} parent=39 // pred_check_branch
        %8912 = sbr.rel (%p8910) target = $region44
      $region43: #{cnn_forward.2} parent=39 // pred_region
        _
      $region44: #{cnn_forward.2} parent=39 // pred_fallthru
        _
    $region40: #{cnn_forward.2} parent=5 // pred_fallthru
      _
    %p8913 = scmp.le.s32.totalorder 2, %s11
    // Predicated region
    $region45: #{cnn_forward.2} parent=5 // pred_check
      %p8914 = pneg %p8913
    $region46: #{cnn_forward.2} parent=5 // pred_check_branch
      %8916 = sbr.rel (%p8914) target = $region48
    $region47: #{cnn_forward.2} parent=5 // pred_region
      %s8917 = ssub.s32 %s11, 2
      // Predicated region
      $region49: #{cnn_forward.2} parent=47 // pred_check
        %p8918 = pneg %p150
      $region50: #{cnn_forward.2} parent=47 // pred_check_branch
        %8920 = sbr.rel (%p8918) target = $region52
      $region51: #{cnn_forward.2} parent=47 // pred_region
        %p8921 = scmp.lt.s32.totalorder %s17, 1
        %s8922 = scalar_select %p8921, %s17, 1
        %s8923 = smul.addr %s8922, 7
        %s8924 = smul.addr %s8923, 8
        %s8925 = scalar_lea.vmem %s5, %s8924
      $region52: #{cnn_forward.2} parent=47 // pred_fallthru
        _
    $region48: #{cnn_forward.2} parent=5 // pred_fallthru
      _
  $region6: #{cnn_forward.2} parent=0 // loop_footer
    %s15 = sadd.s32 1, %s11
  $region7: #{cnn_forward.2} parent=0 // loop_footer_branch
    %10 = sbr.rel target = $region3
  $region8: #{cnn_forward.2} parent=0 // loop_exit
    _

</llo_original>
